<compile_context>
chip_gen: v6e
topology: v6e:2x2x1
jax: 0.10.0
libtpu: 0.0.40
codegen_flags: <defaults>
</compile_context>

<pallas_src>
import functools

import jax
import jax.numpy as jnp
from jax import lax
from jax.experimental import pallas as pl
from jax.experimental.pallas import tpu as pltpu

# ---- model geometry (fixed by the PyTorch module defaults) -------------------
SEQ = 30            # sequence_length       -> W axis after the torch reshape
FEAT = 14           # FD_feature_columns    -> H axis after the torch reshape
K_BIG, PAD_BIG = 10, 5
K_SML, PAD_SML = 3, 1
CONV_SPECS = [      # (C_in, C_out, K, pad) for conv1..conv5
    (1, 10, K_BIG, PAD_BIG),
    (10, 10, K_BIG, PAD_BIG),
    (10, 10, K_BIG, PAD_BIG),
    (10, 10, K_BIG, PAD_BIG),
    (10, 1, K_SML, PAD_SML),
]
H_FINAL = FEAT + 4 * (2 * PAD_BIG - K_BIG + 1) + (2 * PAD_SML - K_SML + 1)   # 18
FLAT = 1 * H_FINAL * SEQ             # 540 == Linear(in_features)
D1, D2 = 100, 1
D1_PAD = 128                         # lane-padded Dense1 width
OUT_PAD = 128                        # lane-dense output width (col 0 is real)
EPS = 1e-5                           # BatchNorm eps
TILE_B = 16                          # batch elements per grid step (480 rows)


def _cnn_rul_kernel(x_ref,
                    t1, b1, t2, b2, t3, b3, t4, b4, t5, b5,
                    u_ref, bd1_ref, w2_ref, bd2_ref,
                    o_ref, *, tile_b):
    # x_ref: (SEQ*tile_b, FEAT); row r = w*tile_b + b (column-major inside tile).
    h = x_ref[...]
    # conv1..conv5: one MXU matmul per layer against the BN-folded Toeplitz
    # weight, plus a per-feature bias row, then tanh (EUP).
    h = jnp.tanh(jnp.dot(h, t1[...], preferred_element_type=jnp.float32) + b1[...])
    h = jnp.tanh(jnp.dot(h, t2[...], preferred_element_type=jnp.float32) + b2[...])
    h = jnp.tanh(jnp.dot(h, t3[...], preferred_element_type=jnp.float32) + b3[...])
    h = jnp.tanh(jnp.dot(h, t4[...], preferred_element_type=jnp.float32) + b4[...])
    h = jnp.tanh(jnp.dot(h, t5[...], preferred_element_type=jnp.float32) + b5[...])
    # h: (SEQ*tile_b, H_FINAL) -- conv5 output, one length-18 column per row.

    # Dense1 (540 -> 100, lane-padded to 128): contract over (column w, height)
    # by accumulating one small matmul per image column.  Rows of column w are
    # the contiguous (sublane-aligned) block [w*tile_b, (w+1)*tile_b).
    u_all = u_ref[...]                                   # (SEQ, H_FINAL, D1_PAD)
    acc = jnp.broadcast_to(bd1_ref[...], (tile_b, D1_PAD))
    for w in range(SEQ):
        acc = acc + jnp.dot(h[w * tile_b:(w + 1) * tile_b, :], u_all[w],
                            preferred_element_type=jnp.float32)
    d1 = jnp.tanh(acc)

    # Dense2 (100 -> 1), zero-padded to a lane-dense (tile_b, 128) store.
    o_ref[...] = (jnp.dot(d1, w2_ref[...], preferred_element_type=jnp.float32)
                  + bd2_ref[...])


def _toeplitz_1d(w, h_in, h_out, pad):
    """Banded matrix T with (x @ T) == width-1 Conv2d(pad(x)).

    w: (C_out, C_in, K).  Returns (C_in*h_in, C_out*h_out) with
    T[ci*h_in + hi, co*h_out + ho] = w[co, ci, hi - ho + pad] (0 outside band).
    """
    c_out, c_in, k = w.shape
    hi = jnp.arange(h_in)[:, None]
    ho = jnp.arange(h_out)[None, :]
    kk = hi - ho + pad
    valid = ((kk >= 0) & (kk < k)).astype(w.dtype)
    band = w[:, :, jnp.clip(kk, 0, k - 1)] * valid[None, None]   # (co, ci, hi, ho)
    return jnp.transpose(band, (1, 2, 0, 3)).reshape(c_in * h_in, c_out * h_out)


def _prepare_weights(params):
    """Fold conv bias + BatchNorm (inference) into Toeplitz matmul weights."""
    convs, (wd1, bd1), (wd2, bd2) = params
    tops = []
    h_in = FEAT
    for (cw, cb, g, be, mu, var), (_, _, k, pad) in zip(convs, CONV_SPECS):
        h_out = h_in + 2 * pad - k + 1
        s = g / jnp.sqrt(var + EPS)                      # BN scale (per channel)
        t = be - mu * s                                  # BN shift
        T = _toeplitz_1d(cw[:, :, :, 0], h_in, h_out, pad)
        tops.append((T * jnp.repeat(s, h_out)[None, :],
                     jnp.repeat(s * cb + t, h_out)[None, :]))
        h_in = h_out
    # Dense1: PyTorch flat index is h*SEQ + w  ->  U[w, h, o] = wd1[o, h*SEQ + w]
    U = jnp.transpose(wd1.T.reshape(H_FINAL, SEQ, D1), (1, 0, 2))
    U = jnp.pad(U, ((0, 0), (0, 0), (0, D1_PAD - D1)))
    bd1p = jnp.pad(bd1, (0, D1_PAD - D1)).reshape(1, D1_PAD)
    # Dense2, padded to a lane-dense 128-wide output (only column 0 is real).
    W2p = jnp.zeros((D1_PAD, OUT_PAD), jnp.float32).at[:D1, 0].set(wd2[0])
    bd2p = jnp.zeros((1, OUT_PAD), jnp.float32).at[0, 0].set(bd2[0])
    return tops, U, bd1p, W2p, bd2p


def cnn_rul_forward(x, params, tile_b=TILE_B):
    """x: (B, 30, 14) float32 -> (B, 1) float32 (== CNN_RUL.forward)."""
    B = x.shape[0]
    tops, U, bd1p, W2p, bd2p = _prepare_weights(params)

    # torch: x.reshape(-1, 1, 14, 30).  Per image column w the signal is the
    # length-14 vector x_img[:, :, w].  Kernel rows are (batch, column) pairs,
    # ordered column-major inside each batch tile: row = w*tile_b + b.
    x_img = x.reshape(B, FEAT, SEQ)                      # raw reshape, like torch
    xc = jnp.transpose(x_img, (0, 2, 1))                 # (B, SEQ, FEAT) = [b, w, h]
    nt = pl.cdiv(B, tile_b)
    b_pad = nt * tile_b
    xc = jnp.pad(xc, ((0, b_pad - B), (0, 0), (0, 0)))
    rows_per_tile = SEQ * tile_b
    x_rows = (xc.reshape(nt, tile_b, SEQ, FEAT)
                .transpose(0, 2, 1, 3)
                .reshape(nt * rows_per_tile, FEAT))

    weight_args, weight_specs = [], []
    for (T, bf) in tops:                                 # VMEM-resident weights
        weight_args += [T, bf]
        weight_specs += [pl.BlockSpec(T.shape, lambda i: (0, 0)),
                         pl.BlockSpec(bf.shape, lambda i: (0, 0))]

    conv_madds = sum(T.shape[0] * T.shape[1] for (T, _) in tops)
    flops = (2 * b_pad * SEQ * conv_madds
             + 2 * b_pad * (SEQ * H_FINAL * D1_PAD + D1_PAD * OUT_PAD))
    trans = b_pad * SEQ * sum(T.shape[1] for (T, _) in tops) + b_pad * D1_PAD
    wbytes = 4 * (sum(T.size + bf.size for (T, bf) in tops)
                  + U.size + bd1p.size + W2p.size + bd2p.size)
    bytes_accessed = 4 * (x_rows.size + b_pad * OUT_PAD) + wbytes

    out = pl.pallas_call(
        functools.partial(_cnn_rul_kernel, tile_b=tile_b),
        out_shape=jax.ShapeDtypeStruct((b_pad, OUT_PAD), jnp.float32),
        grid=(nt,),
        in_specs=([pl.BlockSpec((rows_per_tile, FEAT), lambda i: (i, 0))]
                  + weight_specs
                  + [pl.BlockSpec(U.shape, lambda i: (0, 0, 0)),
                     pl.BlockSpec(bd1p.shape, lambda i: (0, 0)),
                     pl.BlockSpec(W2p.shape, lambda i: (0, 0)),
                     pl.BlockSpec(bd2p.shape, lambda i: (0, 0))]),
        out_specs=pl.BlockSpec((tile_b, OUT_PAD), lambda i: (i, 0)),
        compiler_params=pltpu.CompilerParams(
            dimension_semantics=("parallel",)),          # v7x: both TensorCores
        cost_estimate=pl.CostEstimate(flops=flops, transcendentals=trans,
                                      bytes_accessed=bytes_accessed),
    )(x_rows, *weight_args, U, bd1p, W2p, bd2p)

    return out[:B, :D2]                                  # (B, 1)


def make_params(key):
    """Deterministic synthetic Conv/BN/Linear parameters (inference mode)."""
    keys = jax.random.split(key, 6 * len(CONV_SPECS) + 4)
    it = iter(keys)
    convs = []
    for (c_in, c_out, k, _) in CONV_SPECS:
        std = (2.0 / (c_in * k + c_out * k)) ** 0.5      # xavier-normal-ish
        cw = std * jax.random.normal(next(it), (c_out, c_in, k, 1), jnp.float32)
        cb = 0.05 * jax.random.normal(next(it), (c_out,), jnp.float32)
        g = 1.0 + 0.1 * jax.random.normal(next(it), (c_out,), jnp.float32)
        be = 0.1 * jax.random.normal(next(it), (c_out,), jnp.float32)
        mu = 0.05 * jax.random.normal(next(it), (c_out,), jnp.float32)
        var = 0.5 + jax.random.uniform(next(it), (c_out,), jnp.float32)
        convs.append((cw, cb, g, be, mu, var))
    std1 = (2.0 / (FLAT + D1)) ** 0.5
    wd1 = std1 * jax.random.normal(next(it), (D1, FLAT), jnp.float32)
    bd1 = 0.05 * jax.random.normal(next(it), (D1,), jnp.float32)
    std2 = (2.0 / (D1 + D2)) ** 0.5
    wd2 = std2 * jax.random.normal(next(it), (D2, D1), jnp.float32)
    bd2 = 0.05 * jax.random.normal(next(it), (D2,), jnp.float32)
    return convs, (wd1, bd1), (wd2, bd2)


def reference_forward(x, params):
    """Pure-JAX (lax.conv) reference for correctness checking."""
    convs, (wd1, bd1), (wd2, bd2) = params
    B = x.shape[0]
    h = x.reshape(B, 1, FEAT, SEQ)                       # == torch reshape
    for (cw, cb, g, be, mu, var), (_, _, k, pad) in zip(convs, CONV_SPECS):
        h = lax.conv_general_dilated(h, cw, (1, 1), [(pad, pad), (0, 0)],
                                     dimension_numbers=('NCHW', 'OIHW', 'NCHW'),
                                     precision=lax.Precision.HIGHEST)
        h = h + cb[None, :, None, None]
        s = g / jnp.sqrt(var + EPS)
        t = be - mu * s
        h = jnp.tanh(h * s[None, :, None, None] + t[None, :, None, None])
    flat = h.reshape(B, -1)                              # (B, 540); dropout output discarded
    d1 = jnp.tanh(jnp.dot(flat, wd1.T, precision=lax.Precision.HIGHEST) + bd1)
    return jnp.dot(d1, wd2.T, precision=lax.Precision.HIGHEST) + bd2


if __name__ == "__main__":
    key = jax.random.PRNGKey(0)
    kx, kp = jax.random.split(key)
    params = make_params(kp)
    batch = 4
    # x: (batch, sequence_length=30, FD_feature_columns=14)
    x = jax.random.normal(kx, (batch, SEQ, FEAT), jnp.float32)

    forward = jax.jit(lambda xx: cnn_rul_forward(xx, params))
    out = jax.block_until_ready(forward(x))

    ref = jax.block_until_ready(reference_forward(x, params))
    assert out.shape == (batch, 1), out.shape
    err = float(jnp.max(jnp.abs(out - ref)))
    assert err < 1e-2, f"max abs err {err}"
    print("KERNEL_OK")
</pallas_src>

<mosaic_0001>
module attributes {stable_mosaic.version = 11 : i64} {
  func.func @_cnn_rul_kernel(%arg0: i32, %arg1: memref<480x14xf32, #tpu.memory_space<vmem>>, %arg2: memref<14x150xf32, #tpu.memory_space<vmem>>, %arg3: memref<1x150xf32, #tpu.memory_space<vmem>>, %arg4: memref<150x160xf32, #tpu.memory_space<vmem>>, %arg5: memref<1x160xf32, #tpu.memory_space<vmem>>, %arg6: memref<160x170xf32, #tpu.memory_space<vmem>>, %arg7: memref<1x170xf32, #tpu.memory_space<vmem>>, %arg8: memref<170x180xf32, #tpu.memory_space<vmem>>, %arg9: memref<1x180xf32, #tpu.memory_space<vmem>>, %arg10: memref<180x18xf32, #tpu.memory_space<vmem>>, %arg11: memref<1x18xf32, #tpu.memory_space<vmem>>, %arg12: memref<30x18x128xf32, #tpu.memory_space<vmem>>, %arg13: memref<1x128xf32, #tpu.memory_space<vmem>>, %arg14: memref<128x128xf32, #tpu.memory_space<vmem>>, %arg15: memref<1x128xf32, #tpu.memory_space<vmem>>, %arg16: memref<16x128xf32, #tpu.memory_space<vmem>>) attributes {dimension_semantics = [#tpu.dimension_semantics<parallel>], iteration_bounds = array<i64: 1>, scalar_prefetch = 0 : i64, scratch_operands = 0 : i64, tpu.core_type = #tpu.core_type<tc>, window_params = [{transform_indices = @transform_0, window_bounds = array<i64: 480, 14>}, {pipeline_mode = #tpu.pipeline_mode<synchronous>, transform_indices = @transform_1, window_bounds = array<i64: 14, 150>}, {pipeline_mode = #tpu.pipeline_mode<synchronous>, transform_indices = @transform_2, window_bounds = array<i64: 1, 150>}, {pipeline_mode = #tpu.pipeline_mode<synchronous>, transform_indices = @transform_3, window_bounds = array<i64: 150, 160>}, {pipeline_mode = #tpu.pipeline_mode<synchronous>, transform_indices = @transform_4, window_bounds = array<i64: 1, 160>}, {pipeline_mode = #tpu.pipeline_mode<synchronous>, transform_indices = @transform_5, window_bounds = array<i64: 160, 170>}, {pipeline_mode = #tpu.pipeline_mode<synchronous>, transform_indices = @transform_6, window_bounds = array<i64: 1, 170>}, {pipeline_mode = #tpu.pipeline_mode<synchronous>, transform_indices = @transform_7, window_bounds = array<i64: 170, 180>}, {pipeline_mode = #tpu.pipeline_mode<synchronous>, transform_indices = @transform_8, window_bounds = array<i64: 1, 180>}, {pipeline_mode = #tpu.pipeline_mode<synchronous>, transform_indices = @transform_9, window_bounds = array<i64: 180, 18>}, {pipeline_mode = #tpu.pipeline_mode<synchronous>, transform_indices = @transform_10, window_bounds = array<i64: 1, 18>}, {pipeline_mode = #tpu.pipeline_mode<synchronous>, transform_indices = @transform_11, window_bounds = array<i64: 30, 18, 128>}, {pipeline_mode = #tpu.pipeline_mode<synchronous>, transform_indices = @transform_12, window_bounds = array<i64: 1, 128>}, {pipeline_mode = #tpu.pipeline_mode<synchronous>, transform_indices = @transform_13, window_bounds = array<i64: 128, 128>}, {pipeline_mode = #tpu.pipeline_mode<synchronous>, transform_indices = @transform_14, window_bounds = array<i64: 1, 128>}, {transform_indices = @transform_15, window_bounds = array<i64: 16, 128>}]} {
    %c0 = arith.constant 0 : index
    %c0_0 = arith.constant 0 : index
    %0 = vector.load %arg1[%c0, %c0_0] : memref<480x14xf32, #tpu.memory_space<vmem>>, vector<480x14xf32>
    %c0_1 = arith.constant 0 : index
    %c0_2 = arith.constant 0 : index
    %1 = vector.load %arg2[%c0_1, %c0_2] : memref<14x150xf32, #tpu.memory_space<vmem>>, vector<14x150xf32>
    %cst = arith.constant dense<0.000000e+00> : vector<480x150xf32>
    %2 = tpu.matmul %0, %1, %cst {dimension_numbers = #tpu.dot_dimension_numbers<[1], [0], [0], [1], [0, 0, 1, 1], [], []>} : vector<480x14xf32>, vector<14x150xf32>, vector<480x150xf32> -> vector<480x150xf32>
    %c0_3 = arith.constant 0 : index
    %c0_4 = arith.constant 0 : index
    %3 = vector.load %arg3[%c0_3, %c0_4] : memref<1x150xf32, #tpu.memory_space<vmem>>, vector<1x150xf32>
    %4 = vector.broadcast %3 : vector<1x150xf32> to vector<480x150xf32>
    %5 = arith.addf %2, %4 : vector<480x150xf32>
    %6 = math.tanh %5 : vector<480x150xf32>
    %c0_5 = arith.constant 0 : index
    %c0_6 = arith.constant 0 : index
    %7 = vector.load %arg4[%c0_5, %c0_6] : memref<150x160xf32, #tpu.memory_space<vmem>>, vector<150x160xf32>
    %cst_7 = arith.constant dense<0.000000e+00> : vector<480x160xf32>
    %8 = tpu.matmul %6, %7, %cst_7 {dimension_numbers = #tpu.dot_dimension_numbers<[1], [0], [0], [1], [0, 0, 1, 1], [], []>} : vector<480x150xf32>, vector<150x160xf32>, vector<480x160xf32> -> vector<480x160xf32>
    %c0_8 = arith.constant 0 : index
    %c0_9 = arith.constant 0 : index
    %9 = vector.load %arg5[%c0_8, %c0_9] : memref<1x160xf32, #tpu.memory_space<vmem>>, vector<1x160xf32>
    %10 = vector.broadcast %9 : vector<1x160xf32> to vector<480x160xf32>
    %11 = arith.addf %8, %10 : vector<480x160xf32>
    %12 = math.tanh %11 : vector<480x160xf32>
    %c0_10 = arith.constant 0 : index
    %c0_11 = arith.constant 0 : index
    %13 = vector.load %arg6[%c0_10, %c0_11] : memref<160x170xf32, #tpu.memory_space<vmem>>, vector<160x170xf32>
    %cst_12 = arith.constant dense<0.000000e+00> : vector<480x170xf32>
    %14 = tpu.matmul %12, %13, %cst_12 {dimension_numbers = #tpu.dot_dimension_numbers<[1], [0], [0], [1], [0, 0, 1, 1], [], []>} : vector<480x160xf32>, vector<160x170xf32>, vector<480x170xf32> -> vector<480x170xf32>
    %c0_13 = arith.constant 0 : index
    %c0_14 = arith.constant 0 : index
    %15 = vector.load %arg7[%c0_13, %c0_14] : memref<1x170xf32, #tpu.memory_space<vmem>>, vector<1x170xf32>
    %16 = vector.broadcast %15 : vector<1x170xf32> to vector<480x170xf32>
    %17 = arith.addf %14, %16 : vector<480x170xf32>
    %18 = math.tanh %17 : vector<480x170xf32>
    %c0_15 = arith.constant 0 : index
    %c0_16 = arith.constant 0 : index
    %19 = vector.load %arg8[%c0_15, %c0_16] : memref<170x180xf32, #tpu.memory_space<vmem>>, vector<170x180xf32>
    %cst_17 = arith.constant dense<0.000000e+00> : vector<480x180xf32>
    %20 = tpu.matmul %18, %19, %cst_17 {dimension_numbers = #tpu.dot_dimension_numbers<[1], [0], [0], [1], [0, 0, 1, 1], [], []>} : vector<480x170xf32>, vector<170x180xf32>, vector<480x180xf32> -> vector<480x180xf32>
    %c0_18 = arith.constant 0 : index
    %c0_19 = arith.constant 0 : index
    %21 = vector.load %arg9[%c0_18, %c0_19] : memref<1x180xf32, #tpu.memory_space<vmem>>, vector<1x180xf32>
    %22 = vector.broadcast %21 : vector<1x180xf32> to vector<480x180xf32>
    %23 = arith.addf %20, %22 : vector<480x180xf32>
    %24 = math.tanh %23 : vector<480x180xf32>
    %c0_20 = arith.constant 0 : index
    %c0_21 = arith.constant 0 : index
    %25 = vector.load %arg10[%c0_20, %c0_21] : memref<180x18xf32, #tpu.memory_space<vmem>>, vector<180x18xf32>
    %cst_22 = arith.constant dense<0.000000e+00> : vector<480x18xf32>
    %26 = tpu.matmul %24, %25, %cst_22 {dimension_numbers = #tpu.dot_dimension_numbers<[1], [0], [0], [1], [0, 0, 1, 1], [], []>} : vector<480x180xf32>, vector<180x18xf32>, vector<480x18xf32> -> vector<480x18xf32>
    %c0_23 = arith.constant 0 : index
    %c0_24 = arith.constant 0 : index
    %27 = vector.load %arg11[%c0_23, %c0_24] : memref<1x18xf32, #tpu.memory_space<vmem>>, vector<1x18xf32>
    %28 = vector.broadcast %27 : vector<1x18xf32> to vector<480x18xf32>
    %29 = arith.addf %26, %28 : vector<480x18xf32>
    %30 = math.tanh %29 : vector<480x18xf32>
    %c0_25 = arith.constant 0 : index
    %c0_26 = arith.constant 0 : index
    %c0_27 = arith.constant 0 : index
    %31 = vector.load %arg12[%c0_25, %c0_26, %c0_27] : memref<30x18x128xf32, #tpu.memory_space<vmem>>, vector<30x18x128xf32>
    %c0_28 = arith.constant 0 : index
    %c0_29 = arith.constant 0 : index
    %32 = vector.load %arg13[%c0_28, %c0_29] : memref<1x128xf32, #tpu.memory_space<vmem>>, vector<1x128xf32>
    %33 = vector.shape_cast %32 : vector<1x128xf32> to vector<1x128xf32>
    %34 = vector.broadcast %33 : vector<1x128xf32> to vector<16x128xf32>
    %35 = vector.extract_strided_slice %30 {offsets = [0, 0], sizes = [16, 18], strides = [1, 1]} : vector<480x18xf32> to vector<16x18xf32>
    %36 = vector.extract_strided_slice %31 {offsets = [0, 0, 0], sizes = [1, 18, 128], strides = [1, 1, 1]} : vector<30x18x128xf32> to vector<1x18x128xf32>
    %37 = vector.shape_cast %36 : vector<1x18x128xf32> to vector<18x128xf32>
    %cst_30 = arith.constant dense<0.000000e+00> : vector<16x128xf32>
    %38 = tpu.matmul %35, %37, %cst_30 {dimension_numbers = #tpu.dot_dimension_numbers<[1], [0], [0], [1], [0, 0, 1, 1], [], []>} : vector<16x18xf32>, vector<18x128xf32>, vector<16x128xf32> -> vector<16x128xf32>
    %39 = arith.addf %34, %38 : vector<16x128xf32>
    %40 = vector.extract_strided_slice %30 {offsets = [16, 0], sizes = [16, 18], strides = [1, 1]} : vector<480x18xf32> to vector<16x18xf32>
    %41 = vector.extract_strided_slice %31 {offsets = [1, 0, 0], sizes = [1, 18, 128], strides = [1, 1, 1]} : vector<30x18x128xf32> to vector<1x18x128xf32>
    %42 = vector.shape_cast %41 : vector<1x18x128xf32> to vector<18x128xf32>
    %cst_31 = arith.constant dense<0.000000e+00> : vector<16x128xf32>
    %43 = tpu.matmul %40, %42, %cst_31 {dimension_numbers = #tpu.dot_dimension_numbers<[1], [0], [0], [1], [0, 0, 1, 1], [], []>} : vector<16x18xf32>, vector<18x128xf32>, vector<16x128xf32> -> vector<16x128xf32>
    %44 = arith.addf %39, %43 : vector<16x128xf32>
    %45 = vector.extract_strided_slice %30 {offsets = [32, 0], sizes = [16, 18], strides = [1, 1]} : vector<480x18xf32> to vector<16x18xf32>
    %46 = vector.extract_strided_slice %31 {offsets = [2, 0, 0], sizes = [1, 18, 128], strides = [1, 1, 1]} : vector<30x18x128xf32> to vector<1x18x128xf32>
    %47 = vector.shape_cast %46 : vector<1x18x128xf32> to vector<18x128xf32>
    %cst_32 = arith.constant dense<0.000000e+00> : vector<16x128xf32>
    %48 = tpu.matmul %45, %47, %cst_32 {dimension_numbers = #tpu.dot_dimension_numbers<[1], [0], [0], [1], [0, 0, 1, 1], [], []>} : vector<16x18xf32>, vector<18x128xf32>, vector<16x128xf32> -> vector<16x128xf32>
    %49 = arith.addf %44, %48 : vector<16x128xf32>
    %50 = vector.extract_strided_slice %30 {offsets = [48, 0], sizes = [16, 18], strides = [1, 1]} : vector<480x18xf32> to vector<16x18xf32>
    %51 = vector.extract_strided_slice %31 {offsets = [3, 0, 0], sizes = [1, 18, 128], strides = [1, 1, 1]} : vector<30x18x128xf32> to vector<1x18x128xf32>
    %52 = vector.shape_cast %51 : vector<1x18x128xf32> to vector<18x128xf32>
    %cst_33 = arith.constant dense<0.000000e+00> : vector<16x128xf32>
    %53 = tpu.matmul %50, %52, %cst_33 {dimension_numbers = #tpu.dot_dimension_numbers<[1], [0], [0], [1], [0, 0, 1, 1], [], []>} : vector<16x18xf32>, vector<18x128xf32>, vector<16x128xf32> -> vector<16x128xf32>
    %54 = arith.addf %49, %53 : vector<16x128xf32>
    %55 = vector.extract_strided_slice %30 {offsets = [64, 0], sizes = [16, 18], strides = [1, 1]} : vector<480x18xf32> to vector<16x18xf32>
    %56 = vector.extract_strided_slice %31 {offsets = [4, 0, 0], sizes = [1, 18, 128], strides = [1, 1, 1]} : vector<30x18x128xf32> to vector<1x18x128xf32>
    %57 = vector.shape_cast %56 : vector<1x18x128xf32> to vector<18x128xf32>
    %cst_34 = arith.constant dense<0.000000e+00> : vector<16x128xf32>
    %58 = tpu.matmul %55, %57, %cst_34 {dimension_numbers = #tpu.dot_dimension_numbers<[1], [0], [0], [1], [0, 0, 1, 1], [], []>} : vector<16x18xf32>, vector<18x128xf32>, vector<16x128xf32> -> vector<16x128xf32>
    %59 = arith.addf %54, %58 : vector<16x128xf32>
    %60 = vector.extract_strided_slice %30 {offsets = [80, 0], sizes = [16, 18], strides = [1, 1]} : vector<480x18xf32> to vector<16x18xf32>
    %61 = vector.extract_strided_slice %31 {offsets = [5, 0, 0], sizes = [1, 18, 128], strides = [1, 1, 1]} : vector<30x18x128xf32> to vector<1x18x128xf32>
    %62 = vector.shape_cast %61 : vector<1x18x128xf32> to vector<18x128xf32>
    %cst_35 = arith.constant dense<0.000000e+00> : vector<16x128xf32>
    %63 = tpu.matmul %60, %62, %cst_35 {dimension_numbers = #tpu.dot_dimension_numbers<[1], [0], [0], [1], [0, 0, 1, 1], [], []>} : vector<16x18xf32>, vector<18x128xf32>, vector<16x128xf32> -> vector<16x128xf32>
    %64 = arith.addf %59, %63 : vector<16x128xf32>
    %65 = vector.extract_strided_slice %30 {offsets = [96, 0], sizes = [16, 18], strides = [1, 1]} : vector<480x18xf32> to vector<16x18xf32>
    %66 = vector.extract_strided_slice %31 {offsets = [6, 0, 0], sizes = [1, 18, 128], strides = [1, 1, 1]} : vector<30x18x128xf32> to vector<1x18x128xf32>
    %67 = vector.shape_cast %66 : vector<1x18x128xf32> to vector<18x128xf32>
    %cst_36 = arith.constant dense<0.000000e+00> : vector<16x128xf32>
    %68 = tpu.matmul %65, %67, %cst_36 {dimension_numbers = #tpu.dot_dimension_numbers<[1], [0], [0], [1], [0, 0, 1, 1], [], []>} : vector<16x18xf32>, vector<18x128xf32>, vector<16x128xf32> -> vector<16x128xf32>
    %69 = arith.addf %64, %68 : vector<16x128xf32>
    %70 = vector.extract_strided_slice %30 {offsets = [112, 0], sizes = [16, 18], strides = [1, 1]} : vector<480x18xf32> to vector<16x18xf32>
    %71 = vector.extract_strided_slice %31 {offsets = [7, 0, 0], sizes = [1, 18, 128], strides = [1, 1, 1]} : vector<30x18x128xf32> to vector<1x18x128xf32>
    %72 = vector.shape_cast %71 : vector<1x18x128xf32> to vector<18x128xf32>
    %cst_37 = arith.constant dense<0.000000e+00> : vector<16x128xf32>
    %73 = tpu.matmul %70, %72, %cst_37 {dimension_numbers = #tpu.dot_dimension_numbers<[1], [0], [0], [1], [0, 0, 1, 1], [], []>} : vector<16x18xf32>, vector<18x128xf32>, vector<16x128xf32> -> vector<16x128xf32>
    %74 = arith.addf %69, %73 : vector<16x128xf32>
    %75 = vector.extract_strided_slice %30 {offsets = [128, 0], sizes = [16, 18], strides = [1, 1]} : vector<480x18xf32> to vector<16x18xf32>
    %76 = vector.extract_strided_slice %31 {offsets = [8, 0, 0], sizes = [1, 18, 128], strides = [1, 1, 1]} : vector<30x18x128xf32> to vector<1x18x128xf32>
    %77 = vector.shape_cast %76 : vector<1x18x128xf32> to vector<18x128xf32>
    %cst_38 = arith.constant dense<0.000000e+00> : vector<16x128xf32>
    %78 = tpu.matmul %75, %77, %cst_38 {dimension_numbers = #tpu.dot_dimension_numbers<[1], [0], [0], [1], [0, 0, 1, 1], [], []>} : vector<16x18xf32>, vector<18x128xf32>, vector<16x128xf32> -> vector<16x128xf32>
    %79 = arith.addf %74, %78 : vector<16x128xf32>
    %80 = vector.extract_strided_slice %30 {offsets = [144, 0], sizes = [16, 18], strides = [1, 1]} : vector<480x18xf32> to vector<16x18xf32>
    %81 = vector.extract_strided_slice %31 {offsets = [9, 0, 0], sizes = [1, 18, 128], strides = [1, 1, 1]} : vector<30x18x128xf32> to vector<1x18x128xf32>
    %82 = vector.shape_cast %81 : vector<1x18x128xf32> to vector<18x128xf32>
    %cst_39 = arith.constant dense<0.000000e+00> : vector<16x128xf32>
    %83 = tpu.matmul %80, %82, %cst_39 {dimension_numbers = #tpu.dot_dimension_numbers<[1], [0], [0], [1], [0, 0, 1, 1], [], []>} : vector<16x18xf32>, vector<18x128xf32>, vector<16x128xf32> -> vector<16x128xf32>
    %84 = arith.addf %79, %83 : vector<16x128xf32>
    %85 = vector.extract_strided_slice %30 {offsets = [160, 0], sizes = [16, 18], strides = [1, 1]} : vector<480x18xf32> to vector<16x18xf32>
    %86 = vector.extract_strided_slice %31 {offsets = [10, 0, 0], sizes = [1, 18, 128], strides = [1, 1, 1]} : vector<30x18x128xf32> to vector<1x18x128xf32>
    %87 = vector.shape_cast %86 : vector<1x18x128xf32> to vector<18x128xf32>
    %cst_40 = arith.constant dense<0.000000e+00> : vector<16x128xf32>
    %88 = tpu.matmul %85, %87, %cst_40 {dimension_numbers = #tpu.dot_dimension_numbers<[1], [0], [0], [1], [0, 0, 1, 1], [], []>} : vector<16x18xf32>, vector<18x128xf32>, vector<16x128xf32> -> vector<16x128xf32>
    %89 = arith.addf %84, %88 : vector<16x128xf32>
    %90 = vector.extract_strided_slice %30 {offsets = [176, 0], sizes = [16, 18], strides = [1, 1]} : vector<480x18xf32> to vector<16x18xf32>
    %91 = vector.extract_strided_slice %31 {offsets = [11, 0, 0], sizes = [1, 18, 128], strides = [1, 1, 1]} : vector<30x18x128xf32> to vector<1x18x128xf32>
    %92 = vector.shape_cast %91 : vector<1x18x128xf32> to vector<18x128xf32>
    %cst_41 = arith.constant dense<0.000000e+00> : vector<16x128xf32>
    %93 = tpu.matmul %90, %92, %cst_41 {dimension_numbers = #tpu.dot_dimension_numbers<[1], [0], [0], [1], [0, 0, 1, 1], [], []>} : vector<16x18xf32>, vector<18x128xf32>, vector<16x128xf32> -> vector<16x128xf32>
    %94 = arith.addf %89, %93 : vector<16x128xf32>
    %95 = vector.extract_strided_slice %30 {offsets = [192, 0], sizes = [16, 18], strides = [1, 1]} : vector<480x18xf32> to vector<16x18xf32>
    %96 = vector.extract_strided_slice %31 {offsets = [12, 0, 0], sizes = [1, 18, 128], strides = [1, 1, 1]} : vector<30x18x128xf32> to vector<1x18x128xf32>
    %97 = vector.shape_cast %96 : vector<1x18x128xf32> to vector<18x128xf32>
    %cst_42 = arith.constant dense<0.000000e+00> : vector<16x128xf32>
    %98 = tpu.matmul %95, %97, %cst_42 {dimension_numbers = #tpu.dot_dimension_numbers<[1], [0], [0], [1], [0, 0, 1, 1], [], []>} : vector<16x18xf32>, vector<18x128xf32>, vector<16x128xf32> -> vector<16x128xf32>
    %99 = arith.addf %94, %98 : vector<16x128xf32>
    %100 = vector.extract_strided_slice %30 {offsets = [208, 0], sizes = [16, 18], strides = [1, 1]} : vector<480x18xf32> to vector<16x18xf32>
    %101 = vector.extract_strided_slice %31 {offsets = [13, 0, 0], sizes = [1, 18, 128], strides = [1, 1, 1]} : vector<30x18x128xf32> to vector<1x18x128xf32>
    %102 = vector.shape_cast %101 : vector<1x18x128xf32> to vector<18x128xf32>
    %cst_43 = arith.constant dense<0.000000e+00> : vector<16x128xf32>
    %103 = tpu.matmul %100, %102, %cst_43 {dimension_numbers = #tpu.dot_dimension_numbers<[1], [0], [0], [1], [0, 0, 1, 1], [], []>} : vector<16x18xf32>, vector<18x128xf32>, vector<16x128xf32> -> vector<16x128xf32>
    %104 = arith.addf %99, %103 : vector<16x128xf32>
    %105 = vector.extract_strided_slice %30 {offsets = [224, 0], sizes = [16, 18], strides = [1, 1]} : vector<480x18xf32> to vector<16x18xf32>
    %106 = vector.extract_strided_slice %31 {offsets = [14, 0, 0], sizes = [1, 18, 128], strides = [1, 1, 1]} : vector<30x18x128xf32> to vector<1x18x128xf32>
    %107 = vector.shape_cast %106 : vector<1x18x128xf32> to vector<18x128xf32>
    %cst_44 = arith.constant dense<0.000000e+00> : vector<16x128xf32>
    %108 = tpu.matmul %105, %107, %cst_44 {dimension_numbers = #tpu.dot_dimension_numbers<[1], [0], [0], [1], [0, 0, 1, 1], [], []>} : vector<16x18xf32>, vector<18x128xf32>, vector<16x128xf32> -> vector<16x128xf32>
    %109 = arith.addf %104, %108 : vector<16x128xf32>
    %110 = vector.extract_strided_slice %30 {offsets = [240, 0], sizes = [16, 18], strides = [1, 1]} : vector<480x18xf32> to vector<16x18xf32>
    %111 = vector.extract_strided_slice %31 {offsets = [15, 0, 0], sizes = [1, 18, 128], strides = [1, 1, 1]} : vector<30x18x128xf32> to vector<1x18x128xf32>
    %112 = vector.shape_cast %111 : vector<1x18x128xf32> to vector<18x128xf32>
    %cst_45 = arith.constant dense<0.000000e+00> : vector<16x128xf32>
    %113 = tpu.matmul %110, %112, %cst_45 {dimension_numbers = #tpu.dot_dimension_numbers<[1], [0], [0], [1], [0, 0, 1, 1], [], []>} : vector<16x18xf32>, vector<18x128xf32>, vector<16x128xf32> -> vector<16x128xf32>
    %114 = arith.addf %109, %113 : vector<16x128xf32>
    %115 = vector.extract_strided_slice %30 {offsets = [256, 0], sizes = [16, 18], strides = [1, 1]} : vector<480x18xf32> to vector<16x18xf32>
    %116 = vector.extract_strided_slice %31 {offsets = [16, 0, 0], sizes = [1, 18, 128], strides = [1, 1, 1]} : vector<30x18x128xf32> to vector<1x18x128xf32>
    %117 = vector.shape_cast %116 : vector<1x18x128xf32> to vector<18x128xf32>
    %cst_46 = arith.constant dense<0.000000e+00> : vector<16x128xf32>
    %118 = tpu.matmul %115, %117, %cst_46 {dimension_numbers = #tpu.dot_dimension_numbers<[1], [0], [0], [1], [0, 0, 1, 1], [], []>} : vector<16x18xf32>, vector<18x128xf32>, vector<16x128xf32> -> vector<16x128xf32>
    %119 = arith.addf %114, %118 : vector<16x128xf32>
    %120 = vector.extract_strided_slice %30 {offsets = [272, 0], sizes = [16, 18], strides = [1, 1]} : vector<480x18xf32> to vector<16x18xf32>
    %121 = vector.extract_strided_slice %31 {offsets = [17, 0, 0], sizes = [1, 18, 128], strides = [1, 1, 1]} : vector<30x18x128xf32> to vector<1x18x128xf32>
    %122 = vector.shape_cast %121 : vector<1x18x128xf32> to vector<18x128xf32>
    %cst_47 = arith.constant dense<0.000000e+00> : vector<16x128xf32>
    %123 = tpu.matmul %120, %122, %cst_47 {dimension_numbers = #tpu.dot_dimension_numbers<[1], [0], [0], [1], [0, 0, 1, 1], [], []>} : vector<16x18xf32>, vector<18x128xf32>, vector<16x128xf32> -> vector<16x128xf32>
    %124 = arith.addf %119, %123 : vector<16x128xf32>
    %125 = vector.extract_strided_slice %30 {offsets = [288, 0], sizes = [16, 18], strides = [1, 1]} : vector<480x18xf32> to vector<16x18xf32>
    %126 = vector.extract_strided_slice %31 {offsets = [18, 0, 0], sizes = [1, 18, 128], strides = [1, 1, 1]} : vector<30x18x128xf32> to vector<1x18x128xf32>
    %127 = vector.shape_cast %126 : vector<1x18x128xf32> to vector<18x128xf32>
    %cst_48 = arith.constant dense<0.000000e+00> : vector<16x128xf32>
    %128 = tpu.matmul %125, %127, %cst_48 {dimension_numbers = #tpu.dot_dimension_numbers<[1], [0], [0], [1], [0, 0, 1, 1], [], []>} : vector<16x18xf32>, vector<18x128xf32>, vector<16x128xf32> -> vector<16x128xf32>
    %129 = arith.addf %124, %128 : vector<16x128xf32>
    %130 = vector.extract_strided_slice %30 {offsets = [304, 0], sizes = [16, 18], strides = [1, 1]} : vector<480x18xf32> to vector<16x18xf32>
    %131 = vector.extract_strided_slice %31 {offsets = [19, 0, 0], sizes = [1, 18, 128], strides = [1, 1, 1]} : vector<30x18x128xf32> to vector<1x18x128xf32>
    %132 = vector.shape_cast %131 : vector<1x18x128xf32> to vector<18x128xf32>
    %cst_49 = arith.constant dense<0.000000e+00> : vector<16x128xf32>
    %133 = tpu.matmul %130, %132, %cst_49 {dimension_numbers = #tpu.dot_dimension_numbers<[1], [0], [0], [1], [0, 0, 1, 1], [], []>} : vector<16x18xf32>, vector<18x128xf32>, vector<16x128xf32> -> vector<16x128xf32>
    %134 = arith.addf %129, %133 : vector<16x128xf32>
    %135 = vector.extract_strided_slice %30 {offsets = [320, 0], sizes = [16, 18], strides = [1, 1]} : vector<480x18xf32> to vector<16x18xf32>
    %136 = vector.extract_strided_slice %31 {offsets = [20, 0, 0], sizes = [1, 18, 128], strides = [1, 1, 1]} : vector<30x18x128xf32> to vector<1x18x128xf32>
    %137 = vector.shape_cast %136 : vector<1x18x128xf32> to vector<18x128xf32>
    %cst_50 = arith.constant dense<0.000000e+00> : vector<16x128xf32>
    %138 = tpu.matmul %135, %137, %cst_50 {dimension_numbers = #tpu.dot_dimension_numbers<[1], [0], [0], [1], [0, 0, 1, 1], [], []>} : vector<16x18xf32>, vector<18x128xf32>, vector<16x128xf32> -> vector<16x128xf32>
    %139 = arith.addf %134, %138 : vector<16x128xf32>
    %140 = vector.extract_strided_slice %30 {offsets = [336, 0], sizes = [16, 18], strides = [1, 1]} : vector<480x18xf32> to vector<16x18xf32>
    %141 = vector.extract_strided_slice %31 {offsets = [21, 0, 0], sizes = [1, 18, 128], strides = [1, 1, 1]} : vector<30x18x128xf32> to vector<1x18x128xf32>
    %142 = vector.shape_cast %141 : vector<1x18x128xf32> to vector<18x128xf32>
    %cst_51 = arith.constant dense<0.000000e+00> : vector<16x128xf32>
    %143 = tpu.matmul %140, %142, %cst_51 {dimension_numbers = #tpu.dot_dimension_numbers<[1], [0], [0], [1], [0, 0, 1, 1], [], []>} : vector<16x18xf32>, vector<18x128xf32>, vector<16x128xf32> -> vector<16x128xf32>
    %144 = arith.addf %139, %143 : vector<16x128xf32>
    %145 = vector.extract_strided_slice %30 {offsets = [352, 0], sizes = [16, 18], strides = [1, 1]} : vector<480x18xf32> to vector<16x18xf32>
    %146 = vector.extract_strided_slice %31 {offsets = [22, 0, 0], sizes = [1, 18, 128], strides = [1, 1, 1]} : vector<30x18x128xf32> to vector<1x18x128xf32>
    %147 = vector.shape_cast %146 : vector<1x18x128xf32> to vector<18x128xf32>
    %cst_52 = arith.constant dense<0.000000e+00> : vector<16x128xf32>
    %148 = tpu.matmul %145, %147, %cst_52 {dimension_numbers = #tpu.dot_dimension_numbers<[1], [0], [0], [1], [0, 0, 1, 1], [], []>} : vector<16x18xf32>, vector<18x128xf32>, vector<16x128xf32> -> vector<16x128xf32>
    %149 = arith.addf %144, %148 : vector<16x128xf32>
    %150 = vector.extract_strided_slice %30 {offsets = [368, 0], sizes = [16, 18], strides = [1, 1]} : vector<480x18xf32> to vector<16x18xf32>
    %151 = vector.extract_strided_slice %31 {offsets = [23, 0, 0], sizes = [1, 18, 128], strides = [1, 1, 1]} : vector<30x18x128xf32> to vector<1x18x128xf32>
    %152 = vector.shape_cast %151 : vector<1x18x128xf32> to vector<18x128xf32>
    %cst_53 = arith.constant dense<0.000000e+00> : vector<16x128xf32>
    %153 = tpu.matmul %150, %152, %cst_53 {dimension_numbers = #tpu.dot_dimension_numbers<[1], [0], [0], [1], [0, 0, 1, 1], [], []>} : vector<16x18xf32>, vector<18x128xf32>, vector<16x128xf32> -> vector<16x128xf32>
    %154 = arith.addf %149, %153 : vector<16x128xf32>
    %155 = vector.extract_strided_slice %30 {offsets = [384, 0], sizes = [16, 18], strides = [1, 1]} : vector<480x18xf32> to vector<16x18xf32>
    %156 = vector.extract_strided_slice %31 {offsets = [24, 0, 0], sizes = [1, 18, 128], strides = [1, 1, 1]} : vector<30x18x128xf32> to vector<1x18x128xf32>
    %157 = vector.shape_cast %156 : vector<1x18x128xf32> to vector<18x128xf32>
    %cst_54 = arith.constant dense<0.000000e+00> : vector<16x128xf32>
    %158 = tpu.matmul %155, %157, %cst_54 {dimension_numbers = #tpu.dot_dimension_numbers<[1], [0], [0], [1], [0, 0, 1, 1], [], []>} : vector<16x18xf32>, vector<18x128xf32>, vector<16x128xf32> -> vector<16x128xf32>
    %159 = arith.addf %154, %158 : vector<16x128xf32>
    %160 = vector.extract_strided_slice %30 {offsets = [400, 0], sizes = [16, 18], strides = [1, 1]} : vector<480x18xf32> to vector<16x18xf32>
    %161 = vector.extract_strided_slice %31 {offsets = [25, 0, 0], sizes = [1, 18, 128], strides = [1, 1, 1]} : vector<30x18x128xf32> to vector<1x18x128xf32>
    %162 = vector.shape_cast %161 : vector<1x18x128xf32> to vector<18x128xf32>
    %cst_55 = arith.constant dense<0.000000e+00> : vector<16x128xf32>
    %163 = tpu.matmul %160, %162, %cst_55 {dimension_numbers = #tpu.dot_dimension_numbers<[1], [0], [0], [1], [0, 0, 1, 1], [], []>} : vector<16x18xf32>, vector<18x128xf32>, vector<16x128xf32> -> vector<16x128xf32>
    %164 = arith.addf %159, %163 : vector<16x128xf32>
    %165 = vector.extract_strided_slice %30 {offsets = [416, 0], sizes = [16, 18], strides = [1, 1]} : vector<480x18xf32> to vector<16x18xf32>
    %166 = vector.extract_strided_slice %31 {offsets = [26, 0, 0], sizes = [1, 18, 128], strides = [1, 1, 1]} : vector<30x18x128xf32> to vector<1x18x128xf32>
    %167 = vector.shape_cast %166 : vector<1x18x128xf32> to vector<18x128xf32>
    %cst_56 = arith.constant dense<0.000000e+00> : vector<16x128xf32>
    %168 = tpu.matmul %165, %167, %cst_56 {dimension_numbers = #tpu.dot_dimension_numbers<[1], [0], [0], [1], [0, 0, 1, 1], [], []>} : vector<16x18xf32>, vector<18x128xf32>, vector<16x128xf32> -> vector<16x128xf32>
    %169 = arith.addf %164, %168 : vector<16x128xf32>
    %170 = vector.extract_strided_slice %30 {offsets = [432, 0], sizes = [16, 18], strides = [1, 1]} : vector<480x18xf32> to vector<16x18xf32>
    %171 = vector.extract_strided_slice %31 {offsets = [27, 0, 0], sizes = [1, 18, 128], strides = [1, 1, 1]} : vector<30x18x128xf32> to vector<1x18x128xf32>
    %172 = vector.shape_cast %171 : vector<1x18x128xf32> to vector<18x128xf32>
    %cst_57 = arith.constant dense<0.000000e+00> : vector<16x128xf32>
    %173 = tpu.matmul %170, %172, %cst_57 {dimension_numbers = #tpu.dot_dimension_numbers<[1], [0], [0], [1], [0, 0, 1, 1], [], []>} : vector<16x18xf32>, vector<18x128xf32>, vector<16x128xf32> -> vector<16x128xf32>
    %174 = arith.addf %169, %173 : vector<16x128xf32>
    %175 = vector.extract_strided_slice %30 {offsets = [448, 0], sizes = [16, 18], strides = [1, 1]} : vector<480x18xf32> to vector<16x18xf32>
    %176 = vector.extract_strided_slice %31 {offsets = [28, 0, 0], sizes = [1, 18, 128], strides = [1, 1, 1]} : vector<30x18x128xf32> to vector<1x18x128xf32>
    %177 = vector.shape_cast %176 : vector<1x18x128xf32> to vector<18x128xf32>
    %cst_58 = arith.constant dense<0.000000e+00> : vector<16x128xf32>
    %178 = tpu.matmul %175, %177, %cst_58 {dimension_numbers = #tpu.dot_dimension_numbers<[1], [0], [0], [1], [0, 0, 1, 1], [], []>} : vector<16x18xf32>, vector<18x128xf32>, vector<16x128xf32> -> vector<16x128xf32>
    %179 = arith.addf %174, %178 : vector<16x128xf32>
    %180 = vector.extract_strided_slice %30 {offsets = [464, 0], sizes = [16, 18], strides = [1, 1]} : vector<480x18xf32> to vector<16x18xf32>
    %181 = vector.extract_strided_slice %31 {offsets = [29, 0, 0], sizes = [1, 18, 128], strides = [1, 1, 1]} : vector<30x18x128xf32> to vector<1x18x128xf32>
    %182 = vector.shape_cast %181 : vector<1x18x128xf32> to vector<18x128xf32>
    %cst_59 = arith.constant dense<0.000000e+00> : vector<16x128xf32>
    %183 = tpu.matmul %180, %182, %cst_59 {dimension_numbers = #tpu.dot_dimension_numbers<[1], [0], [0], [1], [0, 0, 1, 1], [], []>} : vector<16x18xf32>, vector<18x128xf32>, vector<16x128xf32> -> vector<16x128xf32>
    %184 = arith.addf %179, %183 : vector<16x128xf32>
    %185 = math.tanh %184 : vector<16x128xf32>
    %c0_60 = arith.constant 0 : index
    %c0_61 = arith.constant 0 : index
    %186 = vector.load %arg14[%c0_60, %c0_61] : memref<128x128xf32, #tpu.memory_space<vmem>>, vector<128x128xf32>
    %cst_62 = arith.constant dense<0.000000e+00> : vector<16x128xf32>
    %187 = tpu.matmul %185, %186, %cst_62 {dimension_numbers = #tpu.dot_dimension_numbers<[1], [0], [0], [1], [0, 0, 1, 1], [], []>} : vector<16x128xf32>, vector<128x128xf32>, vector<16x128xf32> -> vector<16x128xf32>
    %c0_63 = arith.constant 0 : index
    %c0_64 = arith.constant 0 : index
    %188 = vector.load %arg15[%c0_63, %c0_64] : memref<1x128xf32, #tpu.memory_space<vmem>>, vector<1x128xf32>
    %189 = vector.broadcast %188 : vector<1x128xf32> to vector<16x128xf32>
    %190 = arith.addf %187, %189 : vector<16x128xf32>
    %c0_65 = arith.constant 0 : index
    %c0_66 = arith.constant 0 : index
    %191 = vector.load %arg16[%c0_65, %c0_66] : memref<16x128xf32, #tpu.memory_space<vmem>>, vector<16x128xf32>
    tpu.vector_store %arg16[%c0_65, %c0_66], %190 {strides = array<i32>} : memref<16x128xf32, #tpu.memory_space<vmem>>, vector<16x128xf32>,
    return
  }
  func.func @transform_0(%arg0: i32) -> (i32, i32) {
    %c0_i32 = arith.constant 0 : i32
    %c0_i32_0 = arith.constant 0 : i32
    return %arg0, %c0_i32 : i32, i32
  }
  func.func @transform_1(%arg0: i32) -> (i32, i32) {
    %c0_i32 = arith.constant 0 : i32
    %c0_i32_0 = arith.constant 0 : i32
    %c0_i32_1 = arith.constant 0 : i32
    return %c0_i32, %c0_i32_0 : i32, i32
  }
  func.func @transform_2(%arg0: i32) -> (i32, i32) {
    %c0_i32 = arith.constant 0 : i32
    %c0_i32_0 = arith.constant 0 : i32
    %c0_i32_1 = arith.constant 0 : i32
    return %c0_i32, %c0_i32_0 : i32, i32
  }
  func.func @transform_3(%arg0: i32) -> (i32, i32) {
    %c0_i32 = arith.constant 0 : i32
    %c0_i32_0 = arith.constant 0 : i32
    %c0_i32_1 = arith.constant 0 : i32
    return %c0_i32, %c0_i32_0 : i32, i32
  }
  func.func @transform_4(%arg0: i32) -> (i32, i32) {
    %c0_i32 = arith.constant 0 : i32
    %c0_i32_0 = arith.constant 0 : i32
    %c0_i32_1 = arith.constant 0 : i32
    return %c0_i32, %c0_i32_0 : i32, i32
  }
  func.func @transform_5(%arg0: i32) -> (i32, i32) {
    %c0_i32 = arith.constant 0 : i32
    %c0_i32_0 = arith.constant 0 : i32
    %c0_i32_1 = arith.constant 0 : i32
    return %c0_i32, %c0_i32_0 : i32, i32
  }
  func.func @transform_6(%arg0: i32) -> (i32, i32) {
    %c0_i32 = arith.constant 0 : i32
    %c0_i32_0 = arith.constant 0 : i32
    %c0_i32_1 = arith.constant 0 : i32
    return %c0_i32, %c0_i32_0 : i32, i32
  }
  func.func @transform_7(%arg0: i32) -> (i32, i32) {
    %c0_i32 = arith.constant 0 : i32
    %c0_i32_0 = arith.constant 0 : i32
    %c0_i32_1 = arith.constant 0 : i32
    return %c0_i32, %c0_i32_0 : i32, i32
  }
  func.func @transform_8(%arg0: i32) -> (i32, i32) {
    %c0_i32 = arith.constant 0 : i32
    %c0_i32_0 = arith.constant 0 : i32
    %c0_i32_1 = arith.constant 0 : i32
    return %c0_i32, %c0_i32_0 : i32, i32
  }
  func.func @transform_9(%arg0: i32) -> (i32, i32) {
    %c0_i32 = arith.constant 0 : i32
    %c0_i32_0 = arith.constant 0 : i32
    %c0_i32_1 = arith.constant 0 : i32
    return %c0_i32, %c0_i32_0 : i32, i32
  }
  func.func @transform_10(%arg0: i32) -> (i32, i32) {
    %c0_i32 = arith.constant 0 : i32
    %c0_i32_0 = arith.constant 0 : i32
    %c0_i32_1 = arith.constant 0 : i32
    return %c0_i32, %c0_i32_0 : i32, i32
  }
  func.func @transform_11(%arg0: i32) -> (i32, i32, i32) {
    %c0_i32 = arith.constant 0 : i32
    %c0_i32_0 = arith.constant 0 : i32
    %c0_i32_1 = arith.constant 0 : i32
    %c0_i32_2 = arith.constant 0 : i32
    return %c0_i32, %c0_i32_0, %c0_i32_1 : i32, i32, i32
  }
  func.func @transform_12(%arg0: i32) -> (i32, i32) {
    %c0_i32 = arith.constant 0 : i32
    %c0_i32_0 = arith.constant 0 : i32
    %c0_i32_1 = arith.constant 0 : i32
    return %c0_i32, %c0_i32_0 : i32, i32
  }
  func.func @transform_13(%arg0: i32) -> (i32, i32) {
    %c0_i32 = arith.constant 0 : i32
    %c0_i32_0 = arith.constant 0 : i32
    %c0_i32_1 = arith.constant 0 : i32
    return %c0_i32, %c0_i32_0 : i32, i32
  }
  func.func @transform_14(%arg0: i32) -> (i32, i32) {
    %c0_i32 = arith.constant 0 : i32
    %c0_i32_0 = arith.constant 0 : i32
    %c0_i32_1 = arith.constant 0 : i32
    return %c0_i32, %c0_i32_0 : i32, i32
  }
  func.func @transform_15(%arg0: i32) -> (i32, i32) {
    %c0_i32 = arith.constant 0 : i32
    %c0_i32_0 = arith.constant 0 : i32
    return %arg0, %c0_i32 : i32, i32
  }
}

</mosaic_0001>

<llo_original>
// kernel: mul.66
$region0: #{mul.66}
  %s0 = inlined_call_operand.vmem [shape: f32[10,18], index: 0, kind: input, shape index: {}]
  %s1 = inlined_call_operand.vmem [shape: f32[180], index: 1, kind: output, shape index: {}]
  $region1: #{mul.66} parent=0
    #allocation0 [shape = 'u8[4096]{0}', space=vmem, size = 0x1000, scoped, tag = 'scoped mem for output reshape']
    %v2 = vld [vmem:[%s0] sm:$0x1]
    %vm3 = vcmask 146432
    %4 = vst.msk [vmem:[#allocation0] sm:$0x1] %vm3, %v2
    %s5 = scalar_lea.vmem %s0, 7
    %v6 = vld [vmem:[%s5] sm:$0x1]
    %s7 = scalar_lea.vmem %s0, 7
    %v8 = vld [vmem:[%s7] sm:$0x1]
    %vm9 = vcmask 15360
    %v10 = vsel %vm9, %v8, %v6
    %11 = vrot.lane.b32.xlu0 %v10, 126
    %v12 = vpop.permute.xlu0 %11
    %vm13 = vcmask 130048
    %s14 = scalar_lea.vmem [#allocation0], 1
    %15 = vst.msk [vmem:[%s14] sm:$0x1] %vm13, %v12
    %vm16 = vcmask 1048560
    %17 = vst.msk [vmem:[#allocation0] sm:$0x1] %vm16, %v12
    %s18 = scalar_lea.vmem %s0, 6
    %v19 = vld [vmem:[%s18] sm:$0x1]
    %20 = vrot.lane.b32.xlu0 %v19, 108
    %v21 = vpop.permute.xlu0 %20
    %vm22 = vcmask 1032032
    %23 = vst.msk [vmem:[#allocation0] sm:$0x1] %vm22, %v21
    %s24 = scalar_lea.vmem %s0, 5
    %v25 = vld [vmem:[%s24] sm:$0x1]
    %26 = vrot.lane.b32.xlu0 %v25, 90
    %v27 = vpop.permute.xlu0 %26
    %vm28 = vcmask 884432
    %29 = vst.msk [vmem:[#allocation0] sm:$0x1] %vm28, %v27
    %s30 = scalar_lea.vmem %s0, 4
    %v31 = vld [vmem:[%s30] sm:$0x1]
    %32 = vrot.lane.b32.xlu0 %v31, 72
    %v33 = vpop.permute.xlu0 %32
    %vm34 = vcmask 736832
    %35 = vst.msk [vmem:[#allocation0] sm:$0x1] %vm34, %v33
    %s36 = scalar_lea.vmem %s0, 3
    %v37 = vld [vmem:[%s36] sm:$0x1]
    %38 = vrot.lane.b32.xlu0 %v37, 54
    %v39 = vpop.permute.xlu0 %38
    %vm40 = vcmask 589232
    %41 = vst.msk [vmem:[#allocation0] sm:$0x1] %vm40, %v39
    %s42 = scalar_lea.vmem %s0, 2
    %v43 = vld [vmem:[%s42] sm:$0x1]
    %44 = vrot.lane.b32.xlu0 %v43, 36
    %v45 = vpop.permute.xlu0 %44
    %vm46 = vcmask 441632
    %47 = vst.msk [vmem:[#allocation0] sm:$0x1] %vm46, %v45
    %s48 = scalar_lea.vmem %s0, 9
    %v49 = vld [vmem:[%s48] sm:$0x1]
    %50 = vrot.lane.b32.xlu0 %v49, 34
    %v51 = vpop.permute.xlu0 %50
    %vm52 = vcmask 425232
    %s53 = scalar_lea.vmem [#allocation0], 1
    %54 = vst.msk [vmem:[%s53] sm:$0x1] %vm52, %v51
    %s55 = scalar_lea.vmem %s0, 1
    %v56 = vld [vmem:[%s55] sm:$0x1]
    %57 = vrot.lane.b32.xlu0 %v56, 18
    %v58 = vpop.permute.xlu0 %57
    %vm59 = vcmask 294032
    %60 = vst.msk [vmem:[#allocation0] sm:$0x1] %vm59, %v58
    %s61 = scalar_lea.vmem %s0, 8
    %v62 = vld [vmem:[%s61] sm:$0x1]
    %63 = vrot.lane.b32.xlu0 %v62, 16
    %v64 = vpop.permute.xlu0 %63
    %vm65 = vcmask 277632
    %s66 = scalar_lea.vmem [#allocation0], 1
    %67 = vst.msk [vmem:[%s66] sm:$0x1] %vm65, %v64
    %s69 = sshll.u32 1, 2
    %s70 = ssub.s32 %s69, 1
    %v72 = vld [vmem:[#allocation0] sm:%s70]
    %s73 = sshll.u32 1, 2
    %s74 = ssub.s32 %s73, 1
    %75 = vst [vmem:[%s1] sm:%s74] %v72

// kernel: mul.58
$region0: #{mul.58}
  %s0 = inlined_call_operand.vmem [shape: f32[10,17], index: 0, kind: input, shape index: {}]
  %s1 = inlined_call_operand.vmem [shape: f32[170], index: 1, kind: output, shape index: {}]
  $region1: #{mul.58} parent=0
    #allocation0 [shape = 'u8[4096]{0}', space=vmem, size = 0x1000, scoped, tag = 'scoped mem for output reshape']
    %v2 = vld [vmem:[%s0] sm:$0x1]
    %vm3 = vcmask 138240
    %4 = vst.msk [vmem:[#allocation0] sm:$0x1] %vm3, %v2
    %s5 = scalar_lea.vmem %s0, 7
    %v6 = vld [vmem:[%s5] sm:$0x1]
    %s7 = scalar_lea.vmem %s0, 7
    %v8 = vld [vmem:[%s7] sm:$0x1]
    %vm9 = vcmask 72704
    %v10 = vsel %vm9, %v8, %v6
    %11 = vrot.lane.b32.xlu0 %v10, 119
    %v12 = vpop.permute.xlu0 %11
    %vm13 = vcmask 64512
    %s14 = scalar_lea.vmem [#allocation0], 1
    %15 = vst.msk [vmem:[%s14] sm:$0x1] %vm13, %v12
    %vm16 = vcmask 1048504
    %17 = vst.msk [vmem:[#allocation0] sm:$0x1] %vm16, %v12
    %s18 = scalar_lea.vmem %s0, 6
    %v19 = vld [vmem:[%s18] sm:$0x1]
    %20 = vrot.lane.b32.xlu0 %v19, 102
    %v21 = vpop.permute.xlu0 %20
    %vm22 = vcmask 974640
    %23 = vst.msk [vmem:[#allocation0] sm:$0x1] %vm22, %v21
    %s24 = scalar_lea.vmem %s0, 5
    %v25 = vld [vmem:[%s24] sm:$0x1]
    %26 = vrot.lane.b32.xlu0 %v25, 85
    %v27 = vpop.permute.xlu0 %26
    %vm28 = vcmask 835240
    %29 = vst.msk [vmem:[#allocation0] sm:$0x1] %vm28, %v27
    %s30 = scalar_lea.vmem %s0, 4
    %v31 = vld [vmem:[%s30] sm:$0x1]
    %32 = vrot.lane.b32.xlu0 %v31, 68
    %v33 = vpop.permute.xlu0 %32
    %vm34 = vcmask 695840
    %35 = vst.msk [vmem:[#allocation0] sm:$0x1] %vm34, %v33
    %s36 = scalar_lea.vmem %s0, 3
    %v37 = vld [vmem:[%s36] sm:$0x1]
    %38 = vrot.lane.b32.xlu0 %v37, 51
    %v39 = vpop.permute.xlu0 %38
    %vm40 = vcmask 556440
    %41 = vst.msk [vmem:[#allocation0] sm:$0x1] %vm40, %v39
    %s42 = scalar_lea.vmem %s0, 2
    %v43 = vld [vmem:[%s42] sm:$0x1]
    %44 = vrot.lane.b32.xlu0 %v43, 34
    %v45 = vpop.permute.xlu0 %44
    %vm46 = vcmask 417040
    %47 = vst.msk [vmem:[#allocation0] sm:$0x1] %vm46, %v45
    %s48 = scalar_lea.vmem %s0, 9
    %v49 = vld [vmem:[%s48] sm:$0x1]
    %50 = vrot.lane.b32.xlu0 %v49, 25
    %v51 = vpop.permute.xlu0 %50
    %vm52 = vcmask 343240
    %s53 = scalar_lea.vmem [#allocation0], 1
    %54 = vst.msk [vmem:[%s53] sm:$0x1] %vm52, %v51
    %s55 = scalar_lea.vmem %s0, 1
    %v56 = vld [vmem:[%s55] sm:$0x1]
    %57 = vrot.lane.b32.xlu0 %v56, 17
    %v58 = vpop.permute.xlu0 %57
    %vm59 = vcmask 277640
    %60 = vst.msk [vmem:[#allocation0] sm:$0x1] %vm59, %v58
    %s61 = scalar_lea.vmem %s0, 8
    %v62 = vld [vmem:[%s61] sm:$0x1]
    %63 = vrot.lane.b32.xlu0 %v62, 8
    %v64 = vpop.permute.xlu0 %63
    %vm65 = vcmask 203840
    %s66 = scalar_lea.vmem [#allocation0], 1
    %67 = vst.msk [vmem:[%s66] sm:$0x1] %vm65, %v64
    %s69 = sshll.u32 1, 2
    %s70 = ssub.s32 %s69, 1
    %v72 = vld [vmem:[#allocation0] sm:%s70]
    %s73 = sshll.u32 1, 2
    %s74 = ssub.s32 %s73, 1
    %75 = vst [vmem:[%s1] sm:%s74] %v72

// kernel: mul.50
$region0: #{mul.50}
  %s0 = inlined_call_operand.vmem [shape: f32[10,16], index: 0, kind: input, shape index: {}]
  %s1 = inlined_call_operand.vmem [shape: f32[160], index: 1, kind: output, shape index: {}]
  $region1: #{mul.50} parent=0
    #allocation0 [shape = 'u8[4096]{0}', space=vmem, size = 0x1000, scoped, tag = 'scoped mem for output reshape']
    %s2 = smov 3
    %v3 = vld [vmem:[%s0] ss:$8 sm:%s2]
    %vm4 = vcmask 130048
    %5 = vst.msk [vmem:[#allocation0] sm:$0x3] %vm4, %v3
    %s6 = scalar_lea.vmem %s0, 7
    %v7 = vld [vmem:[%s6] sm:$0x1]
    %8 = vrot.lane.b32.xlu0 %v7, 112
    %v9 = vpop.permute.xlu0 %8
    %vm10 = vcmask 1048448
    %11 = vst.msk [vmem:[#allocation0] sm:$0x1] %vm10, %v9
    %s12 = scalar_lea.vmem %s0, 6
    %v13 = vld [vmem:[%s12] sm:$0x1]
    %14 = vrot.lane.b32.xlu0 %v13, 96
    %v15 = vpop.permute.xlu0 %14
    %vm16 = vcmask 917248
    %17 = vst.msk [vmem:[#allocation0] sm:$0x1] %vm16, %v15
    %s18 = scalar_lea.vmem %s0, 5
    %v19 = vld [vmem:[%s18] sm:$0x1]
    %20 = vrot.lane.b32.xlu0 %v19, 80
    %v21 = vpop.permute.xlu0 %20
    %vm22 = vcmask 786048
    %23 = vst.msk [vmem:[#allocation0] sm:$0x1] %vm22, %v21
    %s24 = scalar_lea.vmem %s0, 4
    %v25 = vld [vmem:[%s24] sm:$0x1]
    %26 = vrot.lane.b32.xlu0 %v25, 64
    %v27 = vpop.permute.xlu0 %26
    %vm28 = vcmask 654848
    %29 = vst.msk [vmem:[#allocation0] sm:$0x1] %vm28, %v27
    %s30 = scalar_lea.vmem %s0, 3
    %v31 = vld [vmem:[%s30] sm:$0x1]
    %32 = vrot.lane.b32.xlu0 %v31, 48
    %v33 = vpop.permute.xlu0 %32
    %vm34 = vcmask 523648
    %35 = vst.msk [vmem:[#allocation0] sm:$0x1] %vm34, %v33
    %s36 = scalar_lea.vmem %s0, 2
    %v37 = vld [vmem:[%s36] sm:$0x1]
    %38 = vrot.lane.b32.xlu0 %v37, 32
    %v39 = vpop.permute.xlu0 %38
    %vm40 = vcmask 392448
    %41 = vst.msk [vmem:[#allocation0] sm:$0x1] %vm40, %v39
    %s42 = scalar_lea.vmem %s0, 1
    %s43 = smov 3
    %v44 = vld [vmem:[%s42] ss:$8 sm:%s43]
    %45 = vrot.lane.b32.xlu0 %v44, 16
    %v46 = vpop.permute.xlu0 %45
    %vm47 = vcmask 261248
    %48 = vst.msk [vmem:[#allocation0] sm:$0x3] %vm47, %v46
    %s50 = sshll.u32 1, 2
    %s51 = ssub.s32 %s50, 1
    %v53 = vld [vmem:[#allocation0] sm:%s51]
    %s54 = sshll.u32 1, 2
    %s55 = ssub.s32 %s54, 1
    %56 = vst [vmem:[%s1] sm:%s55] %v53

// kernel: mul.42
$region0: #{mul.42}
  %s0 = inlined_call_operand.vmem [shape: f32[10,15], index: 0, kind: input, shape index: {}]
  %s1 = inlined_call_operand.vmem [shape: f32[150], index: 1, kind: output, shape index: {}]
  $region1: #{mul.42} parent=0
    #allocation0 [shape = 'u8[4096]{0}', space=vmem, size = 0x1000, scoped, tag = 'scoped mem for output reshape']
    %v2 = vld [vmem:[%s0] sm:$0x1]
    %vm3 = vcmask 121856
    %4 = vst.msk [vmem:[#allocation0] sm:$0x1] %vm3, %v2
    %s5 = scalar_lea.vmem %s0, 8
    %v6 = vld [vmem:[%s5] sm:$0x1]
    %s7 = scalar_lea.vmem %s0, 8
    %v8 = vld [vmem:[%s7] sm:$0x1]
    %vm9 = vcmask 64512
    %v10 = vsel %vm9, %v8, %v6
    %11 = vrot.lane.b32.xlu0 %v10, 120
    %v12 = vpop.permute.xlu0 %11
    %vm13 = vcmask 56320
    %s14 = scalar_lea.vmem [#allocation0], 1
    %15 = vst.msk [vmem:[%s14] sm:$0x1] %vm13, %v12
    %vm16 = vcmask 1048512
    %17 = vst.msk [vmem:[#allocation0] sm:$0x1] %vm16, %v12
    %s18 = scalar_lea.vmem %s0, 7
    %v19 = vld [vmem:[%s18] sm:$0x1]
    %20 = vrot.lane.b32.xlu0 %v19, 105
    %v21 = vpop.permute.xlu0 %20
    %vm22 = vcmask 982856
    %23 = vst.msk [vmem:[#allocation0] sm:$0x1] %vm22, %v21
    %s24 = scalar_lea.vmem %s0, 6
    %v25 = vld [vmem:[%s24] sm:$0x1]
    %26 = vrot.lane.b32.xlu0 %v25, 90
    %v27 = vpop.permute.xlu0 %26
    %vm28 = vcmask 859856
    %29 = vst.msk [vmem:[#allocation0] sm:$0x1] %vm28, %v27
    %s30 = scalar_lea.vmem %s0, 5
    %v31 = vld [vmem:[%s30] sm:$0x1]
    %32 = vrot.lane.b32.xlu0 %v31, 75
    %v33 = vpop.permute.xlu0 %32
    %vm34 = vcmask 736856
    %35 = vst.msk [vmem:[#allocation0] sm:$0x1] %vm34, %v33
    %s36 = scalar_lea.vmem %s0, 4
    %v37 = vld [vmem:[%s36] sm:$0x1]
    %38 = vrot.lane.b32.xlu0 %v37, 60
    %v39 = vpop.permute.xlu0 %38
    %vm40 = vcmask 613856
    %41 = vst.msk [vmem:[#allocation0] sm:$0x1] %vm40, %v39
    %s42 = scalar_lea.vmem %s0, 3
    %v43 = vld [vmem:[%s42] sm:$0x1]
    %44 = vrot.lane.b32.xlu0 %v43, 45
    %v45 = vpop.permute.xlu0 %44
    %vm46 = vcmask 490856
    %47 = vst.msk [vmem:[#allocation0] sm:$0x1] %vm46, %v45
    %s48 = scalar_lea.vmem %s0, 2
    %v49 = vld [vmem:[%s48] sm:$0x1]
    %50 = vrot.lane.b32.xlu0 %v49, 30
    %v51 = vpop.permute.xlu0 %50
    %vm52 = vcmask 367856
    %53 = vst.msk [vmem:[#allocation0] sm:$0x1] %vm52, %v51
    %s54 = scalar_lea.vmem %s0, 1
    %v55 = vld [vmem:[%s54] sm:$0x1]
    %56 = vrot.lane.b32.xlu0 %v55, 15
    %v57 = vpop.permute.xlu0 %56
    %vm58 = vcmask 244856
    %59 = vst.msk [vmem:[#allocation0] sm:$0x1] %vm58, %v57
    %s60 = scalar_lea.vmem %s0, 9
    %v61 = vld [vmem:[%s60] sm:$0x1]
    %62 = vrot.lane.b32.xlu0 %v61, 7
    %v63 = vpop.permute.xlu0 %62
    %vm64 = vcmask 179256
    %s65 = scalar_lea.vmem [#allocation0], 1
    %66 = vst.msk [vmem:[%s65] sm:$0x1] %vm64, %v63
    %s68 = sshll.u32 1, 2
    %s69 = ssub.s32 %s68, 1
    %v71 = vld [vmem:[#allocation0] sm:%s69]
    %s72 = sshll.u32 1, 2
    %s73 = ssub.s32 %s72, 1
    %74 = vst [vmem:[%s1] sm:%s73] %v71

// kernel: _lambda_.1
$region0: #{_lambda_.1}
  #allocation0 [shape = 'u32[]', space=smem, size = 0x4, offset = 0x4, fixed_abs, tag = 'smem constant byte address 0x4 - core index']
  #allocation1 [shape = 'u32[144,128]{1,0:T(1,128)}', space=vmem, size = 0x12000, scoped, tag = 'internal scratch']
  %s0 = inlined_call_operand.vmem [shape: f32[480,14], index: 0, kind: input, shape index: {}]
  %s1 = inlined_call_operand.vmem [shape: f32[14,150], index: 1, kind: input, shape index: {}]
  %s2 = inlined_call_operand.vmem [shape: f32[1,150], index: 2, kind: input, shape index: {}]
  %s3 = inlined_call_operand.vmem [shape: f32[150,160], index: 3, kind: input, shape index: {}]
  %s4 = inlined_call_operand.vmem [shape: f32[1,160], index: 4, kind: input, shape index: {}]
  %s5 = inlined_call_operand.vmem [shape: f32[160,170], index: 5, kind: input, shape index: {}]
  %s6 = inlined_call_operand.vmem [shape: f32[1,170], index: 6, kind: input, shape index: {}]
  %s7 = inlined_call_operand.vmem [shape: f32[170,180], index: 7, kind: input, shape index: {}]
  %s8 = inlined_call_operand.vmem [shape: f32[1,180], index: 8, kind: input, shape index: {}]
  %s9 = inlined_call_operand.vmem [shape: f32[180,18], index: 9, kind: input, shape index: {}]
  %s10 = inlined_call_operand.vmem [shape: f32[1,18], index: 10, kind: input, shape index: {}]
  %s11 = inlined_call_operand.vmem [shape: f32[30,18,128], index: 11, kind: input, shape index: {}]
  %s12 = inlined_call_operand.vmem [shape: f32[1,128], index: 12, kind: input, shape index: {}]
  %s13 = inlined_call_operand.vmem [shape: f32[128,128], index: 13, kind: input, shape index: {}]
  %s14 = inlined_call_operand.vmem [shape: f32[1,128], index: 14, kind: input, shape index: {}]
  %s15 = inlined_call_operand.vmem [shape: f32[16,128], index: 15, kind: output, shape index: {}]
  %s16 = sld [smem:[#allocation0]]
  $region70: #{_lambda_.1} parent=0
    _
  %s18 = ssub.s32 1, %s16
  %s19 = scalar_select 0, %s18, %s16
  // Predicated region
  $region2: #{_lambda_.1} parent=0 // pred_check
    _
  $region3: #{_lambda_.1} parent=0 // pred_check_branch
    %21 = sbr.rel (0) target = $region5
  $region4: #{_lambda_.1} parent=0 // pred_region
    _
  $region5: #{_lambda_.1} parent=0 // pred_fallthru
    _
  // Predicated region
  $region6: #{_lambda_.1} parent=0 // pred_check
    _
  $region7: #{_lambda_.1} parent=0 // pred_check_branch
    %23 = sbr.rel (0) target = $region9
  $region8: #{_lambda_.1} parent=0 // pred_region
    _
  $region9: #{_lambda_.1} parent=0 // pred_fallthru
    _
  // Predicated region
  $region10: #{_lambda_.1} parent=0 // pred_check
    _
  $region11: #{_lambda_.1} parent=0 // pred_check_branch
    %25 = sbr.rel (0) target = $region13
  $region12: #{_lambda_.1} parent=0 // pred_region
    _
  $region13: #{_lambda_.1} parent=0 // pred_fallthru
    _
  // Predicated region
  $region14: #{_lambda_.1} parent=0 // pred_check
    _
  $region15: #{_lambda_.1} parent=0 // pred_check_branch
    %27 = sbr.rel (0) target = $region17
  $region16: #{_lambda_.1} parent=0 // pred_region
    _
  $region17: #{_lambda_.1} parent=0 // pred_fallthru
    _
  // Predicated region
  $region18: #{_lambda_.1} parent=0 // pred_check
    _
  $region19: #{_lambda_.1} parent=0 // pred_check_branch
    %29 = sbr.rel (0) target = $region21
  $region20: #{_lambda_.1} parent=0 // pred_region
    _
  $region21: #{_lambda_.1} parent=0 // pred_fallthru
    _
  // Predicated region
  $region22: #{_lambda_.1} parent=0 // pred_check
    _
  $region23: #{_lambda_.1} parent=0 // pred_check_branch
    %31 = sbr.rel (0) target = $region25
  $region24: #{_lambda_.1} parent=0 // pred_region
    _
  $region25: #{_lambda_.1} parent=0 // pred_fallthru
    _
  // Predicated region
  $region26: #{_lambda_.1} parent=0 // pred_check
    _
  $region27: #{_lambda_.1} parent=0 // pred_check_branch
    %33 = sbr.rel (0) target = $region29
  $region28: #{_lambda_.1} parent=0 // pred_region
    _
  $region29: #{_lambda_.1} parent=0 // pred_fallthru
    _
  // Predicated region
  $region30: #{_lambda_.1} parent=0 // pred_check
    _
  $region31: #{_lambda_.1} parent=0 // pred_check_branch
    %35 = sbr.rel (0) target = $region33
  $region32: #{_lambda_.1} parent=0 // pred_region
    _
  $region33: #{_lambda_.1} parent=0 // pred_fallthru
    _
  // Predicated region
  $region34: #{_lambda_.1} parent=0 // pred_check
    _
  $region35: #{_lambda_.1} parent=0 // pred_check_branch
    %37 = sbr.rel (0) target = $region37
  $region36: #{_lambda_.1} parent=0 // pred_region
    _
  $region37: #{_lambda_.1} parent=0 // pred_fallthru
    _
  // Predicated region
  $region38: #{_lambda_.1} parent=0 // pred_check
    _
  $region39: #{_lambda_.1} parent=0 // pred_check_branch
    %39 = sbr.rel (0) target = $region41
  $region40: #{_lambda_.1} parent=0 // pred_region
    _
  $region41: #{_lambda_.1} parent=0 // pred_fallthru
    _
  // Predicated region
  $region42: #{_lambda_.1} parent=0 // pred_check
    _
  $region43: #{_lambda_.1} parent=0 // pred_check_branch
    %41 = sbr.rel (0) target = $region45
  $region44: #{_lambda_.1} parent=0 // pred_region
    _
  $region45: #{_lambda_.1} parent=0 // pred_fallthru
    _
  // Predicated region
  $region46: #{_lambda_.1} parent=0 // pred_check
    _
  $region47: #{_lambda_.1} parent=0 // pred_check_branch
    %43 = sbr.rel (0) target = $region49
  $region48: #{_lambda_.1} parent=0 // pred_region
    _
  $region49: #{_lambda_.1} parent=0 // pred_fallthru
    _
  // Predicated region
  $region50: #{_lambda_.1} parent=0 // pred_check
    _
  $region51: #{_lambda_.1} parent=0 // pred_check_branch
    %45 = sbr.rel (0) target = $region53
  $region52: #{_lambda_.1} parent=0 // pred_region
    _
  $region53: #{_lambda_.1} parent=0 // pred_fallthru
    _
  // Predicated region
  $region54: #{_lambda_.1} parent=0 // pred_check
    _
  $region55: #{_lambda_.1} parent=0 // pred_check_branch
    %47 = sbr.rel (0) target = $region57
  $region56: #{_lambda_.1} parent=0 // pred_region
    _
  $region57: #{_lambda_.1} parent=0 // pred_fallthru
    _
  // Predicated region
  $region58: #{_lambda_.1} parent=0 // pred_check
    _
  $region59: #{_lambda_.1} parent=0 // pred_check_branch
    %49 = sbr.rel (0) target = $region61
  $region60: #{_lambda_.1} parent=0 // pred_region
    _
  $region61: #{_lambda_.1} parent=0 // pred_fallthru
    _
  %v50 = vld [vmem:[%s0] sm:$0xff]
  %v51 = vld [vmem:[%s0 + $0x8] sm:$0xff]
  %v52 = vld [vmem:[%s0 + $0x10] sm:$0xff]
  %v53 = vld [vmem:[%s0 + $0x18] sm:$0xff]
  %v54 = vld [vmem:[%s0 + $0x20] sm:$0xff]
  %v55 = vld [vmem:[%s0 + $0x28] sm:$0xff]
  %v56 = vld [vmem:[%s0 + $0x30] sm:$0xff]
  %v57 = vld [vmem:[%s0 + $0x38] sm:$0xff]
  %v58 = vld [vmem:[%s0 + $0x40] sm:$0xff]
  %v59 = vld [vmem:[%s0 + $0x48] sm:$0xff]
  %v60 = vld [vmem:[%s0 + $0x50] sm:$0xff]
  %v61 = vld [vmem:[%s0 + $0x58] sm:$0xff]
  %v62 = vld [vmem:[%s0 + $0x60] sm:$0xff]
  %v63 = vld [vmem:[%s0 + $0x68] sm:$0xff]
  %v64 = vld [vmem:[%s0 + $0x70] sm:$0xff]
  %v65 = vld [vmem:[%s0 + $0x78] sm:$0xff]
  %v66 = vld [vmem:[%s0 + $0x80] sm:$0xff]
  %v67 = vld [vmem:[%s0 + $0x88] sm:$0xff]
  %v68 = vld [vmem:[%s0 + $0x90] sm:$0xff]
  %v69 = vld [vmem:[%s0 + $0x98] sm:$0xff]
  %v70 = vld [vmem:[%s0 + $0xa0] sm:$0xff]
  %v71 = vld [vmem:[%s0 + $0xa8] sm:$0xff]
  %v72 = vld [vmem:[%s0 + $0xb0] sm:$0xff]
  %v73 = vld [vmem:[%s0 + $0xb8] sm:$0xff]
  %v74 = vld [vmem:[%s0 + $0xc0] sm:$0xff]
  %v75 = vld [vmem:[%s0 + $0xc8] sm:$0xff]
  %v76 = vld [vmem:[%s0 + $0xd0] sm:$0xff]
  %v77 = vld [vmem:[%s0 + $0xd8] sm:$0xff]
  %v78 = vld [vmem:[%s0 + $0xe0] sm:$0xff]
  %v79 = vld [vmem:[%s0 + $0xe8] sm:$0xff]
  %v80 = vld [vmem:[%s0 + $0xf0] sm:$0xff]
  %v81 = vld [vmem:[%s0 + $0xf8] sm:$0xff]
  %v82 = vld [vmem:[%s0 + $0x100] sm:$0xff]
  %v83 = vld [vmem:[%s0 + $0x108] sm:$0xff]
  %v84 = vld [vmem:[%s0 + $0x110] sm:$0xff]
  %v85 = vld [vmem:[%s0 + $0x118] sm:$0xff]
  %v86 = vld [vmem:[%s0 + $0x120] sm:$0xff]
  %v87 = vld [vmem:[%s0 + $0x128] sm:$0xff]
  %v88 = vld [vmem:[%s0 + $0x130] sm:$0xff]
  %v89 = vld [vmem:[%s0 + $0x138] sm:$0xff]
  %v90 = vld [vmem:[%s0 + $0x140] sm:$0xff]
  %v91 = vld [vmem:[%s0 + $0x148] sm:$0xff]
  %v92 = vld [vmem:[%s0 + $0x150] sm:$0xff]
  %v93 = vld [vmem:[%s0 + $0x158] sm:$0xff]
  %v94 = vld [vmem:[%s0 + $0x160] sm:$0xff]
  %v95 = vld [vmem:[%s0 + $0x168] sm:$0xff]
  %v96 = vld [vmem:[%s0 + $0x170] sm:$0xff]
  %v97 = vld [vmem:[%s0 + $0x178] sm:$0xff]
  %v98 = vld [vmem:[%s0 + $0x180] sm:$0xff]
  %v99 = vld [vmem:[%s0 + $0x188] sm:$0xff]
  %v100 = vld [vmem:[%s0 + $0x190] sm:$0xff]
  %v101 = vld [vmem:[%s0 + $0x198] sm:$0xff]
  %v102 = vld [vmem:[%s0 + $0x1a0] sm:$0xff]
  %v103 = vld [vmem:[%s0 + $0x1a8] sm:$0xff]
  %v104 = vld [vmem:[%s0 + $0x1b0] sm:$0xff]
  %v105 = vld [vmem:[%s0 + $0x1b8] sm:$0xff]
  %v106 = vld [vmem:[%s0 + $0x1c0] sm:$0xff]
  %v107 = vld [vmem:[%s0 + $0x1c8] sm:$0xff]
  %v108 = vld [vmem:[%s0 + $0x1d0] sm:$0xff]
  %v109 = vld [vmem:[%s0 + $0x1d8] sm:$0xff]
  %v110 = vld [vmem:[%s1] sm:$0xff]
  %v111 = vld [vmem:[%s1 + $0x8] sm:$0xff]
  %v112 = vld [vmem:[%s1 + $0x10] sm:$0x3f]
  %v113 = vld [vmem:[%s1 + $0x18] sm:$0x3f]
  %v114 = vld [vmem:[%s2] sm:$0x3]
  %v116 = vlaneseq
  %v117 = vshrl.u32 %v116, 7
  %v118 = vsub.s32 0, %v117
  %v119 = vrot.slane %v114, %v118
  %v120 = vlaneseq
  %v121 = vshrl.u32 %v120, 7
  %v122 = vsub.s32 1, %v121
  %v123 = vrot.slane %v114, %v122
  %vm126 = vcmask 113664
  %v128 = vsel %vm126, %v50, 0
  %v131 = vsel %vm126, %v51, 0
  %v134 = vsel %vm126, %v52, 0
  %v137 = vsel %vm126, %v53, 0
  %v140 = vsel %vm126, %v54, 0
  %v143 = vsel %vm126, %v55, 0
  %v146 = vsel %vm126, %v56, 0
  %v149 = vsel %vm126, %v57, 0
  %v152 = vsel %vm126, %v58, 0
  %v155 = vsel %vm126, %v59, 0
  %v158 = vsel %vm126, %v60, 0
  %v161 = vsel %vm126, %v61, 0
  %v164 = vsel %vm126, %v62, 0
  %v167 = vsel %vm126, %v63, 0
  %v170 = vsel %vm126, %v64, 0
  %v173 = vsel %vm126, %v65, 0
  %v176 = vsel %vm126, %v66, 0
  %v179 = vsel %vm126, %v67, 0
  %v182 = vsel %vm126, %v68, 0
  %v185 = vsel %vm126, %v69, 0
  %v188 = vsel %vm126, %v70, 0
  %v191 = vsel %vm126, %v71, 0
  %v194 = vsel %vm126, %v72, 0
  %v197 = vsel %vm126, %v73, 0
  %v200 = vsel %vm126, %v74, 0
  %v203 = vsel %vm126, %v75, 0
  %v206 = vsel %vm126, %v76, 0
  %v209 = vsel %vm126, %v77, 0
  %v212 = vsel %vm126, %v78, 0
  %v215 = vsel %vm126, %v79, 0
  %v218 = vsel %vm126, %v80, 0
  %v221 = vsel %vm126, %v81, 0
  %v224 = vsel %vm126, %v82, 0
  %v227 = vsel %vm126, %v83, 0
  %v230 = vsel %vm126, %v84, 0
  %v233 = vsel %vm126, %v85, 0
  %v236 = vsel %vm126, %v86, 0
  %v239 = vsel %vm126, %v87, 0
  %v242 = vsel %vm126, %v88, 0
  %v245 = vsel %vm126, %v89, 0
  %v248 = vsel %vm126, %v90, 0
  %v251 = vsel %vm126, %v91, 0
  %v254 = vsel %vm126, %v92, 0
  %v257 = vsel %vm126, %v93, 0
  %v260 = vsel %vm126, %v94, 0
  %v263 = vsel %vm126, %v95, 0
  %v266 = vsel %vm126, %v96, 0
  %v269 = vsel %vm126, %v97, 0
  %v272 = vsel %vm126, %v98, 0
  %v275 = vsel %vm126, %v99, 0
  %v278 = vsel %vm126, %v100, 0
  %v281 = vsel %vm126, %v101, 0
  %v284 = vsel %vm126, %v102, 0
  %v287 = vsel %vm126, %v103, 0
  %v290 = vsel %vm126, %v104, 0
  %v293 = vsel %vm126, %v105, 0
  %v296 = vsel %vm126, %v106, 0
  %v299 = vsel %vm126, %v107, 0
  %v302 = vsel %vm126, %v108, 0
  %v305 = vsel %vm126, %v109, 0
  %vm307 = vcmask 1045504
  %v309 = vsel %vm307, %v112, 0
  %v312 = vsel %vm307, %v113, 0
  %314 = vmatprep.subr.mxu0 0.0
  %315 = vmatpush1.msra.mxu0 0.0
  %316 = vmatprep.subr.mxu0 0.0
  %317 = vmatpush1.msra.mxu0 0.0
  %318 = vmatprep.subr.mxu0 0.0
  %319 = vmatpush1.msra.mxu0 0.0
  %320 = vmatprep.subr.mxu0 0.0
  %321 = vmatpush1.msra.mxu0 0.0
  %322 = vmatprep.subr.mxu0 0.0
  %323 = vmatpush1.msra.mxu0 0.0
  %324 = vmatprep.subr.mxu0 0.0
  %325 = vmatpush1.msra.mxu0 0.0
  %326 = vmatprep.subr.mxu0 0.0
  %327 = vmatpush1.msra.mxu0 0.0
  %328 = vmatprep.subr.mxu0 0.0
  %329 = vmatpush1.msra.mxu0 0.0
  %330 = vmatprep.subr.mxu0 0.0
  %331 = vmatpush1.msra.mxu0 0.0
  %332 = vmatprep.subr.mxu0 0.0
  %333 = vmatpush1.msra.mxu0 0.0
  %334 = vmatprep.subr.mxu0 0.0
  %335 = vmatpush1.msra.mxu0 0.0
  %336 = vmatprep.subr.mxu0 0.0
  %337 = vmatpush1.msra.mxu0 0.0
  %338 = vmatprep.subr.mxu0 0.0
  %339 = vmatpush1.msra.mxu0 0.0
  %340 = vmatprep.subr.mxu0 0.0
  %341 = vmatpush1.msra.mxu0 0.0
  %342 = vmatprep.subr.mxu0 %v312
  %343 = vmatpush1.msra.mxu0 %v309
  %344 = vmatprep.subr.mxu0 %v111
  %345 = vmatpush1.msra.mxu0 %v110
  %346 = vmatprep.subr.mxu0 0.0
  %347 = vmatpush2.msra.mxu0 0.0
  %348 = vmatprep.subr.mxu0 0.0
  %349 = vmatpush2.msra.mxu0 0.0
  %350 = vmatprep.subr.mxu0 0.0
  %351 = vmatpush2.msra.mxu0 0.0
  %352 = vmatprep.subr.mxu0 0.0
  %353 = vmatpush2.msra.mxu0 0.0
  %354 = vmatprep.subr.mxu0 0.0
  %355 = vmatpush2.msra.mxu0 0.0
  %356 = vmatprep.subr.mxu0 0.0
  %357 = vmatpush2.msra.mxu0 0.0
  %358 = vmatprep.subr.mxu0 0.0
  %359 = vmatpush2.msra.mxu0 0.0
  %360 = vmatprep.subr.mxu0 0.0
  %361 = vmatpush2.msra.mxu0 0.0
  %362 = vmatprep.subr.mxu0 0.0
  %363 = vmatpush2.msra.mxu0 0.0
  %364 = vmatprep.subr.mxu0 0.0
  %365 = vmatpush2.msra.mxu0 0.0
  %366 = vmatprep.subr.mxu0 0.0
  %367 = vmatpush2.msra.mxu0 0.0
  %368 = vmatprep.subr.mxu0 0.0
  %369 = vmatpush2.msra.mxu0 0.0
  %370 = vmatprep.subr.mxu0 0.0
  %371 = vmatpush2.msra.mxu0 0.0
  %372 = vmatprep.subr.mxu0 0.0
  %373 = vmatpush2.msra.mxu0 0.0
  %374 = vmatprep.subr.mxu0 0.0
  %375 = vmatpush2.msra.mxu0 0.0
  %376 = vmatprep.subr.mxu0 0.0
  %377 = vmatpush2.msra.mxu0 0.0
  %378 = vmatprep.mubr.f32.mxu0 0.0
  %379 = vmatmul.mubr.f32.gmra.mxu0 %v128
  %v380 = vpop.f32.mrf.mxu0
  %v381 = vadd.f32 %v119, %v380
  %v382 = vpop.f32.mrf.mxu0
  %v383 = vadd.f32 %v123, %v382
  %384 = vmatprep.mubr.f32.mxu0 0.0
  %385 = vmatmul.mubr.f32.gmra.mxu0 %v131
  %v386 = vpop.f32.mrf.mxu0
  %v387 = vadd.f32 %v119, %v386
  %v388 = vpop.f32.mrf.mxu0
  %v389 = vadd.f32 %v123, %v388
  %390 = vmatprep.mubr.f32.mxu0 0.0
  %391 = vmatmul.mubr.f32.gmra.mxu0 %v134
  %v392 = vpop.f32.mrf.mxu0
  %v393 = vadd.f32 %v119, %v392
  %v394 = vpop.f32.mrf.mxu0
  %v395 = vadd.f32 %v123, %v394
  %396 = vmatprep.mubr.f32.mxu0 0.0
  %397 = vmatmul.mubr.f32.gmra.mxu0 %v137
  %v398 = vpop.f32.mrf.mxu0
  %v399 = vadd.f32 %v119, %v398
  %v400 = vpop.f32.mrf.mxu0
  %v401 = vadd.f32 %v123, %v400
  %402 = vmatprep.mubr.f32.mxu0 0.0
  %403 = vmatmul.mubr.f32.gmra.mxu0 %v140
  %v404 = vpop.f32.mrf.mxu0
  %v405 = vadd.f32 %v119, %v404
  %v406 = vpop.f32.mrf.mxu0
  %v407 = vadd.f32 %v123, %v406
  %408 = vmatprep.mubr.f32.mxu0 0.0
  %409 = vmatmul.mubr.f32.gmra.mxu0 %v143
  %v410 = vpop.f32.mrf.mxu0
  %v411 = vadd.f32 %v119, %v410
  %v412 = vpop.f32.mrf.mxu0
  %v413 = vadd.f32 %v123, %v412
  %414 = vmatprep.mubr.f32.mxu0 0.0
  %415 = vmatmul.mubr.f32.gmra.mxu0 %v146
  %v416 = vpop.f32.mrf.mxu0
  %v417 = vadd.f32 %v119, %v416
  %v418 = vpop.f32.mrf.mxu0
  %v419 = vadd.f32 %v123, %v418
  %420 = vmatprep.mubr.f32.mxu0 0.0
  %421 = vmatmul.mubr.f32.gmra.mxu0 %v149
  %v422 = vpop.f32.mrf.mxu0
  %v423 = vadd.f32 %v119, %v422
  %v424 = vpop.f32.mrf.mxu0
  %v425 = vadd.f32 %v123, %v424
  %426 = vmatprep.mubr.f32.mxu0 0.0
  %427 = vmatmul.mubr.f32.gmra.mxu0 %v152
  %v428 = vpop.f32.mrf.mxu0
  %v429 = vadd.f32 %v119, %v428
  %v430 = vpop.f32.mrf.mxu0
  %v431 = vadd.f32 %v123, %v430
  %432 = vmatprep.mubr.f32.mxu0 0.0
  %433 = vmatmul.mubr.f32.gmra.mxu0 %v155
  %v434 = vpop.f32.mrf.mxu0
  %v435 = vadd.f32 %v119, %v434
  %v436 = vpop.f32.mrf.mxu0
  %v437 = vadd.f32 %v123, %v436
  %438 = vmatprep.mubr.f32.mxu0 0.0
  %439 = vmatmul.mubr.f32.gmra.mxu0 %v158
  %v440 = vpop.f32.mrf.mxu0
  %v441 = vadd.f32 %v119, %v440
  %v442 = vpop.f32.mrf.mxu0
  %v443 = vadd.f32 %v123, %v442
  %444 = vmatprep.mubr.f32.mxu0 0.0
  %445 = vmatmul.mubr.f32.gmra.mxu0 %v161
  %v446 = vpop.f32.mrf.mxu0
  %v447 = vadd.f32 %v119, %v446
  %v448 = vpop.f32.mrf.mxu0
  %v449 = vadd.f32 %v123, %v448
  %450 = vmatprep.mubr.f32.mxu0 0.0
  %451 = vmatmul.mubr.f32.gmra.mxu0 %v164
  %v452 = vpop.f32.mrf.mxu0
  %v453 = vadd.f32 %v119, %v452
  %v454 = vpop.f32.mrf.mxu0
  %v455 = vadd.f32 %v123, %v454
  %456 = vmatprep.mubr.f32.mxu0 0.0
  %457 = vmatmul.mubr.f32.gmra.mxu0 %v167
  %v458 = vpop.f32.mrf.mxu0
  %v459 = vadd.f32 %v119, %v458
  %v460 = vpop.f32.mrf.mxu0
  %v461 = vadd.f32 %v123, %v460
  %462 = vmatprep.mubr.f32.mxu0 0.0
  %463 = vmatmul.mubr.f32.gmra.mxu0 %v170
  %v464 = vpop.f32.mrf.mxu0
  %v465 = vadd.f32 %v119, %v464
  %v466 = vpop.f32.mrf.mxu0
  %v467 = vadd.f32 %v123, %v466
  %468 = vmatprep.mubr.f32.mxu0 0.0
  %469 = vmatmul.mubr.f32.gmra.mxu0 %v173
  %v470 = vpop.f32.mrf.mxu0
  %v471 = vadd.f32 %v119, %v470
  %v472 = vpop.f32.mrf.mxu0
  %v473 = vadd.f32 %v123, %v472
  %474 = vmatprep.mubr.f32.mxu0 0.0
  %475 = vmatmul.mubr.f32.gmra.mxu0 %v176
  %v476 = vpop.f32.mrf.mxu0
  %v477 = vadd.f32 %v119, %v476
  %v478 = vpop.f32.mrf.mxu0
  %v479 = vadd.f32 %v123, %v478
  %480 = vmatprep.mubr.f32.mxu0 0.0
  %481 = vmatmul.mubr.f32.gmra.mxu0 %v179
  %v482 = vpop.f32.mrf.mxu0
  %v483 = vadd.f32 %v119, %v482
  %v484 = vpop.f32.mrf.mxu0
  %v485 = vadd.f32 %v123, %v484
  %486 = vmatprep.mubr.f32.mxu0 0.0
  %487 = vmatmul.mubr.f32.gmra.mxu0 %v182
  %v488 = vpop.f32.mrf.mxu0
  %v489 = vadd.f32 %v119, %v488
  %v490 = vpop.f32.mrf.mxu0
  %v491 = vadd.f32 %v123, %v490
  %492 = vmatprep.mubr.f32.mxu0 0.0
  %493 = vmatmul.mubr.f32.gmra.mxu0 %v185
  %v494 = vpop.f32.mrf.mxu0
  %v495 = vadd.f32 %v119, %v494
  %v496 = vpop.f32.mrf.mxu0
  %v497 = vadd.f32 %v123, %v496
  %498 = vmatprep.mubr.f32.mxu0 0.0
  %499 = vmatmul.mubr.f32.gmra.mxu0 %v188
  %v500 = vpop.f32.mrf.mxu0
  %v501 = vadd.f32 %v119, %v500
  %v502 = vpop.f32.mrf.mxu0
  %v503 = vadd.f32 %v123, %v502
  %504 = vmatprep.mubr.f32.mxu0 0.0
  %505 = vmatmul.mubr.f32.gmra.mxu0 %v191
  %v506 = vpop.f32.mrf.mxu0
  %v507 = vadd.f32 %v119, %v506
  %v508 = vpop.f32.mrf.mxu0
  %v509 = vadd.f32 %v123, %v508
  %510 = vmatprep.mubr.f32.mxu0 0.0
  %511 = vmatmul.mubr.f32.gmra.mxu0 %v194
  %v512 = vpop.f32.mrf.mxu0
  %v513 = vadd.f32 %v119, %v512
  %v514 = vpop.f32.mrf.mxu0
  %v515 = vadd.f32 %v123, %v514
  %516 = vmatprep.mubr.f32.mxu0 0.0
  %517 = vmatmul.mubr.f32.gmra.mxu0 %v197
  %v518 = vpop.f32.mrf.mxu0
  %v519 = vadd.f32 %v119, %v518
  %v520 = vpop.f32.mrf.mxu0
  %v521 = vadd.f32 %v123, %v520
  %522 = vmatprep.mubr.f32.mxu0 0.0
  %523 = vmatmul.mubr.f32.gmra.mxu0 %v200
  %v524 = vpop.f32.mrf.mxu0
  %v525 = vadd.f32 %v119, %v524
  %v526 = vpop.f32.mrf.mxu0
  %v527 = vadd.f32 %v123, %v526
  %528 = vmatprep.mubr.f32.mxu0 0.0
  %529 = vmatmul.mubr.f32.gmra.mxu0 %v203
  %v530 = vpop.f32.mrf.mxu0
  %v531 = vadd.f32 %v119, %v530
  %v532 = vpop.f32.mrf.mxu0
  %v533 = vadd.f32 %v123, %v532
  %534 = vmatprep.mubr.f32.mxu0 0.0
  %535 = vmatmul.mubr.f32.gmra.mxu0 %v206
  %v536 = vpop.f32.mrf.mxu0
  %v537 = vadd.f32 %v119, %v536
  %v538 = vpop.f32.mrf.mxu0
  %v539 = vadd.f32 %v123, %v538
  %540 = vmatprep.mubr.f32.mxu0 0.0
  %541 = vmatmul.mubr.f32.gmra.mxu0 %v209
  %v542 = vpop.f32.mrf.mxu0
  %v543 = vadd.f32 %v119, %v542
  %v544 = vpop.f32.mrf.mxu0
  %v545 = vadd.f32 %v123, %v544
  %546 = vmatprep.mubr.f32.mxu0 0.0
  %547 = vmatmul.mubr.f32.gmra.mxu0 %v212
  %v548 = vpop.f32.mrf.mxu0
  %v549 = vadd.f32 %v119, %v548
  %v550 = vpop.f32.mrf.mxu0
  %v551 = vadd.f32 %v123, %v550
  %552 = vmatprep.mubr.f32.mxu0 0.0
  %553 = vmatmul.mubr.f32.gmra.mxu0 %v215
  %v554 = vpop.f32.mrf.mxu0
  %v555 = vadd.f32 %v119, %v554
  %v556 = vpop.f32.mrf.mxu0
  %v557 = vadd.f32 %v123, %v556
  %558 = vmatprep.mubr.f32.mxu0 0.0
  %559 = vmatmul.mubr.f32.gmra.mxu0 %v218
  %v560 = vpop.f32.mrf.mxu0
  %v561 = vadd.f32 %v119, %v560
  %v562 = vpop.f32.mrf.mxu0
  %v563 = vadd.f32 %v123, %v562
  %564 = vmatprep.mubr.f32.mxu0 0.0
  %565 = vmatmul.mubr.f32.gmra.mxu0 %v221
  %v566 = vpop.f32.mrf.mxu0
  %v567 = vadd.f32 %v119, %v566
  %v568 = vpop.f32.mrf.mxu0
  %v569 = vadd.f32 %v123, %v568
  %570 = vmatprep.mubr.f32.mxu0 0.0
  %571 = vmatmul.mubr.f32.gmra.mxu0 %v224
  %v572 = vpop.f32.mrf.mxu0
  %v573 = vadd.f32 %v119, %v572
  %v574 = vpop.f32.mrf.mxu0
  %v575 = vadd.f32 %v123, %v574
  %576 = vmatprep.mubr.f32.mxu0 0.0
  %577 = vmatmul.mubr.f32.gmra.mxu0 %v227
  %v578 = vpop.f32.mrf.mxu0
  %v579 = vadd.f32 %v119, %v578
  %v580 = vpop.f32.mrf.mxu0
  %v581 = vadd.f32 %v123, %v580
  %582 = vmatprep.mubr.f32.mxu0 0.0
  %583 = vmatmul.mubr.f32.gmra.mxu0 %v230
  %v584 = vpop.f32.mrf.mxu0
  %v585 = vadd.f32 %v119, %v584
  %v586 = vpop.f32.mrf.mxu0
  %v587 = vadd.f32 %v123, %v586
  %588 = vmatprep.mubr.f32.mxu0 0.0
  %589 = vmatmul.mubr.f32.gmra.mxu0 %v233
  %v590 = vpop.f32.mrf.mxu0
  %v591 = vadd.f32 %v119, %v590
  %v592 = vpop.f32.mrf.mxu0
  %v593 = vadd.f32 %v123, %v592
  %594 = vmatprep.mubr.f32.mxu0 0.0
  %595 = vmatmul.mubr.f32.gmra.mxu0 %v236
  %v596 = vpop.f32.mrf.mxu0
  %v597 = vadd.f32 %v119, %v596
  %v598 = vpop.f32.mrf.mxu0
  %v599 = vadd.f32 %v123, %v598
  %600 = vmatprep.mubr.f32.mxu0 0.0
  %601 = vmatmul.mubr.f32.gmra.mxu0 %v239
  %v602 = vpop.f32.mrf.mxu0
  %v603 = vadd.f32 %v119, %v602
  %v604 = vpop.f32.mrf.mxu0
  %v605 = vadd.f32 %v123, %v604
  %606 = vmatprep.mubr.f32.mxu0 0.0
  %607 = vmatmul.mubr.f32.gmra.mxu0 %v242
  %v608 = vpop.f32.mrf.mxu0
  %v609 = vadd.f32 %v119, %v608
  %v610 = vpop.f32.mrf.mxu0
  %v611 = vadd.f32 %v123, %v610
  %612 = vmatprep.mubr.f32.mxu0 0.0
  %613 = vmatmul.mubr.f32.gmra.mxu0 %v245
  %v614 = vpop.f32.mrf.mxu0
  %v615 = vadd.f32 %v119, %v614
  %v616 = vpop.f32.mrf.mxu0
  %v617 = vadd.f32 %v123, %v616
  %618 = vmatprep.mubr.f32.mxu0 0.0
  %619 = vmatmul.mubr.f32.gmra.mxu0 %v248
  %v620 = vpop.f32.mrf.mxu0
  %v621 = vadd.f32 %v119, %v620
  %v622 = vpop.f32.mrf.mxu0
  %v623 = vadd.f32 %v123, %v622
  %624 = vmatprep.mubr.f32.mxu0 0.0
  %625 = vmatmul.mubr.f32.gmra.mxu0 %v251
  %v626 = vpop.f32.mrf.mxu0
  %v627 = vadd.f32 %v119, %v626
  %v628 = vpop.f32.mrf.mxu0
  %v629 = vadd.f32 %v123, %v628
  %630 = vmatprep.mubr.f32.mxu0 0.0
  %631 = vmatmul.mubr.f32.gmra.mxu0 %v254
  %v632 = vpop.f32.mrf.mxu0
  %v633 = vadd.f32 %v119, %v632
  %v634 = vpop.f32.mrf.mxu0
  %v635 = vadd.f32 %v123, %v634
  %636 = vmatprep.mubr.f32.mxu0 0.0
  %637 = vmatmul.mubr.f32.gmra.mxu0 %v257
  %v638 = vpop.f32.mrf.mxu0
  %v639 = vadd.f32 %v119, %v638
  %v640 = vpop.f32.mrf.mxu0
  %v641 = vadd.f32 %v123, %v640
  %642 = vmatprep.mubr.f32.mxu0 0.0
  %643 = vmatmul.mubr.f32.gmra.mxu0 %v260
  %v644 = vpop.f32.mrf.mxu0
  %v645 = vadd.f32 %v119, %v644
  %v646 = vpop.f32.mrf.mxu0
  %v647 = vadd.f32 %v123, %v646
  %648 = vmatprep.mubr.f32.mxu0 0.0
  %649 = vmatmul.mubr.f32.gmra.mxu0 %v263
  %v650 = vpop.f32.mrf.mxu0
  %v651 = vadd.f32 %v119, %v650
  %v652 = vpop.f32.mrf.mxu0
  %v653 = vadd.f32 %v123, %v652
  %654 = vmatprep.mubr.f32.mxu0 0.0
  %655 = vmatmul.mubr.f32.gmra.mxu0 %v266
  %v656 = vpop.f32.mrf.mxu0
  %v657 = vadd.f32 %v119, %v656
  %v658 = vpop.f32.mrf.mxu0
  %v659 = vadd.f32 %v123, %v658
  %660 = vmatprep.mubr.f32.mxu0 0.0
  %661 = vmatmul.mubr.f32.gmra.mxu0 %v269
  %v662 = vpop.f32.mrf.mxu0
  %v663 = vadd.f32 %v119, %v662
  %v664 = vpop.f32.mrf.mxu0
  %v665 = vadd.f32 %v123, %v664
  %666 = vmatprep.mubr.f32.mxu0 0.0
  %667 = vmatmul.mubr.f32.gmra.mxu0 %v272
  %v668 = vpop.f32.mrf.mxu0
  %v669 = vadd.f32 %v119, %v668
  %v670 = vpop.f32.mrf.mxu0
  %v671 = vadd.f32 %v123, %v670
  %672 = vmatprep.mubr.f32.mxu0 0.0
  %673 = vmatmul.mubr.f32.gmra.mxu0 %v275
  %v674 = vpop.f32.mrf.mxu0
  %v675 = vadd.f32 %v119, %v674
  %v676 = vpop.f32.mrf.mxu0
  %v677 = vadd.f32 %v123, %v676
  %678 = vmatprep.mubr.f32.mxu0 0.0
  %679 = vmatmul.mubr.f32.gmra.mxu0 %v278
  %v680 = vpop.f32.mrf.mxu0
  %v681 = vadd.f32 %v119, %v680
  %v682 = vpop.f32.mrf.mxu0
  %v683 = vadd.f32 %v123, %v682
  %684 = vmatprep.mubr.f32.mxu0 0.0
  %685 = vmatmul.mubr.f32.gmra.mxu0 %v281
  %v686 = vpop.f32.mrf.mxu0
  %v687 = vadd.f32 %v119, %v686
  %v688 = vpop.f32.mrf.mxu0
  %v689 = vadd.f32 %v123, %v688
  %690 = vmatprep.mubr.f32.mxu0 0.0
  %691 = vmatmul.mubr.f32.gmra.mxu0 %v284
  %v692 = vpop.f32.mrf.mxu0
  %v693 = vadd.f32 %v119, %v692
  %v694 = vpop.f32.mrf.mxu0
  %v695 = vadd.f32 %v123, %v694
  %696 = vmatprep.mubr.f32.mxu0 0.0
  %697 = vmatmul.mubr.f32.gmra.mxu0 %v287
  %v698 = vpop.f32.mrf.mxu0
  %v699 = vadd.f32 %v119, %v698
  %v700 = vpop.f32.mrf.mxu0
  %v701 = vadd.f32 %v123, %v700
  %702 = vmatprep.mubr.f32.mxu0 0.0
  %703 = vmatmul.mubr.f32.gmra.mxu0 %v290
  %v704 = vpop.f32.mrf.mxu0
  %v705 = vadd.f32 %v119, %v704
  %v706 = vpop.f32.mrf.mxu0
  %v707 = vadd.f32 %v123, %v706
  %708 = vmatprep.mubr.f32.mxu0 0.0
  %709 = vmatmul.mubr.f32.gmra.mxu0 %v293
  %v710 = vpop.f32.mrf.mxu0
  %v711 = vadd.f32 %v119, %v710
  %v712 = vpop.f32.mrf.mxu0
  %v713 = vadd.f32 %v123, %v712
  %714 = vmatprep.mubr.f32.mxu0 0.0
  %715 = vmatmul.mubr.f32.gmra.mxu0 %v296
  %v716 = vpop.f32.mrf.mxu0
  %v717 = vadd.f32 %v119, %v716
  %v718 = vpop.f32.mrf.mxu0
  %v719 = vadd.f32 %v123, %v718
  %720 = vmatprep.mubr.f32.mxu0 0.0
  %721 = vmatmul.mubr.f32.gmra.mxu0 %v299
  %v722 = vpop.f32.mrf.mxu0
  %v723 = vadd.f32 %v119, %v722
  %v724 = vpop.f32.mrf.mxu0
  %v725 = vadd.f32 %v123, %v724
  %726 = vmatprep.mubr.f32.mxu0 0.0
  %727 = vmatmul.mubr.f32.gmra.mxu0 %v302
  %v728 = vpop.f32.mrf.mxu0
  %v729 = vadd.f32 %v119, %v728
  %v730 = vpop.f32.mrf.mxu0
  %v731 = vadd.f32 %v123, %v730
  %732 = vmatprep.mubr.f32.mxu0 0.0
  %733 = vmatmul.mubr.f32.gmra.mxu0 %v305
  %v734 = vpop.f32.mrf.mxu0
  %v735 = vadd.f32 %v119, %v734
  %v736 = vpop.f32.mrf.mxu0
  %v737 = vadd.f32 %v123, %v736
  %738 = vdwg.mxu0
  %v739 = vtanh.pop %v381
  %v740 = vtanh.pop %v383
  %v741 = vtanh.pop %v387
  %v742 = vtanh.pop %v389
  %v743 = vtanh.pop %v393
  %v744 = vtanh.pop %v395
  %v745 = vtanh.pop %v399
  %v746 = vtanh.pop %v401
  %v747 = vtanh.pop %v405
  %v748 = vtanh.pop %v407
  %v749 = vtanh.pop %v411
  %v750 = vtanh.pop %v413
  %v751 = vtanh.pop %v417
  %v752 = vtanh.pop %v419
  %v753 = vtanh.pop %v423
  %v754 = vtanh.pop %v425
  %v755 = vtanh.pop %v429
  %v756 = vtanh.pop %v431
  %v757 = vtanh.pop %v435
  %v758 = vtanh.pop %v437
  %v759 = vtanh.pop %v441
  %v760 = vtanh.pop %v443
  %v761 = vtanh.pop %v447
  %v762 = vtanh.pop %v449
  %v763 = vtanh.pop %v453
  %v764 = vtanh.pop %v455
  %v765 = vtanh.pop %v459
  %v766 = vtanh.pop %v461
  %v767 = vtanh.pop %v465
  %v768 = vtanh.pop %v467
  %v769 = vtanh.pop %v471
  %v770 = vtanh.pop %v473
  %v771 = vtanh.pop %v477
  %v772 = vtanh.pop %v479
  %v773 = vtanh.pop %v483
  %v774 = vtanh.pop %v485
  %v775 = vtanh.pop %v489
  %v776 = vtanh.pop %v491
  %v777 = vtanh.pop %v495
  %v778 = vtanh.pop %v497
  %v779 = vtanh.pop %v501
  %v780 = vtanh.pop %v503
  %v781 = vtanh.pop %v507
  %v782 = vtanh.pop %v509
  %v783 = vtanh.pop %v513
  %v784 = vtanh.pop %v515
  %v785 = vtanh.pop %v519
  %v786 = vtanh.pop %v521
  %v787 = vtanh.pop %v525
  %v788 = vtanh.pop %v527
  %v789 = vtanh.pop %v531
  %v790 = vtanh.pop %v533
  %v791 = vtanh.pop %v537
  %v792 = vtanh.pop %v539
  %v793 = vtanh.pop %v543
  %v794 = vtanh.pop %v545
  %v795 = vtanh.pop %v549
  %v796 = vtanh.pop %v551
  %v797 = vtanh.pop %v555
  %v798 = vtanh.pop %v557
  %v799 = vtanh.pop %v561
  %v800 = vtanh.pop %v563
  %v801 = vtanh.pop %v567
  %v802 = vtanh.pop %v569
  %v803 = vtanh.pop %v573
  %v804 = vtanh.pop %v575
  %v805 = vtanh.pop %v579
  %v806 = vtanh.pop %v581
  %v807 = vtanh.pop %v585
  %v808 = vtanh.pop %v587
  %v809 = vtanh.pop %v591
  %v810 = vtanh.pop %v593
  %v811 = vtanh.pop %v597
  %v812 = vtanh.pop %v599
  %v813 = vtanh.pop %v603
  %v814 = vtanh.pop %v605
  %v815 = vtanh.pop %v609
  %v816 = vtanh.pop %v611
  %v817 = vtanh.pop %v615
  %v818 = vtanh.pop %v617
  %v819 = vtanh.pop %v621
  %v820 = vtanh.pop %v623
  %v821 = vtanh.pop %v627
  %v822 = vtanh.pop %v629
  %v823 = vtanh.pop %v633
  %v824 = vtanh.pop %v635
  %v825 = vtanh.pop %v639
  %v826 = vtanh.pop %v641
  %v827 = vtanh.pop %v645
  %v828 = vtanh.pop %v647
  %v829 = vtanh.pop %v651
  %v830 = vtanh.pop %v653
  %v831 = vtanh.pop %v657
  %v832 = vtanh.pop %v659
  %v833 = vtanh.pop %v663
  %v834 = vtanh.pop %v665
  %v835 = vtanh.pop %v669
  %v836 = vtanh.pop %v671
  %v837 = vtanh.pop %v675
  %v838 = vtanh.pop %v677
  %v839 = vtanh.pop %v681
  %v840 = vtanh.pop %v683
  %v841 = vtanh.pop %v687
  %v842 = vtanh.pop %v689
  %v843 = vtanh.pop %v693
  %v844 = vtanh.pop %v695
  %v845 = vtanh.pop %v699
  %v846 = vtanh.pop %v701
  %v847 = vtanh.pop %v705
  %v848 = vtanh.pop %v707
  %v849 = vtanh.pop %v711
  %v850 = vtanh.pop %v713
  %v851 = vtanh.pop %v717
  %v852 = vtanh.pop %v719
  %v853 = vtanh.pop %v723
  %v854 = vtanh.pop %v725
  %v855 = vtanh.pop %v729
  %v856 = vtanh.pop %v731
  %v857 = vtanh.pop %v735
  %v858 = vtanh.pop %v737
  %v859 = vld [vmem:[%s3] sm:$0xff]
  %v860 = vld [vmem:[%s3 + $0x8] sm:$0xff]
  %v861 = vld [vmem:[%s3 + $0x10] sm:$0xff]
  %v862 = vld [vmem:[%s3 + $0x18] sm:$0xff]
  %v863 = vld [vmem:[%s3 + $0x20] sm:$0xff]
  %v864 = vld [vmem:[%s3 + $0x28] sm:$0xff]
  %v865 = vld [vmem:[%s3 + $0x30] sm:$0xff]
  %v866 = vld [vmem:[%s3 + $0x38] sm:$0xff]
  %v867 = vld [vmem:[%s3 + $0x40] sm:$0xff]
  %v868 = vld [vmem:[%s3 + $0x48] sm:$0xff]
  %v869 = vld [vmem:[%s3 + $0x50] sm:$0xff]
  %v870 = vld [vmem:[%s3 + $0x58] sm:$0xff]
  %v871 = vld [vmem:[%s3 + $0x60] sm:$0xff]
  %v872 = vld [vmem:[%s3 + $0x68] sm:$0xff]
  %v873 = vld [vmem:[%s3 + $0x70] sm:$0xff]
  %v874 = vld [vmem:[%s3 + $0x78] sm:$0xff]
  %v875 = vld [vmem:[%s3 + $0x80] sm:$0xff]
  %v876 = vld [vmem:[%s3 + $0x88] sm:$0xff]
  %v877 = vld [vmem:[%s3 + $0x90] sm:$0xff]
  %v878 = vld [vmem:[%s3 + $0x98] sm:$0xff]
  %v879 = vld [vmem:[%s3 + $0xa0] sm:$0xff]
  %v880 = vld [vmem:[%s3 + $0xa8] sm:$0xff]
  %v881 = vld [vmem:[%s3 + $0xb0] sm:$0xff]
  %v882 = vld [vmem:[%s3 + $0xb8] sm:$0xff]
  %v883 = vld [vmem:[%s3 + $0xc0] sm:$0xff]
  %v884 = vld [vmem:[%s3 + $0xc8] sm:$0xff]
  %v885 = vld [vmem:[%s3 + $0xd0] sm:$0xff]
  %v886 = vld [vmem:[%s3 + $0xd8] sm:$0xff]
  %v887 = vld [vmem:[%s3 + $0xe0] sm:$0xff]
  %v888 = vld [vmem:[%s3 + $0xe8] sm:$0xff]
  %v889 = vld [vmem:[%s3 + $0xf0] sm:$0xff]
  %v890 = vld [vmem:[%s3 + $0xf8] sm:$0xff]
  %v891 = vld [vmem:[%s3 + $0x100] sm:$0xff]
  %v892 = vld [vmem:[%s3 + $0x108] sm:$0xff]
  %v893 = vld [vmem:[%s3 + $0x110] sm:$0xff]
  %v894 = vld [vmem:[%s3 + $0x118] sm:$0xff]
  %v895 = vld [vmem:[%s3 + $0x120] sm:$0x3f]
  %v896 = vld [vmem:[%s3 + $0x128] sm:$0x3f]
  %v897 = vld [vmem:[%s4] sm:$0x3]
  %v899 = vlaneseq
  %v900 = vshrl.u32 %v899, 7
  %v901 = vsub.s32 0, %v900
  %v902 = vrot.slane %v897, %v901
  %v903 = vlaneseq
  %v904 = vshrl.u32 %v903, 7
  %v905 = vsub.s32 1, %v904
  %v906 = vrot.slane %v897, %v905
  %vm909 = vcmask 179200
  %v911 = vsel %vm909, %v740, 0
  %v914 = vsel %vm909, %v742, 0
  %v917 = vsel %vm909, %v744, 0
  %v920 = vsel %vm909, %v746, 0
  %v923 = vsel %vm909, %v748, 0
  %v926 = vsel %vm909, %v750, 0
  %v929 = vsel %vm909, %v752, 0
  %v932 = vsel %vm909, %v754, 0
  %v935 = vsel %vm909, %v756, 0
  %v938 = vsel %vm909, %v758, 0
  %v941 = vsel %vm909, %v760, 0
  %v944 = vsel %vm909, %v762, 0
  %v947 = vsel %vm909, %v764, 0
  %v950 = vsel %vm909, %v766, 0
  %v953 = vsel %vm909, %v768, 0
  %v956 = vsel %vm909, %v770, 0
  %v959 = vsel %vm909, %v772, 0
  %v962 = vsel %vm909, %v774, 0
  %v965 = vsel %vm909, %v776, 0
  %v968 = vsel %vm909, %v778, 0
  %v971 = vsel %vm909, %v780, 0
  %v974 = vsel %vm909, %v782, 0
  %v977 = vsel %vm909, %v784, 0
  %v980 = vsel %vm909, %v786, 0
  %v983 = vsel %vm909, %v788, 0
  %v986 = vsel %vm909, %v790, 0
  %v989 = vsel %vm909, %v792, 0
  %v992 = vsel %vm909, %v794, 0
  %v995 = vsel %vm909, %v796, 0
  %v998 = vsel %vm909, %v798, 0
  %v1001 = vsel %vm909, %v800, 0
  %v1004 = vsel %vm909, %v802, 0
  %v1007 = vsel %vm909, %v804, 0
  %v1010 = vsel %vm909, %v806, 0
  %v1013 = vsel %vm909, %v808, 0
  %v1016 = vsel %vm909, %v810, 0
  %v1019 = vsel %vm909, %v812, 0
  %v1022 = vsel %vm909, %v814, 0
  %v1025 = vsel %vm909, %v816, 0
  %v1028 = vsel %vm909, %v818, 0
  %v1031 = vsel %vm909, %v820, 0
  %v1034 = vsel %vm909, %v822, 0
  %v1037 = vsel %vm909, %v824, 0
  %v1040 = vsel %vm909, %v826, 0
  %v1043 = vsel %vm909, %v828, 0
  %v1046 = vsel %vm909, %v830, 0
  %v1049 = vsel %vm909, %v832, 0
  %v1052 = vsel %vm909, %v834, 0
  %v1055 = vsel %vm909, %v836, 0
  %v1058 = vsel %vm909, %v838, 0
  %v1061 = vsel %vm909, %v840, 0
  %v1064 = vsel %vm909, %v842, 0
  %v1067 = vsel %vm909, %v844, 0
  %v1070 = vsel %vm909, %v846, 0
  %v1073 = vsel %vm909, %v848, 0
  %v1076 = vsel %vm909, %v850, 0
  %v1079 = vsel %vm909, %v852, 0
  %v1082 = vsel %vm909, %v854, 0
  %v1085 = vsel %vm909, %v856, 0
  %v1088 = vsel %vm909, %v858, 0
  %v1091 = vsel %vm307, %v895, 0
  %v1094 = vsel %vm307, %v896, 0
  %1096 = vmatprep.subr.mxu0 %v890
  %1097 = vmatpush1.msra.mxu0 %v889
  %1098 = vmatprep.subr.mxu0 %v888
  %1099 = vmatpush1.msra.mxu0 %v887
  %1100 = vmatprep.subr.mxu0 %v886
  %1101 = vmatpush1.msra.mxu0 %v885
  %1102 = vmatprep.subr.mxu0 %v884
  %1103 = vmatpush1.msra.mxu0 %v883
  %1104 = vmatprep.subr.mxu0 %v882
  %1105 = vmatpush1.msra.mxu0 %v881
  %1106 = vmatprep.subr.mxu0 %v880
  %1107 = vmatpush1.msra.mxu0 %v879
  %1108 = vmatprep.subr.mxu0 %v878
  %1109 = vmatpush1.msra.mxu0 %v877
  %1110 = vmatprep.subr.mxu0 %v876
  %1111 = vmatpush1.msra.mxu0 %v875
  %1112 = vmatprep.subr.mxu0 %v874
  %1113 = vmatpush1.msra.mxu0 %v873
  %1114 = vmatprep.subr.mxu0 %v872
  %1115 = vmatpush1.msra.mxu0 %v871
  %1116 = vmatprep.subr.mxu0 %v870
  %1117 = vmatpush1.msra.mxu0 %v869
  %1118 = vmatprep.subr.mxu0 %v868
  %1119 = vmatpush1.msra.mxu0 %v867
  %1120 = vmatprep.subr.mxu0 %v866
  %1121 = vmatpush1.msra.mxu0 %v865
  %1122 = vmatprep.subr.mxu0 %v864
  %1123 = vmatpush1.msra.mxu0 %v863
  %1124 = vmatprep.subr.mxu0 %v862
  %1125 = vmatpush1.msra.mxu0 %v861
  %1126 = vmatprep.subr.mxu0 %v860
  %1127 = vmatpush1.msra.mxu0 %v859
  %1128 = vmatprep.subr.mxu0 0.0
  %1129 = vmatpush2.msra.mxu0 0.0
  %1130 = vmatprep.subr.mxu0 0.0
  %1131 = vmatpush2.msra.mxu0 0.0
  %1132 = vmatprep.subr.mxu0 0.0
  %1133 = vmatpush2.msra.mxu0 0.0
  %1134 = vmatprep.subr.mxu0 0.0
  %1135 = vmatpush2.msra.mxu0 0.0
  %1136 = vmatprep.subr.mxu0 0.0
  %1137 = vmatpush2.msra.mxu0 0.0
  %1138 = vmatprep.subr.mxu0 0.0
  %1139 = vmatpush2.msra.mxu0 0.0
  %1140 = vmatprep.subr.mxu0 0.0
  %1141 = vmatpush2.msra.mxu0 0.0
  %1142 = vmatprep.subr.mxu0 0.0
  %1143 = vmatpush2.msra.mxu0 0.0
  %1144 = vmatprep.subr.mxu0 0.0
  %1145 = vmatpush2.msra.mxu0 0.0
  %1146 = vmatprep.subr.mxu0 0.0
  %1147 = vmatpush2.msra.mxu0 0.0
  %1148 = vmatprep.subr.mxu0 0.0
  %1149 = vmatpush2.msra.mxu0 0.0
  %1150 = vmatprep.subr.mxu0 0.0
  %1151 = vmatpush2.msra.mxu0 0.0
  %1152 = vmatprep.subr.mxu0 0.0
  %1153 = vmatpush2.msra.mxu0 0.0
  %1154 = vmatprep.subr.mxu0 %v1094
  %1155 = vmatpush2.msra.mxu0 %v1091
  %1156 = vmatprep.subr.mxu0 %v894
  %1157 = vmatpush2.msra.mxu0 %v893
  %1158 = vmatprep.subr.mxu0 %v892
  %1159 = vmatpush2.msra.mxu0 %v891
  %1160 = vmatprep.mubr.f32.mxu0 %v911
  %1161 = vmatmul.mubr.f32.gmra.mxu0 %v739
  %v1162 = vpop.f32.mrf.mxu0
  %v1163 = vadd.f32 %v902, %v1162
  %v1164 = vpop.f32.mrf.mxu0
  %v1165 = vadd.f32 %v906, %v1164
  %1166 = vmatprep.mubr.f32.mxu0 %v914
  %1167 = vmatmul.mubr.f32.gmra.mxu0 %v741
  %v1168 = vpop.f32.mrf.mxu0
  %v1169 = vadd.f32 %v902, %v1168
  %v1170 = vpop.f32.mrf.mxu0
  %v1171 = vadd.f32 %v906, %v1170
  %1172 = vmatprep.mubr.f32.mxu0 %v917
  %1173 = vmatmul.mubr.f32.gmra.mxu0 %v743
  %v1174 = vpop.f32.mrf.mxu0
  %v1175 = vadd.f32 %v902, %v1174
  %v1176 = vpop.f32.mrf.mxu0
  %v1177 = vadd.f32 %v906, %v1176
  %1178 = vmatprep.mubr.f32.mxu0 %v920
  %1179 = vmatmul.mubr.f32.gmra.mxu0 %v745
  %v1180 = vpop.f32.mrf.mxu0
  %v1181 = vadd.f32 %v902, %v1180
  %v1182 = vpop.f32.mrf.mxu0
  %v1183 = vadd.f32 %v906, %v1182
  %1184 = vmatprep.mubr.f32.mxu0 %v923
  %1185 = vmatmul.mubr.f32.gmra.mxu0 %v747
  %v1186 = vpop.f32.mrf.mxu0
  %v1187 = vadd.f32 %v902, %v1186
  %v1188 = vpop.f32.mrf.mxu0
  %v1189 = vadd.f32 %v906, %v1188
  %1190 = vmatprep.mubr.f32.mxu0 %v926
  %1191 = vmatmul.mubr.f32.gmra.mxu0 %v749
  %v1192 = vpop.f32.mrf.mxu0
  %v1193 = vadd.f32 %v902, %v1192
  %v1194 = vpop.f32.mrf.mxu0
  %v1195 = vadd.f32 %v906, %v1194
  %1196 = vmatprep.mubr.f32.mxu0 %v929
  %1197 = vmatmul.mubr.f32.gmra.mxu0 %v751
  %v1198 = vpop.f32.mrf.mxu0
  %v1199 = vadd.f32 %v902, %v1198
  %v1200 = vpop.f32.mrf.mxu0
  %v1201 = vadd.f32 %v906, %v1200
  %1202 = vmatprep.mubr.f32.mxu0 %v932
  %1203 = vmatmul.mubr.f32.gmra.mxu0 %v753
  %v1204 = vpop.f32.mrf.mxu0
  %v1205 = vadd.f32 %v902, %v1204
  %v1206 = vpop.f32.mrf.mxu0
  %v1207 = vadd.f32 %v906, %v1206
  %1208 = vmatprep.mubr.f32.mxu0 %v935
  %1209 = vmatmul.mubr.f32.gmra.mxu0 %v755
  %v1210 = vpop.f32.mrf.mxu0
  %v1211 = vadd.f32 %v902, %v1210
  %v1212 = vpop.f32.mrf.mxu0
  %v1213 = vadd.f32 %v906, %v1212
  %1214 = vmatprep.mubr.f32.mxu0 %v938
  %1215 = vmatmul.mubr.f32.gmra.mxu0 %v757
  %v1216 = vpop.f32.mrf.mxu0
  %v1217 = vadd.f32 %v902, %v1216
  %v1218 = vpop.f32.mrf.mxu0
  %v1219 = vadd.f32 %v906, %v1218
  %1220 = vmatprep.mubr.f32.mxu0 %v941
  %1221 = vmatmul.mubr.f32.gmra.mxu0 %v759
  %v1222 = vpop.f32.mrf.mxu0
  %v1223 = vadd.f32 %v902, %v1222
  %v1224 = vpop.f32.mrf.mxu0
  %v1225 = vadd.f32 %v906, %v1224
  %1226 = vmatprep.mubr.f32.mxu0 %v944
  %1227 = vmatmul.mubr.f32.gmra.mxu0 %v761
  %v1228 = vpop.f32.mrf.mxu0
  %v1229 = vadd.f32 %v902, %v1228
  %v1230 = vpop.f32.mrf.mxu0
  %v1231 = vadd.f32 %v906, %v1230
  %1232 = vmatprep.mubr.f32.mxu0 %v947
  %1233 = vmatmul.mubr.f32.gmra.mxu0 %v763
  %v1234 = vpop.f32.mrf.mxu0
  %v1235 = vadd.f32 %v902, %v1234
  %v1236 = vpop.f32.mrf.mxu0
  %v1237 = vadd.f32 %v906, %v1236
  %1238 = vmatprep.mubr.f32.mxu0 %v950
  %1239 = vmatmul.mubr.f32.gmra.mxu0 %v765
  %v1240 = vpop.f32.mrf.mxu0
  %v1241 = vadd.f32 %v902, %v1240
  %v1242 = vpop.f32.mrf.mxu0
  %v1243 = vadd.f32 %v906, %v1242
  %1244 = vmatprep.mubr.f32.mxu0 %v953
  %1245 = vmatmul.mubr.f32.gmra.mxu0 %v767
  %v1246 = vpop.f32.mrf.mxu0
  %v1247 = vadd.f32 %v902, %v1246
  %v1248 = vpop.f32.mrf.mxu0
  %v1249 = vadd.f32 %v906, %v1248
  %1250 = vmatprep.mubr.f32.mxu0 %v956
  %1251 = vmatmul.mubr.f32.gmra.mxu0 %v769
  %v1252 = vpop.f32.mrf.mxu0
  %v1253 = vadd.f32 %v902, %v1252
  %v1254 = vpop.f32.mrf.mxu0
  %v1255 = vadd.f32 %v906, %v1254
  %1256 = vmatprep.mubr.f32.mxu0 %v959
  %1257 = vmatmul.mubr.f32.gmra.mxu0 %v771
  %v1258 = vpop.f32.mrf.mxu0
  %v1259 = vadd.f32 %v902, %v1258
  %v1260 = vpop.f32.mrf.mxu0
  %v1261 = vadd.f32 %v906, %v1260
  %1262 = vmatprep.mubr.f32.mxu0 %v962
  %1263 = vmatmul.mubr.f32.gmra.mxu0 %v773
  %v1264 = vpop.f32.mrf.mxu0
  %v1265 = vadd.f32 %v902, %v1264
  %v1266 = vpop.f32.mrf.mxu0
  %v1267 = vadd.f32 %v906, %v1266
  %1268 = vmatprep.mubr.f32.mxu0 %v965
  %1269 = vmatmul.mubr.f32.gmra.mxu0 %v775
  %v1270 = vpop.f32.mrf.mxu0
  %v1271 = vadd.f32 %v902, %v1270
  %v1272 = vpop.f32.mrf.mxu0
  %v1273 = vadd.f32 %v906, %v1272
  %1274 = vmatprep.mubr.f32.mxu0 %v968
  %1275 = vmatmul.mubr.f32.gmra.mxu0 %v777
  %v1276 = vpop.f32.mrf.mxu0
  %v1277 = vadd.f32 %v902, %v1276
  %v1278 = vpop.f32.mrf.mxu0
  %v1279 = vadd.f32 %v906, %v1278
  %1280 = vmatprep.mubr.f32.mxu0 %v971
  %1281 = vmatmul.mubr.f32.gmra.mxu0 %v779
  %v1282 = vpop.f32.mrf.mxu0
  %v1283 = vadd.f32 %v902, %v1282
  %v1284 = vpop.f32.mrf.mxu0
  %v1285 = vadd.f32 %v906, %v1284
  %1286 = vmatprep.mubr.f32.mxu0 %v974
  %1287 = vmatmul.mubr.f32.gmra.mxu0 %v781
  %v1288 = vpop.f32.mrf.mxu0
  %v1289 = vadd.f32 %v902, %v1288
  %v1290 = vpop.f32.mrf.mxu0
  %v1291 = vadd.f32 %v906, %v1290
  %1292 = vmatprep.mubr.f32.mxu0 %v977
  %1293 = vmatmul.mubr.f32.gmra.mxu0 %v783
  %v1294 = vpop.f32.mrf.mxu0
  %v1295 = vadd.f32 %v902, %v1294
  %v1296 = vpop.f32.mrf.mxu0
  %v1297 = vadd.f32 %v906, %v1296
  %1298 = vmatprep.mubr.f32.mxu0 %v980
  %1299 = vmatmul.mubr.f32.gmra.mxu0 %v785
  %v1300 = vpop.f32.mrf.mxu0
  %v1301 = vadd.f32 %v902, %v1300
  %v1302 = vpop.f32.mrf.mxu0
  %v1303 = vadd.f32 %v906, %v1302
  %1304 = vmatprep.mubr.f32.mxu0 %v983
  %1305 = vmatmul.mubr.f32.gmra.mxu0 %v787
  %v1306 = vpop.f32.mrf.mxu0
  %v1307 = vadd.f32 %v902, %v1306
  %v1308 = vpop.f32.mrf.mxu0
  %v1309 = vadd.f32 %v906, %v1308
  %1310 = vmatprep.mubr.f32.mxu0 %v986
  %1311 = vmatmul.mubr.f32.gmra.mxu0 %v789
  %v1312 = vpop.f32.mrf.mxu0
  %v1313 = vadd.f32 %v902, %v1312
  %v1314 = vpop.f32.mrf.mxu0
  %v1315 = vadd.f32 %v906, %v1314
  %1316 = vmatprep.mubr.f32.mxu0 %v989
  %1317 = vmatmul.mubr.f32.gmra.mxu0 %v791
  %v1318 = vpop.f32.mrf.mxu0
  %v1319 = vadd.f32 %v902, %v1318
  %v1320 = vpop.f32.mrf.mxu0
  %v1321 = vadd.f32 %v906, %v1320
  %1322 = vmatprep.mubr.f32.mxu0 %v992
  %1323 = vmatmul.mubr.f32.gmra.mxu0 %v793
  %v1324 = vpop.f32.mrf.mxu0
  %v1325 = vadd.f32 %v902, %v1324
  %v1326 = vpop.f32.mrf.mxu0
  %v1327 = vadd.f32 %v906, %v1326
  %1328 = vmatprep.mubr.f32.mxu0 %v995
  %1329 = vmatmul.mubr.f32.gmra.mxu0 %v795
  %v1330 = vpop.f32.mrf.mxu0
  %v1331 = vadd.f32 %v902, %v1330
  %v1332 = vpop.f32.mrf.mxu0
  %v1333 = vadd.f32 %v906, %v1332
  %1334 = vmatprep.mubr.f32.mxu0 %v998
  %1335 = vmatmul.mubr.f32.gmra.mxu0 %v797
  %v1336 = vpop.f32.mrf.mxu0
  %v1337 = vadd.f32 %v902, %v1336
  %v1338 = vpop.f32.mrf.mxu0
  %v1339 = vadd.f32 %v906, %v1338
  %1340 = vmatprep.mubr.f32.mxu0 %v1001
  %1341 = vmatmul.mubr.f32.gmra.mxu0 %v799
  %v1342 = vpop.f32.mrf.mxu0
  %v1343 = vadd.f32 %v902, %v1342
  %v1344 = vpop.f32.mrf.mxu0
  %v1345 = vadd.f32 %v906, %v1344
  %1346 = vmatprep.mubr.f32.mxu0 %v1004
  %1347 = vmatmul.mubr.f32.gmra.mxu0 %v801
  %v1348 = vpop.f32.mrf.mxu0
  %v1349 = vadd.f32 %v902, %v1348
  %v1350 = vpop.f32.mrf.mxu0
  %v1351 = vadd.f32 %v906, %v1350
  %1352 = vmatprep.mubr.f32.mxu0 %v1007
  %1353 = vmatmul.mubr.f32.gmra.mxu0 %v803
  %v1354 = vpop.f32.mrf.mxu0
  %v1355 = vadd.f32 %v902, %v1354
  %v1356 = vpop.f32.mrf.mxu0
  %v1357 = vadd.f32 %v906, %v1356
  %1358 = vmatprep.mubr.f32.mxu0 %v1010
  %1359 = vmatmul.mubr.f32.gmra.mxu0 %v805
  %v1360 = vpop.f32.mrf.mxu0
  %v1361 = vadd.f32 %v902, %v1360
  %v1362 = vpop.f32.mrf.mxu0
  %v1363 = vadd.f32 %v906, %v1362
  %1364 = vmatprep.mubr.f32.mxu0 %v1013
  %1365 = vmatmul.mubr.f32.gmra.mxu0 %v807
  %v1366 = vpop.f32.mrf.mxu0
  %v1367 = vadd.f32 %v902, %v1366
  %v1368 = vpop.f32.mrf.mxu0
  %v1369 = vadd.f32 %v906, %v1368
  %1370 = vmatprep.mubr.f32.mxu0 %v1016
  %1371 = vmatmul.mubr.f32.gmra.mxu0 %v809
  %v1372 = vpop.f32.mrf.mxu0
  %v1373 = vadd.f32 %v902, %v1372
  %v1374 = vpop.f32.mrf.mxu0
  %v1375 = vadd.f32 %v906, %v1374
  %1376 = vmatprep.mubr.f32.mxu0 %v1019
  %1377 = vmatmul.mubr.f32.gmra.mxu0 %v811
  %v1378 = vpop.f32.mrf.mxu0
  %v1379 = vadd.f32 %v902, %v1378
  %v1380 = vpop.f32.mrf.mxu0
  %v1381 = vadd.f32 %v906, %v1380
  %1382 = vmatprep.mubr.f32.mxu0 %v1022
  %1383 = vmatmul.mubr.f32.gmra.mxu0 %v813
  %v1384 = vpop.f32.mrf.mxu0
  %v1385 = vadd.f32 %v902, %v1384
  %v1386 = vpop.f32.mrf.mxu0
  %v1387 = vadd.f32 %v906, %v1386
  %1388 = vmatprep.mubr.f32.mxu0 %v1025
  %1389 = vmatmul.mubr.f32.gmra.mxu0 %v815
  %v1390 = vpop.f32.mrf.mxu0
  %v1391 = vadd.f32 %v902, %v1390
  %v1392 = vpop.f32.mrf.mxu0
  %v1393 = vadd.f32 %v906, %v1392
  %1394 = vmatprep.mubr.f32.mxu0 %v1028
  %1395 = vmatmul.mubr.f32.gmra.mxu0 %v817
  %v1396 = vpop.f32.mrf.mxu0
  %v1397 = vadd.f32 %v902, %v1396
  %v1398 = vpop.f32.mrf.mxu0
  %v1399 = vadd.f32 %v906, %v1398
  %1400 = vmatprep.mubr.f32.mxu0 %v1031
  %1401 = vmatmul.mubr.f32.gmra.mxu0 %v819
  %v1402 = vpop.f32.mrf.mxu0
  %v1403 = vadd.f32 %v902, %v1402
  %v1404 = vpop.f32.mrf.mxu0
  %v1405 = vadd.f32 %v906, %v1404
  %1406 = vmatprep.mubr.f32.mxu0 %v1034
  %1407 = vmatmul.mubr.f32.gmra.mxu0 %v821
  %v1408 = vpop.f32.mrf.mxu0
  %v1409 = vadd.f32 %v902, %v1408
  %v1410 = vpop.f32.mrf.mxu0
  %v1411 = vadd.f32 %v906, %v1410
  %1412 = vmatprep.mubr.f32.mxu0 %v1037
  %1413 = vmatmul.mubr.f32.gmra.mxu0 %v823
  %v1414 = vpop.f32.mrf.mxu0
  %v1415 = vadd.f32 %v902, %v1414
  %v1416 = vpop.f32.mrf.mxu0
  %v1417 = vadd.f32 %v906, %v1416
  %1418 = vmatprep.mubr.f32.mxu0 %v1040
  %1419 = vmatmul.mubr.f32.gmra.mxu0 %v825
  %v1420 = vpop.f32.mrf.mxu0
  %v1421 = vadd.f32 %v902, %v1420
  %v1422 = vpop.f32.mrf.mxu0
  %v1423 = vadd.f32 %v906, %v1422
  %1424 = vmatprep.mubr.f32.mxu0 %v1043
  %1425 = vmatmul.mubr.f32.gmra.mxu0 %v827
  %v1426 = vpop.f32.mrf.mxu0
  %v1427 = vadd.f32 %v902, %v1426
  %v1428 = vpop.f32.mrf.mxu0
  %v1429 = vadd.f32 %v906, %v1428
  %1430 = vmatprep.mubr.f32.mxu0 %v1046
  %1431 = vmatmul.mubr.f32.gmra.mxu0 %v829
  %v1432 = vpop.f32.mrf.mxu0
  %v1433 = vadd.f32 %v902, %v1432
  %v1434 = vpop.f32.mrf.mxu0
  %v1435 = vadd.f32 %v906, %v1434
  %1436 = vmatprep.mubr.f32.mxu0 %v1049
  %1437 = vmatmul.mubr.f32.gmra.mxu0 %v831
  %v1438 = vpop.f32.mrf.mxu0
  %v1439 = vadd.f32 %v902, %v1438
  %v1440 = vpop.f32.mrf.mxu0
  %v1441 = vadd.f32 %v906, %v1440
  %1442 = vmatprep.mubr.f32.mxu0 %v1052
  %1443 = vmatmul.mubr.f32.gmra.mxu0 %v833
  %v1444 = vpop.f32.mrf.mxu0
  %v1445 = vadd.f32 %v902, %v1444
  %v1446 = vpop.f32.mrf.mxu0
  %v1447 = vadd.f32 %v906, %v1446
  %1448 = vmatprep.mubr.f32.mxu0 %v1055
  %1449 = vmatmul.mubr.f32.gmra.mxu0 %v835
  %v1450 = vpop.f32.mrf.mxu0
  %v1451 = vadd.f32 %v902, %v1450
  %v1452 = vpop.f32.mrf.mxu0
  %v1453 = vadd.f32 %v906, %v1452
  %1454 = vmatprep.mubr.f32.mxu0 %v1058
  %1455 = vmatmul.mubr.f32.gmra.mxu0 %v837
  %v1456 = vpop.f32.mrf.mxu0
  %v1457 = vadd.f32 %v902, %v1456
  %v1458 = vpop.f32.mrf.mxu0
  %v1459 = vadd.f32 %v906, %v1458
  %1460 = vmatprep.mubr.f32.mxu0 %v1061
  %1461 = vmatmul.mubr.f32.gmra.mxu0 %v839
  %v1462 = vpop.f32.mrf.mxu0
  %v1463 = vadd.f32 %v902, %v1462
  %v1464 = vpop.f32.mrf.mxu0
  %v1465 = vadd.f32 %v906, %v1464
  %1466 = vmatprep.mubr.f32.mxu0 %v1064
  %1467 = vmatmul.mubr.f32.gmra.mxu0 %v841
  %v1468 = vpop.f32.mrf.mxu0
  %v1469 = vadd.f32 %v902, %v1468
  %v1470 = vpop.f32.mrf.mxu0
  %v1471 = vadd.f32 %v906, %v1470
  %1472 = vmatprep.mubr.f32.mxu0 %v1067
  %1473 = vmatmul.mubr.f32.gmra.mxu0 %v843
  %v1474 = vpop.f32.mrf.mxu0
  %v1475 = vadd.f32 %v902, %v1474
  %v1476 = vpop.f32.mrf.mxu0
  %v1477 = vadd.f32 %v906, %v1476
  %1478 = vmatprep.mubr.f32.mxu0 %v1070
  %1479 = vmatmul.mubr.f32.gmra.mxu0 %v845
  %v1480 = vpop.f32.mrf.mxu0
  %v1481 = vadd.f32 %v902, %v1480
  %v1482 = vpop.f32.mrf.mxu0
  %v1483 = vadd.f32 %v906, %v1482
  %1484 = vmatprep.mubr.f32.mxu0 %v1073
  %1485 = vmatmul.mubr.f32.gmra.mxu0 %v847
  %v1486 = vpop.f32.mrf.mxu0
  %v1487 = vadd.f32 %v902, %v1486
  %v1488 = vpop.f32.mrf.mxu0
  %v1489 = vadd.f32 %v906, %v1488
  %1490 = vmatprep.mubr.f32.mxu0 %v1076
  %1491 = vmatmul.mubr.f32.gmra.mxu0 %v849
  %v1492 = vpop.f32.mrf.mxu0
  %v1493 = vadd.f32 %v902, %v1492
  %v1494 = vpop.f32.mrf.mxu0
  %v1495 = vadd.f32 %v906, %v1494
  %1496 = vmatprep.mubr.f32.mxu0 %v1079
  %1497 = vmatmul.mubr.f32.gmra.mxu0 %v851
  %v1498 = vpop.f32.mrf.mxu0
  %v1499 = vadd.f32 %v902, %v1498
  %v1500 = vpop.f32.mrf.mxu0
  %v1501 = vadd.f32 %v906, %v1500
  %1502 = vmatprep.mubr.f32.mxu0 %v1082
  %1503 = vmatmul.mubr.f32.gmra.mxu0 %v853
  %v1504 = vpop.f32.mrf.mxu0
  %v1505 = vadd.f32 %v902, %v1504
  %v1506 = vpop.f32.mrf.mxu0
  %v1507 = vadd.f32 %v906, %v1506
  %1508 = vmatprep.mubr.f32.mxu0 %v1085
  %1509 = vmatmul.mubr.f32.gmra.mxu0 %v855
  %v1510 = vpop.f32.mrf.mxu0
  %v1511 = vadd.f32 %v902, %v1510
  %v1512 = vpop.f32.mrf.mxu0
  %v1513 = vadd.f32 %v906, %v1512
  %1514 = vmatprep.mubr.f32.mxu0 %v1088
  %1515 = vmatmul.mubr.f32.gmra.mxu0 %v857
  %v1516 = vpop.f32.mrf.mxu0
  %v1517 = vadd.f32 %v902, %v1516
  %v1518 = vpop.f32.mrf.mxu0
  %v1519 = vadd.f32 %v906, %v1518
  %1520 = vdwg.mxu0
  %v1521 = vtanh.pop %v1163
  %v1522 = vtanh.pop %v1165
  %v1523 = vtanh.pop %v1169
  %v1524 = vtanh.pop %v1171
  %v1525 = vtanh.pop %v1175
  %v1526 = vtanh.pop %v1177
  %v1527 = vtanh.pop %v1181
  %v1528 = vtanh.pop %v1183
  %v1529 = vtanh.pop %v1187
  %v1530 = vtanh.pop %v1189
  %v1531 = vtanh.pop %v1193
  %v1532 = vtanh.pop %v1195
  %v1533 = vtanh.pop %v1199
  %v1534 = vtanh.pop %v1201
  %v1535 = vtanh.pop %v1205
  %v1536 = vtanh.pop %v1207
  %v1537 = vtanh.pop %v1211
  %v1538 = vtanh.pop %v1213
  %v1539 = vtanh.pop %v1217
  %v1540 = vtanh.pop %v1219
  %v1541 = vtanh.pop %v1223
  %v1542 = vtanh.pop %v1225
  %v1543 = vtanh.pop %v1229
  %v1544 = vtanh.pop %v1231
  %v1545 = vtanh.pop %v1235
  %v1546 = vtanh.pop %v1237
  %v1547 = vtanh.pop %v1241
  %v1548 = vtanh.pop %v1243
  %v1549 = vtanh.pop %v1247
  %v1550 = vtanh.pop %v1249
  %v1551 = vtanh.pop %v1253
  %v1552 = vtanh.pop %v1255
  %v1553 = vtanh.pop %v1259
  %v1554 = vtanh.pop %v1261
  %v1555 = vtanh.pop %v1265
  %v1556 = vtanh.pop %v1267
  %v1557 = vtanh.pop %v1271
  %v1558 = vtanh.pop %v1273
  %v1559 = vtanh.pop %v1277
  %v1560 = vtanh.pop %v1279
  %v1561 = vtanh.pop %v1283
  %v1562 = vtanh.pop %v1285
  %v1563 = vtanh.pop %v1289
  %v1564 = vtanh.pop %v1291
  %v1565 = vtanh.pop %v1295
  %v1566 = vtanh.pop %v1297
  %v1567 = vtanh.pop %v1301
  %v1568 = vtanh.pop %v1303
  %v1569 = vtanh.pop %v1307
  %v1570 = vtanh.pop %v1309
  %v1571 = vtanh.pop %v1313
  %v1572 = vtanh.pop %v1315
  %v1573 = vtanh.pop %v1319
  %v1574 = vtanh.pop %v1321
  %v1575 = vtanh.pop %v1325
  %v1576 = vtanh.pop %v1327
  %v1577 = vtanh.pop %v1331
  %v1578 = vtanh.pop %v1333
  %v1579 = vtanh.pop %v1337
  %v1580 = vtanh.pop %v1339
  %v1581 = vtanh.pop %v1343
  %v1582 = vtanh.pop %v1345
  %v1583 = vtanh.pop %v1349
  %v1584 = vtanh.pop %v1351
  %v1585 = vtanh.pop %v1355
  %v1586 = vtanh.pop %v1357
  %v1587 = vtanh.pop %v1361
  %v1588 = vtanh.pop %v1363
  %v1589 = vtanh.pop %v1367
  %v1590 = vtanh.pop %v1369
  %v1591 = vtanh.pop %v1373
  %v1592 = vtanh.pop %v1375
  %v1593 = vtanh.pop %v1379
  %v1594 = vtanh.pop %v1381
  %v1595 = vtanh.pop %v1385
  %v1596 = vtanh.pop %v1387
  %v1597 = vtanh.pop %v1391
  %v1598 = vtanh.pop %v1393
  %v1599 = vtanh.pop %v1397
  %v1600 = vtanh.pop %v1399
  %v1601 = vtanh.pop %v1403
  %v1602 = vtanh.pop %v1405
  %v1603 = vtanh.pop %v1409
  %v1604 = vtanh.pop %v1411
  %v1605 = vtanh.pop %v1415
  %v1606 = vtanh.pop %v1417
  %v1607 = vtanh.pop %v1421
  %v1608 = vtanh.pop %v1423
  %v1609 = vtanh.pop %v1427
  %v1610 = vtanh.pop %v1429
  %v1611 = vtanh.pop %v1433
  %v1612 = vtanh.pop %v1435
  %v1613 = vtanh.pop %v1439
  %v1614 = vtanh.pop %v1441
  %v1615 = vtanh.pop %v1445
  %v1616 = vtanh.pop %v1447
  %v1617 = vtanh.pop %v1451
  %v1618 = vtanh.pop %v1453
  %v1619 = vtanh.pop %v1457
  %v1620 = vtanh.pop %v1459
  %v1621 = vtanh.pop %v1463
  %v1622 = vtanh.pop %v1465
  %v1623 = vtanh.pop %v1469
  %v1624 = vtanh.pop %v1471
  %v1625 = vtanh.pop %v1475
  %v1626 = vtanh.pop %v1477
  %v1627 = vtanh.pop %v1481
  %v1628 = vtanh.pop %v1483
  %v1629 = vtanh.pop %v1487
  %v1630 = vtanh.pop %v1489
  %v1631 = vtanh.pop %v1493
  %v1632 = vtanh.pop %v1495
  %v1633 = vtanh.pop %v1499
  %v1634 = vtanh.pop %v1501
  %v1635 = vtanh.pop %v1505
  %v1636 = vtanh.pop %v1507
  %v1637 = vtanh.pop %v1511
  %v1638 = vtanh.pop %v1513
  %v1639 = vtanh.pop %v1517
  %v1640 = vtanh.pop %v1519
  %v1641 = vld [vmem:[%s5] sm:$0xff]
  %v1642 = vld [vmem:[%s5 + $0x8] sm:$0xff]
  %v1643 = vld [vmem:[%s5 + $0x10] sm:$0xff]
  %v1644 = vld [vmem:[%s5 + $0x18] sm:$0xff]
  %v1645 = vld [vmem:[%s5 + $0x20] sm:$0xff]
  %v1646 = vld [vmem:[%s5 + $0x28] sm:$0xff]
  %v1647 = vld [vmem:[%s5 + $0x30] sm:$0xff]
  %v1648 = vld [vmem:[%s5 + $0x38] sm:$0xff]
  %v1649 = vld [vmem:[%s5 + $0x40] sm:$0xff]
  %v1650 = vld [vmem:[%s5 + $0x48] sm:$0xff]
  %v1651 = vld [vmem:[%s5 + $0x50] sm:$0xff]
  %v1652 = vld [vmem:[%s5 + $0x58] sm:$0xff]
  %v1653 = vld [vmem:[%s5 + $0x60] sm:$0xff]
  %v1654 = vld [vmem:[%s5 + $0x68] sm:$0xff]
  %v1655 = vld [vmem:[%s5 + $0x70] sm:$0xff]
  %v1656 = vld [vmem:[%s5 + $0x78] sm:$0xff]
  %v1657 = vld [vmem:[%s5 + $0x80] sm:$0xff]
  %v1658 = vld [vmem:[%s5 + $0x88] sm:$0xff]
  %v1659 = vld [vmem:[%s5 + $0x90] sm:$0xff]
  %v1660 = vld [vmem:[%s5 + $0x98] sm:$0xff]
  %v1661 = vld [vmem:[%s5 + $0xa0] sm:$0xff]
  %v1662 = vld [vmem:[%s5 + $0xa8] sm:$0xff]
  %v1663 = vld [vmem:[%s5 + $0xb0] sm:$0xff]
  %v1664 = vld [vmem:[%s5 + $0xb8] sm:$0xff]
  %v1665 = vld [vmem:[%s5 + $0xc0] sm:$0xff]
  %v1666 = vld [vmem:[%s5 + $0xc8] sm:$0xff]
  %v1667 = vld [vmem:[%s5 + $0xd0] sm:$0xff]
  %v1668 = vld [vmem:[%s5 + $0xd8] sm:$0xff]
  %v1669 = vld [vmem:[%s5 + $0xe0] sm:$0xff]
  %v1670 = vld [vmem:[%s5 + $0xe8] sm:$0xff]
  %v1671 = vld [vmem:[%s5 + $0xf0] sm:$0xff]
  %v1672 = vld [vmem:[%s5 + $0xf8] sm:$0xff]
  %v1673 = vld [vmem:[%s5 + $0x100] sm:$0xff]
  %v1674 = vld [vmem:[%s5 + $0x108] sm:$0xff]
  %v1675 = vld [vmem:[%s5 + $0x110] sm:$0xff]
  %v1676 = vld [vmem:[%s5 + $0x118] sm:$0xff]
  %v1677 = vld [vmem:[%s5 + $0x120] sm:$0xff]
  %v1678 = vld [vmem:[%s5 + $0x128] sm:$0xff]
  %v1679 = vld [vmem:[%s5 + $0x130] sm:$0xff]
  %v1680 = vld [vmem:[%s5 + $0x138] sm:$0xff]
  %v1681 = vld [vmem:[%s6] sm:$0x3]
  %v1683 = vlaneseq
  %v1684 = vshrl.u32 %v1683, 7
  %v1685 = vsub.s32 0, %v1684
  %v1686 = vrot.slane %v1681, %v1685
  %v1687 = vlaneseq
  %v1688 = vshrl.u32 %v1687, 7
  %v1689 = vsub.s32 1, %v1688
  %v1690 = vrot.slane %v1681, %v1689
  %vm1693 = vcmask 261120
  %v1695 = vsel %vm1693, %v1522, 0
  %v1698 = vsel %vm1693, %v1524, 0
  %v1701 = vsel %vm1693, %v1526, 0
  %v1704 = vsel %vm1693, %v1528, 0
  %v1707 = vsel %vm1693, %v1530, 0
  %v1710 = vsel %vm1693, %v1532, 0
  %v1713 = vsel %vm1693, %v1534, 0
  %v1716 = vsel %vm1693, %v1536, 0
  %v1719 = vsel %vm1693, %v1538, 0
  %v1722 = vsel %vm1693, %v1540, 0
  %v1725 = vsel %vm1693, %v1542, 0
  %v1728 = vsel %vm1693, %v1544, 0
  %v1731 = vsel %vm1693, %v1546, 0
  %v1734 = vsel %vm1693, %v1548, 0
  %v1737 = vsel %vm1693, %v1550, 0
  %v1740 = vsel %vm1693, %v1552, 0
  %v1743 = vsel %vm1693, %v1554, 0
  %v1746 = vsel %vm1693, %v1556, 0
  %v1749 = vsel %vm1693, %v1558, 0
  %v1752 = vsel %vm1693, %v1560, 0
  %v1755 = vsel %vm1693, %v1562, 0
  %v1758 = vsel %vm1693, %v1564, 0
  %v1761 = vsel %vm1693, %v1566, 0
  %v1764 = vsel %vm1693, %v1568, 0
  %v1767 = vsel %vm1693, %v1570, 0
  %v1770 = vsel %vm1693, %v1572, 0
  %v1773 = vsel %vm1693, %v1574, 0
  %v1776 = vsel %vm1693, %v1576, 0
  %v1779 = vsel %vm1693, %v1578, 0
  %v1782 = vsel %vm1693, %v1580, 0
  %v1785 = vsel %vm1693, %v1582, 0
  %v1788 = vsel %vm1693, %v1584, 0
  %v1791 = vsel %vm1693, %v1586, 0
  %v1794 = vsel %vm1693, %v1588, 0
  %v1797 = vsel %vm1693, %v1590, 0
  %v1800 = vsel %vm1693, %v1592, 0
  %v1803 = vsel %vm1693, %v1594, 0
  %v1806 = vsel %vm1693, %v1596, 0
  %v1809 = vsel %vm1693, %v1598, 0
  %v1812 = vsel %vm1693, %v1600, 0
  %v1815 = vsel %vm1693, %v1602, 0
  %v1818 = vsel %vm1693, %v1604, 0
  %v1821 = vsel %vm1693, %v1606, 0
  %v1824 = vsel %vm1693, %v1608, 0
  %v1827 = vsel %vm1693, %v1610, 0
  %v1830 = vsel %vm1693, %v1612, 0
  %v1833 = vsel %vm1693, %v1614, 0
  %v1836 = vsel %vm1693, %v1616, 0
  %v1839 = vsel %vm1693, %v1618, 0
  %v1842 = vsel %vm1693, %v1620, 0
  %v1845 = vsel %vm1693, %v1622, 0
  %v1848 = vsel %vm1693, %v1624, 0
  %v1851 = vsel %vm1693, %v1626, 0
  %v1854 = vsel %vm1693, %v1628, 0
  %v1857 = vsel %vm1693, %v1630, 0
  %v1860 = vsel %vm1693, %v1632, 0
  %v1863 = vsel %vm1693, %v1634, 0
  %v1866 = vsel %vm1693, %v1636, 0
  %v1869 = vsel %vm1693, %v1638, 0
  %v1872 = vsel %vm1693, %v1640, 0
  %1874 = vmatprep.subr.mxu0 %v1672
  %1875 = vmatpush1.msra.mxu0 %v1671
  %1876 = vmatprep.subr.mxu0 %v1670
  %1877 = vmatpush1.msra.mxu0 %v1669
  %1878 = vmatprep.subr.mxu0 %v1668
  %1879 = vmatpush1.msra.mxu0 %v1667
  %1880 = vmatprep.subr.mxu0 %v1666
  %1881 = vmatpush1.msra.mxu0 %v1665
  %1882 = vmatprep.subr.mxu0 %v1664
  %1883 = vmatpush1.msra.mxu0 %v1663
  %1884 = vmatprep.subr.mxu0 %v1662
  %1885 = vmatpush1.msra.mxu0 %v1661
  %1886 = vmatprep.subr.mxu0 %v1660
  %1887 = vmatpush1.msra.mxu0 %v1659
  %1888 = vmatprep.subr.mxu0 %v1658
  %1889 = vmatpush1.msra.mxu0 %v1657
  %1890 = vmatprep.subr.mxu0 %v1656
  %1891 = vmatpush1.msra.mxu0 %v1655
  %1892 = vmatprep.subr.mxu0 %v1654
  %1893 = vmatpush1.msra.mxu0 %v1653
  %1894 = vmatprep.subr.mxu0 %v1652
  %1895 = vmatpush1.msra.mxu0 %v1651
  %1896 = vmatprep.subr.mxu0 %v1650
  %1897 = vmatpush1.msra.mxu0 %v1649
  %1898 = vmatprep.subr.mxu0 %v1648
  %1899 = vmatpush1.msra.mxu0 %v1647
  %1900 = vmatprep.subr.mxu0 %v1646
  %1901 = vmatpush1.msra.mxu0 %v1645
  %1902 = vmatprep.subr.mxu0 %v1644
  %1903 = vmatpush1.msra.mxu0 %v1643
  %1904 = vmatprep.subr.mxu0 %v1642
  %1905 = vmatpush1.msra.mxu0 %v1641
  %1906 = vmatprep.subr.mxu0 0.0
  %1907 = vmatpush2.msra.mxu0 0.0
  %1908 = vmatprep.subr.mxu0 0.0
  %1909 = vmatpush2.msra.mxu0 0.0
  %1910 = vmatprep.subr.mxu0 0.0
  %1911 = vmatpush2.msra.mxu0 0.0
  %1912 = vmatprep.subr.mxu0 0.0
  %1913 = vmatpush2.msra.mxu0 0.0
  %1914 = vmatprep.subr.mxu0 0.0
  %1915 = vmatpush2.msra.mxu0 0.0
  %1916 = vmatprep.subr.mxu0 0.0
  %1917 = vmatpush2.msra.mxu0 0.0
  %1918 = vmatprep.subr.mxu0 0.0
  %1919 = vmatpush2.msra.mxu0 0.0
  %1920 = vmatprep.subr.mxu0 0.0
  %1921 = vmatpush2.msra.mxu0 0.0
  %1922 = vmatprep.subr.mxu0 0.0
  %1923 = vmatpush2.msra.mxu0 0.0
  %1924 = vmatprep.subr.mxu0 0.0
  %1925 = vmatpush2.msra.mxu0 0.0
  %1926 = vmatprep.subr.mxu0 0.0
  %1927 = vmatpush2.msra.mxu0 0.0
  %1928 = vmatprep.subr.mxu0 0.0
  %1929 = vmatpush2.msra.mxu0 0.0
  %1930 = vmatprep.subr.mxu0 %v1680
  %1931 = vmatpush2.msra.mxu0 %v1679
  %1932 = vmatprep.subr.mxu0 %v1678
  %1933 = vmatpush2.msra.mxu0 %v1677
  %1934 = vmatprep.subr.mxu0 %v1676
  %1935 = vmatpush2.msra.mxu0 %v1675
  %1936 = vmatprep.subr.mxu0 %v1674
  %1937 = vmatpush2.msra.mxu0 %v1673
  %1938 = vmatprep.mubr.f32.mxu0 %v1695
  %1939 = vmatmul.mubr.f32.gmra.mxu0 %v1521
  %v1940 = vpop.f32.mrf.mxu0
  %v1941 = vadd.f32 %v1686, %v1940
  %v1942 = vpop.f32.mrf.mxu0
  %v1943 = vadd.f32 %v1690, %v1942
  %1944 = vmatprep.mubr.f32.mxu0 %v1698
  %1945 = vmatmul.mubr.f32.gmra.mxu0 %v1523
  %v1946 = vpop.f32.mrf.mxu0
  %v1947 = vadd.f32 %v1686, %v1946
  %v1948 = vpop.f32.mrf.mxu0
  %v1949 = vadd.f32 %v1690, %v1948
  %1950 = vmatprep.mubr.f32.mxu0 %v1701
  %1951 = vmatmul.mubr.f32.gmra.mxu0 %v1525
  %v1952 = vpop.f32.mrf.mxu0
  %v1953 = vadd.f32 %v1686, %v1952
  %v1954 = vpop.f32.mrf.mxu0
  %v1955 = vadd.f32 %v1690, %v1954
  %1956 = vmatprep.mubr.f32.mxu0 %v1704
  %1957 = vmatmul.mubr.f32.gmra.mxu0 %v1527
  %v1958 = vpop.f32.mrf.mxu0
  %v1959 = vadd.f32 %v1686, %v1958
  %v1960 = vpop.f32.mrf.mxu0
  %v1961 = vadd.f32 %v1690, %v1960
  %1962 = vmatprep.mubr.f32.mxu0 %v1707
  %1963 = vmatmul.mubr.f32.gmra.mxu0 %v1529
  %v1964 = vpop.f32.mrf.mxu0
  %v1965 = vadd.f32 %v1686, %v1964
  %v1966 = vpop.f32.mrf.mxu0
  %v1967 = vadd.f32 %v1690, %v1966
  %1968 = vmatprep.mubr.f32.mxu0 %v1710
  %1969 = vmatmul.mubr.f32.gmra.mxu0 %v1531
  %v1970 = vpop.f32.mrf.mxu0
  %v1971 = vadd.f32 %v1686, %v1970
  %v1972 = vpop.f32.mrf.mxu0
  %v1973 = vadd.f32 %v1690, %v1972
  %1974 = vmatprep.mubr.f32.mxu0 %v1713
  %1975 = vmatmul.mubr.f32.gmra.mxu0 %v1533
  %v1976 = vpop.f32.mrf.mxu0
  %v1977 = vadd.f32 %v1686, %v1976
  %v1978 = vpop.f32.mrf.mxu0
  %v1979 = vadd.f32 %v1690, %v1978
  %1980 = vmatprep.mubr.f32.mxu0 %v1716
  %1981 = vmatmul.mubr.f32.gmra.mxu0 %v1535
  %v1982 = vpop.f32.mrf.mxu0
  %v1983 = vadd.f32 %v1686, %v1982
  %v1984 = vpop.f32.mrf.mxu0
  %v1985 = vadd.f32 %v1690, %v1984
  %1986 = vmatprep.mubr.f32.mxu0 %v1719
  %1987 = vmatmul.mubr.f32.gmra.mxu0 %v1537
  %v1988 = vpop.f32.mrf.mxu0
  %v1989 = vadd.f32 %v1686, %v1988
  %v1990 = vpop.f32.mrf.mxu0
  %v1991 = vadd.f32 %v1690, %v1990
  %1992 = vmatprep.mubr.f32.mxu0 %v1722
  %1993 = vmatmul.mubr.f32.gmra.mxu0 %v1539
  %v1994 = vpop.f32.mrf.mxu0
  %v1995 = vadd.f32 %v1686, %v1994
  %v1996 = vpop.f32.mrf.mxu0
  %v1997 = vadd.f32 %v1690, %v1996
  %1998 = vmatprep.mubr.f32.mxu0 %v1725
  %1999 = vmatmul.mubr.f32.gmra.mxu0 %v1541
  %v2000 = vpop.f32.mrf.mxu0
  %v2001 = vadd.f32 %v1686, %v2000
  %v2002 = vpop.f32.mrf.mxu0
  %v2003 = vadd.f32 %v1690, %v2002
  %2004 = vmatprep.mubr.f32.mxu0 %v1728
  %2005 = vmatmul.mubr.f32.gmra.mxu0 %v1543
  %v2006 = vpop.f32.mrf.mxu0
  %v2007 = vadd.f32 %v1686, %v2006
  %v2008 = vpop.f32.mrf.mxu0
  %v2009 = vadd.f32 %v1690, %v2008
  %2010 = vmatprep.mubr.f32.mxu0 %v1731
  %2011 = vmatmul.mubr.f32.gmra.mxu0 %v1545
  %v2012 = vpop.f32.mrf.mxu0
  %v2013 = vadd.f32 %v1686, %v2012
  %v2014 = vpop.f32.mrf.mxu0
  %v2015 = vadd.f32 %v1690, %v2014
  %2016 = vmatprep.mubr.f32.mxu0 %v1734
  %2017 = vmatmul.mubr.f32.gmra.mxu0 %v1547
  %v2018 = vpop.f32.mrf.mxu0
  %v2019 = vadd.f32 %v1686, %v2018
  %v2020 = vpop.f32.mrf.mxu0
  %v2021 = vadd.f32 %v1690, %v2020
  %2022 = vmatprep.mubr.f32.mxu0 %v1737
  %2023 = vmatmul.mubr.f32.gmra.mxu0 %v1549
  %v2024 = vpop.f32.mrf.mxu0
  %v2025 = vadd.f32 %v1686, %v2024
  %v2026 = vpop.f32.mrf.mxu0
  %v2027 = vadd.f32 %v1690, %v2026
  %2028 = vmatprep.mubr.f32.mxu0 %v1740
  %2029 = vmatmul.mubr.f32.gmra.mxu0 %v1551
  %v2030 = vpop.f32.mrf.mxu0
  %v2031 = vadd.f32 %v1686, %v2030
  %v2032 = vpop.f32.mrf.mxu0
  %v2033 = vadd.f32 %v1690, %v2032
  %2034 = vmatprep.mubr.f32.mxu0 %v1743
  %2035 = vmatmul.mubr.f32.gmra.mxu0 %v1553
  %v2036 = vpop.f32.mrf.mxu0
  %v2037 = vadd.f32 %v1686, %v2036
  %v2038 = vpop.f32.mrf.mxu0
  %v2039 = vadd.f32 %v1690, %v2038
  %2040 = vmatprep.mubr.f32.mxu0 %v1746
  %2041 = vmatmul.mubr.f32.gmra.mxu0 %v1555
  %v2042 = vpop.f32.mrf.mxu0
  %v2043 = vadd.f32 %v1686, %v2042
  %v2044 = vpop.f32.mrf.mxu0
  %v2045 = vadd.f32 %v1690, %v2044
  %2046 = vmatprep.mubr.f32.mxu0 %v1749
  %2047 = vmatmul.mubr.f32.gmra.mxu0 %v1557
  %v2048 = vpop.f32.mrf.mxu0
  %v2049 = vadd.f32 %v1686, %v2048
  %v2050 = vpop.f32.mrf.mxu0
  %v2051 = vadd.f32 %v1690, %v2050
  %2052 = vmatprep.mubr.f32.mxu0 %v1752
  %2053 = vmatmul.mubr.f32.gmra.mxu0 %v1559
  %v2054 = vpop.f32.mrf.mxu0
  %v2055 = vadd.f32 %v1686, %v2054
  %v2056 = vpop.f32.mrf.mxu0
  %v2057 = vadd.f32 %v1690, %v2056
  %2058 = vmatprep.mubr.f32.mxu0 %v1755
  %2059 = vmatmul.mubr.f32.gmra.mxu0 %v1561
  %v2060 = vpop.f32.mrf.mxu0
  %v2061 = vadd.f32 %v1686, %v2060
  %v2062 = vpop.f32.mrf.mxu0
  %v2063 = vadd.f32 %v1690, %v2062
  %2064 = vmatprep.mubr.f32.mxu0 %v1758
  %2065 = vmatmul.mubr.f32.gmra.mxu0 %v1563
  %v2066 = vpop.f32.mrf.mxu0
  %v2067 = vadd.f32 %v1686, %v2066
  %v2068 = vpop.f32.mrf.mxu0
  %v2069 = vadd.f32 %v1690, %v2068
  %2070 = vmatprep.mubr.f32.mxu0 %v1761
  %2071 = vmatmul.mubr.f32.gmra.mxu0 %v1565
  %v2072 = vpop.f32.mrf.mxu0
  %v2073 = vadd.f32 %v1686, %v2072
  %v2074 = vpop.f32.mrf.mxu0
  %v2075 = vadd.f32 %v1690, %v2074
  %2076 = vmatprep.mubr.f32.mxu0 %v1764
  %2077 = vmatmul.mubr.f32.gmra.mxu0 %v1567
  %v2078 = vpop.f32.mrf.mxu0
  %v2079 = vadd.f32 %v1686, %v2078
  %v2080 = vpop.f32.mrf.mxu0
  %v2081 = vadd.f32 %v1690, %v2080
  %2082 = vmatprep.mubr.f32.mxu0 %v1767
  %2083 = vmatmul.mubr.f32.gmra.mxu0 %v1569
  %v2084 = vpop.f32.mrf.mxu0
  %v2085 = vadd.f32 %v1686, %v2084
  %v2086 = vpop.f32.mrf.mxu0
  %v2087 = vadd.f32 %v1690, %v2086
  %2088 = vmatprep.mubr.f32.mxu0 %v1770
  %2089 = vmatmul.mubr.f32.gmra.mxu0 %v1571
  %v2090 = vpop.f32.mrf.mxu0
  %v2091 = vadd.f32 %v1686, %v2090
  %v2092 = vpop.f32.mrf.mxu0
  %v2093 = vadd.f32 %v1690, %v2092
  %2094 = vmatprep.mubr.f32.mxu0 %v1773
  %2095 = vmatmul.mubr.f32.gmra.mxu0 %v1573
  %v2096 = vpop.f32.mrf.mxu0
  %v2097 = vadd.f32 %v1686, %v2096
  %v2098 = vpop.f32.mrf.mxu0
  %v2099 = vadd.f32 %v1690, %v2098
  %2100 = vmatprep.mubr.f32.mxu0 %v1776
  %2101 = vmatmul.mubr.f32.gmra.mxu0 %v1575
  %v2102 = vpop.f32.mrf.mxu0
  %v2103 = vadd.f32 %v1686, %v2102
  %v2104 = vpop.f32.mrf.mxu0
  %v2105 = vadd.f32 %v1690, %v2104
  %2106 = vmatprep.mubr.f32.mxu0 %v1779
  %2107 = vmatmul.mubr.f32.gmra.mxu0 %v1577
  %v2108 = vpop.f32.mrf.mxu0
  %v2109 = vadd.f32 %v1686, %v2108
  %v2110 = vpop.f32.mrf.mxu0
  %v2111 = vadd.f32 %v1690, %v2110
  %2112 = vmatprep.mubr.f32.mxu0 %v1782
  %2113 = vmatmul.mubr.f32.gmra.mxu0 %v1579
  %v2114 = vpop.f32.mrf.mxu0
  %v2115 = vadd.f32 %v1686, %v2114
  %v2116 = vpop.f32.mrf.mxu0
  %v2117 = vadd.f32 %v1690, %v2116
  %2118 = vmatprep.mubr.f32.mxu0 %v1785
  %2119 = vmatmul.mubr.f32.gmra.mxu0 %v1581
  %v2120 = vpop.f32.mrf.mxu0
  %v2121 = vadd.f32 %v1686, %v2120
  %v2122 = vpop.f32.mrf.mxu0
  %v2123 = vadd.f32 %v1690, %v2122
  %2124 = vmatprep.mubr.f32.mxu0 %v1788
  %2125 = vmatmul.mubr.f32.gmra.mxu0 %v1583
  %v2126 = vpop.f32.mrf.mxu0
  %v2127 = vadd.f32 %v1686, %v2126
  %v2128 = vpop.f32.mrf.mxu0
  %v2129 = vadd.f32 %v1690, %v2128
  %2130 = vmatprep.mubr.f32.mxu0 %v1791
  %2131 = vmatmul.mubr.f32.gmra.mxu0 %v1585
  %v2132 = vpop.f32.mrf.mxu0
  %v2133 = vadd.f32 %v1686, %v2132
  %v2134 = vpop.f32.mrf.mxu0
  %v2135 = vadd.f32 %v1690, %v2134
  %2136 = vmatprep.mubr.f32.mxu0 %v1794
  %2137 = vmatmul.mubr.f32.gmra.mxu0 %v1587
  %v2138 = vpop.f32.mrf.mxu0
  %v2139 = vadd.f32 %v1686, %v2138
  %v2140 = vpop.f32.mrf.mxu0
  %v2141 = vadd.f32 %v1690, %v2140
  %2142 = vmatprep.mubr.f32.mxu0 %v1797
  %2143 = vmatmul.mubr.f32.gmra.mxu0 %v1589
  %v2144 = vpop.f32.mrf.mxu0
  %v2145 = vadd.f32 %v1686, %v2144
  %v2146 = vpop.f32.mrf.mxu0
  %v2147 = vadd.f32 %v1690, %v2146
  %2148 = vmatprep.mubr.f32.mxu0 %v1800
  %2149 = vmatmul.mubr.f32.gmra.mxu0 %v1591
  %v2150 = vpop.f32.mrf.mxu0
  %v2151 = vadd.f32 %v1686, %v2150
  %v2152 = vpop.f32.mrf.mxu0
  %v2153 = vadd.f32 %v1690, %v2152
  %2154 = vmatprep.mubr.f32.mxu0 %v1803
  %2155 = vmatmul.mubr.f32.gmra.mxu0 %v1593
  %v2156 = vpop.f32.mrf.mxu0
  %v2157 = vadd.f32 %v1686, %v2156
  %v2158 = vpop.f32.mrf.mxu0
  %v2159 = vadd.f32 %v1690, %v2158
  %2160 = vmatprep.mubr.f32.mxu0 %v1806
  %2161 = vmatmul.mubr.f32.gmra.mxu0 %v1595
  %v2162 = vpop.f32.mrf.mxu0
  %v2163 = vadd.f32 %v1686, %v2162
  %v2164 = vpop.f32.mrf.mxu0
  %v2165 = vadd.f32 %v1690, %v2164
  %2166 = vmatprep.mubr.f32.mxu0 %v1809
  %2167 = vmatmul.mubr.f32.gmra.mxu0 %v1597
  %v2168 = vpop.f32.mrf.mxu0
  %v2169 = vadd.f32 %v1686, %v2168
  %v2170 = vpop.f32.mrf.mxu0
  %v2171 = vadd.f32 %v1690, %v2170
  %2172 = vmatprep.mubr.f32.mxu0 %v1812
  %2173 = vmatmul.mubr.f32.gmra.mxu0 %v1599
  %v2174 = vpop.f32.mrf.mxu0
  %v2175 = vadd.f32 %v1686, %v2174
  %v2176 = vpop.f32.mrf.mxu0
  %v2177 = vadd.f32 %v1690, %v2176
  %2178 = vmatprep.mubr.f32.mxu0 %v1815
  %2179 = vmatmul.mubr.f32.gmra.mxu0 %v1601
  %v2180 = vpop.f32.mrf.mxu0
  %v2181 = vadd.f32 %v1686, %v2180
  %v2182 = vpop.f32.mrf.mxu0
  %v2183 = vadd.f32 %v1690, %v2182
  %2184 = vmatprep.mubr.f32.mxu0 %v1818
  %2185 = vmatmul.mubr.f32.gmra.mxu0 %v1603
  %v2186 = vpop.f32.mrf.mxu0
  %v2187 = vadd.f32 %v1686, %v2186
  %v2188 = vpop.f32.mrf.mxu0
  %v2189 = vadd.f32 %v1690, %v2188
  %2190 = vmatprep.mubr.f32.mxu0 %v1821
  %2191 = vmatmul.mubr.f32.gmra.mxu0 %v1605
  %v2192 = vpop.f32.mrf.mxu0
  %v2193 = vadd.f32 %v1686, %v2192
  %v2194 = vpop.f32.mrf.mxu0
  %v2195 = vadd.f32 %v1690, %v2194
  %2196 = vmatprep.mubr.f32.mxu0 %v1824
  %2197 = vmatmul.mubr.f32.gmra.mxu0 %v1607
  %v2198 = vpop.f32.mrf.mxu0
  %v2199 = vadd.f32 %v1686, %v2198
  %v2200 = vpop.f32.mrf.mxu0
  %v2201 = vadd.f32 %v1690, %v2200
  %2202 = vmatprep.mubr.f32.mxu0 %v1827
  %2203 = vmatmul.mubr.f32.gmra.mxu0 %v1609
  %v2204 = vpop.f32.mrf.mxu0
  %v2205 = vadd.f32 %v1686, %v2204
  %v2206 = vpop.f32.mrf.mxu0
  %v2207 = vadd.f32 %v1690, %v2206
  %2208 = vmatprep.mubr.f32.mxu0 %v1830
  %2209 = vmatmul.mubr.f32.gmra.mxu0 %v1611
  %v2210 = vpop.f32.mrf.mxu0
  %v2211 = vadd.f32 %v1686, %v2210
  %v2212 = vpop.f32.mrf.mxu0
  %v2213 = vadd.f32 %v1690, %v2212
  %2214 = vmatprep.mubr.f32.mxu0 %v1833
  %2215 = vmatmul.mubr.f32.gmra.mxu0 %v1613
  %v2216 = vpop.f32.mrf.mxu0
  %v2217 = vadd.f32 %v1686, %v2216
  %v2218 = vpop.f32.mrf.mxu0
  %v2219 = vadd.f32 %v1690, %v2218
  %2220 = vmatprep.mubr.f32.mxu0 %v1836
  %2221 = vmatmul.mubr.f32.gmra.mxu0 %v1615
  %v2222 = vpop.f32.mrf.mxu0
  %v2223 = vadd.f32 %v1686, %v2222
  %v2224 = vpop.f32.mrf.mxu0
  %v2225 = vadd.f32 %v1690, %v2224
  %2226 = vmatprep.mubr.f32.mxu0 %v1839
  %2227 = vmatmul.mubr.f32.gmra.mxu0 %v1617
  %v2228 = vpop.f32.mrf.mxu0
  %v2229 = vadd.f32 %v1686, %v2228
  %v2230 = vpop.f32.mrf.mxu0
  %v2231 = vadd.f32 %v1690, %v2230
  %2232 = vmatprep.mubr.f32.mxu0 %v1842
  %2233 = vmatmul.mubr.f32.gmra.mxu0 %v1619
  %v2234 = vpop.f32.mrf.mxu0
  %v2235 = vadd.f32 %v1686, %v2234
  %v2236 = vpop.f32.mrf.mxu0
  %v2237 = vadd.f32 %v1690, %v2236
  %2238 = vmatprep.mubr.f32.mxu0 %v1845
  %2239 = vmatmul.mubr.f32.gmra.mxu0 %v1621
  %v2240 = vpop.f32.mrf.mxu0
  %v2241 = vadd.f32 %v1686, %v2240
  %v2242 = vpop.f32.mrf.mxu0
  %v2243 = vadd.f32 %v1690, %v2242
  %2244 = vmatprep.mubr.f32.mxu0 %v1848
  %2245 = vmatmul.mubr.f32.gmra.mxu0 %v1623
  %v2246 = vpop.f32.mrf.mxu0
  %v2247 = vadd.f32 %v1686, %v2246
  %v2248 = vpop.f32.mrf.mxu0
  %v2249 = vadd.f32 %v1690, %v2248
  %2250 = vmatprep.mubr.f32.mxu0 %v1851
  %2251 = vmatmul.mubr.f32.gmra.mxu0 %v1625
  %v2252 = vpop.f32.mrf.mxu0
  %v2253 = vadd.f32 %v1686, %v2252
  %v2254 = vpop.f32.mrf.mxu0
  %v2255 = vadd.f32 %v1690, %v2254
  %2256 = vmatprep.mubr.f32.mxu0 %v1854
  %2257 = vmatmul.mubr.f32.gmra.mxu0 %v1627
  %v2258 = vpop.f32.mrf.mxu0
  %v2259 = vadd.f32 %v1686, %v2258
  %v2260 = vpop.f32.mrf.mxu0
  %v2261 = vadd.f32 %v1690, %v2260
  %2262 = vmatprep.mubr.f32.mxu0 %v1857
  %2263 = vmatmul.mubr.f32.gmra.mxu0 %v1629
  %v2264 = vpop.f32.mrf.mxu0
  %v2265 = vadd.f32 %v1686, %v2264
  %v2266 = vpop.f32.mrf.mxu0
  %v2267 = vadd.f32 %v1690, %v2266
  %2268 = vmatprep.mubr.f32.mxu0 %v1860
  %2269 = vmatmul.mubr.f32.gmra.mxu0 %v1631
  %v2270 = vpop.f32.mrf.mxu0
  %v2271 = vadd.f32 %v1686, %v2270
  %v2272 = vpop.f32.mrf.mxu0
  %v2273 = vadd.f32 %v1690, %v2272
  %2274 = vmatprep.mubr.f32.mxu0 %v1863
  %2275 = vmatmul.mubr.f32.gmra.mxu0 %v1633
  %v2276 = vpop.f32.mrf.mxu0
  %v2277 = vadd.f32 %v1686, %v2276
  %v2278 = vpop.f32.mrf.mxu0
  %v2279 = vadd.f32 %v1690, %v2278
  %2280 = vmatprep.mubr.f32.mxu0 %v1866
  %2281 = vmatmul.mubr.f32.gmra.mxu0 %v1635
  %v2282 = vpop.f32.mrf.mxu0
  %v2283 = vadd.f32 %v1686, %v2282
  %v2284 = vpop.f32.mrf.mxu0
  %v2285 = vadd.f32 %v1690, %v2284
  %2286 = vmatprep.mubr.f32.mxu0 %v1869
  %2287 = vmatmul.mubr.f32.gmra.mxu0 %v1637
  %v2288 = vpop.f32.mrf.mxu0
  %v2289 = vadd.f32 %v1686, %v2288
  %v2290 = vpop.f32.mrf.mxu0
  %v2291 = vadd.f32 %v1690, %v2290
  %2292 = vmatprep.mubr.f32.mxu0 %v1872
  %2293 = vmatmul.mubr.f32.gmra.mxu0 %v1639
  %v2294 = vpop.f32.mrf.mxu0
  %v2295 = vadd.f32 %v1686, %v2294
  %v2296 = vpop.f32.mrf.mxu0
  %v2297 = vadd.f32 %v1690, %v2296
  %2298 = vdwg.mxu0
  %v2299 = vtanh.pop %v1941
  %v2300 = vtanh.pop %v1943
  %v2301 = vtanh.pop %v1947
  %v2302 = vtanh.pop %v1949
  %v2303 = vtanh.pop %v1953
  %v2304 = vtanh.pop %v1955
  %v2305 = vtanh.pop %v1959
  %v2306 = vtanh.pop %v1961
  %v2307 = vtanh.pop %v1965
  %v2308 = vtanh.pop %v1967
  %v2309 = vtanh.pop %v1971
  %v2310 = vtanh.pop %v1973
  %v2311 = vtanh.pop %v1977
  %v2312 = vtanh.pop %v1979
  %v2313 = vtanh.pop %v1983
  %v2314 = vtanh.pop %v1985
  %v2315 = vtanh.pop %v1989
  %v2316 = vtanh.pop %v1991
  %v2317 = vtanh.pop %v1995
  %v2318 = vtanh.pop %v1997
  %v2319 = vtanh.pop %v2001
  %v2320 = vtanh.pop %v2003
  %v2321 = vtanh.pop %v2007
  %v2322 = vtanh.pop %v2009
  %v2323 = vtanh.pop %v2013
  %v2324 = vtanh.pop %v2015
  %v2325 = vtanh.pop %v2019
  %v2326 = vtanh.pop %v2021
  %v2327 = vtanh.pop %v2025
  %v2328 = vtanh.pop %v2027
  %v2329 = vtanh.pop %v2031
  %v2330 = vtanh.pop %v2033
  %v2331 = vtanh.pop %v2037
  %v2332 = vtanh.pop %v2039
  %v2333 = vtanh.pop %v2043
  %v2334 = vtanh.pop %v2045
  %v2335 = vtanh.pop %v2049
  %v2336 = vtanh.pop %v2051
  %v2337 = vtanh.pop %v2055
  %v2338 = vtanh.pop %v2057
  %v2339 = vtanh.pop %v2061
  %v2340 = vtanh.pop %v2063
  %v2341 = vtanh.pop %v2067
  %v2342 = vtanh.pop %v2069
  %v2343 = vtanh.pop %v2073
  %v2344 = vtanh.pop %v2075
  %v2345 = vtanh.pop %v2079
  %v2346 = vtanh.pop %v2081
  %v2347 = vtanh.pop %v2085
  %v2348 = vtanh.pop %v2087
  %v2349 = vtanh.pop %v2091
  %v2350 = vtanh.pop %v2093
  %v2351 = vtanh.pop %v2097
  %v2352 = vtanh.pop %v2099
  %v2353 = vtanh.pop %v2103
  %v2354 = vtanh.pop %v2105
  %v2355 = vtanh.pop %v2109
  %v2356 = vtanh.pop %v2111
  %v2357 = vtanh.pop %v2115
  %v2358 = vtanh.pop %v2117
  %v2359 = vtanh.pop %v2121
  %v2360 = vtanh.pop %v2123
  %v2361 = vtanh.pop %v2127
  %v2362 = vtanh.pop %v2129
  %v2363 = vtanh.pop %v2133
  %v2364 = vtanh.pop %v2135
  %v2365 = vtanh.pop %v2139
  %v2366 = vtanh.pop %v2141
  %v2367 = vtanh.pop %v2145
  %v2368 = vtanh.pop %v2147
  %v2369 = vtanh.pop %v2151
  %v2370 = vtanh.pop %v2153
  %v2371 = vtanh.pop %v2157
  %v2372 = vtanh.pop %v2159
  %v2373 = vtanh.pop %v2163
  %v2374 = vtanh.pop %v2165
  %v2375 = vtanh.pop %v2169
  %v2376 = vtanh.pop %v2171
  %v2377 = vtanh.pop %v2175
  %v2378 = vtanh.pop %v2177
  %v2379 = vtanh.pop %v2181
  %v2380 = vtanh.pop %v2183
  %v2381 = vtanh.pop %v2187
  %v2382 = vtanh.pop %v2189
  %v2383 = vtanh.pop %v2193
  %v2384 = vtanh.pop %v2195
  %v2385 = vtanh.pop %v2199
  %v2386 = vtanh.pop %v2201
  %v2387 = vtanh.pop %v2205
  %v2388 = vtanh.pop %v2207
  %v2389 = vtanh.pop %v2211
  %v2390 = vtanh.pop %v2213
  %v2391 = vtanh.pop %v2217
  %v2392 = vtanh.pop %v2219
  %v2393 = vtanh.pop %v2223
  %v2394 = vtanh.pop %v2225
  %v2395 = vtanh.pop %v2229
  %v2396 = vtanh.pop %v2231
  %v2397 = vtanh.pop %v2235
  %v2398 = vtanh.pop %v2237
  %v2399 = vtanh.pop %v2241
  %v2400 = vtanh.pop %v2243
  %v2401 = vtanh.pop %v2247
  %v2402 = vtanh.pop %v2249
  %v2403 = vtanh.pop %v2253
  %v2404 = vtanh.pop %v2255
  %v2405 = vtanh.pop %v2259
  %v2406 = vtanh.pop %v2261
  %v2407 = vtanh.pop %v2265
  %v2408 = vtanh.pop %v2267
  %v2409 = vtanh.pop %v2271
  %v2410 = vtanh.pop %v2273
  %v2411 = vtanh.pop %v2277
  %v2412 = vtanh.pop %v2279
  %v2413 = vtanh.pop %v2283
  %v2414 = vtanh.pop %v2285
  %v2415 = vtanh.pop %v2289
  %v2416 = vtanh.pop %v2291
  %v2417 = vtanh.pop %v2295
  %v2418 = vtanh.pop %v2297
  %v2419 = vld [vmem:[%s7] sm:$0xff]
  %v2420 = vld [vmem:[%s7 + $0x8] sm:$0xff]
  %v2421 = vld [vmem:[%s7 + $0x10] sm:$0xff]
  %v2422 = vld [vmem:[%s7 + $0x18] sm:$0xff]
  %v2423 = vld [vmem:[%s7 + $0x20] sm:$0xff]
  %v2424 = vld [vmem:[%s7 + $0x28] sm:$0xff]
  %v2425 = vld [vmem:[%s7 + $0x30] sm:$0xff]
  %v2426 = vld [vmem:[%s7 + $0x38] sm:$0xff]
  %v2427 = vld [vmem:[%s7 + $0x40] sm:$0xff]
  %v2428 = vld [vmem:[%s7 + $0x48] sm:$0xff]
  %v2429 = vld [vmem:[%s7 + $0x50] sm:$0xff]
  %v2430 = vld [vmem:[%s7 + $0x58] sm:$0xff]
  %v2431 = vld [vmem:[%s7 + $0x60] sm:$0xff]
  %v2432 = vld [vmem:[%s7 + $0x68] sm:$0xff]
  %v2433 = vld [vmem:[%s7 + $0x70] sm:$0xff]
  %v2434 = vld [vmem:[%s7 + $0x78] sm:$0xff]
  %v2435 = vld [vmem:[%s7 + $0x80] sm:$0xff]
  %v2436 = vld [vmem:[%s7 + $0x88] sm:$0xff]
  %v2437 = vld [vmem:[%s7 + $0x90] sm:$0xff]
  %v2438 = vld [vmem:[%s7 + $0x98] sm:$0xff]
  %v2439 = vld [vmem:[%s7 + $0xa0] sm:$0xff]
  %v2440 = vld [vmem:[%s7 + $0xa8] sm:$0xff]
  %v2441 = vld [vmem:[%s7 + $0xb0] sm:$0xff]
  %v2442 = vld [vmem:[%s7 + $0xb8] sm:$0xff]
  %v2443 = vld [vmem:[%s7 + $0xc0] sm:$0xff]
  %v2444 = vld [vmem:[%s7 + $0xc8] sm:$0xff]
  %v2445 = vld [vmem:[%s7 + $0xd0] sm:$0xff]
  %v2446 = vld [vmem:[%s7 + $0xd8] sm:$0xff]
  %v2447 = vld [vmem:[%s7 + $0xe0] sm:$0xff]
  %v2448 = vld [vmem:[%s7 + $0xe8] sm:$0xff]
  %v2449 = vld [vmem:[%s7 + $0xf0] sm:$0xff]
  %v2450 = vld [vmem:[%s7 + $0xf8] sm:$0xff]
  %v2451 = vld [vmem:[%s7 + $0x100] sm:$0xff]
  %v2452 = vld [vmem:[%s7 + $0x108] sm:$0xff]
  %v2453 = vld [vmem:[%s7 + $0x110] sm:$0xff]
  %v2454 = vld [vmem:[%s7 + $0x118] sm:$0xff]
  %v2455 = vld [vmem:[%s7 + $0x120] sm:$0xff]
  %v2456 = vld [vmem:[%s7 + $0x128] sm:$0xff]
  %v2457 = vld [vmem:[%s7 + $0x130] sm:$0xff]
  %v2458 = vld [vmem:[%s7 + $0x138] sm:$0xff]
  %v2459 = vld [vmem:[%s7 + $0x140] sm:$0xff]
  %v2460 = vld [vmem:[%s7 + $0x148] sm:$0xff]
  %v2461 = vld [vmem:[%s7 + $0x150] sm:$0x3]
  %v2462 = vld [vmem:[%s7 + $0x158] sm:$0x3]
  %v2463 = vld [vmem:[%s8] sm:$0x3]
  %v2465 = vlaneseq
  %v2466 = vshrl.u32 %v2465, 7
  %v2467 = vsub.s32 0, %v2466
  %v2468 = vrot.slane %v2463, %v2467
  %v2469 = vlaneseq
  %v2470 = vshrl.u32 %v2469, 7
  %v2471 = vsub.s32 1, %v2470
  %v2472 = vrot.slane %v2463, %v2471
  %vm2475 = vcmask 343040
  %v2477 = vsel %vm2475, %v2300, 0
  %v2480 = vsel %vm2475, %v2302, 0
  %v2483 = vsel %vm2475, %v2304, 0
  %v2486 = vsel %vm2475, %v2306, 0
  %v2489 = vsel %vm2475, %v2308, 0
  %v2492 = vsel %vm2475, %v2310, 0
  %v2495 = vsel %vm2475, %v2312, 0
  %v2498 = vsel %vm2475, %v2314, 0
  %v2501 = vsel %vm2475, %v2316, 0
  %v2504 = vsel %vm2475, %v2318, 0
  %v2507 = vsel %vm2475, %v2320, 0
  %v2510 = vsel %vm2475, %v2322, 0
  %v2513 = vsel %vm2475, %v2324, 0
  %v2516 = vsel %vm2475, %v2326, 0
  %v2519 = vsel %vm2475, %v2328, 0
  %v2522 = vsel %vm2475, %v2330, 0
  %v2525 = vsel %vm2475, %v2332, 0
  %v2528 = vsel %vm2475, %v2334, 0
  %v2531 = vsel %vm2475, %v2336, 0
  %v2534 = vsel %vm2475, %v2338, 0
  %v2537 = vsel %vm2475, %v2340, 0
  %v2540 = vsel %vm2475, %v2342, 0
  %v2543 = vsel %vm2475, %v2344, 0
  %v2546 = vsel %vm2475, %v2346, 0
  %v2549 = vsel %vm2475, %v2348, 0
  %v2552 = vsel %vm2475, %v2350, 0
  %v2555 = vsel %vm2475, %v2352, 0
  %v2558 = vsel %vm2475, %v2354, 0
  %v2561 = vsel %vm2475, %v2356, 0
  %v2564 = vsel %vm2475, %v2358, 0
  %v2567 = vsel %vm2475, %v2360, 0
  %v2570 = vsel %vm2475, %v2362, 0
  %v2573 = vsel %vm2475, %v2364, 0
  %v2576 = vsel %vm2475, %v2366, 0
  %v2579 = vsel %vm2475, %v2368, 0
  %v2582 = vsel %vm2475, %v2370, 0
  %v2585 = vsel %vm2475, %v2372, 0
  %v2588 = vsel %vm2475, %v2374, 0
  %v2591 = vsel %vm2475, %v2376, 0
  %v2594 = vsel %vm2475, %v2378, 0
  %v2597 = vsel %vm2475, %v2380, 0
  %v2600 = vsel %vm2475, %v2382, 0
  %v2603 = vsel %vm2475, %v2384, 0
  %v2606 = vsel %vm2475, %v2386, 0
  %v2609 = vsel %vm2475, %v2388, 0
  %v2612 = vsel %vm2475, %v2390, 0
  %v2615 = vsel %vm2475, %v2392, 0
  %v2618 = vsel %vm2475, %v2394, 0
  %v2621 = vsel %vm2475, %v2396, 0
  %v2624 = vsel %vm2475, %v2398, 0
  %v2627 = vsel %vm2475, %v2400, 0
  %v2630 = vsel %vm2475, %v2402, 0
  %v2633 = vsel %vm2475, %v2404, 0
  %v2636 = vsel %vm2475, %v2406, 0
  %v2639 = vsel %vm2475, %v2408, 0
  %v2642 = vsel %vm2475, %v2410, 0
  %v2645 = vsel %vm2475, %v2412, 0
  %v2648 = vsel %vm2475, %v2414, 0
  %v2651 = vsel %vm2475, %v2416, 0
  %v2654 = vsel %vm2475, %v2418, 0
  %vm2656 = vcmask 1041408
  %v2658 = vsel %vm2656, %v2461, 0
  %v2661 = vsel %vm2656, %v2462, 0
  %2663 = vmatprep.subr.mxu0 %v2450
  %2664 = vmatpush1.msra.mxu0 %v2449
  %2665 = vmatprep.subr.mxu0 %v2448
  %2666 = vmatpush1.msra.mxu0 %v2447
  %2667 = vmatprep.subr.mxu0 %v2446
  %2668 = vmatpush1.msra.mxu0 %v2445
  %2669 = vmatprep.subr.mxu0 %v2444
  %2670 = vmatpush1.msra.mxu0 %v2443
  %2671 = vmatprep.subr.mxu0 %v2442
  %2672 = vmatpush1.msra.mxu0 %v2441
  %2673 = vmatprep.subr.mxu0 %v2440
  %2674 = vmatpush1.msra.mxu0 %v2439
  %2675 = vmatprep.subr.mxu0 %v2438
  %2676 = vmatpush1.msra.mxu0 %v2437
  %2677 = vmatprep.subr.mxu0 %v2436
  %2678 = vmatpush1.msra.mxu0 %v2435
  %2679 = vmatprep.subr.mxu0 %v2434
  %2680 = vmatpush1.msra.mxu0 %v2433
  %2681 = vmatprep.subr.mxu0 %v2432
  %2682 = vmatpush1.msra.mxu0 %v2431
  %2683 = vmatprep.subr.mxu0 %v2430
  %2684 = vmatpush1.msra.mxu0 %v2429
  %2685 = vmatprep.subr.mxu0 %v2428
  %2686 = vmatpush1.msra.mxu0 %v2427
  %2687 = vmatprep.subr.mxu0 %v2426
  %2688 = vmatpush1.msra.mxu0 %v2425
  %2689 = vmatprep.subr.mxu0 %v2424
  %2690 = vmatpush1.msra.mxu0 %v2423
  %2691 = vmatprep.subr.mxu0 %v2422
  %2692 = vmatpush1.msra.mxu0 %v2421
  %2693 = vmatprep.subr.mxu0 %v2420
  %2694 = vmatpush1.msra.mxu0 %v2419
  %2695 = vmatprep.subr.mxu0 0.0
  %2696 = vmatpush2.msra.mxu0 0.0
  %2697 = vmatprep.subr.mxu0 0.0
  %2698 = vmatpush2.msra.mxu0 0.0
  %2699 = vmatprep.subr.mxu0 0.0
  %2700 = vmatpush2.msra.mxu0 0.0
  %2701 = vmatprep.subr.mxu0 0.0
  %2702 = vmatpush2.msra.mxu0 0.0
  %2703 = vmatprep.subr.mxu0 0.0
  %2704 = vmatpush2.msra.mxu0 0.0
  %2705 = vmatprep.subr.mxu0 0.0
  %2706 = vmatpush2.msra.mxu0 0.0
  %2707 = vmatprep.subr.mxu0 0.0
  %2708 = vmatpush2.msra.mxu0 0.0
  %2709 = vmatprep.subr.mxu0 0.0
  %2710 = vmatpush2.msra.mxu0 0.0
  %2711 = vmatprep.subr.mxu0 0.0
  %2712 = vmatpush2.msra.mxu0 0.0
  %2713 = vmatprep.subr.mxu0 0.0
  %2714 = vmatpush2.msra.mxu0 0.0
  %2715 = vmatprep.subr.mxu0 %v2661
  %2716 = vmatpush2.msra.mxu0 %v2658
  %2717 = vmatprep.subr.mxu0 %v2460
  %2718 = vmatpush2.msra.mxu0 %v2459
  %2719 = vmatprep.subr.mxu0 %v2458
  %2720 = vmatpush2.msra.mxu0 %v2457
  %2721 = vmatprep.subr.mxu0 %v2456
  %2722 = vmatpush2.msra.mxu0 %v2455
  %2723 = vmatprep.subr.mxu0 %v2454
  %2724 = vmatpush2.msra.mxu0 %v2453
  %2725 = vmatprep.subr.mxu0 %v2452
  %2726 = vmatpush2.msra.mxu0 %v2451
  %2727 = vmatprep.mubr.f32.mxu0 %v2477
  %2728 = vmatmul.mubr.f32.gmra.mxu0 %v2299
  %v2729 = vpop.f32.mrf.mxu0
  %v2730 = vadd.f32 %v2468, %v2729
  %v2731 = vpop.f32.mrf.mxu0
  %v2732 = vadd.f32 %v2472, %v2731
  %2733 = vmatprep.mubr.f32.mxu0 %v2480
  %2734 = vmatmul.mubr.f32.gmra.mxu0 %v2301
  %v2735 = vpop.f32.mrf.mxu0
  %v2736 = vadd.f32 %v2468, %v2735
  %v2737 = vpop.f32.mrf.mxu0
  %v2738 = vadd.f32 %v2472, %v2737
  %2739 = vmatprep.mubr.f32.mxu0 %v2483
  %2740 = vmatmul.mubr.f32.gmra.mxu0 %v2303
  %v2741 = vpop.f32.mrf.mxu0
  %v2742 = vadd.f32 %v2468, %v2741
  %v2743 = vpop.f32.mrf.mxu0
  %v2744 = vadd.f32 %v2472, %v2743
  %2745 = vmatprep.mubr.f32.mxu0 %v2486
  %2746 = vmatmul.mubr.f32.gmra.mxu0 %v2305
  %v2747 = vpop.f32.mrf.mxu0
  %v2748 = vadd.f32 %v2468, %v2747
  %v2749 = vpop.f32.mrf.mxu0
  %v2750 = vadd.f32 %v2472, %v2749
  %2751 = vmatprep.mubr.f32.mxu0 %v2489
  %2752 = vmatmul.mubr.f32.gmra.mxu0 %v2307
  %v2753 = vpop.f32.mrf.mxu0
  %v2754 = vadd.f32 %v2468, %v2753
  %v2755 = vpop.f32.mrf.mxu0
  %v2756 = vadd.f32 %v2472, %v2755
  %2757 = vmatprep.mubr.f32.mxu0 %v2492
  %2758 = vmatmul.mubr.f32.gmra.mxu0 %v2309
  %v2759 = vpop.f32.mrf.mxu0
  %v2760 = vadd.f32 %v2468, %v2759
  %v2761 = vpop.f32.mrf.mxu0
  %v2762 = vadd.f32 %v2472, %v2761
  %2763 = vmatprep.mubr.f32.mxu0 %v2495
  %2764 = vmatmul.mubr.f32.gmra.mxu0 %v2311
  %v2765 = vpop.f32.mrf.mxu0
  %v2766 = vadd.f32 %v2468, %v2765
  %v2767 = vpop.f32.mrf.mxu0
  %v2768 = vadd.f32 %v2472, %v2767
  %2769 = vmatprep.mubr.f32.mxu0 %v2498
  %2770 = vmatmul.mubr.f32.gmra.mxu0 %v2313
  %v2771 = vpop.f32.mrf.mxu0
  %v2772 = vadd.f32 %v2468, %v2771
  %v2773 = vpop.f32.mrf.mxu0
  %v2774 = vadd.f32 %v2472, %v2773
  %2775 = vmatprep.mubr.f32.mxu0 %v2501
  %2776 = vmatmul.mubr.f32.gmra.mxu0 %v2315
  %v2777 = vpop.f32.mrf.mxu0
  %v2778 = vadd.f32 %v2468, %v2777
  %v2779 = vpop.f32.mrf.mxu0
  %v2780 = vadd.f32 %v2472, %v2779
  %2781 = vmatprep.mubr.f32.mxu0 %v2504
  %2782 = vmatmul.mubr.f32.gmra.mxu0 %v2317
  %v2783 = vpop.f32.mrf.mxu0
  %v2784 = vadd.f32 %v2468, %v2783
  %v2785 = vpop.f32.mrf.mxu0
  %v2786 = vadd.f32 %v2472, %v2785
  %2787 = vmatprep.mubr.f32.mxu0 %v2507
  %2788 = vmatmul.mubr.f32.gmra.mxu0 %v2319
  %v2789 = vpop.f32.mrf.mxu0
  %v2790 = vadd.f32 %v2468, %v2789
  %v2791 = vpop.f32.mrf.mxu0
  %v2792 = vadd.f32 %v2472, %v2791
  %2793 = vmatprep.mubr.f32.mxu0 %v2510
  %2794 = vmatmul.mubr.f32.gmra.mxu0 %v2321
  %v2795 = vpop.f32.mrf.mxu0
  %v2796 = vadd.f32 %v2468, %v2795
  %v2797 = vpop.f32.mrf.mxu0
  %v2798 = vadd.f32 %v2472, %v2797
  %2799 = vmatprep.mubr.f32.mxu0 %v2513
  %2800 = vmatmul.mubr.f32.gmra.mxu0 %v2323
  %v2801 = vpop.f32.mrf.mxu0
  %v2802 = vadd.f32 %v2468, %v2801
  %v2803 = vpop.f32.mrf.mxu0
  %v2804 = vadd.f32 %v2472, %v2803
  %2805 = vmatprep.mubr.f32.mxu0 %v2516
  %2806 = vmatmul.mubr.f32.gmra.mxu0 %v2325
  %v2807 = vpop.f32.mrf.mxu0
  %v2808 = vadd.f32 %v2468, %v2807
  %v2809 = vpop.f32.mrf.mxu0
  %v2810 = vadd.f32 %v2472, %v2809
  %2811 = vmatprep.mubr.f32.mxu0 %v2519
  %2812 = vmatmul.mubr.f32.gmra.mxu0 %v2327
  %v2813 = vpop.f32.mrf.mxu0
  %v2814 = vadd.f32 %v2468, %v2813
  %v2815 = vpop.f32.mrf.mxu0
  %v2816 = vadd.f32 %v2472, %v2815
  %2817 = vmatprep.mubr.f32.mxu0 %v2522
  %2818 = vmatmul.mubr.f32.gmra.mxu0 %v2329
  %v2819 = vpop.f32.mrf.mxu0
  %v2820 = vadd.f32 %v2468, %v2819
  %v2821 = vpop.f32.mrf.mxu0
  %v2822 = vadd.f32 %v2472, %v2821
  %2823 = vmatprep.mubr.f32.mxu0 %v2525
  %2824 = vmatmul.mubr.f32.gmra.mxu0 %v2331
  %v2825 = vpop.f32.mrf.mxu0
  %v2826 = vadd.f32 %v2468, %v2825
  %v2827 = vpop.f32.mrf.mxu0
  %v2828 = vadd.f32 %v2472, %v2827
  %2829 = vmatprep.mubr.f32.mxu0 %v2528
  %2830 = vmatmul.mubr.f32.gmra.mxu0 %v2333
  %v2831 = vpop.f32.mrf.mxu0
  %v2832 = vadd.f32 %v2468, %v2831
  %v2833 = vpop.f32.mrf.mxu0
  %v2834 = vadd.f32 %v2472, %v2833
  %2835 = vmatprep.mubr.f32.mxu0 %v2531
  %2836 = vmatmul.mubr.f32.gmra.mxu0 %v2335
  %v2837 = vpop.f32.mrf.mxu0
  %v2838 = vadd.f32 %v2468, %v2837
  %v2839 = vpop.f32.mrf.mxu0
  %v2840 = vadd.f32 %v2472, %v2839
  %2841 = vmatprep.mubr.f32.mxu0 %v2534
  %2842 = vmatmul.mubr.f32.gmra.mxu0 %v2337
  %v2843 = vpop.f32.mrf.mxu0
  %v2844 = vadd.f32 %v2468, %v2843
  %v2845 = vpop.f32.mrf.mxu0
  %v2846 = vadd.f32 %v2472, %v2845
  %2847 = vmatprep.mubr.f32.mxu0 %v2537
  %2848 = vmatmul.mubr.f32.gmra.mxu0 %v2339
  %v2849 = vpop.f32.mrf.mxu0
  %v2850 = vadd.f32 %v2468, %v2849
  %v2851 = vpop.f32.mrf.mxu0
  %v2852 = vadd.f32 %v2472, %v2851
  %2853 = vmatprep.mubr.f32.mxu0 %v2540
  %2854 = vmatmul.mubr.f32.gmra.mxu0 %v2341
  %v2855 = vpop.f32.mrf.mxu0
  %v2856 = vadd.f32 %v2468, %v2855
  %v2857 = vpop.f32.mrf.mxu0
  %v2858 = vadd.f32 %v2472, %v2857
  %2859 = vmatprep.mubr.f32.mxu0 %v2543
  %2860 = vmatmul.mubr.f32.gmra.mxu0 %v2343
  %v2861 = vpop.f32.mrf.mxu0
  %v2862 = vadd.f32 %v2468, %v2861
  %v2863 = vpop.f32.mrf.mxu0
  %v2864 = vadd.f32 %v2472, %v2863
  %2865 = vmatprep.mubr.f32.mxu0 %v2546
  %2866 = vmatmul.mubr.f32.gmra.mxu0 %v2345
  %v2867 = vpop.f32.mrf.mxu0
  %v2868 = vadd.f32 %v2468, %v2867
  %v2869 = vpop.f32.mrf.mxu0
  %v2870 = vadd.f32 %v2472, %v2869
  %2871 = vmatprep.mubr.f32.mxu0 %v2549
  %2872 = vmatmul.mubr.f32.gmra.mxu0 %v2347
  %v2873 = vpop.f32.mrf.mxu0
  %v2874 = vadd.f32 %v2468, %v2873
  %v2875 = vpop.f32.mrf.mxu0
  %v2876 = vadd.f32 %v2472, %v2875
  %2877 = vmatprep.mubr.f32.mxu0 %v2552
  %2878 = vmatmul.mubr.f32.gmra.mxu0 %v2349
  %v2879 = vpop.f32.mrf.mxu0
  %v2880 = vadd.f32 %v2468, %v2879
  %v2881 = vpop.f32.mrf.mxu0
  %v2882 = vadd.f32 %v2472, %v2881
  %2883 = vmatprep.mubr.f32.mxu0 %v2555
  %2884 = vmatmul.mubr.f32.gmra.mxu0 %v2351
  %v2885 = vpop.f32.mrf.mxu0
  %v2886 = vadd.f32 %v2468, %v2885
  %v2887 = vpop.f32.mrf.mxu0
  %v2888 = vadd.f32 %v2472, %v2887
  %2889 = vmatprep.mubr.f32.mxu0 %v2558
  %2890 = vmatmul.mubr.f32.gmra.mxu0 %v2353
  %v2891 = vpop.f32.mrf.mxu0
  %v2892 = vadd.f32 %v2468, %v2891
  %v2893 = vpop.f32.mrf.mxu0
  %v2894 = vadd.f32 %v2472, %v2893
  %2895 = vmatprep.mubr.f32.mxu0 %v2561
  %2896 = vmatmul.mubr.f32.gmra.mxu0 %v2355
  %v2897 = vpop.f32.mrf.mxu0
  %v2898 = vadd.f32 %v2468, %v2897
  %v2899 = vpop.f32.mrf.mxu0
  %v2900 = vadd.f32 %v2472, %v2899
  %2901 = vmatprep.mubr.f32.mxu0 %v2564
  %2902 = vmatmul.mubr.f32.gmra.mxu0 %v2357
  %v2903 = vpop.f32.mrf.mxu0
  %v2904 = vadd.f32 %v2468, %v2903
  %v2905 = vpop.f32.mrf.mxu0
  %v2906 = vadd.f32 %v2472, %v2905
  %2907 = vmatprep.mubr.f32.mxu0 %v2567
  %2908 = vmatmul.mubr.f32.gmra.mxu0 %v2359
  %v2909 = vpop.f32.mrf.mxu0
  %v2910 = vadd.f32 %v2468, %v2909
  %v2911 = vpop.f32.mrf.mxu0
  %v2912 = vadd.f32 %v2472, %v2911
  %2913 = vmatprep.mubr.f32.mxu0 %v2570
  %2914 = vmatmul.mubr.f32.gmra.mxu0 %v2361
  %v2915 = vpop.f32.mrf.mxu0
  %v2916 = vadd.f32 %v2468, %v2915
  %v2917 = vpop.f32.mrf.mxu0
  %v2918 = vadd.f32 %v2472, %v2917
  %2919 = vmatprep.mubr.f32.mxu0 %v2573
  %2920 = vmatmul.mubr.f32.gmra.mxu0 %v2363
  %v2921 = vpop.f32.mrf.mxu0
  %v2922 = vadd.f32 %v2468, %v2921
  %v2923 = vpop.f32.mrf.mxu0
  %v2924 = vadd.f32 %v2472, %v2923
  %2925 = vmatprep.mubr.f32.mxu0 %v2576
  %2926 = vmatmul.mubr.f32.gmra.mxu0 %v2365
  %v2927 = vpop.f32.mrf.mxu0
  %v2928 = vadd.f32 %v2468, %v2927
  %v2929 = vpop.f32.mrf.mxu0
  %v2930 = vadd.f32 %v2472, %v2929
  %2931 = vmatprep.mubr.f32.mxu0 %v2579
  %2932 = vmatmul.mubr.f32.gmra.mxu0 %v2367
  %v2933 = vpop.f32.mrf.mxu0
  %v2934 = vadd.f32 %v2468, %v2933
  %v2935 = vpop.f32.mrf.mxu0
  %v2936 = vadd.f32 %v2472, %v2935
  %2937 = vmatprep.mubr.f32.mxu0 %v2582
  %2938 = vmatmul.mubr.f32.gmra.mxu0 %v2369
  %v2939 = vpop.f32.mrf.mxu0
  %v2940 = vadd.f32 %v2468, %v2939
  %v2941 = vpop.f32.mrf.mxu0
  %v2942 = vadd.f32 %v2472, %v2941
  %2943 = vmatprep.mubr.f32.mxu0 %v2585
  %2944 = vmatmul.mubr.f32.gmra.mxu0 %v2371
  %v2945 = vpop.f32.mrf.mxu0
  %v2946 = vadd.f32 %v2468, %v2945
  %v2947 = vpop.f32.mrf.mxu0
  %v2948 = vadd.f32 %v2472, %v2947
  %2949 = vmatprep.mubr.f32.mxu0 %v2588
  %2950 = vmatmul.mubr.f32.gmra.mxu0 %v2373
  %v2951 = vpop.f32.mrf.mxu0
  %v2952 = vadd.f32 %v2468, %v2951
  %v2953 = vpop.f32.mrf.mxu0
  %v2954 = vadd.f32 %v2472, %v2953
  %2955 = vmatprep.mubr.f32.mxu0 %v2591
  %2956 = vmatmul.mubr.f32.gmra.mxu0 %v2375
  %v2957 = vpop.f32.mrf.mxu0
  %v2958 = vadd.f32 %v2468, %v2957
  %v2959 = vpop.f32.mrf.mxu0
  %v2960 = vadd.f32 %v2472, %v2959
  %2961 = vmatprep.mubr.f32.mxu0 %v2594
  %2962 = vmatmul.mubr.f32.gmra.mxu0 %v2377
  %v2963 = vpop.f32.mrf.mxu0
  %v2964 = vadd.f32 %v2468, %v2963
  %v2965 = vpop.f32.mrf.mxu0
  %v2966 = vadd.f32 %v2472, %v2965
  %2967 = vmatprep.mubr.f32.mxu0 %v2597
  %2968 = vmatmul.mubr.f32.gmra.mxu0 %v2379
  %v2969 = vpop.f32.mrf.mxu0
  %v2970 = vadd.f32 %v2468, %v2969
  %v2971 = vpop.f32.mrf.mxu0
  %v2972 = vadd.f32 %v2472, %v2971
  %2973 = vmatprep.mubr.f32.mxu0 %v2600
  %2974 = vmatmul.mubr.f32.gmra.mxu0 %v2381
  %v2975 = vpop.f32.mrf.mxu0
  %v2976 = vadd.f32 %v2468, %v2975
  %v2977 = vpop.f32.mrf.mxu0
  %v2978 = vadd.f32 %v2472, %v2977
  %2979 = vmatprep.mubr.f32.mxu0 %v2603
  %2980 = vmatmul.mubr.f32.gmra.mxu0 %v2383
  %v2981 = vpop.f32.mrf.mxu0
  %v2982 = vadd.f32 %v2468, %v2981
  %v2983 = vpop.f32.mrf.mxu0
  %v2984 = vadd.f32 %v2472, %v2983
  %2985 = vmatprep.mubr.f32.mxu0 %v2606
  %2986 = vmatmul.mubr.f32.gmra.mxu0 %v2385
  %v2987 = vpop.f32.mrf.mxu0
  %v2988 = vadd.f32 %v2468, %v2987
  %v2989 = vpop.f32.mrf.mxu0
  %v2990 = vadd.f32 %v2472, %v2989
  %2991 = vmatprep.mubr.f32.mxu0 %v2609
  %2992 = vmatmul.mubr.f32.gmra.mxu0 %v2387
  %v2993 = vpop.f32.mrf.mxu0
  %v2994 = vadd.f32 %v2468, %v2993
  %v2995 = vpop.f32.mrf.mxu0
  %v2996 = vadd.f32 %v2472, %v2995
  %2997 = vmatprep.mubr.f32.mxu0 %v2612
  %2998 = vmatmul.mubr.f32.gmra.mxu0 %v2389
  %v2999 = vpop.f32.mrf.mxu0
  %v3000 = vadd.f32 %v2468, %v2999
  %v3001 = vpop.f32.mrf.mxu0
  %v3002 = vadd.f32 %v2472, %v3001
  %3003 = vmatprep.mubr.f32.mxu0 %v2615
  %3004 = vmatmul.mubr.f32.gmra.mxu0 %v2391
  %v3005 = vpop.f32.mrf.mxu0
  %v3006 = vadd.f32 %v2468, %v3005
  %v3007 = vpop.f32.mrf.mxu0
  %v3008 = vadd.f32 %v2472, %v3007
  %3009 = vmatprep.mubr.f32.mxu0 %v2618
  %3010 = vmatmul.mubr.f32.gmra.mxu0 %v2393
  %v3011 = vpop.f32.mrf.mxu0
  %v3012 = vadd.f32 %v2468, %v3011
  %v3013 = vpop.f32.mrf.mxu0
  %v3014 = vadd.f32 %v2472, %v3013
  %3015 = vmatprep.mubr.f32.mxu0 %v2621
  %3016 = vmatmul.mubr.f32.gmra.mxu0 %v2395
  %v3017 = vpop.f32.mrf.mxu0
  %v3018 = vadd.f32 %v2468, %v3017
  %v3019 = vpop.f32.mrf.mxu0
  %v3020 = vadd.f32 %v2472, %v3019
  %3021 = vmatprep.mubr.f32.mxu0 %v2624
  %3022 = vmatmul.mubr.f32.gmra.mxu0 %v2397
  %v3023 = vpop.f32.mrf.mxu0
  %v3024 = vadd.f32 %v2468, %v3023
  %v3025 = vpop.f32.mrf.mxu0
  %v3026 = vadd.f32 %v2472, %v3025
  %3027 = vmatprep.mubr.f32.mxu0 %v2627
  %3028 = vmatmul.mubr.f32.gmra.mxu0 %v2399
  %v3029 = vpop.f32.mrf.mxu0
  %v3030 = vadd.f32 %v2468, %v3029
  %v3031 = vpop.f32.mrf.mxu0
  %v3032 = vadd.f32 %v2472, %v3031
  %3033 = vmatprep.mubr.f32.mxu0 %v2630
  %3034 = vmatmul.mubr.f32.gmra.mxu0 %v2401
  %v3035 = vpop.f32.mrf.mxu0
  %v3036 = vadd.f32 %v2468, %v3035
  %v3037 = vpop.f32.mrf.mxu0
  %v3038 = vadd.f32 %v2472, %v3037
  %3039 = vmatprep.mubr.f32.mxu0 %v2633
  %3040 = vmatmul.mubr.f32.gmra.mxu0 %v2403
  %v3041 = vpop.f32.mrf.mxu0
  %v3042 = vadd.f32 %v2468, %v3041
  %v3043 = vpop.f32.mrf.mxu0
  %v3044 = vadd.f32 %v2472, %v3043
  %3045 = vmatprep.mubr.f32.mxu0 %v2636
  %3046 = vmatmul.mubr.f32.gmra.mxu0 %v2405
  %v3047 = vpop.f32.mrf.mxu0
  %v3048 = vadd.f32 %v2468, %v3047
  %v3049 = vpop.f32.mrf.mxu0
  %v3050 = vadd.f32 %v2472, %v3049
  %3051 = vmatprep.mubr.f32.mxu0 %v2639
  %3052 = vmatmul.mubr.f32.gmra.mxu0 %v2407
  %v3053 = vpop.f32.mrf.mxu0
  %v3054 = vadd.f32 %v2468, %v3053
  %v3055 = vpop.f32.mrf.mxu0
  %v3056 = vadd.f32 %v2472, %v3055
  %3057 = vmatprep.mubr.f32.mxu0 %v2642
  %3058 = vmatmul.mubr.f32.gmra.mxu0 %v2409
  %v3059 = vpop.f32.mrf.mxu0
  %v3060 = vadd.f32 %v2468, %v3059
  %v3061 = vpop.f32.mrf.mxu0
  %v3062 = vadd.f32 %v2472, %v3061
  %3063 = vmatprep.mubr.f32.mxu0 %v2645
  %3064 = vmatmul.mubr.f32.gmra.mxu0 %v2411
  %v3065 = vpop.f32.mrf.mxu0
  %v3066 = vadd.f32 %v2468, %v3065
  %v3067 = vpop.f32.mrf.mxu0
  %v3068 = vadd.f32 %v2472, %v3067
  %3069 = vmatprep.mubr.f32.mxu0 %v2648
  %3070 = vmatmul.mubr.f32.gmra.mxu0 %v2413
  %v3071 = vpop.f32.mrf.mxu0
  %v3072 = vadd.f32 %v2468, %v3071
  %v3073 = vpop.f32.mrf.mxu0
  %v3074 = vadd.f32 %v2472, %v3073
  %3075 = vmatprep.mubr.f32.mxu0 %v2651
  %3076 = vmatmul.mubr.f32.gmra.mxu0 %v2415
  %v3077 = vpop.f32.mrf.mxu0
  %v3078 = vadd.f32 %v2468, %v3077
  %v3079 = vpop.f32.mrf.mxu0
  %v3080 = vadd.f32 %v2472, %v3079
  %3081 = vmatprep.mubr.f32.mxu0 %v2654
  %3082 = vmatmul.mubr.f32.gmra.mxu0 %v2417
  %v3083 = vpop.f32.mrf.mxu0
  %v3084 = vadd.f32 %v2468, %v3083
  %v3085 = vpop.f32.mrf.mxu0
  %v3086 = vadd.f32 %v2472, %v3085
  %3087 = vdwg.mxu0
  %v3088 = vtanh.pop %v2730
  %v3089 = vtanh.pop %v2732
  %v3090 = vtanh.pop %v2736
  %v3091 = vtanh.pop %v2738
  %v3092 = vtanh.pop %v2742
  %v3093 = vtanh.pop %v2744
  %v3094 = vtanh.pop %v2748
  %v3095 = vtanh.pop %v2750
  %v3096 = vtanh.pop %v2754
  %v3097 = vtanh.pop %v2756
  %v3098 = vtanh.pop %v2760
  %v3099 = vtanh.pop %v2762
  %v3100 = vtanh.pop %v2766
  %v3101 = vtanh.pop %v2768
  %v3102 = vtanh.pop %v2772
  %v3103 = vtanh.pop %v2774
  %v3104 = vtanh.pop %v2778
  %v3105 = vtanh.pop %v2780
  %v3106 = vtanh.pop %v2784
  %v3107 = vtanh.pop %v2786
  %v3108 = vtanh.pop %v2790
  %v3109 = vtanh.pop %v2792
  %v3110 = vtanh.pop %v2796
  %v3111 = vtanh.pop %v2798
  %v3112 = vtanh.pop %v2802
  %v3113 = vtanh.pop %v2804
  %v3114 = vtanh.pop %v2808
  %v3115 = vtanh.pop %v2810
  %v3116 = vtanh.pop %v2814
  %v3117 = vtanh.pop %v2816
  %v3118 = vtanh.pop %v2820
  %v3119 = vtanh.pop %v2822
  %v3120 = vtanh.pop %v2826
  %v3121 = vtanh.pop %v2828
  %v3122 = vtanh.pop %v2832
  %v3123 = vtanh.pop %v2834
  %v3124 = vtanh.pop %v2838
  %v3125 = vtanh.pop %v2840
  %v3126 = vtanh.pop %v2844
  %v3127 = vtanh.pop %v2846
  %v3128 = vtanh.pop %v2850
  %v3129 = vtanh.pop %v2852
  %v3130 = vtanh.pop %v2856
  %v3131 = vtanh.pop %v2858
  %v3132 = vtanh.pop %v2862
  %v3133 = vtanh.pop %v2864
  %v3134 = vtanh.pop %v2868
  %v3135 = vtanh.pop %v2870
  %v3136 = vtanh.pop %v2874
  %v3137 = vtanh.pop %v2876
  %v3138 = vtanh.pop %v2880
  %v3139 = vtanh.pop %v2882
  %v3140 = vtanh.pop %v2886
  %v3141 = vtanh.pop %v2888
  %v3142 = vtanh.pop %v2892
  %v3143 = vtanh.pop %v2894
  %v3144 = vtanh.pop %v2898
  %v3145 = vtanh.pop %v2900
  %v3146 = vtanh.pop %v2904
  %v3147 = vtanh.pop %v2906
  %v3148 = vtanh.pop %v2910
  %v3149 = vtanh.pop %v2912
  %v3150 = vtanh.pop %v2916
  %v3151 = vtanh.pop %v2918
  %v3152 = vtanh.pop %v2922
  %v3153 = vtanh.pop %v2924
  %v3154 = vtanh.pop %v2928
  %v3155 = vtanh.pop %v2930
  %v3156 = vtanh.pop %v2934
  %v3157 = vtanh.pop %v2936
  %v3158 = vtanh.pop %v2940
  %v3159 = vtanh.pop %v2942
  %v3160 = vtanh.pop %v2946
  %v3161 = vtanh.pop %v2948
  %v3162 = vtanh.pop %v2952
  %v3163 = vtanh.pop %v2954
  %v3164 = vtanh.pop %v2958
  %v3165 = vtanh.pop %v2960
  %v3166 = vtanh.pop %v2964
  %v3167 = vtanh.pop %v2966
  %v3168 = vtanh.pop %v2970
  %v3169 = vtanh.pop %v2972
  %v3170 = vtanh.pop %v2976
  %v3171 = vtanh.pop %v2978
  %v3172 = vtanh.pop %v2982
  %v3173 = vtanh.pop %v2984
  %v3174 = vtanh.pop %v2988
  %v3175 = vtanh.pop %v2990
  %v3176 = vtanh.pop %v2994
  %v3177 = vtanh.pop %v2996
  %v3178 = vtanh.pop %v3000
  %v3179 = vtanh.pop %v3002
  %v3180 = vtanh.pop %v3006
  %v3181 = vtanh.pop %v3008
  %v3182 = vtanh.pop %v3012
  %v3183 = vtanh.pop %v3014
  %v3184 = vtanh.pop %v3018
  %v3185 = vtanh.pop %v3020
  %v3186 = vtanh.pop %v3024
  %v3187 = vtanh.pop %v3026
  %v3188 = vtanh.pop %v3030
  %v3189 = vtanh.pop %v3032
  %v3190 = vtanh.pop %v3036
  %v3191 = vtanh.pop %v3038
  %v3192 = vtanh.pop %v3042
  %v3193 = vtanh.pop %v3044
  %v3194 = vtanh.pop %v3048
  %v3195 = vtanh.pop %v3050
  %v3196 = vtanh.pop %v3054
  %v3197 = vtanh.pop %v3056
  %v3198 = vtanh.pop %v3060
  %v3199 = vtanh.pop %v3062
  %v3200 = vtanh.pop %v3066
  %v3201 = vtanh.pop %v3068
  %v3202 = vtanh.pop %v3072
  %v3203 = vtanh.pop %v3074
  %v3204 = vtanh.pop %v3078
  %v3205 = vtanh.pop %v3080
  %v3206 = vtanh.pop %v3084
  %v3207 = vtanh.pop %v3086
  %v3208 = vld [vmem:[%s9] sm:$0xff]
  %v3209 = vld [vmem:[%s9 + $0x8] sm:$0xff]
  %v3210 = vld [vmem:[%s9 + $0x10] sm:$0xff]
  %v3211 = vld [vmem:[%s9 + $0x18] sm:$0xff]
  %v3212 = vld [vmem:[%s9 + $0x20] sm:$0xff]
  %v3213 = vld [vmem:[%s9 + $0x28] sm:$0xff]
  %v3214 = vld [vmem:[%s9 + $0x30] sm:$0xff]
  %v3215 = vld [vmem:[%s9 + $0x38] sm:$0xff]
  %v3216 = vld [vmem:[%s9 + $0x40] sm:$0xff]
  %v3217 = vld [vmem:[%s9 + $0x48] sm:$0xff]
  %v3218 = vld [vmem:[%s9 + $0x50] sm:$0xff]
  %v3219 = vld [vmem:[%s9 + $0x58] sm:$0xff]
  %v3220 = vld [vmem:[%s9 + $0x60] sm:$0xff]
  %v3221 = vld [vmem:[%s9 + $0x68] sm:$0xff]
  %v3222 = vld [vmem:[%s9 + $0x70] sm:$0xff]
  %v3223 = vld [vmem:[%s9 + $0x78] sm:$0xff]
  %v3224 = vld [vmem:[%s9 + $0x80] sm:$0xff]
  %v3225 = vld [vmem:[%s9 + $0x88] sm:$0xff]
  %v3226 = vld [vmem:[%s9 + $0x90] sm:$0xff]
  %v3227 = vld [vmem:[%s9 + $0x98] sm:$0xff]
  %v3228 = vld [vmem:[%s9 + $0xa0] sm:$0xff]
  %v3229 = vld [vmem:[%s9 + $0xa8] sm:$0xff]
  %v3230 = vld [vmem:[%s9 + $0xb0] sm:$0xf]
  %v3231 = vld [vmem:[%s10] sm:$0x1]
  %v3233 = vlaneseq
  %v3234 = vshrl.u32 %v3233, 7
  %v3235 = vsub.s32 0, %v3234
  %v3236 = vrot.slane %v3231, %v3235
  %vm3238 = vcmask 424960
  %v3240 = vsel %vm3238, %v3089, 0
  %v3243 = vsel %vm3238, %v3091, 0
  %v3246 = vsel %vm3238, %v3093, 0
  %v3249 = vsel %vm3238, %v3095, 0
  %v3252 = vsel %vm3238, %v3097, 0
  %v3255 = vsel %vm3238, %v3099, 0
  %v3258 = vsel %vm3238, %v3101, 0
  %v3261 = vsel %vm3238, %v3103, 0
  %v3264 = vsel %vm3238, %v3105, 0
  %v3267 = vsel %vm3238, %v3107, 0
  %v3270 = vsel %vm3238, %v3109, 0
  %v3273 = vsel %vm3238, %v3111, 0
  %v3276 = vsel %vm3238, %v3113, 0
  %v3279 = vsel %vm3238, %v3115, 0
  %v3282 = vsel %vm3238, %v3117, 0
  %v3285 = vsel %vm3238, %v3119, 0
  %v3288 = vsel %vm3238, %v3121, 0
  %v3291 = vsel %vm3238, %v3123, 0
  %v3294 = vsel %vm3238, %v3125, 0
  %v3297 = vsel %vm3238, %v3127, 0
  %v3300 = vsel %vm3238, %v3129, 0
  %v3303 = vsel %vm3238, %v3131, 0
  %v3306 = vsel %vm3238, %v3133, 0
  %v3309 = vsel %vm3238, %v3135, 0
  %v3312 = vsel %vm3238, %v3137, 0
  %v3315 = vsel %vm3238, %v3139, 0
  %v3318 = vsel %vm3238, %v3141, 0
  %v3321 = vsel %vm3238, %v3143, 0
  %v3324 = vsel %vm3238, %v3145, 0
  %v3327 = vsel %vm3238, %v3147, 0
  %v3330 = vsel %vm3238, %v3149, 0
  %v3333 = vsel %vm3238, %v3151, 0
  %v3336 = vsel %vm3238, %v3153, 0
  %v3339 = vsel %vm3238, %v3155, 0
  %v3342 = vsel %vm3238, %v3157, 0
  %v3345 = vsel %vm3238, %v3159, 0
  %v3348 = vsel %vm3238, %v3161, 0
  %v3351 = vsel %vm3238, %v3163, 0
  %v3354 = vsel %vm3238, %v3165, 0
  %v3357 = vsel %vm3238, %v3167, 0
  %v3360 = vsel %vm3238, %v3169, 0
  %v3363 = vsel %vm3238, %v3171, 0
  %v3366 = vsel %vm3238, %v3173, 0
  %v3369 = vsel %vm3238, %v3175, 0
  %v3372 = vsel %vm3238, %v3177, 0
  %v3375 = vsel %vm3238, %v3179, 0
  %v3378 = vsel %vm3238, %v3181, 0
  %v3381 = vsel %vm3238, %v3183, 0
  %v3384 = vsel %vm3238, %v3185, 0
  %v3387 = vsel %vm3238, %v3187, 0
  %v3390 = vsel %vm3238, %v3189, 0
  %v3393 = vsel %vm3238, %v3191, 0
  %v3396 = vsel %vm3238, %v3193, 0
  %v3399 = vsel %vm3238, %v3195, 0
  %v3402 = vsel %vm3238, %v3197, 0
  %v3405 = vsel %vm3238, %v3199, 0
  %v3408 = vsel %vm3238, %v3201, 0
  %v3411 = vsel %vm3238, %v3203, 0
  %v3414 = vsel %vm3238, %v3205, 0
  %v3417 = vsel %vm3238, %v3207, 0
  %vm3419 = vcmask 1043456
  %v3421 = vsel %vm3419, %v3230, 0
  %3423 = vmatprep.subr.mxu0 0.0
  %3424 = vmatpush1.msra.mxu0 %v3223
  %3425 = vmatprep.subr.mxu0 0.0
  %3426 = vmatpush1.msra.mxu0 %v3222
  %3427 = vmatprep.subr.mxu0 0.0
  %3428 = vmatpush1.msra.mxu0 %v3221
  %3429 = vmatprep.subr.mxu0 0.0
  %3430 = vmatpush1.msra.mxu0 %v3220
  %3431 = vmatprep.subr.mxu0 0.0
  %3432 = vmatpush1.msra.mxu0 %v3219
  %3433 = vmatprep.subr.mxu0 0.0
  %3434 = vmatpush1.msra.mxu0 %v3218
  %3435 = vmatprep.subr.mxu0 0.0
  %3436 = vmatpush1.msra.mxu0 %v3217
  %3437 = vmatprep.subr.mxu0 0.0
  %3438 = vmatpush1.msra.mxu0 %v3216
  %3439 = vmatprep.subr.mxu0 0.0
  %3440 = vmatpush1.msra.mxu0 %v3215
  %3441 = vmatprep.subr.mxu0 0.0
  %3442 = vmatpush1.msra.mxu0 %v3214
  %3443 = vmatprep.subr.mxu0 0.0
  %3444 = vmatpush1.msra.mxu0 %v3213
  %3445 = vmatprep.subr.mxu0 0.0
  %3446 = vmatpush1.msra.mxu0 %v3212
  %3447 = vmatprep.subr.mxu0 0.0
  %3448 = vmatpush1.msra.mxu0 %v3211
  %3449 = vmatprep.subr.mxu0 0.0
  %3450 = vmatpush1.msra.mxu0 %v3210
  %3451 = vmatprep.subr.mxu0 0.0
  %3452 = vmatpush1.msra.mxu0 %v3209
  %3453 = vmatprep.subr.mxu0 0.0
  %3454 = vmatpush1.msra.mxu0 %v3208
  %3455 = vmatprep.subr.mxu0 0.0
  %3456 = vmatpush2.msra.mxu0 0.0
  %3457 = vmatprep.subr.mxu0 0.0
  %3458 = vmatpush2.msra.mxu0 0.0
  %3459 = vmatprep.subr.mxu0 0.0
  %3460 = vmatpush2.msra.mxu0 0.0
  %3461 = vmatprep.subr.mxu0 0.0
  %3462 = vmatpush2.msra.mxu0 0.0
  %3463 = vmatprep.subr.mxu0 0.0
  %3464 = vmatpush2.msra.mxu0 0.0
  %3465 = vmatprep.subr.mxu0 0.0
  %3466 = vmatpush2.msra.mxu0 0.0
  %3467 = vmatprep.subr.mxu0 0.0
  %3468 = vmatpush2.msra.mxu0 0.0
  %3469 = vmatprep.subr.mxu0 0.0
  %3470 = vmatpush2.msra.mxu0 0.0
  %3471 = vmatprep.subr.mxu0 0.0
  %3472 = vmatpush2.msra.mxu0 0.0
  %3473 = vmatprep.subr.mxu0 0.0
  %3474 = vmatpush2.msra.mxu0 %v3421
  %3475 = vmatprep.subr.mxu0 0.0
  %3476 = vmatpush2.msra.mxu0 %v3229
  %3477 = vmatprep.subr.mxu0 0.0
  %3478 = vmatpush2.msra.mxu0 %v3228
  %3479 = vmatprep.subr.mxu0 0.0
  %3480 = vmatpush2.msra.mxu0 %v3227
  %3481 = vmatprep.subr.mxu0 0.0
  %3482 = vmatpush2.msra.mxu0 %v3226
  %3483 = vmatprep.subr.mxu0 0.0
  %3484 = vmatpush2.msra.mxu0 %v3225
  %3485 = vmatprep.subr.mxu0 0.0
  %3486 = vmatpush2.msra.mxu0 %v3224
  %3487 = vmatprep.mubr.f32.mxu0 %v3240
  %3488 = vmatmul.mubr.f32.gmra.mxu0 %v3088
  %v3489 = vpop.f32.mrf.mxu0
  %v3490 = vadd.f32 %v3236, %v3489
  %v3491 = vpop.f32.mrf.mxu0
  %3492 = vmatprep.mubr.f32.mxu0 %v3243
  %3493 = vmatmul.mubr.f32.gmra.mxu0 %v3090
  %v3494 = vpop.f32.mrf.mxu0
  %v3495 = vadd.f32 %v3236, %v3494
  %v3496 = vpop.f32.mrf.mxu0
  %3497 = vmatprep.mubr.f32.mxu0 %v3246
  %3498 = vmatmul.mubr.f32.gmra.mxu0 %v3092
  %v3499 = vpop.f32.mrf.mxu0
  %v3500 = vadd.f32 %v3236, %v3499
  %v3501 = vpop.f32.mrf.mxu0
  %3502 = vmatprep.mubr.f32.mxu0 %v3249
  %3503 = vmatmul.mubr.f32.gmra.mxu0 %v3094
  %v3504 = vpop.f32.mrf.mxu0
  %v3505 = vadd.f32 %v3236, %v3504
  %v3506 = vpop.f32.mrf.mxu0
  %3507 = vmatprep.mubr.f32.mxu0 %v3252
  %3508 = vmatmul.mubr.f32.gmra.mxu0 %v3096
  %v3509 = vpop.f32.mrf.mxu0
  %v3510 = vadd.f32 %v3236, %v3509
  %v3511 = vpop.f32.mrf.mxu0
  %3512 = vmatprep.mubr.f32.mxu0 %v3255
  %3513 = vmatmul.mubr.f32.gmra.mxu0 %v3098
  %v3514 = vpop.f32.mrf.mxu0
  %v3515 = vadd.f32 %v3236, %v3514
  %v3516 = vpop.f32.mrf.mxu0
  %3517 = vmatprep.mubr.f32.mxu0 %v3258
  %3518 = vmatmul.mubr.f32.gmra.mxu0 %v3100
  %v3519 = vpop.f32.mrf.mxu0
  %v3520 = vadd.f32 %v3236, %v3519
  %v3521 = vpop.f32.mrf.mxu0
  %3522 = vmatprep.mubr.f32.mxu0 %v3261
  %3523 = vmatmul.mubr.f32.gmra.mxu0 %v3102
  %v3524 = vpop.f32.mrf.mxu0
  %v3525 = vadd.f32 %v3236, %v3524
  %v3526 = vpop.f32.mrf.mxu0
  %3527 = vmatprep.mubr.f32.mxu0 %v3264
  %3528 = vmatmul.mubr.f32.gmra.mxu0 %v3104
  %v3529 = vpop.f32.mrf.mxu0
  %v3530 = vadd.f32 %v3236, %v3529
  %v3531 = vpop.f32.mrf.mxu0
  %3532 = vmatprep.mubr.f32.mxu0 %v3267
  %3533 = vmatmul.mubr.f32.gmra.mxu0 %v3106
  %v3534 = vpop.f32.mrf.mxu0
  %v3535 = vadd.f32 %v3236, %v3534
  %v3536 = vpop.f32.mrf.mxu0
  %3537 = vmatprep.mubr.f32.mxu0 %v3270
  %3538 = vmatmul.mubr.f32.gmra.mxu0 %v3108
  %v3539 = vpop.f32.mrf.mxu0
  %v3540 = vadd.f32 %v3236, %v3539
  %v3541 = vpop.f32.mrf.mxu0
  %3542 = vmatprep.mubr.f32.mxu0 %v3273
  %3543 = vmatmul.mubr.f32.gmra.mxu0 %v3110
  %v3544 = vpop.f32.mrf.mxu0
  %v3545 = vadd.f32 %v3236, %v3544
  %v3546 = vpop.f32.mrf.mxu0
  %3547 = vmatprep.mubr.f32.mxu0 %v3276
  %3548 = vmatmul.mubr.f32.gmra.mxu0 %v3112
  %v3549 = vpop.f32.mrf.mxu0
  %v3550 = vadd.f32 %v3236, %v3549
  %v3551 = vpop.f32.mrf.mxu0
  %3552 = vmatprep.mubr.f32.mxu0 %v3279
  %3553 = vmatmul.mubr.f32.gmra.mxu0 %v3114
  %v3554 = vpop.f32.mrf.mxu0
  %v3555 = vadd.f32 %v3236, %v3554
  %v3556 = vpop.f32.mrf.mxu0
  %3557 = vmatprep.mubr.f32.mxu0 %v3282
  %3558 = vmatmul.mubr.f32.gmra.mxu0 %v3116
  %v3559 = vpop.f32.mrf.mxu0
  %v3560 = vadd.f32 %v3236, %v3559
  %v3561 = vpop.f32.mrf.mxu0
  %3562 = vmatprep.mubr.f32.mxu0 %v3285
  %3563 = vmatmul.mubr.f32.gmra.mxu0 %v3118
  %v3564 = vpop.f32.mrf.mxu0
  %v3565 = vadd.f32 %v3236, %v3564
  %v3566 = vpop.f32.mrf.mxu0
  %3567 = vmatprep.mubr.f32.mxu0 %v3288
  %3568 = vmatmul.mubr.f32.gmra.mxu0 %v3120
  %v3569 = vpop.f32.mrf.mxu0
  %v3570 = vadd.f32 %v3236, %v3569
  %v3571 = vpop.f32.mrf.mxu0
  %3572 = vmatprep.mubr.f32.mxu0 %v3291
  %3573 = vmatmul.mubr.f32.gmra.mxu0 %v3122
  %v3574 = vpop.f32.mrf.mxu0
  %v3575 = vadd.f32 %v3236, %v3574
  %v3576 = vpop.f32.mrf.mxu0
  %3577 = vmatprep.mubr.f32.mxu0 %v3294
  %3578 = vmatmul.mubr.f32.gmra.mxu0 %v3124
  %v3579 = vpop.f32.mrf.mxu0
  %v3580 = vadd.f32 %v3236, %v3579
  %v3581 = vpop.f32.mrf.mxu0
  %3582 = vmatprep.mubr.f32.mxu0 %v3297
  %3583 = vmatmul.mubr.f32.gmra.mxu0 %v3126
  %v3584 = vpop.f32.mrf.mxu0
  %v3585 = vadd.f32 %v3236, %v3584
  %v3586 = vpop.f32.mrf.mxu0
  %3587 = vmatprep.mubr.f32.mxu0 %v3300
  %3588 = vmatmul.mubr.f32.gmra.mxu0 %v3128
  %v3589 = vpop.f32.mrf.mxu0
  %v3590 = vadd.f32 %v3236, %v3589
  %v3591 = vpop.f32.mrf.mxu0
  %3592 = vmatprep.mubr.f32.mxu0 %v3303
  %3593 = vmatmul.mubr.f32.gmra.mxu0 %v3130
  %v3594 = vpop.f32.mrf.mxu0
  %v3595 = vadd.f32 %v3236, %v3594
  %v3596 = vpop.f32.mrf.mxu0
  %3597 = vmatprep.mubr.f32.mxu0 %v3306
  %3598 = vmatmul.mubr.f32.gmra.mxu0 %v3132
  %v3599 = vpop.f32.mrf.mxu0
  %v3600 = vadd.f32 %v3236, %v3599
  %v3601 = vpop.f32.mrf.mxu0
  %3602 = vmatprep.mubr.f32.mxu0 %v3309
  %3603 = vmatmul.mubr.f32.gmra.mxu0 %v3134
  %v3604 = vpop.f32.mrf.mxu0
  %v3605 = vadd.f32 %v3236, %v3604
  %v3606 = vpop.f32.mrf.mxu0
  %3607 = vmatprep.mubr.f32.mxu0 %v3312
  %3608 = vmatmul.mubr.f32.gmra.mxu0 %v3136
  %v3609 = vpop.f32.mrf.mxu0
  %v3610 = vadd.f32 %v3236, %v3609
  %v3611 = vpop.f32.mrf.mxu0
  %3612 = vmatprep.mubr.f32.mxu0 %v3315
  %3613 = vmatmul.mubr.f32.gmra.mxu0 %v3138
  %v3614 = vpop.f32.mrf.mxu0
  %v3615 = vadd.f32 %v3236, %v3614
  %v3616 = vpop.f32.mrf.mxu0
  %3617 = vmatprep.mubr.f32.mxu0 %v3318
  %3618 = vmatmul.mubr.f32.gmra.mxu0 %v3140
  %v3619 = vpop.f32.mrf.mxu0
  %v3620 = vadd.f32 %v3236, %v3619
  %v3621 = vpop.f32.mrf.mxu0
  %3622 = vmatprep.mubr.f32.mxu0 %v3321
  %3623 = vmatmul.mubr.f32.gmra.mxu0 %v3142
  %v3624 = vpop.f32.mrf.mxu0
  %v3625 = vadd.f32 %v3236, %v3624
  %v3626 = vpop.f32.mrf.mxu0
  %3627 = vmatprep.mubr.f32.mxu0 %v3324
  %3628 = vmatmul.mubr.f32.gmra.mxu0 %v3144
  %v3629 = vpop.f32.mrf.mxu0
  %v3630 = vadd.f32 %v3236, %v3629
  %v3631 = vpop.f32.mrf.mxu0
  %3632 = vmatprep.mubr.f32.mxu0 %v3327
  %3633 = vmatmul.mubr.f32.gmra.mxu0 %v3146
  %v3634 = vpop.f32.mrf.mxu0
  %v3635 = vadd.f32 %v3236, %v3634
  %v3636 = vpop.f32.mrf.mxu0
  %3637 = vmatprep.mubr.f32.mxu0 %v3330
  %3638 = vmatmul.mubr.f32.gmra.mxu0 %v3148
  %v3639 = vpop.f32.mrf.mxu0
  %v3640 = vadd.f32 %v3236, %v3639
  %v3641 = vpop.f32.mrf.mxu0
  %3642 = vmatprep.mubr.f32.mxu0 %v3333
  %3643 = vmatmul.mubr.f32.gmra.mxu0 %v3150
  %v3644 = vpop.f32.mrf.mxu0
  %v3645 = vadd.f32 %v3236, %v3644
  %v3646 = vpop.f32.mrf.mxu0
  %3647 = vmatprep.mubr.f32.mxu0 %v3336
  %3648 = vmatmul.mubr.f32.gmra.mxu0 %v3152
  %v3649 = vpop.f32.mrf.mxu0
  %v3650 = vadd.f32 %v3236, %v3649
  %v3651 = vpop.f32.mrf.mxu0
  %3652 = vmatprep.mubr.f32.mxu0 %v3339
  %3653 = vmatmul.mubr.f32.gmra.mxu0 %v3154
  %v3654 = vpop.f32.mrf.mxu0
  %v3655 = vadd.f32 %v3236, %v3654
  %v3656 = vpop.f32.mrf.mxu0
  %3657 = vmatprep.mubr.f32.mxu0 %v3342
  %3658 = vmatmul.mubr.f32.gmra.mxu0 %v3156
  %v3659 = vpop.f32.mrf.mxu0
  %v3660 = vadd.f32 %v3236, %v3659
  %v3661 = vpop.f32.mrf.mxu0
  %3662 = vmatprep.mubr.f32.mxu0 %v3345
  %3663 = vmatmul.mubr.f32.gmra.mxu0 %v3158
  %v3664 = vpop.f32.mrf.mxu0
  %v3665 = vadd.f32 %v3236, %v3664
  %v3666 = vpop.f32.mrf.mxu0
  %3667 = vmatprep.mubr.f32.mxu0 %v3348
  %3668 = vmatmul.mubr.f32.gmra.mxu0 %v3160
  %v3669 = vpop.f32.mrf.mxu0
  %v3670 = vadd.f32 %v3236, %v3669
  %v3671 = vpop.f32.mrf.mxu0
  %3672 = vmatprep.mubr.f32.mxu0 %v3351
  %3673 = vmatmul.mubr.f32.gmra.mxu0 %v3162
  %v3674 = vpop.f32.mrf.mxu0
  %v3675 = vadd.f32 %v3236, %v3674
  %v3676 = vpop.f32.mrf.mxu0
  %3677 = vmatprep.mubr.f32.mxu0 %v3354
  %3678 = vmatmul.mubr.f32.gmra.mxu0 %v3164
  %v3679 = vpop.f32.mrf.mxu0
  %v3680 = vadd.f32 %v3236, %v3679
  %v3681 = vpop.f32.mrf.mxu0
  %3682 = vmatprep.mubr.f32.mxu0 %v3357
  %3683 = vmatmul.mubr.f32.gmra.mxu0 %v3166
  %v3684 = vpop.f32.mrf.mxu0
  %v3685 = vadd.f32 %v3236, %v3684
  %v3686 = vpop.f32.mrf.mxu0
  %3687 = vmatprep.mubr.f32.mxu0 %v3360
  %3688 = vmatmul.mubr.f32.gmra.mxu0 %v3168
  %v3689 = vpop.f32.mrf.mxu0
  %v3690 = vadd.f32 %v3236, %v3689
  %v3691 = vpop.f32.mrf.mxu0
  %3692 = vmatprep.mubr.f32.mxu0 %v3363
  %3693 = vmatmul.mubr.f32.gmra.mxu0 %v3170
  %v3694 = vpop.f32.mrf.mxu0
  %v3695 = vadd.f32 %v3236, %v3694
  %v3696 = vpop.f32.mrf.mxu0
  %3697 = vmatprep.mubr.f32.mxu0 %v3366
  %3698 = vmatmul.mubr.f32.gmra.mxu0 %v3172
  %v3699 = vpop.f32.mrf.mxu0
  %v3700 = vadd.f32 %v3236, %v3699
  %v3701 = vpop.f32.mrf.mxu0
  %3702 = vmatprep.mubr.f32.mxu0 %v3369
  %3703 = vmatmul.mubr.f32.gmra.mxu0 %v3174
  %v3704 = vpop.f32.mrf.mxu0
  %v3705 = vadd.f32 %v3236, %v3704
  %v3706 = vpop.f32.mrf.mxu0
  %3707 = vmatprep.mubr.f32.mxu0 %v3372
  %3708 = vmatmul.mubr.f32.gmra.mxu0 %v3176
  %v3709 = vpop.f32.mrf.mxu0
  %v3710 = vadd.f32 %v3236, %v3709
  %v3711 = vpop.f32.mrf.mxu0
  %3712 = vmatprep.mubr.f32.mxu0 %v3375
  %3713 = vmatmul.mubr.f32.gmra.mxu0 %v3178
  %v3714 = vpop.f32.mrf.mxu0
  %v3715 = vadd.f32 %v3236, %v3714
  %v3716 = vpop.f32.mrf.mxu0
  %3717 = vmatprep.mubr.f32.mxu0 %v3378
  %3718 = vmatmul.mubr.f32.gmra.mxu0 %v3180
  %v3719 = vpop.f32.mrf.mxu0
  %v3720 = vadd.f32 %v3236, %v3719
  %v3721 = vpop.f32.mrf.mxu0
  %3722 = vmatprep.mubr.f32.mxu0 %v3381
  %3723 = vmatmul.mubr.f32.gmra.mxu0 %v3182
  %v3724 = vpop.f32.mrf.mxu0
  %v3725 = vadd.f32 %v3236, %v3724
  %v3726 = vpop.f32.mrf.mxu0
  %3727 = vmatprep.mubr.f32.mxu0 %v3384
  %3728 = vmatmul.mubr.f32.gmra.mxu0 %v3184
  %v3729 = vpop.f32.mrf.mxu0
  %v3730 = vadd.f32 %v3236, %v3729
  %v3731 = vpop.f32.mrf.mxu0
  %3732 = vmatprep.mubr.f32.mxu0 %v3387
  %3733 = vmatmul.mubr.f32.gmra.mxu0 %v3186
  %v3734 = vpop.f32.mrf.mxu0
  %v3735 = vadd.f32 %v3236, %v3734
  %v3736 = vpop.f32.mrf.mxu0
  %3737 = vmatprep.mubr.f32.mxu0 %v3390
  %3738 = vmatmul.mubr.f32.gmra.mxu0 %v3188
  %v3739 = vpop.f32.mrf.mxu0
  %v3740 = vadd.f32 %v3236, %v3739
  %v3741 = vpop.f32.mrf.mxu0
  %3742 = vmatprep.mubr.f32.mxu0 %v3393
  %3743 = vmatmul.mubr.f32.gmra.mxu0 %v3190
  %v3744 = vpop.f32.mrf.mxu0
  %v3745 = vadd.f32 %v3236, %v3744
  %v3746 = vpop.f32.mrf.mxu0
  %3747 = vmatprep.mubr.f32.mxu0 %v3396
  %3748 = vmatmul.mubr.f32.gmra.mxu0 %v3192
  %v3749 = vpop.f32.mrf.mxu0
  %v3750 = vadd.f32 %v3236, %v3749
  %v3751 = vpop.f32.mrf.mxu0
  %3752 = vmatprep.mubr.f32.mxu0 %v3399
  %3753 = vmatmul.mubr.f32.gmra.mxu0 %v3194
  %v3754 = vpop.f32.mrf.mxu0
  %v3755 = vadd.f32 %v3236, %v3754
  %v3756 = vpop.f32.mrf.mxu0
  %3757 = vmatprep.mubr.f32.mxu0 %v3402
  %3758 = vmatmul.mubr.f32.gmra.mxu0 %v3196
  %v3759 = vpop.f32.mrf.mxu0
  %v3760 = vadd.f32 %v3236, %v3759
  %v3761 = vpop.f32.mrf.mxu0
  %3762 = vmatprep.mubr.f32.mxu0 %v3405
  %3763 = vmatmul.mubr.f32.gmra.mxu0 %v3198
  %v3764 = vpop.f32.mrf.mxu0
  %v3765 = vadd.f32 %v3236, %v3764
  %v3766 = vpop.f32.mrf.mxu0
  %3767 = vmatprep.mubr.f32.mxu0 %v3408
  %3768 = vmatmul.mubr.f32.gmra.mxu0 %v3200
  %v3769 = vpop.f32.mrf.mxu0
  %v3770 = vadd.f32 %v3236, %v3769
  %v3771 = vpop.f32.mrf.mxu0
  %3772 = vmatprep.mubr.f32.mxu0 %v3411
  %3773 = vmatmul.mubr.f32.gmra.mxu0 %v3202
  %v3774 = vpop.f32.mrf.mxu0
  %v3775 = vadd.f32 %v3236, %v3774
  %v3776 = vpop.f32.mrf.mxu0
  %3777 = vmatprep.mubr.f32.mxu0 %v3414
  %3778 = vmatmul.mubr.f32.gmra.mxu0 %v3204
  %v3779 = vpop.f32.mrf.mxu0
  %v3780 = vadd.f32 %v3236, %v3779
  %v3781 = vpop.f32.mrf.mxu0
  %3782 = vmatprep.mubr.f32.mxu0 %v3417
  %3783 = vmatmul.mubr.f32.gmra.mxu0 %v3206
  %v3784 = vpop.f32.mrf.mxu0
  %v3785 = vadd.f32 %v3236, %v3784
  %v3786 = vpop.f32.mrf.mxu0
  %3787 = vdwg.mxu0
  %v3788 = vtanh.pop %v3490
  %v3789 = vtanh.pop %v3495
  %v3790 = vtanh.pop %v3500
  %v3791 = vtanh.pop %v3505
  %v3792 = vtanh.pop %v3510
  %v3793 = vtanh.pop %v3515
  %v3794 = vtanh.pop %v3520
  %v3795 = vtanh.pop %v3525
  %v3796 = vtanh.pop %v3530
  %v3797 = vtanh.pop %v3535
  %v3798 = vtanh.pop %v3540
  %v3799 = vtanh.pop %v3545
  %v3800 = vtanh.pop %v3550
  %v3801 = vtanh.pop %v3555
  %v3802 = vtanh.pop %v3560
  %v3803 = vtanh.pop %v3565
  %v3804 = vtanh.pop %v3570
  %v3805 = vtanh.pop %v3575
  %v3806 = vtanh.pop %v3580
  %v3807 = vtanh.pop %v3585
  %v3808 = vtanh.pop %v3590
  %v3809 = vtanh.pop %v3595
  %v3810 = vtanh.pop %v3600
  %v3811 = vtanh.pop %v3605
  %v3812 = vtanh.pop %v3610
  %v3813 = vtanh.pop %v3615
  %v3814 = vtanh.pop %v3620
  %v3815 = vtanh.pop %v3625
  %v3816 = vtanh.pop %v3630
  %v3817 = vtanh.pop %v3635
  %v3818 = vtanh.pop %v3640
  %v3819 = vtanh.pop %v3645
  %v3820 = vtanh.pop %v3650
  %v3821 = vtanh.pop %v3655
  %v3822 = vtanh.pop %v3660
  %v3823 = vtanh.pop %v3665
  %v3824 = vtanh.pop %v3670
  %v3825 = vtanh.pop %v3675
  %v3826 = vtanh.pop %v3680
  %v3827 = vtanh.pop %v3685
  %v3828 = vtanh.pop %v3690
  %v3829 = vtanh.pop %v3695
  %v3830 = vtanh.pop %v3700
  %v3831 = vtanh.pop %v3705
  %v3832 = vtanh.pop %v3710
  %v3833 = vtanh.pop %v3715
  %v3834 = vtanh.pop %v3720
  %v3835 = vtanh.pop %v3725
  %v3836 = vtanh.pop %v3730
  %v3837 = vtanh.pop %v3735
  %v3838 = vtanh.pop %v3740
  %v3839 = vtanh.pop %v3745
  %v3840 = vtanh.pop %v3750
  %v3841 = vtanh.pop %v3755
  %v3842 = vtanh.pop %v3760
  %v3843 = vtanh.pop %v3765
  %v3844 = vtanh.pop %v3770
  %v3845 = vtanh.pop %v3775
  %v3846 = vtanh.pop %v3780
  %v3847 = vtanh.pop %v3785
  %v3848 = vld [vmem:[%s11] sm:$0xff]
  %v3849 = vld [vmem:[%s11 + $0x8] sm:$0xff]
  %v3850 = vld [vmem:[%s11 + $0x10] sm:$0x3]
  %v3851 = vld [vmem:[%s11 + $0x18] sm:$0xff]
  %v3852 = vld [vmem:[%s11 + $0x20] sm:$0xff]
  %v3853 = vld [vmem:[%s11 + $0x28] sm:$0x3]
  %v3854 = vld [vmem:[%s11 + $0x30] sm:$0xff]
  %v3855 = vld [vmem:[%s11 + $0x38] sm:$0xff]
  %v3856 = vld [vmem:[%s11 + $0x40] sm:$0x3]
  %v3857 = vld [vmem:[%s11 + $0x48] sm:$0xff]
  %v3858 = vld [vmem:[%s11 + $0x50] sm:$0xff]
  %v3859 = vld [vmem:[%s11 + $0x58] sm:$0x3]
  %v3860 = vld [vmem:[%s11 + $0x60] sm:$0xff]
  %v3861 = vld [vmem:[%s11 + $0x68] sm:$0xff]
  %v3862 = vld [vmem:[%s11 + $0x70] sm:$0x3]
  %v3863 = vld [vmem:[%s11 + $0x78] sm:$0xff]
  %v3864 = vld [vmem:[%s11 + $0x80] sm:$0xff]
  %v3865 = vld [vmem:[%s11 + $0x88] sm:$0x3]
  %v3866 = vld [vmem:[%s11 + $0x90] sm:$0xff]
  %v3867 = vld [vmem:[%s11 + $0x98] sm:$0xff]
  %v3868 = vld [vmem:[%s11 + $0xa0] sm:$0x3]
  %v3869 = vld [vmem:[%s11 + $0xa8] sm:$0xff]
  %v3870 = vld [vmem:[%s11 + $0xb0] sm:$0xff]
  %v3871 = vld [vmem:[%s11 + $0xb8] sm:$0x3]
  %v3872 = vld [vmem:[%s11 + $0xc0] sm:$0xff]
  %v3873 = vld [vmem:[%s11 + $0xc8] sm:$0xff]
  %v3874 = vld [vmem:[%s11 + $0xd0] sm:$0x3]
  %v3875 = vld [vmem:[%s11 + $0xd8] sm:$0xff]
  %v3876 = vld [vmem:[%s11 + $0xe0] sm:$0xff]
  %v3877 = vld [vmem:[%s11 + $0xe8] sm:$0x3]
  %v3878 = vld [vmem:[%s11 + $0xf0] sm:$0xff]
  %v3879 = vld [vmem:[%s11 + $0xf8] sm:$0xff]
  %v3880 = vld [vmem:[%s11 + $0x100] sm:$0x3]
  %v3881 = vld [vmem:[%s11 + $0x108] sm:$0xff]
  %v3882 = vld [vmem:[%s11 + $0x110] sm:$0xff]
  %v3883 = vld [vmem:[%s11 + $0x118] sm:$0x3]
  %v3884 = vld [vmem:[%s11 + $0x120] sm:$0xff]
  %v3885 = vld [vmem:[%s11 + $0x128] sm:$0xff]
  %v3886 = vld [vmem:[%s11 + $0x130] sm:$0x3]
  %v3887 = vld [vmem:[%s11 + $0x138] sm:$0xff]
  %v3888 = vld [vmem:[%s11 + $0x140] sm:$0xff]
  %v3889 = vld [vmem:[%s11 + $0x148] sm:$0x3]
  %v3890 = vld [vmem:[%s11 + $0x150] sm:$0xff]
  %v3891 = vld [vmem:[%s11 + $0x158] sm:$0xff]
  %v3892 = vld [vmem:[%s11 + $0x160] sm:$0x3]
  %v3893 = vld [vmem:[%s11 + $0x168] sm:$0xff]
  %v3894 = vld [vmem:[%s11 + $0x170] sm:$0xff]
  %v3895 = vld [vmem:[%s11 + $0x178] sm:$0x3]
  %v3896 = vld [vmem:[%s11 + $0x180] sm:$0xff]
  %v3897 = vld [vmem:[%s11 + $0x188] sm:$0xff]
  %v3898 = vld [vmem:[%s11 + $0x190] sm:$0x3]
  %v3899 = vld [vmem:[%s11 + $0x198] sm:$0xff]
  %v3900 = vld [vmem:[%s11 + $0x1a0] sm:$0xff]
  %v3901 = vld [vmem:[%s11 + $0x1a8] sm:$0x3]
  %v3902 = vld [vmem:[%s11 + $0x1b0] sm:$0xff]
  %v3903 = vld [vmem:[%s11 + $0x1b8] sm:$0xff]
  %v3904 = vld [vmem:[%s11 + $0x1c0] sm:$0x3]
  %v3905 = vld [vmem:[%s11 + $0x1c8] sm:$0xff]
  %v3906 = vld [vmem:[%s11 + $0x1d0] sm:$0xff]
  %v3907 = vld [vmem:[%s11 + $0x1d8] sm:$0x3]
  %v3908 = vld [vmem:[%s11 + $0x1e0] sm:$0xff]
  %v3909 = vld [vmem:[%s11 + $0x1e8] sm:$0xff]
  %v3910 = vld [vmem:[%s11 + $0x1f0] sm:$0x3]
  %v3911 = vld [vmem:[%s11 + $0x1f8] sm:$0xff]
  %v3912 = vld [vmem:[%s11 + $0x200] sm:$0xff]
  %v3913 = vld [vmem:[%s11 + $0x208] sm:$0x3]
  %v3914 = vld [vmem:[%s11 + $0x210] sm:$0xff]
  %v3915 = vld [vmem:[%s11 + $0x218] sm:$0xff]
  %v3916 = vld [vmem:[%s11 + $0x220] sm:$0x3]
  %v3917 = vld [vmem:[%s11 + $0x228] sm:$0xff]
  %v3918 = vld [vmem:[%s11 + $0x230] sm:$0xff]
  %v3919 = vld [vmem:[%s11 + $0x238] sm:$0x3]
  %v3920 = vld [vmem:[%s11 + $0x240] sm:$0xff]
  %v3921 = vld [vmem:[%s11 + $0x248] sm:$0xff]
  %v3922 = vld [vmem:[%s11 + $0x250] sm:$0x3]
  %v3923 = vld [vmem:[%s11 + $0x258] sm:$0xff]
  %v3924 = vld [vmem:[%s11 + $0x260] sm:$0xff]
  %v3925 = vld [vmem:[%s11 + $0x268] sm:$0x3]
  %v3926 = vld [vmem:[%s11 + $0x270] sm:$0xff]
  %v3927 = vld [vmem:[%s11 + $0x278] sm:$0xff]
  %v3928 = vld [vmem:[%s11 + $0x280] sm:$0x3]
  %v3929 = vld [vmem:[%s11 + $0x288] sm:$0xff]
  %v3930 = vld [vmem:[%s11 + $0x290] sm:$0xff]
  %v3931 = vld [vmem:[%s11 + $0x298] sm:$0x3]
  %v3932 = vld [vmem:[%s11 + $0x2a0] sm:$0xff]
  %v3933 = vld [vmem:[%s11 + $0x2a8] sm:$0xff]
  %v3934 = vld [vmem:[%s11 + $0x2b0] sm:$0x3]
  %v3935 = vld [vmem:[%s11 + $0x2b8] sm:$0xff]
  %v3936 = vld [vmem:[%s11 + $0x2c0] sm:$0xff]
  %v3937 = vld [vmem:[%s11 + $0x2c8] sm:$0x3]
  %v3938 = vld [vmem:[%s12] sm:$0x1]
  %v3940 = vlaneseq
  %v3941 = vshrl.u32 %v3940, 7
  %v3942 = vsub.s32 0, %v3941
  %v3943 = vrot.slane %v3938, %v3942
  %vm3945 = vcmask 146432
  %v3947 = vsel %vm3945, %v3788, 0
  %v3950 = vsel %vm3945, %v3789, 0
  %v3953 = vsel %vm2656, %v3850, 0
  %3955 = vmatprep.subr.mxu0 0.0
  %3956 = vmatpush1.msra.mxu0 0.0
  %3957 = vmatprep.subr.mxu0 0.0
  %3958 = vmatpush1.msra.mxu0 0.0
  %3959 = vmatprep.subr.mxu0 0.0
  %3960 = vmatpush1.msra.mxu0 0.0
  %3961 = vmatprep.subr.mxu0 0.0
  %3962 = vmatpush1.msra.mxu0 0.0
  %3963 = vmatprep.subr.mxu0 0.0
  %3964 = vmatpush1.msra.mxu0 0.0
  %3965 = vmatprep.subr.mxu0 0.0
  %3966 = vmatpush1.msra.mxu0 0.0
  %3967 = vmatprep.subr.mxu0 0.0
  %3968 = vmatpush1.msra.mxu0 0.0
  %3969 = vmatprep.subr.mxu0 0.0
  %3970 = vmatpush1.msra.mxu0 0.0
  %3971 = vmatprep.subr.mxu0 0.0
  %3972 = vmatpush1.msra.mxu0 0.0
  %3973 = vmatprep.subr.mxu0 0.0
  %3974 = vmatpush1.msra.mxu0 0.0
  %3975 = vmatprep.subr.mxu0 0.0
  %3976 = vmatpush1.msra.mxu0 0.0
  %3977 = vmatprep.subr.mxu0 0.0
  %3978 = vmatpush1.msra.mxu0 0.0
  %3979 = vmatprep.subr.mxu0 0.0
  %3980 = vmatpush1.msra.mxu0 0.0
  %3981 = vmatprep.subr.mxu0 0.0
  %3982 = vmatpush1.msra.mxu0 %v3953
  %3983 = vmatprep.subr.mxu0 0.0
  %3984 = vmatpush1.msra.mxu0 %v3849
  %3985 = vmatprep.subr.mxu0 0.0
  %3986 = vmatpush1.msra.mxu0 %v3848
  %3987 = vmatprep.subr.mxu0 0.0
  %3988 = vmatpush2.msra.mxu0 0.0
  %3989 = vmatprep.subr.mxu0 0.0
  %3990 = vmatpush2.msra.mxu0 0.0
  %3991 = vmatprep.subr.mxu0 0.0
  %3992 = vmatpush2.msra.mxu0 0.0
  %3993 = vmatprep.subr.mxu0 0.0
  %3994 = vmatpush2.msra.mxu0 0.0
  %3995 = vmatprep.subr.mxu0 0.0
  %3996 = vmatpush2.msra.mxu0 0.0
  %3997 = vmatprep.subr.mxu0 0.0
  %3998 = vmatpush2.msra.mxu0 0.0
  %3999 = vmatprep.subr.mxu0 0.0
  %4000 = vmatpush2.msra.mxu0 0.0
  %4001 = vmatprep.subr.mxu0 0.0
  %4002 = vmatpush2.msra.mxu0 0.0
  %4003 = vmatprep.subr.mxu0 0.0
  %4004 = vmatpush2.msra.mxu0 0.0
  %4005 = vmatprep.subr.mxu0 0.0
  %4006 = vmatpush2.msra.mxu0 0.0
  %4007 = vmatprep.subr.mxu0 0.0
  %4008 = vmatpush2.msra.mxu0 0.0
  %4009 = vmatprep.subr.mxu0 0.0
  %4010 = vmatpush2.msra.mxu0 0.0
  %4011 = vmatprep.subr.mxu0 0.0
  %4012 = vmatpush2.msra.mxu0 0.0
  %4013 = vmatprep.subr.mxu0 0.0
  %4014 = vmatpush2.msra.mxu0 0.0
  %4015 = vmatprep.subr.mxu0 0.0
  %4016 = vmatpush2.msra.mxu0 0.0
  %4017 = vmatprep.subr.mxu0 0.0
  %4018 = vmatpush2.msra.mxu0 0.0
  %4019 = vmatprep.mubr.f32.mxu0 0.0
  %4020 = vmatmul.mubr.f32.gmra.mxu0 %v3947
  %v4021 = vpop.f32.mrf.mxu0
  %v4022 = vadd.f32 0.0, %v4021
  %v4023 = vpop.f32.mrf.mxu0
  %4024 = vmatprep.mubr.f32.mxu0 0.0
  %4025 = vmatmul.mubr.f32.gmra.mxu0 %v3950
  %v4026 = vpop.f32.mrf.mxu0
  %v4027 = vadd.f32 0.0, %v4026
  %v4028 = vpop.f32.mrf.mxu0
  %4029 = vdwg.mxu0
  %v4030 = vadd.f32 %v3943, %v4022
  %v4031 = vadd.f32 %v3943, %v4027
  %v4033 = vsel %vm3945, %v3790, 0
  %v4036 = vsel %vm3945, %v3791, 0
  %v4039 = vsel %vm2656, %v3853, 0
  %4041 = vmatprep.subr.mxu0 0.0
  %4042 = vmatpush1.msra.mxu0 0.0
  %4043 = vmatprep.subr.mxu0 0.0
  %4044 = vmatpush1.msra.mxu0 0.0
  %4045 = vmatprep.subr.mxu0 0.0
  %4046 = vmatpush1.msra.mxu0 0.0
  %4047 = vmatprep.subr.mxu0 0.0
  %4048 = vmatpush1.msra.mxu0 0.0
  %4049 = vmatprep.subr.mxu0 0.0
  %4050 = vmatpush1.msra.mxu0 0.0
  %4051 = vmatprep.subr.mxu0 0.0
  %4052 = vmatpush1.msra.mxu0 0.0
  %4053 = vmatprep.subr.mxu0 0.0
  %4054 = vmatpush1.msra.mxu0 0.0
  %4055 = vmatprep.subr.mxu0 0.0
  %4056 = vmatpush1.msra.mxu0 0.0
  %4057 = vmatprep.subr.mxu0 0.0
  %4058 = vmatpush1.msra.mxu0 0.0
  %4059 = vmatprep.subr.mxu0 0.0
  %4060 = vmatpush1.msra.mxu0 0.0
  %4061 = vmatprep.subr.mxu0 0.0
  %4062 = vmatpush1.msra.mxu0 0.0
  %4063 = vmatprep.subr.mxu0 0.0
  %4064 = vmatpush1.msra.mxu0 0.0
  %4065 = vmatprep.subr.mxu0 0.0
  %4066 = vmatpush1.msra.mxu0 0.0
  %4067 = vmatprep.subr.mxu0 0.0
  %4068 = vmatpush1.msra.mxu0 %v4039
  %4069 = vmatprep.subr.mxu0 0.0
  %4070 = vmatpush1.msra.mxu0 %v3852
  %4071 = vmatprep.subr.mxu0 0.0
  %4072 = vmatpush1.msra.mxu0 %v3851
  %4073 = vmatprep.subr.mxu0 0.0
  %4074 = vmatpush2.msra.mxu0 0.0
  %4075 = vmatprep.subr.mxu0 0.0
  %4076 = vmatpush2.msra.mxu0 0.0
  %4077 = vmatprep.subr.mxu0 0.0
  %4078 = vmatpush2.msra.mxu0 0.0
  %4079 = vmatprep.subr.mxu0 0.0
  %4080 = vmatpush2.msra.mxu0 0.0
  %4081 = vmatprep.subr.mxu0 0.0
  %4082 = vmatpush2.msra.mxu0 0.0
  %4083 = vmatprep.subr.mxu0 0.0
  %4084 = vmatpush2.msra.mxu0 0.0
  %4085 = vmatprep.subr.mxu0 0.0
  %4086 = vmatpush2.msra.mxu0 0.0
  %4087 = vmatprep.subr.mxu0 0.0
  %4088 = vmatpush2.msra.mxu0 0.0
  %4089 = vmatprep.subr.mxu0 0.0
  %4090 = vmatpush2.msra.mxu0 0.0
  %4091 = vmatprep.subr.mxu0 0.0
  %4092 = vmatpush2.msra.mxu0 0.0
  %4093 = vmatprep.subr.mxu0 0.0
  %4094 = vmatpush2.msra.mxu0 0.0
  %4095 = vmatprep.subr.mxu0 0.0
  %4096 = vmatpush2.msra.mxu0 0.0
  %4097 = vmatprep.subr.mxu0 0.0
  %4098 = vmatpush2.msra.mxu0 0.0
  %4099 = vmatprep.subr.mxu0 0.0
  %4100 = vmatpush2.msra.mxu0 0.0
  %4101 = vmatprep.subr.mxu0 0.0
  %4102 = vmatpush2.msra.mxu0 0.0
  %4103 = vmatprep.subr.mxu0 0.0
  %4104 = vmatpush2.msra.mxu0 0.0
  %4105 = vmatprep.mubr.f32.mxu0 0.0
  %4106 = vmatmul.mubr.f32.gmra.mxu0 %v4033
  %v4107 = vpop.f32.mrf.mxu0
  %v4108 = vadd.f32 0.0, %v4107
  %v4109 = vpop.f32.mrf.mxu0
  %4110 = vmatprep.mubr.f32.mxu0 0.0
  %4111 = vmatmul.mubr.f32.gmra.mxu0 %v4036
  %v4112 = vpop.f32.mrf.mxu0
  %v4113 = vadd.f32 0.0, %v4112
  %v4114 = vpop.f32.mrf.mxu0
  %4115 = vdwg.mxu0
  %v4116 = vadd.f32 %v4030, %v4108
  %v4117 = vadd.f32 %v4031, %v4113
  %v4119 = vsel %vm3945, %v3792, 0
  %v4122 = vsel %vm3945, %v3793, 0
  %v4125 = vsel %vm2656, %v3856, 0
  %4127 = vmatprep.subr.mxu0 0.0
  %4128 = vmatpush1.msra.mxu0 0.0
  %4129 = vmatprep.subr.mxu0 0.0
  %4130 = vmatpush1.msra.mxu0 0.0
  %4131 = vmatprep.subr.mxu0 0.0
  %4132 = vmatpush1.msra.mxu0 0.0
  %4133 = vmatprep.subr.mxu0 0.0
  %4134 = vmatpush1.msra.mxu0 0.0
  %4135 = vmatprep.subr.mxu0 0.0
  %4136 = vmatpush1.msra.mxu0 0.0
  %4137 = vmatprep.subr.mxu0 0.0
  %4138 = vmatpush1.msra.mxu0 0.0
  %4139 = vmatprep.subr.mxu0 0.0
  %4140 = vmatpush1.msra.mxu0 0.0
  %4141 = vmatprep.subr.mxu0 0.0
  %4142 = vmatpush1.msra.mxu0 0.0
  %4143 = vmatprep.subr.mxu0 0.0
  %4144 = vmatpush1.msra.mxu0 0.0
  %4145 = vmatprep.subr.mxu0 0.0
  %4146 = vmatpush1.msra.mxu0 0.0
  %4147 = vmatprep.subr.mxu0 0.0
  %4148 = vmatpush1.msra.mxu0 0.0
  %4149 = vmatprep.subr.mxu0 0.0
  %4150 = vmatpush1.msra.mxu0 0.0
  %4151 = vmatprep.subr.mxu0 0.0
  %4152 = vmatpush1.msra.mxu0 0.0
  %4153 = vmatprep.subr.mxu0 0.0
  %4154 = vmatpush1.msra.mxu0 %v4125
  %4155 = vmatprep.subr.mxu0 0.0
  %4156 = vmatpush1.msra.mxu0 %v3855
  %4157 = vmatprep.subr.mxu0 0.0
  %4158 = vmatpush1.msra.mxu0 %v3854
  %4159 = vmatprep.subr.mxu0 0.0
  %4160 = vmatpush2.msra.mxu0 0.0
  %4161 = vmatprep.subr.mxu0 0.0
  %4162 = vmatpush2.msra.mxu0 0.0
  %4163 = vmatprep.subr.mxu0 0.0
  %4164 = vmatpush2.msra.mxu0 0.0
  %4165 = vmatprep.subr.mxu0 0.0
  %4166 = vmatpush2.msra.mxu0 0.0
  %4167 = vmatprep.subr.mxu0 0.0
  %4168 = vmatpush2.msra.mxu0 0.0
  %4169 = vmatprep.subr.mxu0 0.0
  %4170 = vmatpush2.msra.mxu0 0.0
  %4171 = vmatprep.subr.mxu0 0.0
  %4172 = vmatpush2.msra.mxu0 0.0
  %4173 = vmatprep.subr.mxu0 0.0
  %4174 = vmatpush2.msra.mxu0 0.0
  %4175 = vmatprep.subr.mxu0 0.0
  %4176 = vmatpush2.msra.mxu0 0.0
  %4177 = vmatprep.subr.mxu0 0.0
  %4178 = vmatpush2.msra.mxu0 0.0
  %4179 = vmatprep.subr.mxu0 0.0
  %4180 = vmatpush2.msra.mxu0 0.0
  %4181 = vmatprep.subr.mxu0 0.0
  %4182 = vmatpush2.msra.mxu0 0.0
  %4183 = vmatprep.subr.mxu0 0.0
  %4184 = vmatpush2.msra.mxu0 0.0
  %4185 = vmatprep.subr.mxu0 0.0
  %4186 = vmatpush2.msra.mxu0 0.0
  %4187 = vmatprep.subr.mxu0 0.0
  %4188 = vmatpush2.msra.mxu0 0.0
  %4189 = vmatprep.subr.mxu0 0.0
  %4190 = vmatpush2.msra.mxu0 0.0
  %4191 = vmatprep.mubr.f32.mxu0 0.0
  %4192 = vmatmul.mubr.f32.gmra.mxu0 %v4119
  %v4193 = vpop.f32.mrf.mxu0
  %v4194 = vadd.f32 0.0, %v4193
  %v4195 = vpop.f32.mrf.mxu0
  %4196 = vmatprep.mubr.f32.mxu0 0.0
  %4197 = vmatmul.mubr.f32.gmra.mxu0 %v4122
  %v4198 = vpop.f32.mrf.mxu0
  %v4199 = vadd.f32 0.0, %v4198
  %v4200 = vpop.f32.mrf.mxu0
  %4201 = vdwg.mxu0
  %v4202 = vadd.f32 %v4116, %v4194
  %v4203 = vadd.f32 %v4117, %v4199
  %v4205 = vsel %vm3945, %v3794, 0
  %v4208 = vsel %vm3945, %v3795, 0
  %v4211 = vsel %vm2656, %v3859, 0
  %4213 = vmatprep.subr.mxu0 0.0
  %4214 = vmatpush1.msra.mxu0 0.0
  %4215 = vmatprep.subr.mxu0 0.0
  %4216 = vmatpush1.msra.mxu0 0.0
  %4217 = vmatprep.subr.mxu0 0.0
  %4218 = vmatpush1.msra.mxu0 0.0
  %4219 = vmatprep.subr.mxu0 0.0
  %4220 = vmatpush1.msra.mxu0 0.0
  %4221 = vmatprep.subr.mxu0 0.0
  %4222 = vmatpush1.msra.mxu0 0.0
  %4223 = vmatprep.subr.mxu0 0.0
  %4224 = vmatpush1.msra.mxu0 0.0
  %4225 = vmatprep.subr.mxu0 0.0
  %4226 = vmatpush1.msra.mxu0 0.0
  %4227 = vmatprep.subr.mxu0 0.0
  %4228 = vmatpush1.msra.mxu0 0.0
  %4229 = vmatprep.subr.mxu0 0.0
  %4230 = vmatpush1.msra.mxu0 0.0
  %4231 = vmatprep.subr.mxu0 0.0
  %4232 = vmatpush1.msra.mxu0 0.0
  %4233 = vmatprep.subr.mxu0 0.0
  %4234 = vmatpush1.msra.mxu0 0.0
  %4235 = vmatprep.subr.mxu0 0.0
  %4236 = vmatpush1.msra.mxu0 0.0
  %4237 = vmatprep.subr.mxu0 0.0
  %4238 = vmatpush1.msra.mxu0 0.0
  %4239 = vmatprep.subr.mxu0 0.0
  %4240 = vmatpush1.msra.mxu0 %v4211
  %4241 = vmatprep.subr.mxu0 0.0
  %4242 = vmatpush1.msra.mxu0 %v3858
  %4243 = vmatprep.subr.mxu0 0.0
  %4244 = vmatpush1.msra.mxu0 %v3857
  %4245 = vmatprep.subr.mxu0 0.0
  %4246 = vmatpush2.msra.mxu0 0.0
  %4247 = vmatprep.subr.mxu0 0.0
  %4248 = vmatpush2.msra.mxu0 0.0
  %4249 = vmatprep.subr.mxu0 0.0
  %4250 = vmatpush2.msra.mxu0 0.0
  %4251 = vmatprep.subr.mxu0 0.0
  %4252 = vmatpush2.msra.mxu0 0.0
  %4253 = vmatprep.subr.mxu0 0.0
  %4254 = vmatpush2.msra.mxu0 0.0
  %4255 = vmatprep.subr.mxu0 0.0
  %4256 = vmatpush2.msra.mxu0 0.0
  %4257 = vmatprep.subr.mxu0 0.0
  %4258 = vmatpush2.msra.mxu0 0.0
  %4259 = vmatprep.subr.mxu0 0.0
  %4260 = vmatpush2.msra.mxu0 0.0
  %4261 = vmatprep.subr.mxu0 0.0
  %4262 = vmatpush2.msra.mxu0 0.0
  %4263 = vmatprep.subr.mxu0 0.0
  %4264 = vmatpush2.msra.mxu0 0.0
  %4265 = vmatprep.subr.mxu0 0.0
  %4266 = vmatpush2.msra.mxu0 0.0
  %4267 = vmatprep.subr.mxu0 0.0
  %4268 = vmatpush2.msra.mxu0 0.0
  %4269 = vmatprep.subr.mxu0 0.0
  %4270 = vmatpush2.msra.mxu0 0.0
  %4271 = vmatprep.subr.mxu0 0.0
  %4272 = vmatpush2.msra.mxu0 0.0
  %4273 = vmatprep.subr.mxu0 0.0
  %4274 = vmatpush2.msra.mxu0 0.0
  %4275 = vmatprep.subr.mxu0 0.0
  %4276 = vmatpush2.msra.mxu0 0.0
  %4277 = vmatprep.mubr.f32.mxu0 0.0
  %4278 = vmatmul.mubr.f32.gmra.mxu0 %v4205
  %v4279 = vpop.f32.mrf.mxu0
  %v4280 = vadd.f32 0.0, %v4279
  %v4281 = vpop.f32.mrf.mxu0
  %4282 = vmatprep.mubr.f32.mxu0 0.0
  %4283 = vmatmul.mubr.f32.gmra.mxu0 %v4208
  %v4284 = vpop.f32.mrf.mxu0
  %v4285 = vadd.f32 0.0, %v4284
  %v4286 = vpop.f32.mrf.mxu0
  %4287 = vdwg.mxu0
  %v4288 = vadd.f32 %v4202, %v4280
  %v4289 = vadd.f32 %v4203, %v4285
  %v4291 = vsel %vm3945, %v3796, 0
  %v4294 = vsel %vm3945, %v3797, 0
  %v4297 = vsel %vm2656, %v3862, 0
  %4299 = vmatprep.subr.mxu0 0.0
  %4300 = vmatpush1.msra.mxu0 0.0
  %4301 = vmatprep.subr.mxu0 0.0
  %4302 = vmatpush1.msra.mxu0 0.0
  %4303 = vmatprep.subr.mxu0 0.0
  %4304 = vmatpush1.msra.mxu0 0.0
  %4305 = vmatprep.subr.mxu0 0.0
  %4306 = vmatpush1.msra.mxu0 0.0
  %4307 = vmatprep.subr.mxu0 0.0
  %4308 = vmatpush1.msra.mxu0 0.0
  %4309 = vmatprep.subr.mxu0 0.0
  %4310 = vmatpush1.msra.mxu0 0.0
  %4311 = vmatprep.subr.mxu0 0.0
  %4312 = vmatpush1.msra.mxu0 0.0
  %4313 = vmatprep.subr.mxu0 0.0
  %4314 = vmatpush1.msra.mxu0 0.0
  %4315 = vmatprep.subr.mxu0 0.0
  %4316 = vmatpush1.msra.mxu0 0.0
  %4317 = vmatprep.subr.mxu0 0.0
  %4318 = vmatpush1.msra.mxu0 0.0
  %4319 = vmatprep.subr.mxu0 0.0
  %4320 = vmatpush1.msra.mxu0 0.0
  %4321 = vmatprep.subr.mxu0 0.0
  %4322 = vmatpush1.msra.mxu0 0.0
  %4323 = vmatprep.subr.mxu0 0.0
  %4324 = vmatpush1.msra.mxu0 0.0
  %4325 = vmatprep.subr.mxu0 0.0
  %4326 = vmatpush1.msra.mxu0 %v4297
  %4327 = vmatprep.subr.mxu0 0.0
  %4328 = vmatpush1.msra.mxu0 %v3861
  %4329 = vmatprep.subr.mxu0 0.0
  %4330 = vmatpush1.msra.mxu0 %v3860
  %4331 = vmatprep.subr.mxu0 0.0
  %4332 = vmatpush2.msra.mxu0 0.0
  %4333 = vmatprep.subr.mxu0 0.0
  %4334 = vmatpush2.msra.mxu0 0.0
  %4335 = vmatprep.subr.mxu0 0.0
  %4336 = vmatpush2.msra.mxu0 0.0
  %4337 = vmatprep.subr.mxu0 0.0
  %4338 = vmatpush2.msra.mxu0 0.0
  %4339 = vmatprep.subr.mxu0 0.0
  %4340 = vmatpush2.msra.mxu0 0.0
  %4341 = vmatprep.subr.mxu0 0.0
  %4342 = vmatpush2.msra.mxu0 0.0
  %4343 = vmatprep.subr.mxu0 0.0
  %4344 = vmatpush2.msra.mxu0 0.0
  %4345 = vmatprep.subr.mxu0 0.0
  %4346 = vmatpush2.msra.mxu0 0.0
  %4347 = vmatprep.subr.mxu0 0.0
  %4348 = vmatpush2.msra.mxu0 0.0
  %4349 = vmatprep.subr.mxu0 0.0
  %4350 = vmatpush2.msra.mxu0 0.0
  %4351 = vmatprep.subr.mxu0 0.0
  %4352 = vmatpush2.msra.mxu0 0.0
  %4353 = vmatprep.subr.mxu0 0.0
  %4354 = vmatpush2.msra.mxu0 0.0
  %4355 = vmatprep.subr.mxu0 0.0
  %4356 = vmatpush2.msra.mxu0 0.0
  %4357 = vmatprep.subr.mxu0 0.0
  %4358 = vmatpush2.msra.mxu0 0.0
  %4359 = vmatprep.subr.mxu0 0.0
  %4360 = vmatpush2.msra.mxu0 0.0
  %4361 = vmatprep.subr.mxu0 0.0
  %4362 = vmatpush2.msra.mxu0 0.0
  %4363 = vmatprep.mubr.f32.mxu0 0.0
  %4364 = vmatmul.mubr.f32.gmra.mxu0 %v4291
  %v4365 = vpop.f32.mrf.mxu0
  %v4366 = vadd.f32 0.0, %v4365
  %v4367 = vpop.f32.mrf.mxu0
  %4368 = vmatprep.mubr.f32.mxu0 0.0
  %4369 = vmatmul.mubr.f32.gmra.mxu0 %v4294
  %v4370 = vpop.f32.mrf.mxu0
  %v4371 = vadd.f32 0.0, %v4370
  %v4372 = vpop.f32.mrf.mxu0
  %4373 = vdwg.mxu0
  %v4374 = vadd.f32 %v4288, %v4366
  %v4375 = vadd.f32 %v4289, %v4371
  %v4377 = vsel %vm3945, %v3798, 0
  %v4380 = vsel %vm3945, %v3799, 0
  %v4383 = vsel %vm2656, %v3865, 0
  %4385 = vmatprep.subr.mxu0 0.0
  %4386 = vmatpush1.msra.mxu0 0.0
  %4387 = vmatprep.subr.mxu0 0.0
  %4388 = vmatpush1.msra.mxu0 0.0
  %4389 = vmatprep.subr.mxu0 0.0
  %4390 = vmatpush1.msra.mxu0 0.0
  %4391 = vmatprep.subr.mxu0 0.0
  %4392 = vmatpush1.msra.mxu0 0.0
  %4393 = vmatprep.subr.mxu0 0.0
  %4394 = vmatpush1.msra.mxu0 0.0
  %4395 = vmatprep.subr.mxu0 0.0
  %4396 = vmatpush1.msra.mxu0 0.0
  %4397 = vmatprep.subr.mxu0 0.0
  %4398 = vmatpush1.msra.mxu0 0.0
  %4399 = vmatprep.subr.mxu0 0.0
  %4400 = vmatpush1.msra.mxu0 0.0
  %4401 = vmatprep.subr.mxu0 0.0
  %4402 = vmatpush1.msra.mxu0 0.0
  %4403 = vmatprep.subr.mxu0 0.0
  %4404 = vmatpush1.msra.mxu0 0.0
  %4405 = vmatprep.subr.mxu0 0.0
  %4406 = vmatpush1.msra.mxu0 0.0
  %4407 = vmatprep.subr.mxu0 0.0
  %4408 = vmatpush1.msra.mxu0 0.0
  %4409 = vmatprep.subr.mxu0 0.0
  %4410 = vmatpush1.msra.mxu0 0.0
  %4411 = vmatprep.subr.mxu0 0.0
  %4412 = vmatpush1.msra.mxu0 %v4383
  %4413 = vmatprep.subr.mxu0 0.0
  %4414 = vmatpush1.msra.mxu0 %v3864
  %4415 = vmatprep.subr.mxu0 0.0
  %4416 = vmatpush1.msra.mxu0 %v3863
  %4417 = vmatprep.subr.mxu0 0.0
  %4418 = vmatpush2.msra.mxu0 0.0
  %4419 = vmatprep.subr.mxu0 0.0
  %4420 = vmatpush2.msra.mxu0 0.0
  %4421 = vmatprep.subr.mxu0 0.0
  %4422 = vmatpush2.msra.mxu0 0.0
  %4423 = vmatprep.subr.mxu0 0.0
  %4424 = vmatpush2.msra.mxu0 0.0
  %4425 = vmatprep.subr.mxu0 0.0
  %4426 = vmatpush2.msra.mxu0 0.0
  %4427 = vmatprep.subr.mxu0 0.0
  %4428 = vmatpush2.msra.mxu0 0.0
  %4429 = vmatprep.subr.mxu0 0.0
  %4430 = vmatpush2.msra.mxu0 0.0
  %4431 = vmatprep.subr.mxu0 0.0
  %4432 = vmatpush2.msra.mxu0 0.0
  %4433 = vmatprep.subr.mxu0 0.0
  %4434 = vmatpush2.msra.mxu0 0.0
  %4435 = vmatprep.subr.mxu0 0.0
  %4436 = vmatpush2.msra.mxu0 0.0
  %4437 = vmatprep.subr.mxu0 0.0
  %4438 = vmatpush2.msra.mxu0 0.0
  %4439 = vmatprep.subr.mxu0 0.0
  %4440 = vmatpush2.msra.mxu0 0.0
  %4441 = vmatprep.subr.mxu0 0.0
  %4442 = vmatpush2.msra.mxu0 0.0
  %4443 = vmatprep.subr.mxu0 0.0
  %4444 = vmatpush2.msra.mxu0 0.0
  %4445 = vmatprep.subr.mxu0 0.0
  %4446 = vmatpush2.msra.mxu0 0.0
  %4447 = vmatprep.subr.mxu0 0.0
  %4448 = vmatpush2.msra.mxu0 0.0
  %4449 = vmatprep.mubr.f32.mxu0 0.0
  %4450 = vmatmul.mubr.f32.gmra.mxu0 %v4377
  %v4451 = vpop.f32.mrf.mxu0
  %v4452 = vadd.f32 0.0, %v4451
  %v4453 = vpop.f32.mrf.mxu0
  %4454 = vmatprep.mubr.f32.mxu0 0.0
  %4455 = vmatmul.mubr.f32.gmra.mxu0 %v4380
  %v4456 = vpop.f32.mrf.mxu0
  %v4457 = vadd.f32 0.0, %v4456
  %v4458 = vpop.f32.mrf.mxu0
  %4459 = vdwg.mxu0
  %v4460 = vadd.f32 %v4374, %v4452
  %v4461 = vadd.f32 %v4375, %v4457
  %v4463 = vsel %vm3945, %v3800, 0
  %v4466 = vsel %vm3945, %v3801, 0
  %v4469 = vsel %vm2656, %v3868, 0
  %4471 = vmatprep.subr.mxu0 0.0
  %4472 = vmatpush1.msra.mxu0 0.0
  %4473 = vmatprep.subr.mxu0 0.0
  %4474 = vmatpush1.msra.mxu0 0.0
  %4475 = vmatprep.subr.mxu0 0.0
  %4476 = vmatpush1.msra.mxu0 0.0
  %4477 = vmatprep.subr.mxu0 0.0
  %4478 = vmatpush1.msra.mxu0 0.0
  %4479 = vmatprep.subr.mxu0 0.0
  %4480 = vmatpush1.msra.mxu0 0.0
  %4481 = vmatprep.subr.mxu0 0.0
  %4482 = vmatpush1.msra.mxu0 0.0
  %4483 = vmatprep.subr.mxu0 0.0
  %4484 = vmatpush1.msra.mxu0 0.0
  %4485 = vmatprep.subr.mxu0 0.0
  %4486 = vmatpush1.msra.mxu0 0.0
  %4487 = vmatprep.subr.mxu0 0.0
  %4488 = vmatpush1.msra.mxu0 0.0
  %4489 = vmatprep.subr.mxu0 0.0
  %4490 = vmatpush1.msra.mxu0 0.0
  %4491 = vmatprep.subr.mxu0 0.0
  %4492 = vmatpush1.msra.mxu0 0.0
  %4493 = vmatprep.subr.mxu0 0.0
  %4494 = vmatpush1.msra.mxu0 0.0
  %4495 = vmatprep.subr.mxu0 0.0
  %4496 = vmatpush1.msra.mxu0 0.0
  %4497 = vmatprep.subr.mxu0 0.0
  %4498 = vmatpush1.msra.mxu0 %v4469
  %4499 = vmatprep.subr.mxu0 0.0
  %4500 = vmatpush1.msra.mxu0 %v3867
  %4501 = vmatprep.subr.mxu0 0.0
  %4502 = vmatpush1.msra.mxu0 %v3866
  %4503 = vmatprep.subr.mxu0 0.0
  %4504 = vmatpush2.msra.mxu0 0.0
  %4505 = vmatprep.subr.mxu0 0.0
  %4506 = vmatpush2.msra.mxu0 0.0
  %4507 = vmatprep.subr.mxu0 0.0
  %4508 = vmatpush2.msra.mxu0 0.0
  %4509 = vmatprep.subr.mxu0 0.0
  %4510 = vmatpush2.msra.mxu0 0.0
  %4511 = vmatprep.subr.mxu0 0.0
  %4512 = vmatpush2.msra.mxu0 0.0
  %4513 = vmatprep.subr.mxu0 0.0
  %4514 = vmatpush2.msra.mxu0 0.0
  %4515 = vmatprep.subr.mxu0 0.0
  %4516 = vmatpush2.msra.mxu0 0.0
  %4517 = vmatprep.subr.mxu0 0.0
  %4518 = vmatpush2.msra.mxu0 0.0
  %4519 = vmatprep.subr.mxu0 0.0
  %4520 = vmatpush2.msra.mxu0 0.0
  %4521 = vmatprep.subr.mxu0 0.0
  %4522 = vmatpush2.msra.mxu0 0.0
  %4523 = vmatprep.subr.mxu0 0.0
  %4524 = vmatpush2.msra.mxu0 0.0
  %4525 = vmatprep.subr.mxu0 0.0
  %4526 = vmatpush2.msra.mxu0 0.0
  %4527 = vmatprep.subr.mxu0 0.0
  %4528 = vmatpush2.msra.mxu0 0.0
  %4529 = vmatprep.subr.mxu0 0.0
  %4530 = vmatpush2.msra.mxu0 0.0
  %4531 = vmatprep.subr.mxu0 0.0
  %4532 = vmatpush2.msra.mxu0 0.0
  %4533 = vmatprep.subr.mxu0 0.0
  %4534 = vmatpush2.msra.mxu0 0.0
  %4535 = vmatprep.mubr.f32.mxu0 0.0
  %4536 = vmatmul.mubr.f32.gmra.mxu0 %v4463
  %v4537 = vpop.f32.mrf.mxu0
  %v4538 = vadd.f32 0.0, %v4537
  %v4539 = vpop.f32.mrf.mxu0
  %4540 = vmatprep.mubr.f32.mxu0 0.0
  %4541 = vmatmul.mubr.f32.gmra.mxu0 %v4466
  %v4542 = vpop.f32.mrf.mxu0
  %v4543 = vadd.f32 0.0, %v4542
  %v4544 = vpop.f32.mrf.mxu0
  %4545 = vdwg.mxu0
  %v4546 = vadd.f32 %v4460, %v4538
  %v4547 = vadd.f32 %v4461, %v4543
  %v4549 = vsel %vm3945, %v3802, 0
  %v4552 = vsel %vm3945, %v3803, 0
  %v4555 = vsel %vm2656, %v3871, 0
  %4557 = vmatprep.subr.mxu0 0.0
  %4558 = vmatpush1.msra.mxu0 0.0
  %4559 = vmatprep.subr.mxu0 0.0
  %4560 = vmatpush1.msra.mxu0 0.0
  %4561 = vmatprep.subr.mxu0 0.0
  %4562 = vmatpush1.msra.mxu0 0.0
  %4563 = vmatprep.subr.mxu0 0.0
  %4564 = vmatpush1.msra.mxu0 0.0
  %4565 = vmatprep.subr.mxu0 0.0
  %4566 = vmatpush1.msra.mxu0 0.0
  %4567 = vmatprep.subr.mxu0 0.0
  %4568 = vmatpush1.msra.mxu0 0.0
  %4569 = vmatprep.subr.mxu0 0.0
  %4570 = vmatpush1.msra.mxu0 0.0
  %4571 = vmatprep.subr.mxu0 0.0
  %4572 = vmatpush1.msra.mxu0 0.0
  %4573 = vmatprep.subr.mxu0 0.0
  %4574 = vmatpush1.msra.mxu0 0.0
  %4575 = vmatprep.subr.mxu0 0.0
  %4576 = vmatpush1.msra.mxu0 0.0
  %4577 = vmatprep.subr.mxu0 0.0
  %4578 = vmatpush1.msra.mxu0 0.0
  %4579 = vmatprep.subr.mxu0 0.0
  %4580 = vmatpush1.msra.mxu0 0.0
  %4581 = vmatprep.subr.mxu0 0.0
  %4582 = vmatpush1.msra.mxu0 0.0
  %4583 = vmatprep.subr.mxu0 0.0
  %4584 = vmatpush1.msra.mxu0 %v4555
  %4585 = vmatprep.subr.mxu0 0.0
  %4586 = vmatpush1.msra.mxu0 %v3870
  %4587 = vmatprep.subr.mxu0 0.0
  %4588 = vmatpush1.msra.mxu0 %v3869
  %4589 = vmatprep.subr.mxu0 0.0
  %4590 = vmatpush2.msra.mxu0 0.0
  %4591 = vmatprep.subr.mxu0 0.0
  %4592 = vmatpush2.msra.mxu0 0.0
  %4593 = vmatprep.subr.mxu0 0.0
  %4594 = vmatpush2.msra.mxu0 0.0
  %4595 = vmatprep.subr.mxu0 0.0
  %4596 = vmatpush2.msra.mxu0 0.0
  %4597 = vmatprep.subr.mxu0 0.0
  %4598 = vmatpush2.msra.mxu0 0.0
  %4599 = vmatprep.subr.mxu0 0.0
  %4600 = vmatpush2.msra.mxu0 0.0
  %4601 = vmatprep.subr.mxu0 0.0
  %4602 = vmatpush2.msra.mxu0 0.0
  %4603 = vmatprep.subr.mxu0 0.0
  %4604 = vmatpush2.msra.mxu0 0.0
  %4605 = vmatprep.subr.mxu0 0.0
  %4606 = vmatpush2.msra.mxu0 0.0
  %4607 = vmatprep.subr.mxu0 0.0
  %4608 = vmatpush2.msra.mxu0 0.0
  %4609 = vmatprep.subr.mxu0 0.0
  %4610 = vmatpush2.msra.mxu0 0.0
  %4611 = vmatprep.subr.mxu0 0.0
  %4612 = vmatpush2.msra.mxu0 0.0
  %4613 = vmatprep.subr.mxu0 0.0
  %4614 = vmatpush2.msra.mxu0 0.0
  %4615 = vmatprep.subr.mxu0 0.0
  %4616 = vmatpush2.msra.mxu0 0.0
  %4617 = vmatprep.subr.mxu0 0.0
  %4618 = vmatpush2.msra.mxu0 0.0
  %4619 = vmatprep.subr.mxu0 0.0
  %4620 = vmatpush2.msra.mxu0 0.0
  %4621 = vmatprep.mubr.f32.mxu0 0.0
  %4622 = vmatmul.mubr.f32.gmra.mxu0 %v4549
  %v4623 = vpop.f32.mrf.mxu0
  %v4624 = vadd.f32 0.0, %v4623
  %v4625 = vpop.f32.mrf.mxu0
  %4626 = vmatprep.mubr.f32.mxu0 0.0
  %4627 = vmatmul.mubr.f32.gmra.mxu0 %v4552
  %v4628 = vpop.f32.mrf.mxu0
  %v4629 = vadd.f32 0.0, %v4628
  %v4630 = vpop.f32.mrf.mxu0
  %4631 = vdwg.mxu0
  %v4632 = vadd.f32 %v4546, %v4624
  %v4633 = vadd.f32 %v4547, %v4629
  %v4635 = vsel %vm3945, %v3804, 0
  %v4638 = vsel %vm3945, %v3805, 0
  %v4641 = vsel %vm2656, %v3874, 0
  %4643 = vmatprep.subr.mxu0 0.0
  %4644 = vmatpush1.msra.mxu0 0.0
  %4645 = vmatprep.subr.mxu0 0.0
  %4646 = vmatpush1.msra.mxu0 0.0
  %4647 = vmatprep.subr.mxu0 0.0
  %4648 = vmatpush1.msra.mxu0 0.0
  %4649 = vmatprep.subr.mxu0 0.0
  %4650 = vmatpush1.msra.mxu0 0.0
  %4651 = vmatprep.subr.mxu0 0.0
  %4652 = vmatpush1.msra.mxu0 0.0
  %4653 = vmatprep.subr.mxu0 0.0
  %4654 = vmatpush1.msra.mxu0 0.0
  %4655 = vmatprep.subr.mxu0 0.0
  %4656 = vmatpush1.msra.mxu0 0.0
  %4657 = vmatprep.subr.mxu0 0.0
  %4658 = vmatpush1.msra.mxu0 0.0
  %4659 = vmatprep.subr.mxu0 0.0
  %4660 = vmatpush1.msra.mxu0 0.0
  %4661 = vmatprep.subr.mxu0 0.0
  %4662 = vmatpush1.msra.mxu0 0.0
  %4663 = vmatprep.subr.mxu0 0.0
  %4664 = vmatpush1.msra.mxu0 0.0
  %4665 = vmatprep.subr.mxu0 0.0
  %4666 = vmatpush1.msra.mxu0 0.0
  %4667 = vmatprep.subr.mxu0 0.0
  %4668 = vmatpush1.msra.mxu0 0.0
  %4669 = vmatprep.subr.mxu0 0.0
  %4670 = vmatpush1.msra.mxu0 %v4641
  %4671 = vmatprep.subr.mxu0 0.0
  %4672 = vmatpush1.msra.mxu0 %v3873
  %4673 = vmatprep.subr.mxu0 0.0
  %4674 = vmatpush1.msra.mxu0 %v3872
  %4675 = vmatprep.subr.mxu0 0.0
  %4676 = vmatpush2.msra.mxu0 0.0
  %4677 = vmatprep.subr.mxu0 0.0
  %4678 = vmatpush2.msra.mxu0 0.0
  %4679 = vmatprep.subr.mxu0 0.0
  %4680 = vmatpush2.msra.mxu0 0.0
  %4681 = vmatprep.subr.mxu0 0.0
  %4682 = vmatpush2.msra.mxu0 0.0
  %4683 = vmatprep.subr.mxu0 0.0
  %4684 = vmatpush2.msra.mxu0 0.0
  %4685 = vmatprep.subr.mxu0 0.0
  %4686 = vmatpush2.msra.mxu0 0.0
  %4687 = vmatprep.subr.mxu0 0.0
  %4688 = vmatpush2.msra.mxu0 0.0
  %4689 = vmatprep.subr.mxu0 0.0
  %4690 = vmatpush2.msra.mxu0 0.0
  %4691 = vmatprep.subr.mxu0 0.0
  %4692 = vmatpush2.msra.mxu0 0.0
  %4693 = vmatprep.subr.mxu0 0.0
  %4694 = vmatpush2.msra.mxu0 0.0
  %4695 = vmatprep.subr.mxu0 0.0
  %4696 = vmatpush2.msra.mxu0 0.0
  %4697 = vmatprep.subr.mxu0 0.0
  %4698 = vmatpush2.msra.mxu0 0.0
  %4699 = vmatprep.subr.mxu0 0.0
  %4700 = vmatpush2.msra.mxu0 0.0
  %4701 = vmatprep.subr.mxu0 0.0
  %4702 = vmatpush2.msra.mxu0 0.0
  %4703 = vmatprep.subr.mxu0 0.0
  %4704 = vmatpush2.msra.mxu0 0.0
  %4705 = vmatprep.subr.mxu0 0.0
  %4706 = vmatpush2.msra.mxu0 0.0
  %4707 = vmatprep.mubr.f32.mxu0 0.0
  %4708 = vmatmul.mubr.f32.gmra.mxu0 %v4635
  %v4709 = vpop.f32.mrf.mxu0
  %v4710 = vadd.f32 0.0, %v4709
  %v4711 = vpop.f32.mrf.mxu0
  %4712 = vmatprep.mubr.f32.mxu0 0.0
  %4713 = vmatmul.mubr.f32.gmra.mxu0 %v4638
  %v4714 = vpop.f32.mrf.mxu0
  %v4715 = vadd.f32 0.0, %v4714
  %v4716 = vpop.f32.mrf.mxu0
  %4717 = vdwg.mxu0
  %v4718 = vadd.f32 %v4632, %v4710
  %v4719 = vadd.f32 %v4633, %v4715
  %v4721 = vsel %vm3945, %v3806, 0
  %v4724 = vsel %vm3945, %v3807, 0
  %v4727 = vsel %vm2656, %v3877, 0
  %4729 = vmatprep.subr.mxu0 0.0
  %4730 = vmatpush1.msra.mxu0 0.0
  %4731 = vmatprep.subr.mxu0 0.0
  %4732 = vmatpush1.msra.mxu0 0.0
  %4733 = vmatprep.subr.mxu0 0.0
  %4734 = vmatpush1.msra.mxu0 0.0
  %4735 = vmatprep.subr.mxu0 0.0
  %4736 = vmatpush1.msra.mxu0 0.0
  %4737 = vmatprep.subr.mxu0 0.0
  %4738 = vmatpush1.msra.mxu0 0.0
  %4739 = vmatprep.subr.mxu0 0.0
  %4740 = vmatpush1.msra.mxu0 0.0
  %4741 = vmatprep.subr.mxu0 0.0
  %4742 = vmatpush1.msra.mxu0 0.0
  %4743 = vmatprep.subr.mxu0 0.0
  %4744 = vmatpush1.msra.mxu0 0.0
  %4745 = vmatprep.subr.mxu0 0.0
  %4746 = vmatpush1.msra.mxu0 0.0
  %4747 = vmatprep.subr.mxu0 0.0
  %4748 = vmatpush1.msra.mxu0 0.0
  %4749 = vmatprep.subr.mxu0 0.0
  %4750 = vmatpush1.msra.mxu0 0.0
  %4751 = vmatprep.subr.mxu0 0.0
  %4752 = vmatpush1.msra.mxu0 0.0
  %4753 = vmatprep.subr.mxu0 0.0
  %4754 = vmatpush1.msra.mxu0 0.0
  %4755 = vmatprep.subr.mxu0 0.0
  %4756 = vmatpush1.msra.mxu0 %v4727
  %4757 = vmatprep.subr.mxu0 0.0
  %4758 = vmatpush1.msra.mxu0 %v3876
  %4759 = vmatprep.subr.mxu0 0.0
  %4760 = vmatpush1.msra.mxu0 %v3875
  %4761 = vmatprep.subr.mxu0 0.0
  %4762 = vmatpush2.msra.mxu0 0.0
  %4763 = vmatprep.subr.mxu0 0.0
  %4764 = vmatpush2.msra.mxu0 0.0
  %4765 = vmatprep.subr.mxu0 0.0
  %4766 = vmatpush2.msra.mxu0 0.0
  %4767 = vmatprep.subr.mxu0 0.0
  %4768 = vmatpush2.msra.mxu0 0.0
  %4769 = vmatprep.subr.mxu0 0.0
  %4770 = vmatpush2.msra.mxu0 0.0
  %4771 = vmatprep.subr.mxu0 0.0
  %4772 = vmatpush2.msra.mxu0 0.0
  %4773 = vmatprep.subr.mxu0 0.0
  %4774 = vmatpush2.msra.mxu0 0.0
  %4775 = vmatprep.subr.mxu0 0.0
  %4776 = vmatpush2.msra.mxu0 0.0
  %4777 = vmatprep.subr.mxu0 0.0
  %4778 = vmatpush2.msra.mxu0 0.0
  %4779 = vmatprep.subr.mxu0 0.0
  %4780 = vmatpush2.msra.mxu0 0.0
  %4781 = vmatprep.subr.mxu0 0.0
  %4782 = vmatpush2.msra.mxu0 0.0
  %4783 = vmatprep.subr.mxu0 0.0
  %4784 = vmatpush2.msra.mxu0 0.0
  %4785 = vmatprep.subr.mxu0 0.0
  %4786 = vmatpush2.msra.mxu0 0.0
  %4787 = vmatprep.subr.mxu0 0.0
  %4788 = vmatpush2.msra.mxu0 0.0
  %4789 = vmatprep.subr.mxu0 0.0
  %4790 = vmatpush2.msra.mxu0 0.0
  %4791 = vmatprep.subr.mxu0 0.0
  %4792 = vmatpush2.msra.mxu0 0.0
  %4793 = vmatprep.mubr.f32.mxu0 0.0
  %4794 = vmatmul.mubr.f32.gmra.mxu0 %v4721
  %v4795 = vpop.f32.mrf.mxu0
  %v4796 = vadd.f32 0.0, %v4795
  %v4797 = vpop.f32.mrf.mxu0
  %4798 = vmatprep.mubr.f32.mxu0 0.0
  %4799 = vmatmul.mubr.f32.gmra.mxu0 %v4724
  %v4800 = vpop.f32.mrf.mxu0
  %v4801 = vadd.f32 0.0, %v4800
  %v4802 = vpop.f32.mrf.mxu0
  %4803 = vdwg.mxu0
  %v4804 = vadd.f32 %v4718, %v4796
  %v4805 = vadd.f32 %v4719, %v4801
  %v4807 = vsel %vm3945, %v3808, 0
  %v4810 = vsel %vm3945, %v3809, 0
  %v4813 = vsel %vm2656, %v3880, 0
  %4815 = vmatprep.subr.mxu0 0.0
  %4816 = vmatpush1.msra.mxu0 0.0
  %4817 = vmatprep.subr.mxu0 0.0
  %4818 = vmatpush1.msra.mxu0 0.0
  %4819 = vmatprep.subr.mxu0 0.0
  %4820 = vmatpush1.msra.mxu0 0.0
  %4821 = vmatprep.subr.mxu0 0.0
  %4822 = vmatpush1.msra.mxu0 0.0
  %4823 = vmatprep.subr.mxu0 0.0
  %4824 = vmatpush1.msra.mxu0 0.0
  %4825 = vmatprep.subr.mxu0 0.0
  %4826 = vmatpush1.msra.mxu0 0.0
  %4827 = vmatprep.subr.mxu0 0.0
  %4828 = vmatpush1.msra.mxu0 0.0
  %4829 = vmatprep.subr.mxu0 0.0
  %4830 = vmatpush1.msra.mxu0 0.0
  %4831 = vmatprep.subr.mxu0 0.0
  %4832 = vmatpush1.msra.mxu0 0.0
  %4833 = vmatprep.subr.mxu0 0.0
  %4834 = vmatpush1.msra.mxu0 0.0
  %4835 = vmatprep.subr.mxu0 0.0
  %4836 = vmatpush1.msra.mxu0 0.0
  %4837 = vmatprep.subr.mxu0 0.0
  %4838 = vmatpush1.msra.mxu0 0.0
  %4839 = vmatprep.subr.mxu0 0.0
  %4840 = vmatpush1.msra.mxu0 0.0
  %4841 = vmatprep.subr.mxu0 0.0
  %4842 = vmatpush1.msra.mxu0 %v4813
  %4843 = vmatprep.subr.mxu0 0.0
  %4844 = vmatpush1.msra.mxu0 %v3879
  %4845 = vmatprep.subr.mxu0 0.0
  %4846 = vmatpush1.msra.mxu0 %v3878
  %4847 = vmatprep.subr.mxu0 0.0
  %4848 = vmatpush2.msra.mxu0 0.0
  %4849 = vmatprep.subr.mxu0 0.0
  %4850 = vmatpush2.msra.mxu0 0.0
  %4851 = vmatprep.subr.mxu0 0.0
  %4852 = vmatpush2.msra.mxu0 0.0
  %4853 = vmatprep.subr.mxu0 0.0
  %4854 = vmatpush2.msra.mxu0 0.0
  %4855 = vmatprep.subr.mxu0 0.0
  %4856 = vmatpush2.msra.mxu0 0.0
  %4857 = vmatprep.subr.mxu0 0.0
  %4858 = vmatpush2.msra.mxu0 0.0
  %4859 = vmatprep.subr.mxu0 0.0
  %4860 = vmatpush2.msra.mxu0 0.0
  %4861 = vmatprep.subr.mxu0 0.0
  %4862 = vmatpush2.msra.mxu0 0.0
  %4863 = vmatprep.subr.mxu0 0.0
  %4864 = vmatpush2.msra.mxu0 0.0
  %4865 = vmatprep.subr.mxu0 0.0
  %4866 = vmatpush2.msra.mxu0 0.0
  %4867 = vmatprep.subr.mxu0 0.0
  %4868 = vmatpush2.msra.mxu0 0.0
  %4869 = vmatprep.subr.mxu0 0.0
  %4870 = vmatpush2.msra.mxu0 0.0
  %4871 = vmatprep.subr.mxu0 0.0
  %4872 = vmatpush2.msra.mxu0 0.0
  %4873 = vmatprep.subr.mxu0 0.0
  %4874 = vmatpush2.msra.mxu0 0.0
  %4875 = vmatprep.subr.mxu0 0.0
  %4876 = vmatpush2.msra.mxu0 0.0
  %4877 = vmatprep.subr.mxu0 0.0
  %4878 = vmatpush2.msra.mxu0 0.0
  %4879 = vmatprep.mubr.f32.mxu0 0.0
  %4880 = vmatmul.mubr.f32.gmra.mxu0 %v4807
  %v4881 = vpop.f32.mrf.mxu0
  %v4882 = vadd.f32 0.0, %v4881
  %v4883 = vpop.f32.mrf.mxu0
  %4884 = vmatprep.mubr.f32.mxu0 0.0
  %4885 = vmatmul.mubr.f32.gmra.mxu0 %v4810
  %v4886 = vpop.f32.mrf.mxu0
  %v4887 = vadd.f32 0.0, %v4886
  %v4888 = vpop.f32.mrf.mxu0
  %4889 = vdwg.mxu0
  %v4890 = vadd.f32 %v4804, %v4882
  %v4891 = vadd.f32 %v4805, %v4887
  %v4893 = vsel %vm3945, %v3810, 0
  %v4896 = vsel %vm3945, %v3811, 0
  %v4899 = vsel %vm2656, %v3883, 0
  %4901 = vmatprep.subr.mxu0 0.0
  %4902 = vmatpush1.msra.mxu0 0.0
  %4903 = vmatprep.subr.mxu0 0.0
  %4904 = vmatpush1.msra.mxu0 0.0
  %4905 = vmatprep.subr.mxu0 0.0
  %4906 = vmatpush1.msra.mxu0 0.0
  %4907 = vmatprep.subr.mxu0 0.0
  %4908 = vmatpush1.msra.mxu0 0.0
  %4909 = vmatprep.subr.mxu0 0.0
  %4910 = vmatpush1.msra.mxu0 0.0
  %4911 = vmatprep.subr.mxu0 0.0
  %4912 = vmatpush1.msra.mxu0 0.0
  %4913 = vmatprep.subr.mxu0 0.0
  %4914 = vmatpush1.msra.mxu0 0.0
  %4915 = vmatprep.subr.mxu0 0.0
  %4916 = vmatpush1.msra.mxu0 0.0
  %4917 = vmatprep.subr.mxu0 0.0
  %4918 = vmatpush1.msra.mxu0 0.0
  %4919 = vmatprep.subr.mxu0 0.0
  %4920 = vmatpush1.msra.mxu0 0.0
  %4921 = vmatprep.subr.mxu0 0.0
  %4922 = vmatpush1.msra.mxu0 0.0
  %4923 = vmatprep.subr.mxu0 0.0
  %4924 = vmatpush1.msra.mxu0 0.0
  %4925 = vmatprep.subr.mxu0 0.0
  %4926 = vmatpush1.msra.mxu0 0.0
  %4927 = vmatprep.subr.mxu0 0.0
  %4928 = vmatpush1.msra.mxu0 %v4899
  %4929 = vmatprep.subr.mxu0 0.0
  %4930 = vmatpush1.msra.mxu0 %v3882
  %4931 = vmatprep.subr.mxu0 0.0
  %4932 = vmatpush1.msra.mxu0 %v3881
  %4933 = vmatprep.subr.mxu0 0.0
  %4934 = vmatpush2.msra.mxu0 0.0
  %4935 = vmatprep.subr.mxu0 0.0
  %4936 = vmatpush2.msra.mxu0 0.0
  %4937 = vmatprep.subr.mxu0 0.0
  %4938 = vmatpush2.msra.mxu0 0.0
  %4939 = vmatprep.subr.mxu0 0.0
  %4940 = vmatpush2.msra.mxu0 0.0
  %4941 = vmatprep.subr.mxu0 0.0
  %4942 = vmatpush2.msra.mxu0 0.0
  %4943 = vmatprep.subr.mxu0 0.0
  %4944 = vmatpush2.msra.mxu0 0.0
  %4945 = vmatprep.subr.mxu0 0.0
  %4946 = vmatpush2.msra.mxu0 0.0
  %4947 = vmatprep.subr.mxu0 0.0
  %4948 = vmatpush2.msra.mxu0 0.0
  %4949 = vmatprep.subr.mxu0 0.0
  %4950 = vmatpush2.msra.mxu0 0.0
  %4951 = vmatprep.subr.mxu0 0.0
  %4952 = vmatpush2.msra.mxu0 0.0
  %4953 = vmatprep.subr.mxu0 0.0
  %4954 = vmatpush2.msra.mxu0 0.0
  %4955 = vmatprep.subr.mxu0 0.0
  %4956 = vmatpush2.msra.mxu0 0.0
  %4957 = vmatprep.subr.mxu0 0.0
  %4958 = vmatpush2.msra.mxu0 0.0
  %4959 = vmatprep.subr.mxu0 0.0
  %4960 = vmatpush2.msra.mxu0 0.0
  %4961 = vmatprep.subr.mxu0 0.0
  %4962 = vmatpush2.msra.mxu0 0.0
  %4963 = vmatprep.subr.mxu0 0.0
  %4964 = vmatpush2.msra.mxu0 0.0
  %4965 = vmatprep.mubr.f32.mxu0 0.0
  %4966 = vmatmul.mubr.f32.gmra.mxu0 %v4893
  %v4967 = vpop.f32.mrf.mxu0
  %v4968 = vadd.f32 0.0, %v4967
  %v4969 = vpop.f32.mrf.mxu0
  %4970 = vmatprep.mubr.f32.mxu0 0.0
  %4971 = vmatmul.mubr.f32.gmra.mxu0 %v4896
  %v4972 = vpop.f32.mrf.mxu0
  %v4973 = vadd.f32 0.0, %v4972
  %v4974 = vpop.f32.mrf.mxu0
  %4975 = vdwg.mxu0
  %v4976 = vadd.f32 %v4890, %v4968
  %v4977 = vadd.f32 %v4891, %v4973
  %v4979 = vsel %vm3945, %v3812, 0
  %v4982 = vsel %vm3945, %v3813, 0
  %v4985 = vsel %vm2656, %v3886, 0
  %4987 = vmatprep.subr.mxu0 0.0
  %4988 = vmatpush1.msra.mxu0 0.0
  %4989 = vmatprep.subr.mxu0 0.0
  %4990 = vmatpush1.msra.mxu0 0.0
  %4991 = vmatprep.subr.mxu0 0.0
  %4992 = vmatpush1.msra.mxu0 0.0
  %4993 = vmatprep.subr.mxu0 0.0
  %4994 = vmatpush1.msra.mxu0 0.0
  %4995 = vmatprep.subr.mxu0 0.0
  %4996 = vmatpush1.msra.mxu0 0.0
  %4997 = vmatprep.subr.mxu0 0.0
  %4998 = vmatpush1.msra.mxu0 0.0
  %4999 = vmatprep.subr.mxu0 0.0
  %5000 = vmatpush1.msra.mxu0 0.0
  %5001 = vmatprep.subr.mxu0 0.0
  %5002 = vmatpush1.msra.mxu0 0.0
  %5003 = vmatprep.subr.mxu0 0.0
  %5004 = vmatpush1.msra.mxu0 0.0
  %5005 = vmatprep.subr.mxu0 0.0
  %5006 = vmatpush1.msra.mxu0 0.0
  %5007 = vmatprep.subr.mxu0 0.0
  %5008 = vmatpush1.msra.mxu0 0.0
  %5009 = vmatprep.subr.mxu0 0.0
  %5010 = vmatpush1.msra.mxu0 0.0
  %5011 = vmatprep.subr.mxu0 0.0
  %5012 = vmatpush1.msra.mxu0 0.0
  %5013 = vmatprep.subr.mxu0 0.0
  %5014 = vmatpush1.msra.mxu0 %v4985
  %5015 = vmatprep.subr.mxu0 0.0
  %5016 = vmatpush1.msra.mxu0 %v3885
  %5017 = vmatprep.subr.mxu0 0.0
  %5018 = vmatpush1.msra.mxu0 %v3884
  %5019 = vmatprep.subr.mxu0 0.0
  %5020 = vmatpush2.msra.mxu0 0.0
  %5021 = vmatprep.subr.mxu0 0.0
  %5022 = vmatpush2.msra.mxu0 0.0
  %5023 = vmatprep.subr.mxu0 0.0
  %5024 = vmatpush2.msra.mxu0 0.0
  %5025 = vmatprep.subr.mxu0 0.0
  %5026 = vmatpush2.msra.mxu0 0.0
  %5027 = vmatprep.subr.mxu0 0.0
  %5028 = vmatpush2.msra.mxu0 0.0
  %5029 = vmatprep.subr.mxu0 0.0
  %5030 = vmatpush2.msra.mxu0 0.0
  %5031 = vmatprep.subr.mxu0 0.0
  %5032 = vmatpush2.msra.mxu0 0.0
  %5033 = vmatprep.subr.mxu0 0.0
  %5034 = vmatpush2.msra.mxu0 0.0
  %5035 = vmatprep.subr.mxu0 0.0
  %5036 = vmatpush2.msra.mxu0 0.0
  %5037 = vmatprep.subr.mxu0 0.0
  %5038 = vmatpush2.msra.mxu0 0.0
  %5039 = vmatprep.subr.mxu0 0.0
  %5040 = vmatpush2.msra.mxu0 0.0
  %5041 = vmatprep.subr.mxu0 0.0
  %5042 = vmatpush2.msra.mxu0 0.0
  %5043 = vmatprep.subr.mxu0 0.0
  %5044 = vmatpush2.msra.mxu0 0.0
  %5045 = vmatprep.subr.mxu0 0.0
  %5046 = vmatpush2.msra.mxu0 0.0
  %5047 = vmatprep.subr.mxu0 0.0
  %5048 = vmatpush2.msra.mxu0 0.0
  %5049 = vmatprep.subr.mxu0 0.0
  %5050 = vmatpush2.msra.mxu0 0.0
  %5051 = vmatprep.mubr.f32.mxu0 0.0
  %5052 = vmatmul.mubr.f32.gmra.mxu0 %v4979
  %v5053 = vpop.f32.mrf.mxu0
  %v5054 = vadd.f32 0.0, %v5053
  %v5055 = vpop.f32.mrf.mxu0
  %5056 = vmatprep.mubr.f32.mxu0 0.0
  %5057 = vmatmul.mubr.f32.gmra.mxu0 %v4982
  %v5058 = vpop.f32.mrf.mxu0
  %v5059 = vadd.f32 0.0, %v5058
  %v5060 = vpop.f32.mrf.mxu0
  %5061 = vdwg.mxu0
  %v5062 = vadd.f32 %v4976, %v5054
  %v5063 = vadd.f32 %v4977, %v5059
  %v5065 = vsel %vm3945, %v3814, 0
  %v5068 = vsel %vm3945, %v3815, 0
  %v5071 = vsel %vm2656, %v3889, 0
  %5073 = vmatprep.subr.mxu0 0.0
  %5074 = vmatpush1.msra.mxu0 0.0
  %5075 = vmatprep.subr.mxu0 0.0
  %5076 = vmatpush1.msra.mxu0 0.0
  %5077 = vmatprep.subr.mxu0 0.0
  %5078 = vmatpush1.msra.mxu0 0.0
  %5079 = vmatprep.subr.mxu0 0.0
  %5080 = vmatpush1.msra.mxu0 0.0
  %5081 = vmatprep.subr.mxu0 0.0
  %5082 = vmatpush1.msra.mxu0 0.0
  %5083 = vmatprep.subr.mxu0 0.0
  %5084 = vmatpush1.msra.mxu0 0.0
  %5085 = vmatprep.subr.mxu0 0.0
  %5086 = vmatpush1.msra.mxu0 0.0
  %5087 = vmatprep.subr.mxu0 0.0
  %5088 = vmatpush1.msra.mxu0 0.0
  %5089 = vmatprep.subr.mxu0 0.0
  %5090 = vmatpush1.msra.mxu0 0.0
  %5091 = vmatprep.subr.mxu0 0.0
  %5092 = vmatpush1.msra.mxu0 0.0
  %5093 = vmatprep.subr.mxu0 0.0
  %5094 = vmatpush1.msra.mxu0 0.0
  %5095 = vmatprep.subr.mxu0 0.0
  %5096 = vmatpush1.msra.mxu0 0.0
  %5097 = vmatprep.subr.mxu0 0.0
  %5098 = vmatpush1.msra.mxu0 0.0
  %5099 = vmatprep.subr.mxu0 0.0
  %5100 = vmatpush1.msra.mxu0 %v5071
  %5101 = vmatprep.subr.mxu0 0.0
  %5102 = vmatpush1.msra.mxu0 %v3888
  %5103 = vmatprep.subr.mxu0 0.0
  %5104 = vmatpush1.msra.mxu0 %v3887
  %5105 = vmatprep.subr.mxu0 0.0
  %5106 = vmatpush2.msra.mxu0 0.0
  %5107 = vmatprep.subr.mxu0 0.0
  %5108 = vmatpush2.msra.mxu0 0.0
  %5109 = vmatprep.subr.mxu0 0.0
  %5110 = vmatpush2.msra.mxu0 0.0
  %5111 = vmatprep.subr.mxu0 0.0
  %5112 = vmatpush2.msra.mxu0 0.0
  %5113 = vmatprep.subr.mxu0 0.0
  %5114 = vmatpush2.msra.mxu0 0.0
  %5115 = vmatprep.subr.mxu0 0.0
  %5116 = vmatpush2.msra.mxu0 0.0
  %5117 = vmatprep.subr.mxu0 0.0
  %5118 = vmatpush2.msra.mxu0 0.0
  %5119 = vmatprep.subr.mxu0 0.0
  %5120 = vmatpush2.msra.mxu0 0.0
  %5121 = vmatprep.subr.mxu0 0.0
  %5122 = vmatpush2.msra.mxu0 0.0
  %5123 = vmatprep.subr.mxu0 0.0
  %5124 = vmatpush2.msra.mxu0 0.0
  %5125 = vmatprep.subr.mxu0 0.0
  %5126 = vmatpush2.msra.mxu0 0.0
  %5127 = vmatprep.subr.mxu0 0.0
  %5128 = vmatpush2.msra.mxu0 0.0
  %5129 = vmatprep.subr.mxu0 0.0
  %5130 = vmatpush2.msra.mxu0 0.0
  %5131 = vmatprep.subr.mxu0 0.0
  %5132 = vmatpush2.msra.mxu0 0.0
  %5133 = vmatprep.subr.mxu0 0.0
  %5134 = vmatpush2.msra.mxu0 0.0
  %5135 = vmatprep.subr.mxu0 0.0
  %5136 = vmatpush2.msra.mxu0 0.0
  %5137 = vmatprep.mubr.f32.mxu0 0.0
  %5138 = vmatmul.mubr.f32.gmra.mxu0 %v5065
  %v5139 = vpop.f32.mrf.mxu0
  %v5140 = vadd.f32 0.0, %v5139
  %v5141 = vpop.f32.mrf.mxu0
  %5142 = vmatprep.mubr.f32.mxu0 0.0
  %5143 = vmatmul.mubr.f32.gmra.mxu0 %v5068
  %v5144 = vpop.f32.mrf.mxu0
  %v5145 = vadd.f32 0.0, %v5144
  %v5146 = vpop.f32.mrf.mxu0
  %5147 = vdwg.mxu0
  %v5148 = vadd.f32 %v5062, %v5140
  %v5149 = vadd.f32 %v5063, %v5145
  %v5151 = vsel %vm3945, %v3816, 0
  %v5154 = vsel %vm3945, %v3817, 0
  %v5157 = vsel %vm2656, %v3892, 0
  %5159 = vmatprep.subr.mxu0 0.0
  %5160 = vmatpush1.msra.mxu0 0.0
  %5161 = vmatprep.subr.mxu0 0.0
  %5162 = vmatpush1.msra.mxu0 0.0
  %5163 = vmatprep.subr.mxu0 0.0
  %5164 = vmatpush1.msra.mxu0 0.0
  %5165 = vmatprep.subr.mxu0 0.0
  %5166 = vmatpush1.msra.mxu0 0.0
  %5167 = vmatprep.subr.mxu0 0.0
  %5168 = vmatpush1.msra.mxu0 0.0
  %5169 = vmatprep.subr.mxu0 0.0
  %5170 = vmatpush1.msra.mxu0 0.0
  %5171 = vmatprep.subr.mxu0 0.0
  %5172 = vmatpush1.msra.mxu0 0.0
  %5173 = vmatprep.subr.mxu0 0.0
  %5174 = vmatpush1.msra.mxu0 0.0
  %5175 = vmatprep.subr.mxu0 0.0
  %5176 = vmatpush1.msra.mxu0 0.0
  %5177 = vmatprep.subr.mxu0 0.0
  %5178 = vmatpush1.msra.mxu0 0.0
  %5179 = vmatprep.subr.mxu0 0.0
  %5180 = vmatpush1.msra.mxu0 0.0
  %5181 = vmatprep.subr.mxu0 0.0
  %5182 = vmatpush1.msra.mxu0 0.0
  %5183 = vmatprep.subr.mxu0 0.0
  %5184 = vmatpush1.msra.mxu0 0.0
  %5185 = vmatprep.subr.mxu0 0.0
  %5186 = vmatpush1.msra.mxu0 %v5157
  %5187 = vmatprep.subr.mxu0 0.0
  %5188 = vmatpush1.msra.mxu0 %v3891
  %5189 = vmatprep.subr.mxu0 0.0
  %5190 = vmatpush1.msra.mxu0 %v3890
  %5191 = vmatprep.subr.mxu0 0.0
  %5192 = vmatpush2.msra.mxu0 0.0
  %5193 = vmatprep.subr.mxu0 0.0
  %5194 = vmatpush2.msra.mxu0 0.0
  %5195 = vmatprep.subr.mxu0 0.0
  %5196 = vmatpush2.msra.mxu0 0.0
  %5197 = vmatprep.subr.mxu0 0.0
  %5198 = vmatpush2.msra.mxu0 0.0
  %5199 = vmatprep.subr.mxu0 0.0
  %5200 = vmatpush2.msra.mxu0 0.0
  %5201 = vmatprep.subr.mxu0 0.0
  %5202 = vmatpush2.msra.mxu0 0.0
  %5203 = vmatprep.subr.mxu0 0.0
  %5204 = vmatpush2.msra.mxu0 0.0
  %5205 = vmatprep.subr.mxu0 0.0
  %5206 = vmatpush2.msra.mxu0 0.0
  %5207 = vmatprep.subr.mxu0 0.0
  %5208 = vmatpush2.msra.mxu0 0.0
  %5209 = vmatprep.subr.mxu0 0.0
  %5210 = vmatpush2.msra.mxu0 0.0
  %5211 = vmatprep.subr.mxu0 0.0
  %5212 = vmatpush2.msra.mxu0 0.0
  %5213 = vmatprep.subr.mxu0 0.0
  %5214 = vmatpush2.msra.mxu0 0.0
  %5215 = vmatprep.subr.mxu0 0.0
  %5216 = vmatpush2.msra.mxu0 0.0
  %5217 = vmatprep.subr.mxu0 0.0
  %5218 = vmatpush2.msra.mxu0 0.0
  %5219 = vmatprep.subr.mxu0 0.0
  %5220 = vmatpush2.msra.mxu0 0.0
  %5221 = vmatprep.subr.mxu0 0.0
  %5222 = vmatpush2.msra.mxu0 0.0
  %5223 = vmatprep.mubr.f32.mxu0 0.0
  %5224 = vmatmul.mubr.f32.gmra.mxu0 %v5151
  %v5225 = vpop.f32.mrf.mxu0
  %v5226 = vadd.f32 0.0, %v5225
  %v5227 = vpop.f32.mrf.mxu0
  %5228 = vmatprep.mubr.f32.mxu0 0.0
  %5229 = vmatmul.mubr.f32.gmra.mxu0 %v5154
  %v5230 = vpop.f32.mrf.mxu0
  %v5231 = vadd.f32 0.0, %v5230
  %v5232 = vpop.f32.mrf.mxu0
  %5233 = vdwg.mxu0
  %v5234 = vadd.f32 %v5148, %v5226
  %v5235 = vadd.f32 %v5149, %v5231
  %v5237 = vsel %vm3945, %v3818, 0
  %v5240 = vsel %vm3945, %v3819, 0
  %v5243 = vsel %vm2656, %v3895, 0
  %5245 = vmatprep.subr.mxu0 0.0
  %5246 = vmatpush1.msra.mxu0 0.0
  %5247 = vmatprep.subr.mxu0 0.0
  %5248 = vmatpush1.msra.mxu0 0.0
  %5249 = vmatprep.subr.mxu0 0.0
  %5250 = vmatpush1.msra.mxu0 0.0
  %5251 = vmatprep.subr.mxu0 0.0
  %5252 = vmatpush1.msra.mxu0 0.0
  %5253 = vmatprep.subr.mxu0 0.0
  %5254 = vmatpush1.msra.mxu0 0.0
  %5255 = vmatprep.subr.mxu0 0.0
  %5256 = vmatpush1.msra.mxu0 0.0
  %5257 = vmatprep.subr.mxu0 0.0
  %5258 = vmatpush1.msra.mxu0 0.0
  %5259 = vmatprep.subr.mxu0 0.0
  %5260 = vmatpush1.msra.mxu0 0.0
  %5261 = vmatprep.subr.mxu0 0.0
  %5262 = vmatpush1.msra.mxu0 0.0
  %5263 = vmatprep.subr.mxu0 0.0
  %5264 = vmatpush1.msra.mxu0 0.0
  %5265 = vmatprep.subr.mxu0 0.0
  %5266 = vmatpush1.msra.mxu0 0.0
  %5267 = vmatprep.subr.mxu0 0.0
  %5268 = vmatpush1.msra.mxu0 0.0
  %5269 = vmatprep.subr.mxu0 0.0
  %5270 = vmatpush1.msra.mxu0 0.0
  %5271 = vmatprep.subr.mxu0 0.0
  %5272 = vmatpush1.msra.mxu0 %v5243
  %5273 = vmatprep.subr.mxu0 0.0
  %5274 = vmatpush1.msra.mxu0 %v3894
  %5275 = vmatprep.subr.mxu0 0.0
  %5276 = vmatpush1.msra.mxu0 %v3893
  %5277 = vmatprep.subr.mxu0 0.0
  %5278 = vmatpush2.msra.mxu0 0.0
  %5279 = vmatprep.subr.mxu0 0.0
  %5280 = vmatpush2.msra.mxu0 0.0
  %5281 = vmatprep.subr.mxu0 0.0
  %5282 = vmatpush2.msra.mxu0 0.0
  %5283 = vmatprep.subr.mxu0 0.0
  %5284 = vmatpush2.msra.mxu0 0.0
  %5285 = vmatprep.subr.mxu0 0.0
  %5286 = vmatpush2.msra.mxu0 0.0
  %5287 = vmatprep.subr.mxu0 0.0
  %5288 = vmatpush2.msra.mxu0 0.0
  %5289 = vmatprep.subr.mxu0 0.0
  %5290 = vmatpush2.msra.mxu0 0.0
  %5291 = vmatprep.subr.mxu0 0.0
  %5292 = vmatpush2.msra.mxu0 0.0
  %5293 = vmatprep.subr.mxu0 0.0
  %5294 = vmatpush2.msra.mxu0 0.0
  %5295 = vmatprep.subr.mxu0 0.0
  %5296 = vmatpush2.msra.mxu0 0.0
  %5297 = vmatprep.subr.mxu0 0.0
  %5298 = vmatpush2.msra.mxu0 0.0
  %5299 = vmatprep.subr.mxu0 0.0
  %5300 = vmatpush2.msra.mxu0 0.0
  %5301 = vmatprep.subr.mxu0 0.0
  %5302 = vmatpush2.msra.mxu0 0.0
  %5303 = vmatprep.subr.mxu0 0.0
  %5304 = vmatpush2.msra.mxu0 0.0
  %5305 = vmatprep.subr.mxu0 0.0
  %5306 = vmatpush2.msra.mxu0 0.0
  %5307 = vmatprep.subr.mxu0 0.0
  %5308 = vmatpush2.msra.mxu0 0.0
  %5309 = vmatprep.mubr.f32.mxu0 0.0
  %5310 = vmatmul.mubr.f32.gmra.mxu0 %v5237
  %v5311 = vpop.f32.mrf.mxu0
  %v5312 = vadd.f32 0.0, %v5311
  %v5313 = vpop.f32.mrf.mxu0
  %5314 = vmatprep.mubr.f32.mxu0 0.0
  %5315 = vmatmul.mubr.f32.gmra.mxu0 %v5240
  %v5316 = vpop.f32.mrf.mxu0
  %v5317 = vadd.f32 0.0, %v5316
  %v5318 = vpop.f32.mrf.mxu0
  %5319 = vdwg.mxu0
  %v5320 = vadd.f32 %v5234, %v5312
  %v5321 = vadd.f32 %v5235, %v5317
  %v5323 = vsel %vm3945, %v3820, 0
  %v5326 = vsel %vm3945, %v3821, 0
  %v5329 = vsel %vm2656, %v3898, 0
  %5331 = vmatprep.subr.mxu0 0.0
  %5332 = vmatpush1.msra.mxu0 0.0
  %5333 = vmatprep.subr.mxu0 0.0
  %5334 = vmatpush1.msra.mxu0 0.0
  %5335 = vmatprep.subr.mxu0 0.0
  %5336 = vmatpush1.msra.mxu0 0.0
  %5337 = vmatprep.subr.mxu0 0.0
  %5338 = vmatpush1.msra.mxu0 0.0
  %5339 = vmatprep.subr.mxu0 0.0
  %5340 = vmatpush1.msra.mxu0 0.0
  %5341 = vmatprep.subr.mxu0 0.0
  %5342 = vmatpush1.msra.mxu0 0.0
  %5343 = vmatprep.subr.mxu0 0.0
  %5344 = vmatpush1.msra.mxu0 0.0
  %5345 = vmatprep.subr.mxu0 0.0
  %5346 = vmatpush1.msra.mxu0 0.0
  %5347 = vmatprep.subr.mxu0 0.0
  %5348 = vmatpush1.msra.mxu0 0.0
  %5349 = vmatprep.subr.mxu0 0.0
  %5350 = vmatpush1.msra.mxu0 0.0
  %5351 = vmatprep.subr.mxu0 0.0
  %5352 = vmatpush1.msra.mxu0 0.0
  %5353 = vmatprep.subr.mxu0 0.0
  %5354 = vmatpush1.msra.mxu0 0.0
  %5355 = vmatprep.subr.mxu0 0.0
  %5356 = vmatpush1.msra.mxu0 0.0
  %5357 = vmatprep.subr.mxu0 0.0
  %5358 = vmatpush1.msra.mxu0 %v5329
  %5359 = vmatprep.subr.mxu0 0.0
  %5360 = vmatpush1.msra.mxu0 %v3897
  %5361 = vmatprep.subr.mxu0 0.0
  %5362 = vmatpush1.msra.mxu0 %v3896
  %5363 = vmatprep.subr.mxu0 0.0
  %5364 = vmatpush2.msra.mxu0 0.0
  %5365 = vmatprep.subr.mxu0 0.0
  %5366 = vmatpush2.msra.mxu0 0.0
  %5367 = vmatprep.subr.mxu0 0.0
  %5368 = vmatpush2.msra.mxu0 0.0
  %5369 = vmatprep.subr.mxu0 0.0
  %5370 = vmatpush2.msra.mxu0 0.0
  %5371 = vmatprep.subr.mxu0 0.0
  %5372 = vmatpush2.msra.mxu0 0.0
  %5373 = vmatprep.subr.mxu0 0.0
  %5374 = vmatpush2.msra.mxu0 0.0
  %5375 = vmatprep.subr.mxu0 0.0
  %5376 = vmatpush2.msra.mxu0 0.0
  %5377 = vmatprep.subr.mxu0 0.0
  %5378 = vmatpush2.msra.mxu0 0.0
  %5379 = vmatprep.subr.mxu0 0.0
  %5380 = vmatpush2.msra.mxu0 0.0
  %5381 = vmatprep.subr.mxu0 0.0
  %5382 = vmatpush2.msra.mxu0 0.0
  %5383 = vmatprep.subr.mxu0 0.0
  %5384 = vmatpush2.msra.mxu0 0.0
  %5385 = vmatprep.subr.mxu0 0.0
  %5386 = vmatpush2.msra.mxu0 0.0
  %5387 = vmatprep.subr.mxu0 0.0
  %5388 = vmatpush2.msra.mxu0 0.0
  %5389 = vmatprep.subr.mxu0 0.0
  %5390 = vmatpush2.msra.mxu0 0.0
  %5391 = vmatprep.subr.mxu0 0.0
  %5392 = vmatpush2.msra.mxu0 0.0
  %5393 = vmatprep.subr.mxu0 0.0
  %5394 = vmatpush2.msra.mxu0 0.0
  %5395 = vmatprep.mubr.f32.mxu0 0.0
  %5396 = vmatmul.mubr.f32.gmra.mxu0 %v5323
  %v5397 = vpop.f32.mrf.mxu0
  %v5398 = vadd.f32 0.0, %v5397
  %v5399 = vpop.f32.mrf.mxu0
  %5400 = vmatprep.mubr.f32.mxu0 0.0
  %5401 = vmatmul.mubr.f32.gmra.mxu0 %v5326
  %v5402 = vpop.f32.mrf.mxu0
  %v5403 = vadd.f32 0.0, %v5402
  %v5404 = vpop.f32.mrf.mxu0
  %5405 = vdwg.mxu0
  %v5406 = vadd.f32 %v5320, %v5398
  %v5407 = vadd.f32 %v5321, %v5403
  %v5409 = vsel %vm3945, %v3822, 0
  %v5412 = vsel %vm3945, %v3823, 0
  %v5415 = vsel %vm2656, %v3901, 0
  %5417 = vmatprep.subr.mxu0 0.0
  %5418 = vmatpush1.msra.mxu0 0.0
  %5419 = vmatprep.subr.mxu0 0.0
  %5420 = vmatpush1.msra.mxu0 0.0
  %5421 = vmatprep.subr.mxu0 0.0
  %5422 = vmatpush1.msra.mxu0 0.0
  %5423 = vmatprep.subr.mxu0 0.0
  %5424 = vmatpush1.msra.mxu0 0.0
  %5425 = vmatprep.subr.mxu0 0.0
  %5426 = vmatpush1.msra.mxu0 0.0
  %5427 = vmatprep.subr.mxu0 0.0
  %5428 = vmatpush1.msra.mxu0 0.0
  %5429 = vmatprep.subr.mxu0 0.0
  %5430 = vmatpush1.msra.mxu0 0.0
  %5431 = vmatprep.subr.mxu0 0.0
  %5432 = vmatpush1.msra.mxu0 0.0
  %5433 = vmatprep.subr.mxu0 0.0
  %5434 = vmatpush1.msra.mxu0 0.0
  %5435 = vmatprep.subr.mxu0 0.0
  %5436 = vmatpush1.msra.mxu0 0.0
  %5437 = vmatprep.subr.mxu0 0.0
  %5438 = vmatpush1.msra.mxu0 0.0
  %5439 = vmatprep.subr.mxu0 0.0
  %5440 = vmatpush1.msra.mxu0 0.0
  %5441 = vmatprep.subr.mxu0 0.0
  %5442 = vmatpush1.msra.mxu0 0.0
  %5443 = vmatprep.subr.mxu0 0.0
  %5444 = vmatpush1.msra.mxu0 %v5415
  %5445 = vmatprep.subr.mxu0 0.0
  %5446 = vmatpush1.msra.mxu0 %v3900
  %5447 = vmatprep.subr.mxu0 0.0
  %5448 = vmatpush1.msra.mxu0 %v3899
  %5449 = vmatprep.subr.mxu0 0.0
  %5450 = vmatpush2.msra.mxu0 0.0
  %5451 = vmatprep.subr.mxu0 0.0
  %5452 = vmatpush2.msra.mxu0 0.0
  %5453 = vmatprep.subr.mxu0 0.0
  %5454 = vmatpush2.msra.mxu0 0.0
  %5455 = vmatprep.subr.mxu0 0.0
  %5456 = vmatpush2.msra.mxu0 0.0
  %5457 = vmatprep.subr.mxu0 0.0
  %5458 = vmatpush2.msra.mxu0 0.0
  %5459 = vmatprep.subr.mxu0 0.0
  %5460 = vmatpush2.msra.mxu0 0.0
  %5461 = vmatprep.subr.mxu0 0.0
  %5462 = vmatpush2.msra.mxu0 0.0
  %5463 = vmatprep.subr.mxu0 0.0
  %5464 = vmatpush2.msra.mxu0 0.0
  %5465 = vmatprep.subr.mxu0 0.0
  %5466 = vmatpush2.msra.mxu0 0.0
  %5467 = vmatprep.subr.mxu0 0.0
  %5468 = vmatpush2.msra.mxu0 0.0
  %5469 = vmatprep.subr.mxu0 0.0
  %5470 = vmatpush2.msra.mxu0 0.0
  %5471 = vmatprep.subr.mxu0 0.0
  %5472 = vmatpush2.msra.mxu0 0.0
  %5473 = vmatprep.subr.mxu0 0.0
  %5474 = vmatpush2.msra.mxu0 0.0
  %5475 = vmatprep.subr.mxu0 0.0
  %5476 = vmatpush2.msra.mxu0 0.0
  %5477 = vmatprep.subr.mxu0 0.0
  %5478 = vmatpush2.msra.mxu0 0.0
  %5479 = vmatprep.subr.mxu0 0.0
  %5480 = vmatpush2.msra.mxu0 0.0
  %5481 = vmatprep.mubr.f32.mxu0 0.0
  %5482 = vmatmul.mubr.f32.gmra.mxu0 %v5409
  %v5483 = vpop.f32.mrf.mxu0
  %v5484 = vadd.f32 0.0, %v5483
  %v5485 = vpop.f32.mrf.mxu0
  %5486 = vmatprep.mubr.f32.mxu0 0.0
  %5487 = vmatmul.mubr.f32.gmra.mxu0 %v5412
  %v5488 = vpop.f32.mrf.mxu0
  %v5489 = vadd.f32 0.0, %v5488
  %v5490 = vpop.f32.mrf.mxu0
  %5491 = vdwg.mxu0
  %v5492 = vadd.f32 %v5406, %v5484
  %v5493 = vadd.f32 %v5407, %v5489
  %v5495 = vsel %vm3945, %v3824, 0
  %v5498 = vsel %vm3945, %v3825, 0
  %v5501 = vsel %vm2656, %v3904, 0
  %5503 = vmatprep.subr.mxu0 0.0
  %5504 = vmatpush1.msra.mxu0 0.0
  %5505 = vmatprep.subr.mxu0 0.0
  %5506 = vmatpush1.msra.mxu0 0.0
  %5507 = vmatprep.subr.mxu0 0.0
  %5508 = vmatpush1.msra.mxu0 0.0
  %5509 = vmatprep.subr.mxu0 0.0
  %5510 = vmatpush1.msra.mxu0 0.0
  %5511 = vmatprep.subr.mxu0 0.0
  %5512 = vmatpush1.msra.mxu0 0.0
  %5513 = vmatprep.subr.mxu0 0.0
  %5514 = vmatpush1.msra.mxu0 0.0
  %5515 = vmatprep.subr.mxu0 0.0
  %5516 = vmatpush1.msra.mxu0 0.0
  %5517 = vmatprep.subr.mxu0 0.0
  %5518 = vmatpush1.msra.mxu0 0.0
  %5519 = vmatprep.subr.mxu0 0.0
  %5520 = vmatpush1.msra.mxu0 0.0
  %5521 = vmatprep.subr.mxu0 0.0
  %5522 = vmatpush1.msra.mxu0 0.0
  %5523 = vmatprep.subr.mxu0 0.0
  %5524 = vmatpush1.msra.mxu0 0.0
  %5525 = vmatprep.subr.mxu0 0.0
  %5526 = vmatpush1.msra.mxu0 0.0
  %5527 = vmatprep.subr.mxu0 0.0
  %5528 = vmatpush1.msra.mxu0 0.0
  %5529 = vmatprep.subr.mxu0 0.0
  %5530 = vmatpush1.msra.mxu0 %v5501
  %5531 = vmatprep.subr.mxu0 0.0
  %5532 = vmatpush1.msra.mxu0 %v3903
  %5533 = vmatprep.subr.mxu0 0.0
  %5534 = vmatpush1.msra.mxu0 %v3902
  %5535 = vmatprep.subr.mxu0 0.0
  %5536 = vmatpush2.msra.mxu0 0.0
  %5537 = vmatprep.subr.mxu0 0.0
  %5538 = vmatpush2.msra.mxu0 0.0
  %5539 = vmatprep.subr.mxu0 0.0
  %5540 = vmatpush2.msra.mxu0 0.0
  %5541 = vmatprep.subr.mxu0 0.0
  %5542 = vmatpush2.msra.mxu0 0.0
  %5543 = vmatprep.subr.mxu0 0.0
  %5544 = vmatpush2.msra.mxu0 0.0
  %5545 = vmatprep.subr.mxu0 0.0
  %5546 = vmatpush2.msra.mxu0 0.0
  %5547 = vmatprep.subr.mxu0 0.0
  %5548 = vmatpush2.msra.mxu0 0.0
  %5549 = vmatprep.subr.mxu0 0.0
  %5550 = vmatpush2.msra.mxu0 0.0
  %5551 = vmatprep.subr.mxu0 0.0
  %5552 = vmatpush2.msra.mxu0 0.0
  %5553 = vmatprep.subr.mxu0 0.0
  %5554 = vmatpush2.msra.mxu0 0.0
  %5555 = vmatprep.subr.mxu0 0.0
  %5556 = vmatpush2.msra.mxu0 0.0
  %5557 = vmatprep.subr.mxu0 0.0
  %5558 = vmatpush2.msra.mxu0 0.0
  %5559 = vmatprep.subr.mxu0 0.0
  %5560 = vmatpush2.msra.mxu0 0.0
  %5561 = vmatprep.subr.mxu0 0.0
  %5562 = vmatpush2.msra.mxu0 0.0
  %5563 = vmatprep.subr.mxu0 0.0
  %5564 = vmatpush2.msra.mxu0 0.0
  %5565 = vmatprep.subr.mxu0 0.0
  %5566 = vmatpush2.msra.mxu0 0.0
  %5567 = vmatprep.mubr.f32.mxu0 0.0
  %5568 = vmatmul.mubr.f32.gmra.mxu0 %v5495
  %v5569 = vpop.f32.mrf.mxu0
  %v5570 = vadd.f32 0.0, %v5569
  %v5571 = vpop.f32.mrf.mxu0
  %5572 = vmatprep.mubr.f32.mxu0 0.0
  %5573 = vmatmul.mubr.f32.gmra.mxu0 %v5498
  %v5574 = vpop.f32.mrf.mxu0
  %v5575 = vadd.f32 0.0, %v5574
  %v5576 = vpop.f32.mrf.mxu0
  %5577 = vdwg.mxu0
  %v5578 = vadd.f32 %v5492, %v5570
  %v5579 = vadd.f32 %v5493, %v5575
  %v5581 = vsel %vm3945, %v3826, 0
  %v5584 = vsel %vm3945, %v3827, 0
  %v5587 = vsel %vm2656, %v3907, 0
  %5589 = vmatprep.subr.mxu0 0.0
  %5590 = vmatpush1.msra.mxu0 0.0
  %5591 = vmatprep.subr.mxu0 0.0
  %5592 = vmatpush1.msra.mxu0 0.0
  %5593 = vmatprep.subr.mxu0 0.0
  %5594 = vmatpush1.msra.mxu0 0.0
  %5595 = vmatprep.subr.mxu0 0.0
  %5596 = vmatpush1.msra.mxu0 0.0
  %5597 = vmatprep.subr.mxu0 0.0
  %5598 = vmatpush1.msra.mxu0 0.0
  %5599 = vmatprep.subr.mxu0 0.0
  %5600 = vmatpush1.msra.mxu0 0.0
  %5601 = vmatprep.subr.mxu0 0.0
  %5602 = vmatpush1.msra.mxu0 0.0
  %5603 = vmatprep.subr.mxu0 0.0
  %5604 = vmatpush1.msra.mxu0 0.0
  %5605 = vmatprep.subr.mxu0 0.0
  %5606 = vmatpush1.msra.mxu0 0.0
  %5607 = vmatprep.subr.mxu0 0.0
  %5608 = vmatpush1.msra.mxu0 0.0
  %5609 = vmatprep.subr.mxu0 0.0
  %5610 = vmatpush1.msra.mxu0 0.0
  %5611 = vmatprep.subr.mxu0 0.0
  %5612 = vmatpush1.msra.mxu0 0.0
  %5613 = vmatprep.subr.mxu0 0.0
  %5614 = vmatpush1.msra.mxu0 0.0
  %5615 = vmatprep.subr.mxu0 0.0
  %5616 = vmatpush1.msra.mxu0 %v5587
  %5617 = vmatprep.subr.mxu0 0.0
  %5618 = vmatpush1.msra.mxu0 %v3906
  %5619 = vmatprep.subr.mxu0 0.0
  %5620 = vmatpush1.msra.mxu0 %v3905
  %5621 = vmatprep.subr.mxu0 0.0
  %5622 = vmatpush2.msra.mxu0 0.0
  %5623 = vmatprep.subr.mxu0 0.0
  %5624 = vmatpush2.msra.mxu0 0.0
  %5625 = vmatprep.subr.mxu0 0.0
  %5626 = vmatpush2.msra.mxu0 0.0
  %5627 = vmatprep.subr.mxu0 0.0
  %5628 = vmatpush2.msra.mxu0 0.0
  %5629 = vmatprep.subr.mxu0 0.0
  %5630 = vmatpush2.msra.mxu0 0.0
  %5631 = vmatprep.subr.mxu0 0.0
  %5632 = vmatpush2.msra.mxu0 0.0
  %5633 = vmatprep.subr.mxu0 0.0
  %5634 = vmatpush2.msra.mxu0 0.0
  %5635 = vmatprep.subr.mxu0 0.0
  %5636 = vmatpush2.msra.mxu0 0.0
  %5637 = vmatprep.subr.mxu0 0.0
  %5638 = vmatpush2.msra.mxu0 0.0
  %5639 = vmatprep.subr.mxu0 0.0
  %5640 = vmatpush2.msra.mxu0 0.0
  %5641 = vmatprep.subr.mxu0 0.0
  %5642 = vmatpush2.msra.mxu0 0.0
  %5643 = vmatprep.subr.mxu0 0.0
  %5644 = vmatpush2.msra.mxu0 0.0
  %5645 = vmatprep.subr.mxu0 0.0
  %5646 = vmatpush2.msra.mxu0 0.0
  %5647 = vmatprep.subr.mxu0 0.0
  %5648 = vmatpush2.msra.mxu0 0.0
  %5649 = vmatprep.subr.mxu0 0.0
  %5650 = vmatpush2.msra.mxu0 0.0
  %5651 = vmatprep.subr.mxu0 0.0
  %5652 = vmatpush2.msra.mxu0 0.0
  %5653 = vmatprep.mubr.f32.mxu0 0.0
  %5654 = vmatmul.mubr.f32.gmra.mxu0 %v5581
  %v5655 = vpop.f32.mrf.mxu0
  %v5656 = vadd.f32 0.0, %v5655
  %v5657 = vpop.f32.mrf.mxu0
  %5658 = vmatprep.mubr.f32.mxu0 0.0
  %5659 = vmatmul.mubr.f32.gmra.mxu0 %v5584
  %v5660 = vpop.f32.mrf.mxu0
  %v5661 = vadd.f32 0.0, %v5660
  %v5662 = vpop.f32.mrf.mxu0
  %5663 = vdwg.mxu0
  %v5664 = vadd.f32 %v5578, %v5656
  %v5665 = vadd.f32 %v5579, %v5661
  %v5667 = vsel %vm3945, %v3828, 0
  %v5670 = vsel %vm3945, %v3829, 0
  %v5673 = vsel %vm2656, %v3910, 0
  %5675 = vmatprep.subr.mxu0 0.0
  %5676 = vmatpush1.msra.mxu0 0.0
  %5677 = vmatprep.subr.mxu0 0.0
  %5678 = vmatpush1.msra.mxu0 0.0
  %5679 = vmatprep.subr.mxu0 0.0
  %5680 = vmatpush1.msra.mxu0 0.0
  %5681 = vmatprep.subr.mxu0 0.0
  %5682 = vmatpush1.msra.mxu0 0.0
  %5683 = vmatprep.subr.mxu0 0.0
  %5684 = vmatpush1.msra.mxu0 0.0
  %5685 = vmatprep.subr.mxu0 0.0
  %5686 = vmatpush1.msra.mxu0 0.0
  %5687 = vmatprep.subr.mxu0 0.0
  %5688 = vmatpush1.msra.mxu0 0.0
  %5689 = vmatprep.subr.mxu0 0.0
  %5690 = vmatpush1.msra.mxu0 0.0
  %5691 = vmatprep.subr.mxu0 0.0
  %5692 = vmatpush1.msra.mxu0 0.0
  %5693 = vmatprep.subr.mxu0 0.0
  %5694 = vmatpush1.msra.mxu0 0.0
  %5695 = vmatprep.subr.mxu0 0.0
  %5696 = vmatpush1.msra.mxu0 0.0
  %5697 = vmatprep.subr.mxu0 0.0
  %5698 = vmatpush1.msra.mxu0 0.0
  %5699 = vmatprep.subr.mxu0 0.0
  %5700 = vmatpush1.msra.mxu0 0.0
  %5701 = vmatprep.subr.mxu0 0.0
  %5702 = vmatpush1.msra.mxu0 %v5673
  %5703 = vmatprep.subr.mxu0 0.0
  %5704 = vmatpush1.msra.mxu0 %v3909
  %5705 = vmatprep.subr.mxu0 0.0
  %5706 = vmatpush1.msra.mxu0 %v3908
  %5707 = vmatprep.subr.mxu0 0.0
  %5708 = vmatpush2.msra.mxu0 0.0
  %5709 = vmatprep.subr.mxu0 0.0
  %5710 = vmatpush2.msra.mxu0 0.0
  %5711 = vmatprep.subr.mxu0 0.0
  %5712 = vmatpush2.msra.mxu0 0.0
  %5713 = vmatprep.subr.mxu0 0.0
  %5714 = vmatpush2.msra.mxu0 0.0
  %5715 = vmatprep.subr.mxu0 0.0
  %5716 = vmatpush2.msra.mxu0 0.0
  %5717 = vmatprep.subr.mxu0 0.0
  %5718 = vmatpush2.msra.mxu0 0.0
  %5719 = vmatprep.subr.mxu0 0.0
  %5720 = vmatpush2.msra.mxu0 0.0
  %5721 = vmatprep.subr.mxu0 0.0
  %5722 = vmatpush2.msra.mxu0 0.0
  %5723 = vmatprep.subr.mxu0 0.0
  %5724 = vmatpush2.msra.mxu0 0.0
  %5725 = vmatprep.subr.mxu0 0.0
  %5726 = vmatpush2.msra.mxu0 0.0
  %5727 = vmatprep.subr.mxu0 0.0
  %5728 = vmatpush2.msra.mxu0 0.0
  %5729 = vmatprep.subr.mxu0 0.0
  %5730 = vmatpush2.msra.mxu0 0.0
  %5731 = vmatprep.subr.mxu0 0.0
  %5732 = vmatpush2.msra.mxu0 0.0
  %5733 = vmatprep.subr.mxu0 0.0
  %5734 = vmatpush2.msra.mxu0 0.0
  %5735 = vmatprep.subr.mxu0 0.0
  %5736 = vmatpush2.msra.mxu0 0.0
  %5737 = vmatprep.subr.mxu0 0.0
  %5738 = vmatpush2.msra.mxu0 0.0
  %5739 = vmatprep.mubr.f32.mxu0 0.0
  %5740 = vmatmul.mubr.f32.gmra.mxu0 %v5667
  %v5741 = vpop.f32.mrf.mxu0
  %v5742 = vadd.f32 0.0, %v5741
  %v5743 = vpop.f32.mrf.mxu0
  %5744 = vmatprep.mubr.f32.mxu0 0.0
  %5745 = vmatmul.mubr.f32.gmra.mxu0 %v5670
  %v5746 = vpop.f32.mrf.mxu0
  %v5747 = vadd.f32 0.0, %v5746
  %v5748 = vpop.f32.mrf.mxu0
  %5749 = vdwg.mxu0
  %v5750 = vadd.f32 %v5664, %v5742
  %v5751 = vadd.f32 %v5665, %v5747
  %v5753 = vsel %vm3945, %v3830, 0
  %v5756 = vsel %vm3945, %v3831, 0
  %v5759 = vsel %vm2656, %v3913, 0
  %5761 = vmatprep.subr.mxu0 0.0
  %5762 = vmatpush1.msra.mxu0 0.0
  %5763 = vmatprep.subr.mxu0 0.0
  %5764 = vmatpush1.msra.mxu0 0.0
  %5765 = vmatprep.subr.mxu0 0.0
  %5766 = vmatpush1.msra.mxu0 0.0
  %5767 = vmatprep.subr.mxu0 0.0
  %5768 = vmatpush1.msra.mxu0 0.0
  %5769 = vmatprep.subr.mxu0 0.0
  %5770 = vmatpush1.msra.mxu0 0.0
  %5771 = vmatprep.subr.mxu0 0.0
  %5772 = vmatpush1.msra.mxu0 0.0
  %5773 = vmatprep.subr.mxu0 0.0
  %5774 = vmatpush1.msra.mxu0 0.0
  %5775 = vmatprep.subr.mxu0 0.0
  %5776 = vmatpush1.msra.mxu0 0.0
  %5777 = vmatprep.subr.mxu0 0.0
  %5778 = vmatpush1.msra.mxu0 0.0
  %5779 = vmatprep.subr.mxu0 0.0
  %5780 = vmatpush1.msra.mxu0 0.0
  %5781 = vmatprep.subr.mxu0 0.0
  %5782 = vmatpush1.msra.mxu0 0.0
  %5783 = vmatprep.subr.mxu0 0.0
  %5784 = vmatpush1.msra.mxu0 0.0
  %5785 = vmatprep.subr.mxu0 0.0
  %5786 = vmatpush1.msra.mxu0 0.0
  %5787 = vmatprep.subr.mxu0 0.0
  %5788 = vmatpush1.msra.mxu0 %v5759
  %5789 = vmatprep.subr.mxu0 0.0
  %5790 = vmatpush1.msra.mxu0 %v3912
  %5791 = vmatprep.subr.mxu0 0.0
  %5792 = vmatpush1.msra.mxu0 %v3911
  %5793 = vmatprep.subr.mxu0 0.0
  %5794 = vmatpush2.msra.mxu0 0.0
  %5795 = vmatprep.subr.mxu0 0.0
  %5796 = vmatpush2.msra.mxu0 0.0
  %5797 = vmatprep.subr.mxu0 0.0
  %5798 = vmatpush2.msra.mxu0 0.0
  %5799 = vmatprep.subr.mxu0 0.0
  %5800 = vmatpush2.msra.mxu0 0.0
  %5801 = vmatprep.subr.mxu0 0.0
  %5802 = vmatpush2.msra.mxu0 0.0
  %5803 = vmatprep.subr.mxu0 0.0
  %5804 = vmatpush2.msra.mxu0 0.0
  %5805 = vmatprep.subr.mxu0 0.0
  %5806 = vmatpush2.msra.mxu0 0.0
  %5807 = vmatprep.subr.mxu0 0.0
  %5808 = vmatpush2.msra.mxu0 0.0
  %5809 = vmatprep.subr.mxu0 0.0
  %5810 = vmatpush2.msra.mxu0 0.0
  %5811 = vmatprep.subr.mxu0 0.0
  %5812 = vmatpush2.msra.mxu0 0.0
  %5813 = vmatprep.subr.mxu0 0.0
  %5814 = vmatpush2.msra.mxu0 0.0
  %5815 = vmatprep.subr.mxu0 0.0
  %5816 = vmatpush2.msra.mxu0 0.0
  %5817 = vmatprep.subr.mxu0 0.0
  %5818 = vmatpush2.msra.mxu0 0.0
  %5819 = vmatprep.subr.mxu0 0.0
  %5820 = vmatpush2.msra.mxu0 0.0
  %5821 = vmatprep.subr.mxu0 0.0
  %5822 = vmatpush2.msra.mxu0 0.0
  %5823 = vmatprep.subr.mxu0 0.0
  %5824 = vmatpush2.msra.mxu0 0.0
  %5825 = vmatprep.mubr.f32.mxu0 0.0
  %5826 = vmatmul.mubr.f32.gmra.mxu0 %v5753
  %v5827 = vpop.f32.mrf.mxu0
  %v5828 = vadd.f32 0.0, %v5827
  %v5829 = vpop.f32.mrf.mxu0
  %5830 = vmatprep.mubr.f32.mxu0 0.0
  %5831 = vmatmul.mubr.f32.gmra.mxu0 %v5756
  %v5832 = vpop.f32.mrf.mxu0
  %v5833 = vadd.f32 0.0, %v5832
  %v5834 = vpop.f32.mrf.mxu0
  %5835 = vdwg.mxu0
  %v5836 = vadd.f32 %v5750, %v5828
  %v5837 = vadd.f32 %v5751, %v5833
  %v5839 = vsel %vm3945, %v3832, 0
  %v5842 = vsel %vm3945, %v3833, 0
  %v5845 = vsel %vm2656, %v3916, 0
  %5847 = vmatprep.subr.mxu0 0.0
  %5848 = vmatpush1.msra.mxu0 0.0
  %5849 = vmatprep.subr.mxu0 0.0
  %5850 = vmatpush1.msra.mxu0 0.0
  %5851 = vmatprep.subr.mxu0 0.0
  %5852 = vmatpush1.msra.mxu0 0.0
  %5853 = vmatprep.subr.mxu0 0.0
  %5854 = vmatpush1.msra.mxu0 0.0
  %5855 = vmatprep.subr.mxu0 0.0
  %5856 = vmatpush1.msra.mxu0 0.0
  %5857 = vmatprep.subr.mxu0 0.0
  %5858 = vmatpush1.msra.mxu0 0.0
  %5859 = vmatprep.subr.mxu0 0.0
  %5860 = vmatpush1.msra.mxu0 0.0
  %5861 = vmatprep.subr.mxu0 0.0
  %5862 = vmatpush1.msra.mxu0 0.0
  %5863 = vmatprep.subr.mxu0 0.0
  %5864 = vmatpush1.msra.mxu0 0.0
  %5865 = vmatprep.subr.mxu0 0.0
  %5866 = vmatpush1.msra.mxu0 0.0
  %5867 = vmatprep.subr.mxu0 0.0
  %5868 = vmatpush1.msra.mxu0 0.0
  %5869 = vmatprep.subr.mxu0 0.0
  %5870 = vmatpush1.msra.mxu0 0.0
  %5871 = vmatprep.subr.mxu0 0.0
  %5872 = vmatpush1.msra.mxu0 0.0
  %5873 = vmatprep.subr.mxu0 0.0
  %5874 = vmatpush1.msra.mxu0 %v5845
  %5875 = vmatprep.subr.mxu0 0.0
  %5876 = vmatpush1.msra.mxu0 %v3915
  %5877 = vmatprep.subr.mxu0 0.0
  %5878 = vmatpush1.msra.mxu0 %v3914
  %5879 = vmatprep.subr.mxu0 0.0
  %5880 = vmatpush2.msra.mxu0 0.0
  %5881 = vmatprep.subr.mxu0 0.0
  %5882 = vmatpush2.msra.mxu0 0.0
  %5883 = vmatprep.subr.mxu0 0.0
  %5884 = vmatpush2.msra.mxu0 0.0
  %5885 = vmatprep.subr.mxu0 0.0
  %5886 = vmatpush2.msra.mxu0 0.0
  %5887 = vmatprep.subr.mxu0 0.0
  %5888 = vmatpush2.msra.mxu0 0.0
  %5889 = vmatprep.subr.mxu0 0.0
  %5890 = vmatpush2.msra.mxu0 0.0
  %5891 = vmatprep.subr.mxu0 0.0
  %5892 = vmatpush2.msra.mxu0 0.0
  %5893 = vmatprep.subr.mxu0 0.0
  %5894 = vmatpush2.msra.mxu0 0.0
  %5895 = vmatprep.subr.mxu0 0.0
  %5896 = vmatpush2.msra.mxu0 0.0
  %5897 = vmatprep.subr.mxu0 0.0
  %5898 = vmatpush2.msra.mxu0 0.0
  %5899 = vmatprep.subr.mxu0 0.0
  %5900 = vmatpush2.msra.mxu0 0.0
  %5901 = vmatprep.subr.mxu0 0.0
  %5902 = vmatpush2.msra.mxu0 0.0
  %5903 = vmatprep.subr.mxu0 0.0
  %5904 = vmatpush2.msra.mxu0 0.0
  %5905 = vmatprep.subr.mxu0 0.0
  %5906 = vmatpush2.msra.mxu0 0.0
  %5907 = vmatprep.subr.mxu0 0.0
  %5908 = vmatpush2.msra.mxu0 0.0
  %5909 = vmatprep.subr.mxu0 0.0
  %5910 = vmatpush2.msra.mxu0 0.0
  %5911 = vmatprep.mubr.f32.mxu0 0.0
  %5912 = vmatmul.mubr.f32.gmra.mxu0 %v5839
  %v5913 = vpop.f32.mrf.mxu0
  %v5914 = vadd.f32 0.0, %v5913
  %v5915 = vpop.f32.mrf.mxu0
  %5916 = vmatprep.mubr.f32.mxu0 0.0
  %5917 = vmatmul.mubr.f32.gmra.mxu0 %v5842
  %v5918 = vpop.f32.mrf.mxu0
  %v5919 = vadd.f32 0.0, %v5918
  %v5920 = vpop.f32.mrf.mxu0
  %5921 = vdwg.mxu0
  %v5922 = vadd.f32 %v5836, %v5914
  %v5923 = vadd.f32 %v5837, %v5919
  %v5925 = vsel %vm3945, %v3834, 0
  %v5928 = vsel %vm3945, %v3835, 0
  %v5931 = vsel %vm2656, %v3919, 0
  %5933 = vmatprep.subr.mxu0 0.0
  %5934 = vmatpush1.msra.mxu0 0.0
  %5935 = vmatprep.subr.mxu0 0.0
  %5936 = vmatpush1.msra.mxu0 0.0
  %5937 = vmatprep.subr.mxu0 0.0
  %5938 = vmatpush1.msra.mxu0 0.0
  %5939 = vmatprep.subr.mxu0 0.0
  %5940 = vmatpush1.msra.mxu0 0.0
  %5941 = vmatprep.subr.mxu0 0.0
  %5942 = vmatpush1.msra.mxu0 0.0
  %5943 = vmatprep.subr.mxu0 0.0
  %5944 = vmatpush1.msra.mxu0 0.0
  %5945 = vmatprep.subr.mxu0 0.0
  %5946 = vmatpush1.msra.mxu0 0.0
  %5947 = vmatprep.subr.mxu0 0.0
  %5948 = vmatpush1.msra.mxu0 0.0
  %5949 = vmatprep.subr.mxu0 0.0
  %5950 = vmatpush1.msra.mxu0 0.0
  %5951 = vmatprep.subr.mxu0 0.0
  %5952 = vmatpush1.msra.mxu0 0.0
  %5953 = vmatprep.subr.mxu0 0.0
  %5954 = vmatpush1.msra.mxu0 0.0
  %5955 = vmatprep.subr.mxu0 0.0
  %5956 = vmatpush1.msra.mxu0 0.0
  %5957 = vmatprep.subr.mxu0 0.0
  %5958 = vmatpush1.msra.mxu0 0.0
  %5959 = vmatprep.subr.mxu0 0.0
  %5960 = vmatpush1.msra.mxu0 %v5931
  %5961 = vmatprep.subr.mxu0 0.0
  %5962 = vmatpush1.msra.mxu0 %v3918
  %5963 = vmatprep.subr.mxu0 0.0
  %5964 = vmatpush1.msra.mxu0 %v3917
  %5965 = vmatprep.subr.mxu0 0.0
  %5966 = vmatpush2.msra.mxu0 0.0
  %5967 = vmatprep.subr.mxu0 0.0
  %5968 = vmatpush2.msra.mxu0 0.0
  %5969 = vmatprep.subr.mxu0 0.0
  %5970 = vmatpush2.msra.mxu0 0.0
  %5971 = vmatprep.subr.mxu0 0.0
  %5972 = vmatpush2.msra.mxu0 0.0
  %5973 = vmatprep.subr.mxu0 0.0
  %5974 = vmatpush2.msra.mxu0 0.0
  %5975 = vmatprep.subr.mxu0 0.0
  %5976 = vmatpush2.msra.mxu0 0.0
  %5977 = vmatprep.subr.mxu0 0.0
  %5978 = vmatpush2.msra.mxu0 0.0
  %5979 = vmatprep.subr.mxu0 0.0
  %5980 = vmatpush2.msra.mxu0 0.0
  %5981 = vmatprep.subr.mxu0 0.0
  %5982 = vmatpush2.msra.mxu0 0.0
  %5983 = vmatprep.subr.mxu0 0.0
  %5984 = vmatpush2.msra.mxu0 0.0
  %5985 = vmatprep.subr.mxu0 0.0
  %5986 = vmatpush2.msra.mxu0 0.0
  %5987 = vmatprep.subr.mxu0 0.0
  %5988 = vmatpush2.msra.mxu0 0.0
  %5989 = vmatprep.subr.mxu0 0.0
  %5990 = vmatpush2.msra.mxu0 0.0
  %5991 = vmatprep.subr.mxu0 0.0
  %5992 = vmatpush2.msra.mxu0 0.0
  %5993 = vmatprep.subr.mxu0 0.0
  %5994 = vmatpush2.msra.mxu0 0.0
  %5995 = vmatprep.subr.mxu0 0.0
  %5996 = vmatpush2.msra.mxu0 0.0
  %5997 = vmatprep.mubr.f32.mxu0 0.0
  %5998 = vmatmul.mubr.f32.gmra.mxu0 %v5925
  %v5999 = vpop.f32.mrf.mxu0
  %v6000 = vadd.f32 0.0, %v5999
  %v6001 = vpop.f32.mrf.mxu0
  %6002 = vmatprep.mubr.f32.mxu0 0.0
  %6003 = vmatmul.mubr.f32.gmra.mxu0 %v5928
  %v6004 = vpop.f32.mrf.mxu0
  %v6005 = vadd.f32 0.0, %v6004
  %v6006 = vpop.f32.mrf.mxu0
  %6007 = vdwg.mxu0
  %v6008 = vadd.f32 %v5922, %v6000
  %v6009 = vadd.f32 %v5923, %v6005
  %v6011 = vsel %vm3945, %v3836, 0
  %v6014 = vsel %vm3945, %v3837, 0
  %v6017 = vsel %vm2656, %v3922, 0
  %6019 = vmatprep.subr.mxu0 0.0
  %6020 = vmatpush1.msra.mxu0 0.0
  %6021 = vmatprep.subr.mxu0 0.0
  %6022 = vmatpush1.msra.mxu0 0.0
  %6023 = vmatprep.subr.mxu0 0.0
  %6024 = vmatpush1.msra.mxu0 0.0
  %6025 = vmatprep.subr.mxu0 0.0
  %6026 = vmatpush1.msra.mxu0 0.0
  %6027 = vmatprep.subr.mxu0 0.0
  %6028 = vmatpush1.msra.mxu0 0.0
  %6029 = vmatprep.subr.mxu0 0.0
  %6030 = vmatpush1.msra.mxu0 0.0
  %6031 = vmatprep.subr.mxu0 0.0
  %6032 = vmatpush1.msra.mxu0 0.0
  %6033 = vmatprep.subr.mxu0 0.0
  %6034 = vmatpush1.msra.mxu0 0.0
  %6035 = vmatprep.subr.mxu0 0.0
  %6036 = vmatpush1.msra.mxu0 0.0
  %6037 = vmatprep.subr.mxu0 0.0
  %6038 = vmatpush1.msra.mxu0 0.0
  %6039 = vmatprep.subr.mxu0 0.0
  %6040 = vmatpush1.msra.mxu0 0.0
  %6041 = vmatprep.subr.mxu0 0.0
  %6042 = vmatpush1.msra.mxu0 0.0
  %6043 = vmatprep.subr.mxu0 0.0
  %6044 = vmatpush1.msra.mxu0 0.0
  %6045 = vmatprep.subr.mxu0 0.0
  %6046 = vmatpush1.msra.mxu0 %v6017
  %6047 = vmatprep.subr.mxu0 0.0
  %6048 = vmatpush1.msra.mxu0 %v3921
  %6049 = vmatprep.subr.mxu0 0.0
  %6050 = vmatpush1.msra.mxu0 %v3920
  %6051 = vmatprep.subr.mxu0 0.0
  %6052 = vmatpush2.msra.mxu0 0.0
  %6053 = vmatprep.subr.mxu0 0.0
  %6054 = vmatpush2.msra.mxu0 0.0
  %6055 = vmatprep.subr.mxu0 0.0
  %6056 = vmatpush2.msra.mxu0 0.0
  %6057 = vmatprep.subr.mxu0 0.0
  %6058 = vmatpush2.msra.mxu0 0.0
  %6059 = vmatprep.subr.mxu0 0.0
  %6060 = vmatpush2.msra.mxu0 0.0
  %6061 = vmatprep.subr.mxu0 0.0
  %6062 = vmatpush2.msra.mxu0 0.0
  %6063 = vmatprep.subr.mxu0 0.0
  %6064 = vmatpush2.msra.mxu0 0.0
  %6065 = vmatprep.subr.mxu0 0.0
  %6066 = vmatpush2.msra.mxu0 0.0
  %6067 = vmatprep.subr.mxu0 0.0
  %6068 = vmatpush2.msra.mxu0 0.0
  %6069 = vmatprep.subr.mxu0 0.0
  %6070 = vmatpush2.msra.mxu0 0.0
  %6071 = vmatprep.subr.mxu0 0.0
  %6072 = vmatpush2.msra.mxu0 0.0
  %6073 = vmatprep.subr.mxu0 0.0
  %6074 = vmatpush2.msra.mxu0 0.0
  %6075 = vmatprep.subr.mxu0 0.0
  %6076 = vmatpush2.msra.mxu0 0.0
  %6077 = vmatprep.subr.mxu0 0.0
  %6078 = vmatpush2.msra.mxu0 0.0
  %6079 = vmatprep.subr.mxu0 0.0
  %6080 = vmatpush2.msra.mxu0 0.0
  %6081 = vmatprep.subr.mxu0 0.0
  %6082 = vmatpush2.msra.mxu0 0.0
  %6083 = vmatprep.mubr.f32.mxu0 0.0
  %6084 = vmatmul.mubr.f32.gmra.mxu0 %v6011
  %v6085 = vpop.f32.mrf.mxu0
  %v6086 = vadd.f32 0.0, %v6085
  %v6087 = vpop.f32.mrf.mxu0
  %6088 = vmatprep.mubr.f32.mxu0 0.0
  %6089 = vmatmul.mubr.f32.gmra.mxu0 %v6014
  %v6090 = vpop.f32.mrf.mxu0
  %v6091 = vadd.f32 0.0, %v6090
  %v6092 = vpop.f32.mrf.mxu0
  %6093 = vdwg.mxu0
  %v6094 = vadd.f32 %v6008, %v6086
  %v6095 = vadd.f32 %v6009, %v6091
  %v6097 = vsel %vm3945, %v3838, 0
  %v6100 = vsel %vm3945, %v3839, 0
  %v6103 = vsel %vm2656, %v3925, 0
  %6105 = vmatprep.subr.mxu0 0.0
  %6106 = vmatpush1.msra.mxu0 0.0
  %6107 = vmatprep.subr.mxu0 0.0
  %6108 = vmatpush1.msra.mxu0 0.0
  %6109 = vmatprep.subr.mxu0 0.0
  %6110 = vmatpush1.msra.mxu0 0.0
  %6111 = vmatprep.subr.mxu0 0.0
  %6112 = vmatpush1.msra.mxu0 0.0
  %6113 = vmatprep.subr.mxu0 0.0
  %6114 = vmatpush1.msra.mxu0 0.0
  %6115 = vmatprep.subr.mxu0 0.0
  %6116 = vmatpush1.msra.mxu0 0.0
  %6117 = vmatprep.subr.mxu0 0.0
  %6118 = vmatpush1.msra.mxu0 0.0
  %6119 = vmatprep.subr.mxu0 0.0
  %6120 = vmatpush1.msra.mxu0 0.0
  %6121 = vmatprep.subr.mxu0 0.0
  %6122 = vmatpush1.msra.mxu0 0.0
  %6123 = vmatprep.subr.mxu0 0.0
  %6124 = vmatpush1.msra.mxu0 0.0
  %6125 = vmatprep.subr.mxu0 0.0
  %6126 = vmatpush1.msra.mxu0 0.0
  %6127 = vmatprep.subr.mxu0 0.0
  %6128 = vmatpush1.msra.mxu0 0.0
  %6129 = vmatprep.subr.mxu0 0.0
  %6130 = vmatpush1.msra.mxu0 0.0
  %6131 = vmatprep.subr.mxu0 0.0
  %6132 = vmatpush1.msra.mxu0 %v6103
  %6133 = vmatprep.subr.mxu0 0.0
  %6134 = vmatpush1.msra.mxu0 %v3924
  %6135 = vmatprep.subr.mxu0 0.0
  %6136 = vmatpush1.msra.mxu0 %v3923
  %6137 = vmatprep.subr.mxu0 0.0
  %6138 = vmatpush2.msra.mxu0 0.0
  %6139 = vmatprep.subr.mxu0 0.0
  %6140 = vmatpush2.msra.mxu0 0.0
  %6141 = vmatprep.subr.mxu0 0.0
  %6142 = vmatpush2.msra.mxu0 0.0
  %6143 = vmatprep.subr.mxu0 0.0
  %6144 = vmatpush2.msra.mxu0 0.0
  %6145 = vmatprep.subr.mxu0 0.0
  %6146 = vmatpush2.msra.mxu0 0.0
  %6147 = vmatprep.subr.mxu0 0.0
  %6148 = vmatpush2.msra.mxu0 0.0
  %6149 = vmatprep.subr.mxu0 0.0
  %6150 = vmatpush2.msra.mxu0 0.0
  %6151 = vmatprep.subr.mxu0 0.0
  %6152 = vmatpush2.msra.mxu0 0.0
  %6153 = vmatprep.subr.mxu0 0.0
  %6154 = vmatpush2.msra.mxu0 0.0
  %6155 = vmatprep.subr.mxu0 0.0
  %6156 = vmatpush2.msra.mxu0 0.0
  %6157 = vmatprep.subr.mxu0 0.0
  %6158 = vmatpush2.msra.mxu0 0.0
  %6159 = vmatprep.subr.mxu0 0.0
  %6160 = vmatpush2.msra.mxu0 0.0
  %6161 = vmatprep.subr.mxu0 0.0
  %6162 = vmatpush2.msra.mxu0 0.0
  %6163 = vmatprep.subr.mxu0 0.0
  %6164 = vmatpush2.msra.mxu0 0.0
  %6165 = vmatprep.subr.mxu0 0.0
  %6166 = vmatpush2.msra.mxu0 0.0
  %6167 = vmatprep.subr.mxu0 0.0
  %6168 = vmatpush2.msra.mxu0 0.0
  %6169 = vmatprep.mubr.f32.mxu0 0.0
  %6170 = vmatmul.mubr.f32.gmra.mxu0 %v6097
  %v6171 = vpop.f32.mrf.mxu0
  %v6172 = vadd.f32 0.0, %v6171
  %v6173 = vpop.f32.mrf.mxu0
  %6174 = vmatprep.mubr.f32.mxu0 0.0
  %6175 = vmatmul.mubr.f32.gmra.mxu0 %v6100
  %v6176 = vpop.f32.mrf.mxu0
  %v6177 = vadd.f32 0.0, %v6176
  %v6178 = vpop.f32.mrf.mxu0
  %6179 = vdwg.mxu0
  %v6180 = vadd.f32 %v6094, %v6172
  %v6181 = vadd.f32 %v6095, %v6177
  %v6183 = vsel %vm3945, %v3840, 0
  %v6186 = vsel %vm3945, %v3841, 0
  %v6189 = vsel %vm2656, %v3928, 0
  %6191 = vmatprep.subr.mxu0 0.0
  %6192 = vmatpush1.msra.mxu0 0.0
  %6193 = vmatprep.subr.mxu0 0.0
  %6194 = vmatpush1.msra.mxu0 0.0
  %6195 = vmatprep.subr.mxu0 0.0
  %6196 = vmatpush1.msra.mxu0 0.0
  %6197 = vmatprep.subr.mxu0 0.0
  %6198 = vmatpush1.msra.mxu0 0.0
  %6199 = vmatprep.subr.mxu0 0.0
  %6200 = vmatpush1.msra.mxu0 0.0
  %6201 = vmatprep.subr.mxu0 0.0
  %6202 = vmatpush1.msra.mxu0 0.0
  %6203 = vmatprep.subr.mxu0 0.0
  %6204 = vmatpush1.msra.mxu0 0.0
  %6205 = vmatprep.subr.mxu0 0.0
  %6206 = vmatpush1.msra.mxu0 0.0
  %6207 = vmatprep.subr.mxu0 0.0
  %6208 = vmatpush1.msra.mxu0 0.0
  %6209 = vmatprep.subr.mxu0 0.0
  %6210 = vmatpush1.msra.mxu0 0.0
  %6211 = vmatprep.subr.mxu0 0.0
  %6212 = vmatpush1.msra.mxu0 0.0
  %6213 = vmatprep.subr.mxu0 0.0
  %6214 = vmatpush1.msra.mxu0 0.0
  %6215 = vmatprep.subr.mxu0 0.0
  %6216 = vmatpush1.msra.mxu0 0.0
  %6217 = vmatprep.subr.mxu0 0.0
  %6218 = vmatpush1.msra.mxu0 %v6189
  %6219 = vmatprep.subr.mxu0 0.0
  %6220 = vmatpush1.msra.mxu0 %v3927
  %6221 = vmatprep.subr.mxu0 0.0
  %6222 = vmatpush1.msra.mxu0 %v3926
  %6223 = vmatprep.subr.mxu0 0.0
  %6224 = vmatpush2.msra.mxu0 0.0
  %6225 = vmatprep.subr.mxu0 0.0
  %6226 = vmatpush2.msra.mxu0 0.0
  %6227 = vmatprep.subr.mxu0 0.0
  %6228 = vmatpush2.msra.mxu0 0.0
  %6229 = vmatprep.subr.mxu0 0.0
  %6230 = vmatpush2.msra.mxu0 0.0
  %6231 = vmatprep.subr.mxu0 0.0
  %6232 = vmatpush2.msra.mxu0 0.0
  %6233 = vmatprep.subr.mxu0 0.0
  %6234 = vmatpush2.msra.mxu0 0.0
  %6235 = vmatprep.subr.mxu0 0.0
  %6236 = vmatpush2.msra.mxu0 0.0
  %6237 = vmatprep.subr.mxu0 0.0
  %6238 = vmatpush2.msra.mxu0 0.0
  %6239 = vmatprep.subr.mxu0 0.0
  %6240 = vmatpush2.msra.mxu0 0.0
  %6241 = vmatprep.subr.mxu0 0.0
  %6242 = vmatpush2.msra.mxu0 0.0
  %6243 = vmatprep.subr.mxu0 0.0
  %6244 = vmatpush2.msra.mxu0 0.0
  %6245 = vmatprep.subr.mxu0 0.0
  %6246 = vmatpush2.msra.mxu0 0.0
  %6247 = vmatprep.subr.mxu0 0.0
  %6248 = vmatpush2.msra.mxu0 0.0
  %6249 = vmatprep.subr.mxu0 0.0
  %6250 = vmatpush2.msra.mxu0 0.0
  %6251 = vmatprep.subr.mxu0 0.0
  %6252 = vmatpush2.msra.mxu0 0.0
  %6253 = vmatprep.subr.mxu0 0.0
  %6254 = vmatpush2.msra.mxu0 0.0
  %6255 = vmatprep.mubr.f32.mxu0 0.0
  %6256 = vmatmul.mubr.f32.gmra.mxu0 %v6183
  %v6257 = vpop.f32.mrf.mxu0
  %v6258 = vadd.f32 0.0, %v6257
  %v6259 = vpop.f32.mrf.mxu0
  %6260 = vmatprep.mubr.f32.mxu0 0.0
  %6261 = vmatmul.mubr.f32.gmra.mxu0 %v6186
  %v6262 = vpop.f32.mrf.mxu0
  %v6263 = vadd.f32 0.0, %v6262
  %v6264 = vpop.f32.mrf.mxu0
  %6265 = vdwg.mxu0
  %v6266 = vadd.f32 %v6180, %v6258
  %v6267 = vadd.f32 %v6181, %v6263
  %v6269 = vsel %vm3945, %v3842, 0
  %v6272 = vsel %vm3945, %v3843, 0
  %v6275 = vsel %vm2656, %v3931, 0
  %6277 = vmatprep.subr.mxu0 0.0
  %6278 = vmatpush1.msra.mxu0 0.0
  %6279 = vmatprep.subr.mxu0 0.0
  %6280 = vmatpush1.msra.mxu0 0.0
  %6281 = vmatprep.subr.mxu0 0.0
  %6282 = vmatpush1.msra.mxu0 0.0
  %6283 = vmatprep.subr.mxu0 0.0
  %6284 = vmatpush1.msra.mxu0 0.0
  %6285 = vmatprep.subr.mxu0 0.0
  %6286 = vmatpush1.msra.mxu0 0.0
  %6287 = vmatprep.subr.mxu0 0.0
  %6288 = vmatpush1.msra.mxu0 0.0
  %6289 = vmatprep.subr.mxu0 0.0
  %6290 = vmatpush1.msra.mxu0 0.0
  %6291 = vmatprep.subr.mxu0 0.0
  %6292 = vmatpush1.msra.mxu0 0.0
  %6293 = vmatprep.subr.mxu0 0.0
  %6294 = vmatpush1.msra.mxu0 0.0
  %6295 = vmatprep.subr.mxu0 0.0
  %6296 = vmatpush1.msra.mxu0 0.0
  %6297 = vmatprep.subr.mxu0 0.0
  %6298 = vmatpush1.msra.mxu0 0.0
  %6299 = vmatprep.subr.mxu0 0.0
  %6300 = vmatpush1.msra.mxu0 0.0
  %6301 = vmatprep.subr.mxu0 0.0
  %6302 = vmatpush1.msra.mxu0 0.0
  %6303 = vmatprep.subr.mxu0 0.0
  %6304 = vmatpush1.msra.mxu0 %v6275
  %6305 = vmatprep.subr.mxu0 0.0
  %6306 = vmatpush1.msra.mxu0 %v3930
  %6307 = vmatprep.subr.mxu0 0.0
  %6308 = vmatpush1.msra.mxu0 %v3929
  %6309 = vmatprep.subr.mxu0 0.0
  %6310 = vmatpush2.msra.mxu0 0.0
  %6311 = vmatprep.subr.mxu0 0.0
  %6312 = vmatpush2.msra.mxu0 0.0
  %6313 = vmatprep.subr.mxu0 0.0
  %6314 = vmatpush2.msra.mxu0 0.0
  %6315 = vmatprep.subr.mxu0 0.0
  %6316 = vmatpush2.msra.mxu0 0.0
  %6317 = vmatprep.subr.mxu0 0.0
  %6318 = vmatpush2.msra.mxu0 0.0
  %6319 = vmatprep.subr.mxu0 0.0
  %6320 = vmatpush2.msra.mxu0 0.0
  %6321 = vmatprep.subr.mxu0 0.0
  %6322 = vmatpush2.msra.mxu0 0.0
  %6323 = vmatprep.subr.mxu0 0.0
  %6324 = vmatpush2.msra.mxu0 0.0
  %6325 = vmatprep.subr.mxu0 0.0
  %6326 = vmatpush2.msra.mxu0 0.0
  %6327 = vmatprep.subr.mxu0 0.0
  %6328 = vmatpush2.msra.mxu0 0.0
  %6329 = vmatprep.subr.mxu0 0.0
  %6330 = vmatpush2.msra.mxu0 0.0
  %6331 = vmatprep.subr.mxu0 0.0
  %6332 = vmatpush2.msra.mxu0 0.0
  %6333 = vmatprep.subr.mxu0 0.0
  %6334 = vmatpush2.msra.mxu0 0.0
  %6335 = vmatprep.subr.mxu0 0.0
  %6336 = vmatpush2.msra.mxu0 0.0
  %6337 = vmatprep.subr.mxu0 0.0
  %6338 = vmatpush2.msra.mxu0 0.0
  %6339 = vmatprep.subr.mxu0 0.0
  %6340 = vmatpush2.msra.mxu0 0.0
  %6341 = vmatprep.mubr.f32.mxu0 0.0
  %6342 = vmatmul.mubr.f32.gmra.mxu0 %v6269
  %v6343 = vpop.f32.mrf.mxu0
  %v6344 = vadd.f32 0.0, %v6343
  %v6345 = vpop.f32.mrf.mxu0
  %6346 = vmatprep.mubr.f32.mxu0 0.0
  %6347 = vmatmul.mubr.f32.gmra.mxu0 %v6272
  %v6348 = vpop.f32.mrf.mxu0
  %v6349 = vadd.f32 0.0, %v6348
  %v6350 = vpop.f32.mrf.mxu0
  %6351 = vdwg.mxu0
  %v6352 = vadd.f32 %v6266, %v6344
  %v6353 = vadd.f32 %v6267, %v6349
  %v6355 = vsel %vm3945, %v3844, 0
  %v6358 = vsel %vm3945, %v3845, 0
  %v6361 = vsel %vm2656, %v3934, 0
  %6363 = vmatprep.subr.mxu0 0.0
  %6364 = vmatpush1.msra.mxu0 0.0
  %6365 = vmatprep.subr.mxu0 0.0
  %6366 = vmatpush1.msra.mxu0 0.0
  %6367 = vmatprep.subr.mxu0 0.0
  %6368 = vmatpush1.msra.mxu0 0.0
  %6369 = vmatprep.subr.mxu0 0.0
  %6370 = vmatpush1.msra.mxu0 0.0
  %6371 = vmatprep.subr.mxu0 0.0
  %6372 = vmatpush1.msra.mxu0 0.0
  %6373 = vmatprep.subr.mxu0 0.0
  %6374 = vmatpush1.msra.mxu0 0.0
  %6375 = vmatprep.subr.mxu0 0.0
  %6376 = vmatpush1.msra.mxu0 0.0
  %6377 = vmatprep.subr.mxu0 0.0
  %6378 = vmatpush1.msra.mxu0 0.0
  %6379 = vmatprep.subr.mxu0 0.0
  %6380 = vmatpush1.msra.mxu0 0.0
  %6381 = vmatprep.subr.mxu0 0.0
  %6382 = vmatpush1.msra.mxu0 0.0
  %6383 = vmatprep.subr.mxu0 0.0
  %6384 = vmatpush1.msra.mxu0 0.0
  %6385 = vmatprep.subr.mxu0 0.0
  %6386 = vmatpush1.msra.mxu0 0.0
  %6387 = vmatprep.subr.mxu0 0.0
  %6388 = vmatpush1.msra.mxu0 0.0
  %6389 = vmatprep.subr.mxu0 0.0
  %6390 = vmatpush1.msra.mxu0 %v6361
  %6391 = vmatprep.subr.mxu0 0.0
  %6392 = vmatpush1.msra.mxu0 %v3933
  %6393 = vmatprep.subr.mxu0 0.0
  %6394 = vmatpush1.msra.mxu0 %v3932
  %6395 = vmatprep.subr.mxu0 0.0
  %6396 = vmatpush2.msra.mxu0 0.0
  %6397 = vmatprep.subr.mxu0 0.0
  %6398 = vmatpush2.msra.mxu0 0.0
  %6399 = vmatprep.subr.mxu0 0.0
  %6400 = vmatpush2.msra.mxu0 0.0
  %6401 = vmatprep.subr.mxu0 0.0
  %6402 = vmatpush2.msra.mxu0 0.0
  %6403 = vmatprep.subr.mxu0 0.0
  %6404 = vmatpush2.msra.mxu0 0.0
  %6405 = vmatprep.subr.mxu0 0.0
  %6406 = vmatpush2.msra.mxu0 0.0
  %6407 = vmatprep.subr.mxu0 0.0
  %6408 = vmatpush2.msra.mxu0 0.0
  %6409 = vmatprep.subr.mxu0 0.0
  %6410 = vmatpush2.msra.mxu0 0.0
  %6411 = vmatprep.subr.mxu0 0.0
  %6412 = vmatpush2.msra.mxu0 0.0
  %6413 = vmatprep.subr.mxu0 0.0
  %6414 = vmatpush2.msra.mxu0 0.0
  %6415 = vmatprep.subr.mxu0 0.0
  %6416 = vmatpush2.msra.mxu0 0.0
  %6417 = vmatprep.subr.mxu0 0.0
  %6418 = vmatpush2.msra.mxu0 0.0
  %6419 = vmatprep.subr.mxu0 0.0
  %6420 = vmatpush2.msra.mxu0 0.0
  %6421 = vmatprep.subr.mxu0 0.0
  %6422 = vmatpush2.msra.mxu0 0.0
  %6423 = vmatprep.subr.mxu0 0.0
  %6424 = vmatpush2.msra.mxu0 0.0
  %6425 = vmatprep.subr.mxu0 0.0
  %6426 = vmatpush2.msra.mxu0 0.0
  %6427 = vmatprep.mubr.f32.mxu0 0.0
  %6428 = vmatmul.mubr.f32.gmra.mxu0 %v6355
  %v6429 = vpop.f32.mrf.mxu0
  %v6430 = vadd.f32 0.0, %v6429
  %v6431 = vpop.f32.mrf.mxu0
  %6432 = vmatprep.mubr.f32.mxu0 0.0
  %6433 = vmatmul.mubr.f32.gmra.mxu0 %v6358
  %v6434 = vpop.f32.mrf.mxu0
  %v6435 = vadd.f32 0.0, %v6434
  %v6436 = vpop.f32.mrf.mxu0
  %6437 = vdwg.mxu0
  %v6438 = vadd.f32 %v6352, %v6430
  %v6439 = vadd.f32 %v6353, %v6435
  %v6441 = vsel %vm3945, %v3846, 0
  %v6444 = vsel %vm3945, %v3847, 0
  %v6447 = vsel %vm2656, %v3937, 0
  %6449 = vmatprep.subr.mxu0 0.0
  %6450 = vmatpush1.msra.mxu0 0.0
  %6451 = vmatprep.subr.mxu0 0.0
  %6452 = vmatpush1.msra.mxu0 0.0
  %6453 = vmatprep.subr.mxu0 0.0
  %6454 = vmatpush1.msra.mxu0 0.0
  %6455 = vmatprep.subr.mxu0 0.0
  %6456 = vmatpush1.msra.mxu0 0.0
  %6457 = vmatprep.subr.mxu0 0.0
  %6458 = vmatpush1.msra.mxu0 0.0
  %6459 = vmatprep.subr.mxu0 0.0
  %6460 = vmatpush1.msra.mxu0 0.0
  %6461 = vmatprep.subr.mxu0 0.0
  %6462 = vmatpush1.msra.mxu0 0.0
  %6463 = vmatprep.subr.mxu0 0.0
  %6464 = vmatpush1.msra.mxu0 0.0
  %6465 = vmatprep.subr.mxu0 0.0
  %6466 = vmatpush1.msra.mxu0 0.0
  %6467 = vmatprep.subr.mxu0 0.0
  %6468 = vmatpush1.msra.mxu0 0.0
  %6469 = vmatprep.subr.mxu0 0.0
  %6470 = vmatpush1.msra.mxu0 0.0
  %6471 = vmatprep.subr.mxu0 0.0
  %6472 = vmatpush1.msra.mxu0 0.0
  %6473 = vmatprep.subr.mxu0 0.0
  %6474 = vmatpush1.msra.mxu0 0.0
  %6475 = vmatprep.subr.mxu0 0.0
  %6476 = vmatpush1.msra.mxu0 %v6447
  %6477 = vmatprep.subr.mxu0 0.0
  %6478 = vmatpush1.msra.mxu0 %v3936
  %6479 = vmatprep.subr.mxu0 0.0
  %6480 = vmatpush1.msra.mxu0 %v3935
  %6481 = vmatprep.subr.mxu0 0.0
  %6482 = vmatpush2.msra.mxu0 0.0
  %6483 = vmatprep.subr.mxu0 0.0
  %6484 = vmatpush2.msra.mxu0 0.0
  %6485 = vmatprep.subr.mxu0 0.0
  %6486 = vmatpush2.msra.mxu0 0.0
  %6487 = vmatprep.subr.mxu0 0.0
  %6488 = vmatpush2.msra.mxu0 0.0
  %6489 = vmatprep.subr.mxu0 0.0
  %6490 = vmatpush2.msra.mxu0 0.0
  %6491 = vmatprep.subr.mxu0 0.0
  %6492 = vmatpush2.msra.mxu0 0.0
  %6493 = vmatprep.subr.mxu0 0.0
  %6494 = vmatpush2.msra.mxu0 0.0
  %6495 = vmatprep.subr.mxu0 0.0
  %6496 = vmatpush2.msra.mxu0 0.0
  %6497 = vmatprep.subr.mxu0 0.0
  %6498 = vmatpush2.msra.mxu0 0.0
  %6499 = vmatprep.subr.mxu0 0.0
  %6500 = vmatpush2.msra.mxu0 0.0
  %6501 = vmatprep.subr.mxu0 0.0
  %6502 = vmatpush2.msra.mxu0 0.0
  %6503 = vmatprep.subr.mxu0 0.0
  %6504 = vmatpush2.msra.mxu0 0.0
  %6505 = vmatprep.subr.mxu0 0.0
  %6506 = vmatpush2.msra.mxu0 0.0
  %6507 = vmatprep.subr.mxu0 0.0
  %6508 = vmatpush2.msra.mxu0 0.0
  %6509 = vmatprep.subr.mxu0 0.0
  %6510 = vmatpush2.msra.mxu0 0.0
  %6511 = vmatprep.subr.mxu0 0.0
  %6512 = vmatpush2.msra.mxu0 0.0
  %6513 = vmatprep.mubr.f32.mxu0 0.0
  %6514 = vmatmul.mubr.f32.gmra.mxu0 %v6441
  %v6515 = vpop.f32.mrf.mxu0
  %v6516 = vadd.f32 0.0, %v6515
  %v6517 = vpop.f32.mrf.mxu0
  %6518 = vmatprep.mubr.f32.mxu0 0.0
  %6519 = vmatmul.mubr.f32.gmra.mxu0 %v6444
  %v6520 = vpop.f32.mrf.mxu0
  %v6521 = vadd.f32 0.0, %v6520
  %v6522 = vpop.f32.mrf.mxu0
  %6523 = vdwg.mxu0
  %v6524 = vadd.f32 %v6438, %v6516
  %v6525 = vadd.f32 %v6439, %v6521
  %v6526 = vtanh.pop %v6524
  %v6527 = vtanh.pop %v6525
  %v6528 = vld [vmem:[%s13] sm:$0xff]
  %v6529 = vld [vmem:[%s13 + $0x8] sm:$0xff]
  %v6530 = vld [vmem:[%s13 + $0x10] sm:$0xff]
  %v6531 = vld [vmem:[%s13 + $0x18] sm:$0xff]
  %v6532 = vld [vmem:[%s13 + $0x20] sm:$0xff]
  %v6533 = vld [vmem:[%s13 + $0x28] sm:$0xff]
  %v6534 = vld [vmem:[%s13 + $0x30] sm:$0xff]
  %v6535 = vld [vmem:[%s13 + $0x38] sm:$0xff]
  %v6536 = vld [vmem:[%s13 + $0x40] sm:$0xff]
  %v6537 = vld [vmem:[%s13 + $0x48] sm:$0xff]
  %v6538 = vld [vmem:[%s13 + $0x50] sm:$0xff]
  %v6539 = vld [vmem:[%s13 + $0x58] sm:$0xff]
  %v6540 = vld [vmem:[%s13 + $0x60] sm:$0xff]
  %v6541 = vld [vmem:[%s13 + $0x68] sm:$0xff]
  %v6542 = vld [vmem:[%s13 + $0x70] sm:$0xff]
  %v6543 = vld [vmem:[%s13 + $0x78] sm:$0xff]
  %v6544 = vld [vmem:[%s14] sm:$0x1]
  %v6546 = vlaneseq
  %v6547 = vshrl.u32 %v6546, 7
  %v6548 = vsub.s32 0, %v6547
  %v6549 = vrot.slane %v6544, %v6548
  %6551 = vmatprep.subr.mxu0 0.0
  %6552 = vmatpush1.msra.mxu0 %v6543
  %6553 = vmatprep.subr.mxu0 0.0
  %6554 = vmatpush1.msra.mxu0 %v6542
  %6555 = vmatprep.subr.mxu0 0.0
  %6556 = vmatpush1.msra.mxu0 %v6541
  %6557 = vmatprep.subr.mxu0 0.0
  %6558 = vmatpush1.msra.mxu0 %v6540
  %6559 = vmatprep.subr.mxu0 0.0
  %6560 = vmatpush1.msra.mxu0 %v6539
  %6561 = vmatprep.subr.mxu0 0.0
  %6562 = vmatpush1.msra.mxu0 %v6538
  %6563 = vmatprep.subr.mxu0 0.0
  %6564 = vmatpush1.msra.mxu0 %v6537
  %6565 = vmatprep.subr.mxu0 0.0
  %6566 = vmatpush1.msra.mxu0 %v6536
  %6567 = vmatprep.subr.mxu0 0.0
  %6568 = vmatpush1.msra.mxu0 %v6535
  %6569 = vmatprep.subr.mxu0 0.0
  %6570 = vmatpush1.msra.mxu0 %v6534
  %6571 = vmatprep.subr.mxu0 0.0
  %6572 = vmatpush1.msra.mxu0 %v6533
  %6573 = vmatprep.subr.mxu0 0.0
  %6574 = vmatpush1.msra.mxu0 %v6532
  %6575 = vmatprep.subr.mxu0 0.0
  %6576 = vmatpush1.msra.mxu0 %v6531
  %6577 = vmatprep.subr.mxu0 0.0
  %6578 = vmatpush1.msra.mxu0 %v6530
  %6579 = vmatprep.subr.mxu0 0.0
  %6580 = vmatpush1.msra.mxu0 %v6529
  %6581 = vmatprep.subr.mxu0 0.0
  %6582 = vmatpush1.msra.mxu0 %v6528
  %6583 = vmatprep.subr.mxu0 0.0
  %6584 = vmatpush2.msra.mxu0 0.0
  %6585 = vmatprep.subr.mxu0 0.0
  %6586 = vmatpush2.msra.mxu0 0.0
  %6587 = vmatprep.subr.mxu0 0.0
  %6588 = vmatpush2.msra.mxu0 0.0
  %6589 = vmatprep.subr.mxu0 0.0
  %6590 = vmatpush2.msra.mxu0 0.0
  %6591 = vmatprep.subr.mxu0 0.0
  %6592 = vmatpush2.msra.mxu0 0.0
  %6593 = vmatprep.subr.mxu0 0.0
  %6594 = vmatpush2.msra.mxu0 0.0
  %6595 = vmatprep.subr.mxu0 0.0
  %6596 = vmatpush2.msra.mxu0 0.0
  %6597 = vmatprep.subr.mxu0 0.0
  %6598 = vmatpush2.msra.mxu0 0.0
  %6599 = vmatprep.subr.mxu0 0.0
  %6600 = vmatpush2.msra.mxu0 0.0
  %6601 = vmatprep.subr.mxu0 0.0
  %6602 = vmatpush2.msra.mxu0 0.0
  %6603 = vmatprep.subr.mxu0 0.0
  %6604 = vmatpush2.msra.mxu0 0.0
  %6605 = vmatprep.subr.mxu0 0.0
  %6606 = vmatpush2.msra.mxu0 0.0
  %6607 = vmatprep.subr.mxu0 0.0
  %6608 = vmatpush2.msra.mxu0 0.0
  %6609 = vmatprep.subr.mxu0 0.0
  %6610 = vmatpush2.msra.mxu0 0.0
  %6611 = vmatprep.subr.mxu0 0.0
  %6612 = vmatpush2.msra.mxu0 0.0
  %6613 = vmatprep.subr.mxu0 0.0
  %6614 = vmatpush2.msra.mxu0 0.0
  %6615 = vmatprep.mubr.f32.mxu0 0.0
  %6616 = vmatmul.mubr.f32.gmra.mxu0 %v6526
  %v6617 = vpop.f32.mrf.mxu0
  %v6618 = vadd.f32 %v6549, %v6617
  %v6619 = vpop.f32.mrf.mxu0
  %6620 = vmatprep.mubr.f32.mxu0 0.0
  %6621 = vmatmul.mubr.f32.gmra.mxu0 %v6527
  %v6622 = vpop.f32.mrf.mxu0
  %v6623 = vadd.f32 %v6549, %v6622
  %v6624 = vpop.f32.mrf.mxu0
  %6625 = vdwg.mxu0
  %6626 = vst [vmem:[%s15] sm:$0xff] %v6618
  %6627 = vst [vmem:[%s15 + $0x8] sm:$0xff] %v6623
  // Predicated region
  $region62: #{_lambda_.1} parent=0 // pred_check
    _
  $region63: #{_lambda_.1} parent=0 // pred_check_branch
    %6629 = sbr.rel (0) target = $region65
  $region64: #{_lambda_.1} parent=0 // pred_region
    _
  $region65: #{_lambda_.1} parent=0 // pred_fallthru
    _
  // Predicated region
  $region66: #{_lambda_.1} parent=0 // pred_check
    _
  $region67: #{_lambda_.1} parent=0 // pred_check_branch
    %6631 = sbr.rel (0) target = $region69
  $region68: #{_lambda_.1} parent=0 // pred_region
    _
  $region69: #{_lambda_.1} parent=0 // pred_fallthru
    _

</llo_original>
